<compile_context>
chip_gen: v5e
topology: v5e:2x2
jax: 0.10.0
libtpu: 0.0.40
codegen_flags: <defaults>
</compile_context>

<pallas_src>
import functools
import math

import jax
import jax.numpy as jnp
import numpy as np
from jax import lax
from jax.experimental import pallas as pl
from jax.experimental.pallas import tpu as pltpu

GATE_PAD = 128   # lane width of one gate block [r | z | n]: slices stay lane-aligned
SUBLANE = 8      # f32 sublane group: batch rows padded to a multiple of this


def _round_up(x, m):
    return ((x + m - 1) // m) * m


def _sigmoid(x):
    # One EUP transcendental per gate (instead of a possible exp + divide lowering).
    return 0.5 * (jnp.tanh(0.5 * x) + 1.0)


# ------------------------------- fused kernel --------------------------------
def _fused_gru_kernel(x_ref, wih_ref, whh_ref, bgi_ref, bhn_ref, o_ref,
                      *, T, Bp, L, P, R, Eb):
    """One grid step = `Eb` encoders (all layers, all time steps, wavefronted).

    x_ref   : (Eb, T*Bp, R)    padded input sequences, time-major (rows t*Bp..)
    wih_ref : (Eb, L, R, 3P)   input weights, gate-major 128-lane blocks [r|z|n]
    whh_ref : (Eb, L, R, 3P)   hidden weights (rows padded only to R, not 128)
    bgi_ref : (Eb, L, 1, 3P)   b_ih (all gates) + folded b_hh[r], b_hh[z]
    bhn_ref : (Eb, L, 1, P)    b_hh[n] (must stay inside r*(W_hn h + b_hn))
    o_ref   : (Eb, Bp, P)      final hidden state of the last layer (lane-dense)
    """
    f32 = jnp.float32
    for e in range(Eb):                                   # static: Eb is 1 or E
        # ---- hoisted work (off the serial recurrence chain) -----------------
        # Layer-0 input projection for all T steps in one matmul, biases folded.
        gi0 = (jnp.dot(x_ref[e].astype(f32), wih_ref[e, 0],
                       preferred_element_type=f32)
               + bgi_ref[e, 0])                           # (T*Bp, 3P)
        # Per-layer bias broadcasts hoisted once (JAX does not CSE broadcast_in_dim).
        bgi_b = [None] + [jnp.broadcast_to(bgi_ref[e, l], (Bp, 3 * P))
                          for l in range(1, L)]
        bhn_b = [jnp.broadcast_to(bhn_ref[e, l], (Bp, P)) for l in range(L)]

        # ---- wavefront over (time, layer) ------------------------------------
        # At wavefront step s, layer l processes time t = s - l.  Serial chain
        # length drops from L*T to T+L-1; different layers' matmuls within one
        # wavefront step are independent and overlap on the MXU/EUP.
        h = [jnp.zeros((Bp, P), f32) for _ in range(L)]
        for s in range(T + L - 1):                        # static unroll (tiny)
            for l in range(L - 1, -1, -1):                # descending: read h[l-1]
                t = s - l                                 # before it is overwritten
                if not (0 <= t < T):
                    continue
                if l == 0:
                    gi = gi0[t * Bp:(t + 1) * Bp, :]      # sublane-aligned (Bp, 3P) slab
                else:
                    gi = (jnp.dot(h[l - 1][:, :R], wih_ref[e, l],
                                  preferred_element_type=f32) + bgi_b[l])
                gh = jnp.dot(h[l][:, :R], whh_ref[e, l],
                             preferred_element_type=f32)  # (Bp, 3P)
                # Gate boundaries at multiples of P=128 -> lane-aligned slices.
                r = _sigmoid(gi[:, 0:P] + gh[:, 0:P])
                z = _sigmoid(gi[:, P:2 * P] + gh[:, P:2 * P])
                n = jnp.tanh(gi[:, 2 * P:3 * P] + r * (gh[:, 2 * P:3 * P] + bhn_b[l]))
                h[l] = (1.0 - z) * n + z * h[l]
        # uni_rnn_encoder only consumes output[:, -1]; emit just the last h.
        o_ref[e] = h[L - 1].astype(o_ref.dtype)


# -------------------------- parameter init & packing --------------------------
def init_gru_params(key, input_dim, hidden_dim, num_layers):
    """Uniform(-1/sqrt(H), 1/sqrt(H)) init, PyTorch nn.GRU shapes, gate order [r,z,n]."""
    params = []
    bound = 1.0 / math.sqrt(hidden_dim)
    for layer in range(num_layers):
        d_in = input_dim if layer == 0 else hidden_dim
        key, k0, k1, k2, k3 = jax.random.split(key, 5)
        w_ih = jax.random.uniform(k0, (3 * hidden_dim, d_in), jnp.float32, -bound, bound)
        w_hh = jax.random.uniform(k1, (3 * hidden_dim, hidden_dim), jnp.float32, -bound, bound)
        b_ih = jax.random.uniform(k2, (3 * hidden_dim,), jnp.float32, -bound, bound)
        b_hh = jax.random.uniform(k3, (3 * hidden_dim,), jnp.float32, -bound, bound)
        params.append((w_ih, w_hh, b_ih, b_hh))
    return params


def pack_multi_gru_params(raw_params, hidden_dim, input_dims, gate_pad=GATE_PAD):
    """Pack all encoders' GRU weights into compact, kernel-ready arrays (once, at init).

    Per encoder / layer:
      wih : (R, 3P)  pre-transposed, gate-major 128-lane column blocks [r|z|n]
      whh : (R, 3P)
      bgi : (1, 3P)  b_ih (all gates) + b_hh[r], b_hh[z] folded in
      bhn : (1, P)   b_hh[n]
    Rows are padded only to R = round_up(max(H, max d_in), 8) -> ~4x less weight DMA
    than a fully 128-row-padded layout.  All padding is zero, so padded hidden lanes
    stay exactly 0 through the recurrence.
    """
    H = hidden_dim
    P = gate_pad
    assert H <= P, "hidden_dim must fit in one 128-lane gate block"
    R = _round_up(max([H] + list(input_dims)), SUBLANE)
    wih_all, whh_all, bgi_all, bhn_all = [], [], [], []
    for enc in raw_params:
        wih_l, whh_l, bgi_l, bhn_l = [], [], [], []
        for (w_ih, w_hh, b_ih, b_hh) in enc:
            w_ih = np.asarray(w_ih); w_hh = np.asarray(w_hh)
            b_ih = np.asarray(b_ih); b_hh = np.asarray(b_hh)
            d_in = w_ih.shape[1]
            wih_p = np.zeros((R, 3 * P), np.float32)
            whh_p = np.zeros((R, 3 * P), np.float32)
            bgi_p = np.zeros((1, 3 * P), np.float32)
            bhn_p = np.zeros((1, P), np.float32)
            for g in range(3):
                wih_p[:d_in, g * P:g * P + H] = w_ih[g * H:(g + 1) * H, :].T
                whh_p[:H, g * P:g * P + H] = w_hh[g * H:(g + 1) * H, :].T
                bgi_p[0, g * P:g * P + H] = b_ih[g * H:(g + 1) * H]
            bgi_p[0, 0:H] += b_hh[0:H]             # fold b_hh[r]
            bgi_p[0, P:P + H] += b_hh[H:2 * H]     # fold b_hh[z]
            bhn_p[0, :H] = b_hh[2 * H:3 * H]       # b_hh[n] stays separate
            wih_l.append(wih_p); whh_l.append(whh_p)
            bgi_l.append(bgi_p); bhn_l.append(bhn_p)
        wih_all.append(np.stack(wih_l)); whh_all.append(np.stack(whh_l))
        bgi_all.append(np.stack(bgi_l)); bhn_all.append(np.stack(bhn_l))
    return (jnp.asarray(np.stack(wih_all)), jnp.asarray(np.stack(whh_all)),
            jnp.asarray(np.stack(bgi_all)), jnp.asarray(np.stack(bhn_all)))


def _pack_inputs(inputs, feat_pad, batch_pad):
    """list of (B, T, Din_e) -> (E, T*batch_pad, feat_pad), time-major, zero-padded."""
    xs = []
    for x in inputs:
        B, T, D = x.shape
        xt = jnp.transpose(x, (1, 0, 2))                                  # (T, B, D)
        xt = jnp.pad(xt, ((0, 0), (0, batch_pad - B), (0, feat_pad - D)))  # (T, Bp, R)
        xs.append(xt.reshape(T * batch_pad, feat_pad))
    return jnp.stack(xs)                                                  # (E, T*Bp, R)


# ------------------------------ fused forward ---------------------------------
def _tensorcores_per_chip():
    """Best-effort TensorCore count: v7x has 2 TCs per chip, v5e/v6e have 1."""
    try:
        kind = jax.devices()[0].device_kind.lower()
    except Exception:
        return 1
    return 2 if "7" in kind else 1


@functools.partial(jax.jit, static_argnames=("encoders_per_block", "batch_pad"))
def _fused_forward(x, wih, whh, bgi, bhn, *, encoders_per_block, batch_pad):
    E, L, R, threeP = wih.shape
    P = threeP // 3
    Bp = batch_pad
    T = x.shape[1] // Bp
    Eb = encoders_per_block
    kernel = functools.partial(_fused_gru_kernel, T=T, Bp=Bp, L=L, P=P, R=R, Eb=Eb)
    return pl.pallas_call(
        kernel,
        out_shape=jax.ShapeDtypeStruct((E, Bp, P), jnp.float32),
        grid=(E // Eb,),
        in_specs=[
            pl.BlockSpec((Eb, T * Bp, R), lambda g: (g, 0, 0)),
            pl.BlockSpec((Eb, L, R, threeP), lambda g: (g, 0, 0, 0)),
            pl.BlockSpec((Eb, L, R, threeP), lambda g: (g, 0, 0, 0)),
            pl.BlockSpec((Eb, L, 1, threeP), lambda g: (g, 0, 0, 0)),
            pl.BlockSpec((Eb, L, 1, P), lambda g: (g, 0, 0, 0)),
        ],
        out_specs=pl.BlockSpec((Eb, Bp, P), lambda g: (g, 0, 0)),
        compiler_params=pltpu.CompilerParams(
            # Encoders are fully independent -> safe to shard across TensorCores.
            dimension_semantics=("parallel",),
        ),
    )(x, wih, whh, bgi, bhn)


def multi_rnn_encoder_forward(inputs, packed_params, hidden_dim):
    """inputs: tuple of (B, T, Din_e) arrays; returns tuple of (B, hidden_dim) arrays."""
    wih, whh, bgi, bhn = packed_params
    E, L, R, _ = wih.shape
    B, T, _ = inputs[0].shape
    Bp = _round_up(max(B, SUBLANE), SUBLANE)          # batch rows -> full sublane groups
    x = _pack_inputs(inputs, feat_pad=R, batch_pad=Bp)
    # Single-TC (v5e/v6e): fold all encoders into one body -> the scheduler
    # interleaves their independent recurrences and we pay one grid step.
    # Dual-TC (v7x): keep grid=(E,) "parallel" -> one encoder per TensorCore.
    Eb = 1 if (_tensorcores_per_chip() >= 2 and E > 1) else E
    out = _fused_forward(x, wih, whh, bgi, bhn,
                         encoders_per_block=Eb, batch_pad=Bp)
    out = out[:, :B, :hidden_dim]                     # drop batch / lane padding
    return tuple(out[e] for e in range(E))


# ----------------------------- pure-JAX reference -----------------------------
def gru_layer_ref(x_tbd, w_ih, w_hh, b_ih, b_hh):
    H = w_hh.shape[1]
    B = x_tbd.shape[1]
    hp = lax.Precision.HIGHEST

    def step(h, x):
        gi = jnp.dot(x, w_ih.T, precision=hp) + b_ih
        gh = jnp.dot(h, w_hh.T, precision=hp) + b_hh
        r = jax.nn.sigmoid(gi[:, :H] + gh[:, :H])
        z = jax.nn.sigmoid(gi[:, H:2 * H] + gh[:, H:2 * H])
        n = jnp.tanh(gi[:, 2 * H:] + r * gh[:, 2 * H:])
        h_new = (1.0 - z) * n + z * h
        return h_new, h_new

    h0 = jnp.zeros((B, H), jnp.float32)
    _, seq = lax.scan(step, h0, x_tbd)
    return seq


def uni_ref(x_btd, gru_params):
    out = jnp.transpose(x_btd, (1, 0, 2))
    for (w_ih, w_hh, b_ih, b_hh) in gru_params:
        out = gru_layer_ref(out, w_ih, w_hh, b_ih, b_hh)
    return out[-1]


# ------------------------------------ main ------------------------------------
if __name__ == "__main__":
    # multi_rnn_encoder(input_dim=[4, 6], hidden_dim=32, dropout=0.0,
    #                   rnn_type='gru', rnn_layers=2) -> enc_in=None, enc_att=False
    input_dims = [4, 6]
    hidden_dim = 32
    rnn_layers = 2
    batch, seq = 2, 8

    key = jax.random.PRNGKey(0)
    key, *pkeys = jax.random.split(key, len(input_dims) + 1)
    raw_params = [init_gru_params(pk, d, hidden_dim, rnn_layers)
                  for pk, d in zip(pkeys, input_dims)]

    # Pre-transpose / fold biases / compact-pad / stack weights ONCE at init time.
    packed = pack_multi_gru_params(raw_params, hidden_dim, input_dims)

    inputs = []
    for d in input_dims:
        key, sk = jax.random.split(key)
        inputs.append(jax.random.normal(sk, (batch, seq, d), jnp.float32))

    outputs = multi_rnn_encoder_forward(tuple(inputs), packed, hidden_dim)
    outputs = jax.block_until_ready(outputs)

    # sanity check against the pure-JAX GRU reference
    for x, p, o in zip(inputs, raw_params, outputs):
        assert o.shape == (batch, hidden_dim)
        ref = jax.block_until_ready(uni_ref(x, p))
        np.testing.assert_allclose(np.asarray(o), np.asarray(ref), rtol=1e-3, atol=1e-3)

    print("KERNEL_OK")
</pallas_src>

<mosaic_0001>
module attributes {stable_mosaic.version = 11 : i64} {
  func.func @_fused_gru_kernel(%arg0: i32, %arg1: memref<2x64x32xf32, #tpu.memory_space<vmem>>, %arg2: memref<2x2x32x384xf32, #tpu.memory_space<vmem>>, %arg3: memref<2x2x32x384xf32, #tpu.memory_space<vmem>>, %arg4: memref<2x2x1x384xf32, #tpu.memory_space<vmem>>, %arg5: memref<2x2x1x128xf32, #tpu.memory_space<vmem>>, %arg6: memref<2x8x128xf32, #tpu.memory_space<vmem>>) attributes {dimension_semantics = [#tpu.dimension_semantics<parallel>], iteration_bounds = array<i64: 1>, scalar_prefetch = 0 : i64, scratch_operands = 0 : i64, tpu.core_type = #tpu.core_type<tc>, window_params = [{transform_indices = @transform_0, window_bounds = array<i64: 2, 64, 32>}, {transform_indices = @transform_1, window_bounds = array<i64: 2, 2, 32, 384>}, {transform_indices = @transform_2, window_bounds = array<i64: 2, 2, 32, 384>}, {transform_indices = @transform_3, window_bounds = array<i64: 2, 2, 1, 384>}, {transform_indices = @transform_4, window_bounds = array<i64: 2, 2, 1, 128>}, {transform_indices = @transform_5, window_bounds = array<i64: 2, 8, 128>}]} {
    %c0 = arith.constant 0 : index
    %c0_0 = arith.constant 0 : index
    %c0_1 = arith.constant 0 : index
    %0 = vector.load %arg1[%c0, %c0_0, %c0_1] : memref<2x64x32xf32, #tpu.memory_space<vmem>>, vector<1x64x32xf32>
    %1 = vector.shape_cast %0 : vector<1x64x32xf32> to vector<64x32xf32>
    %c0_2 = arith.constant 0 : index
    %c0_3 = arith.constant 0 : index
    %c0_4 = arith.constant 0 : index
    %c0_5 = arith.constant 0 : index
    %2 = vector.load %arg2[%c0_2, %c0_3, %c0_4, %c0_5] : memref<2x2x32x384xf32, #tpu.memory_space<vmem>>, vector<1x1x32x384xf32>
    %3 = vector.shape_cast %2 : vector<1x1x32x384xf32> to vector<32x384xf32>
    %cst = arith.constant dense<0.000000e+00> : vector<64x384xf32>
    %4 = tpu.matmul %1, %3, %cst {dimension_numbers = #tpu.dot_dimension_numbers<[1], [0], [0], [1], [0, 0, 1, 1], [], []>} : vector<64x32xf32>, vector<32x384xf32>, vector<64x384xf32> -> vector<64x384xf32>
    %c0_6 = arith.constant 0 : index
    %c0_7 = arith.constant 0 : index
    %c0_8 = arith.constant 0 : index
    %c0_9 = arith.constant 0 : index
    %5 = vector.load %arg4[%c0_6, %c0_7, %c0_8, %c0_9] : memref<2x2x1x384xf32, #tpu.memory_space<vmem>>, vector<1x1x1x384xf32>
    %6 = vector.shape_cast %5 : vector<1x1x1x384xf32> to vector<1x384xf32>
    %7 = vector.broadcast %6 : vector<1x384xf32> to vector<64x384xf32>
    %8 = arith.addf %4, %7 : vector<64x384xf32>
    %c0_10 = arith.constant 0 : index
    %c1 = arith.constant 1 : index
    %c0_11 = arith.constant 0 : index
    %c0_12 = arith.constant 0 : index
    %9 = vector.load %arg4[%c0_10, %c1, %c0_11, %c0_12] : memref<2x2x1x384xf32, #tpu.memory_space<vmem>>, vector<1x1x1x384xf32>
    %10 = vector.shape_cast %9 : vector<1x1x1x384xf32> to vector<1x384xf32>
    %11 = vector.shape_cast %10 : vector<1x384xf32> to vector<1x384xf32>
    %12 = vector.broadcast %11 : vector<1x384xf32> to vector<8x384xf32>
    %c0_13 = arith.constant 0 : index
    %c0_14 = arith.constant 0 : index
    %c0_15 = arith.constant 0 : index
    %c0_16 = arith.constant 0 : index
    %13 = vector.load %arg5[%c0_13, %c0_14, %c0_15, %c0_16] : memref<2x2x1x128xf32, #tpu.memory_space<vmem>>, vector<1x1x1x128xf32>
    %14 = vector.shape_cast %13 : vector<1x1x1x128xf32> to vector<1x128xf32>
    %15 = vector.shape_cast %14 : vector<1x128xf32> to vector<1x128xf32>
    %16 = vector.broadcast %15 : vector<1x128xf32> to vector<8x128xf32>
    %c0_17 = arith.constant 0 : index
    %c1_18 = arith.constant 1 : index
    %c0_19 = arith.constant 0 : index
    %c0_20 = arith.constant 0 : index
    %17 = vector.load %arg5[%c0_17, %c1_18, %c0_19, %c0_20] : memref<2x2x1x128xf32, #tpu.memory_space<vmem>>, vector<1x1x1x128xf32>
    %18 = vector.shape_cast %17 : vector<1x1x1x128xf32> to vector<1x128xf32>
    %19 = vector.shape_cast %18 : vector<1x128xf32> to vector<1x128xf32>
    %20 = vector.broadcast %19 : vector<1x128xf32> to vector<8x128xf32>
    %cst_21 = arith.constant 0.000000e+00 : f32
    %21 = vector.broadcast %cst_21 : f32 to vector<8x128xf32>
    %cst_22 = arith.constant 0.000000e+00 : f32
    %22 = vector.broadcast %cst_22 : f32 to vector<8x128xf32>
    %23 = vector.extract_strided_slice %8 {offsets = [0, 0], sizes = [8, 384], strides = [1, 1]} : vector<64x384xf32> to vector<8x384xf32>
    %24 = vector.extract_strided_slice %21 {offsets = [0, 0], sizes = [8, 32], strides = [1, 1]} : vector<8x128xf32> to vector<8x32xf32>
    %c0_23 = arith.constant 0 : index
    %c0_24 = arith.constant 0 : index
    %c0_25 = arith.constant 0 : index
    %c0_26 = arith.constant 0 : index
    %25 = vector.load %arg3[%c0_23, %c0_24, %c0_25, %c0_26] : memref<2x2x32x384xf32, #tpu.memory_space<vmem>>, vector<1x1x32x384xf32>
    %26 = vector.shape_cast %25 : vector<1x1x32x384xf32> to vector<32x384xf32>
    %cst_27 = arith.constant dense<0.000000e+00> : vector<8x384xf32>
    %27 = tpu.matmul %24, %26, %cst_27 {dimension_numbers = #tpu.dot_dimension_numbers<[1], [0], [0], [1], [0, 0, 1, 1], [], []>} : vector<8x32xf32>, vector<32x384xf32>, vector<8x384xf32> -> vector<8x384xf32>
    %28 = vector.extract_strided_slice %23 {offsets = [0, 0], sizes = [8, 128], strides = [1, 1]} : vector<8x384xf32> to vector<8x128xf32>
    %29 = vector.extract_strided_slice %27 {offsets = [0, 0], sizes = [8, 128], strides = [1, 1]} : vector<8x384xf32> to vector<8x128xf32>
    %30 = arith.addf %28, %29 : vector<8x128xf32>
    %cst_28 = arith.constant 5.000000e-01 : f32
    %31 = vector.broadcast %cst_28 : f32 to vector<8x128xf32>
    %32 = arith.mulf %31, %30 : vector<8x128xf32>
    %33 = math.tanh %32 : vector<8x128xf32>
    %cst_29 = arith.constant 1.000000e+00 : f32
    %34 = vector.broadcast %cst_29 : f32 to vector<8x128xf32>
    %35 = arith.addf %33, %34 : vector<8x128xf32>
    %cst_30 = arith.constant 5.000000e-01 : f32
    %36 = vector.broadcast %cst_30 : f32 to vector<8x128xf32>
    %37 = arith.mulf %36, %35 : vector<8x128xf32>
    %38 = vector.extract_strided_slice %23 {offsets = [0, 128], sizes = [8, 128], strides = [1, 1]} : vector<8x384xf32> to vector<8x128xf32>
    %39 = vector.extract_strided_slice %27 {offsets = [0, 128], sizes = [8, 128], strides = [1, 1]} : vector<8x384xf32> to vector<8x128xf32>
    %40 = arith.addf %38, %39 : vector<8x128xf32>
    %cst_31 = arith.constant 5.000000e-01 : f32
    %41 = vector.broadcast %cst_31 : f32 to vector<8x128xf32>
    %42 = arith.mulf %41, %40 : vector<8x128xf32>
    %43 = math.tanh %42 : vector<8x128xf32>
    %cst_32 = arith.constant 1.000000e+00 : f32
    %44 = vector.broadcast %cst_32 : f32 to vector<8x128xf32>
    %45 = arith.addf %43, %44 : vector<8x128xf32>
    %cst_33 = arith.constant 5.000000e-01 : f32
    %46 = vector.broadcast %cst_33 : f32 to vector<8x128xf32>
    %47 = arith.mulf %46, %45 : vector<8x128xf32>
    %48 = vector.extract_strided_slice %23 {offsets = [0, 256], sizes = [8, 128], strides = [1, 1]} : vector<8x384xf32> to vector<8x128xf32>
    %49 = vector.extract_strided_slice %27 {offsets = [0, 256], sizes = [8, 128], strides = [1, 1]} : vector<8x384xf32> to vector<8x128xf32>
    %50 = arith.addf %49, %16 : vector<8x128xf32>
    %51 = arith.mulf %37, %50 : vector<8x128xf32>
    %52 = arith.addf %48, %51 : vector<8x128xf32>
    %53 = math.tanh %52 : vector<8x128xf32>
    %cst_34 = arith.constant 1.000000e+00 : f32
    %54 = vector.broadcast %cst_34 : f32 to vector<8x128xf32>
    %55 = arith.subf %54, %47 : vector<8x128xf32>
    %56 = arith.mulf %55, %53 : vector<8x128xf32>
    %57 = arith.mulf %47, %21 : vector<8x128xf32>
    %58 = arith.addf %56, %57 : vector<8x128xf32>
    %59 = vector.extract_strided_slice %58 {offsets = [0, 0], sizes = [8, 32], strides = [1, 1]} : vector<8x128xf32> to vector<8x32xf32>
    %c0_35 = arith.constant 0 : index
    %c1_36 = arith.constant 1 : index
    %c0_37 = arith.constant 0 : index
    %c0_38 = arith.constant 0 : index
    %60 = vector.load %arg2[%c0_35, %c1_36, %c0_37, %c0_38] : memref<2x2x32x384xf32, #tpu.memory_space<vmem>>, vector<1x1x32x384xf32>
    %61 = vector.shape_cast %60 : vector<1x1x32x384xf32> to vector<32x384xf32>
    %cst_39 = arith.constant dense<0.000000e+00> : vector<8x384xf32>
    %62 = tpu.matmul %59, %61, %cst_39 {dimension_numbers = #tpu.dot_dimension_numbers<[1], [0], [0], [1], [0, 0, 1, 1], [], []>} : vector<8x32xf32>, vector<32x384xf32>, vector<8x384xf32> -> vector<8x384xf32>
    %63 = arith.addf %62, %12 : vector<8x384xf32>
    %64 = vector.extract_strided_slice %22 {offsets = [0, 0], sizes = [8, 32], strides = [1, 1]} : vector<8x128xf32> to vector<8x32xf32>
    %c0_40 = arith.constant 0 : index
    %c1_41 = arith.constant 1 : index
    %c0_42 = arith.constant 0 : index
    %c0_43 = arith.constant 0 : index
    %65 = vector.load %arg3[%c0_40, %c1_41, %c0_42, %c0_43] : memref<2x2x32x384xf32, #tpu.memory_space<vmem>>, vector<1x1x32x384xf32>
    %66 = vector.shape_cast %65 : vector<1x1x32x384xf32> to vector<32x384xf32>
    %cst_44 = arith.constant dense<0.000000e+00> : vector<8x384xf32>
    %67 = tpu.matmul %64, %66, %cst_44 {dimension_numbers = #tpu.dot_dimension_numbers<[1], [0], [0], [1], [0, 0, 1, 1], [], []>} : vector<8x32xf32>, vector<32x384xf32>, vector<8x384xf32> -> vector<8x384xf32>
    %68 = vector.extract_strided_slice %63 {offsets = [0, 0], sizes = [8, 128], strides = [1, 1]} : vector<8x384xf32> to vector<8x128xf32>
    %69 = vector.extract_strided_slice %67 {offsets = [0, 0], sizes = [8, 128], strides = [1, 1]} : vector<8x384xf32> to vector<8x128xf32>
    %70 = arith.addf %68, %69 : vector<8x128xf32>
    %cst_45 = arith.constant 5.000000e-01 : f32
    %71 = vector.broadcast %cst_45 : f32 to vector<8x128xf32>
    %72 = arith.mulf %71, %70 : vector<8x128xf32>
    %73 = math.tanh %72 : vector<8x128xf32>
    %cst_46 = arith.constant 1.000000e+00 : f32
    %74 = vector.broadcast %cst_46 : f32 to vector<8x128xf32>
    %75 = arith.addf %73, %74 : vector<8x128xf32>
    %cst_47 = arith.constant 5.000000e-01 : f32
    %76 = vector.broadcast %cst_47 : f32 to vector<8x128xf32>
    %77 = arith.mulf %76, %75 : vector<8x128xf32>
    %78 = vector.extract_strided_slice %63 {offsets = [0, 128], sizes = [8, 128], strides = [1, 1]} : vector<8x384xf32> to vector<8x128xf32>
    %79 = vector.extract_strided_slice %67 {offsets = [0, 128], sizes = [8, 128], strides = [1, 1]} : vector<8x384xf32> to vector<8x128xf32>
    %80 = arith.addf %78, %79 : vector<8x128xf32>
    %cst_48 = arith.constant 5.000000e-01 : f32
    %81 = vector.broadcast %cst_48 : f32 to vector<8x128xf32>
    %82 = arith.mulf %81, %80 : vector<8x128xf32>
    %83 = math.tanh %82 : vector<8x128xf32>
    %cst_49 = arith.constant 1.000000e+00 : f32
    %84 = vector.broadcast %cst_49 : f32 to vector<8x128xf32>
    %85 = arith.addf %83, %84 : vector<8x128xf32>
    %cst_50 = arith.constant 5.000000e-01 : f32
    %86 = vector.broadcast %cst_50 : f32 to vector<8x128xf32>
    %87 = arith.mulf %86, %85 : vector<8x128xf32>
    %88 = vector.extract_strided_slice %63 {offsets = [0, 256], sizes = [8, 128], strides = [1, 1]} : vector<8x384xf32> to vector<8x128xf32>
    %89 = vector.extract_strided_slice %67 {offsets = [0, 256], sizes = [8, 128], strides = [1, 1]} : vector<8x384xf32> to vector<8x128xf32>
    %90 = arith.addf %89, %20 : vector<8x128xf32>
    %91 = arith.mulf %77, %90 : vector<8x128xf32>
    %92 = arith.addf %88, %91 : vector<8x128xf32>
    %93 = math.tanh %92 : vector<8x128xf32>
    %cst_51 = arith.constant 1.000000e+00 : f32
    %94 = vector.broadcast %cst_51 : f32 to vector<8x128xf32>
    %95 = arith.subf %94, %87 : vector<8x128xf32>
    %96 = arith.mulf %95, %93 : vector<8x128xf32>
    %97 = arith.mulf %87, %22 : vector<8x128xf32>
    %98 = arith.addf %96, %97 : vector<8x128xf32>
    %99 = vector.extract_strided_slice %8 {offsets = [8, 0], sizes = [8, 384], strides = [1, 1]} : vector<64x384xf32> to vector<8x384xf32>
    %100 = vector.extract_strided_slice %58 {offsets = [0, 0], sizes = [8, 32], strides = [1, 1]} : vector<8x128xf32> to vector<8x32xf32>
    %c0_52 = arith.constant 0 : index
    %c0_53 = arith.constant 0 : index
    %c0_54 = arith.constant 0 : index
    %c0_55 = arith.constant 0 : index
    %101 = vector.load %arg3[%c0_52, %c0_53, %c0_54, %c0_55] : memref<2x2x32x384xf32, #tpu.memory_space<vmem>>, vector<1x1x32x384xf32>
    %102 = vector.shape_cast %101 : vector<1x1x32x384xf32> to vector<32x384xf32>
    %cst_56 = arith.constant dense<0.000000e+00> : vector<8x384xf32>
    %103 = tpu.matmul %100, %102, %cst_56 {dimension_numbers = #tpu.dot_dimension_numbers<[1], [0], [0], [1], [0, 0, 1, 1], [], []>} : vector<8x32xf32>, vector<32x384xf32>, vector<8x384xf32> -> vector<8x384xf32>
    %104 = vector.extract_strided_slice %99 {offsets = [0, 0], sizes = [8, 128], strides = [1, 1]} : vector<8x384xf32> to vector<8x128xf32>
    %105 = vector.extract_strided_slice %103 {offsets = [0, 0], sizes = [8, 128], strides = [1, 1]} : vector<8x384xf32> to vector<8x128xf32>
    %106 = arith.addf %104, %105 : vector<8x128xf32>
    %cst_57 = arith.constant 5.000000e-01 : f32
    %107 = vector.broadcast %cst_57 : f32 to vector<8x128xf32>
    %108 = arith.mulf %107, %106 : vector<8x128xf32>
    %109 = math.tanh %108 : vector<8x128xf32>
    %cst_58 = arith.constant 1.000000e+00 : f32
    %110 = vector.broadcast %cst_58 : f32 to vector<8x128xf32>
    %111 = arith.addf %109, %110 : vector<8x128xf32>
    %cst_59 = arith.constant 5.000000e-01 : f32
    %112 = vector.broadcast %cst_59 : f32 to vector<8x128xf32>
    %113 = arith.mulf %112, %111 : vector<8x128xf32>
    %114 = vector.extract_strided_slice %99 {offsets = [0, 128], sizes = [8, 128], strides = [1, 1]} : vector<8x384xf32> to vector<8x128xf32>
    %115 = vector.extract_strided_slice %103 {offsets = [0, 128], sizes = [8, 128], strides = [1, 1]} : vector<8x384xf32> to vector<8x128xf32>
    %116 = arith.addf %114, %115 : vector<8x128xf32>
    %cst_60 = arith.constant 5.000000e-01 : f32
    %117 = vector.broadcast %cst_60 : f32 to vector<8x128xf32>
    %118 = arith.mulf %117, %116 : vector<8x128xf32>
    %119 = math.tanh %118 : vector<8x128xf32>
    %cst_61 = arith.constant 1.000000e+00 : f32
    %120 = vector.broadcast %cst_61 : f32 to vector<8x128xf32>
    %121 = arith.addf %119, %120 : vector<8x128xf32>
    %cst_62 = arith.constant 5.000000e-01 : f32
    %122 = vector.broadcast %cst_62 : f32 to vector<8x128xf32>
    %123 = arith.mulf %122, %121 : vector<8x128xf32>
    %124 = vector.extract_strided_slice %99 {offsets = [0, 256], sizes = [8, 128], strides = [1, 1]} : vector<8x384xf32> to vector<8x128xf32>
    %125 = vector.extract_strided_slice %103 {offsets = [0, 256], sizes = [8, 128], strides = [1, 1]} : vector<8x384xf32> to vector<8x128xf32>
    %126 = arith.addf %125, %16 : vector<8x128xf32>
    %127 = arith.mulf %113, %126 : vector<8x128xf32>
    %128 = arith.addf %124, %127 : vector<8x128xf32>
    %129 = math.tanh %128 : vector<8x128xf32>
    %cst_63 = arith.constant 1.000000e+00 : f32
    %130 = vector.broadcast %cst_63 : f32 to vector<8x128xf32>
    %131 = arith.subf %130, %123 : vector<8x128xf32>
    %132 = arith.mulf %131, %129 : vector<8x128xf32>
    %133 = arith.mulf %123, %58 : vector<8x128xf32>
    %134 = arith.addf %132, %133 : vector<8x128xf32>
    %135 = vector.extract_strided_slice %134 {offsets = [0, 0], sizes = [8, 32], strides = [1, 1]} : vector<8x128xf32> to vector<8x32xf32>
    %c0_64 = arith.constant 0 : index
    %c1_65 = arith.constant 1 : index
    %c0_66 = arith.constant 0 : index
    %c0_67 = arith.constant 0 : index
    %136 = vector.load %arg2[%c0_64, %c1_65, %c0_66, %c0_67] : memref<2x2x32x384xf32, #tpu.memory_space<vmem>>, vector<1x1x32x384xf32>
    %137 = vector.shape_cast %136 : vector<1x1x32x384xf32> to vector<32x384xf32>
    %cst_68 = arith.constant dense<0.000000e+00> : vector<8x384xf32>
    %138 = tpu.matmul %135, %137, %cst_68 {dimension_numbers = #tpu.dot_dimension_numbers<[1], [0], [0], [1], [0, 0, 1, 1], [], []>} : vector<8x32xf32>, vector<32x384xf32>, vector<8x384xf32> -> vector<8x384xf32>
    %139 = arith.addf %138, %12 : vector<8x384xf32>
    %140 = vector.extract_strided_slice %98 {offsets = [0, 0], sizes = [8, 32], strides = [1, 1]} : vector<8x128xf32> to vector<8x32xf32>
    %c0_69 = arith.constant 0 : index
    %c1_70 = arith.constant 1 : index
    %c0_71 = arith.constant 0 : index
    %c0_72 = arith.constant 0 : index
    %141 = vector.load %arg3[%c0_69, %c1_70, %c0_71, %c0_72] : memref<2x2x32x384xf32, #tpu.memory_space<vmem>>, vector<1x1x32x384xf32>
    %142 = vector.shape_cast %141 : vector<1x1x32x384xf32> to vector<32x384xf32>
    %cst_73 = arith.constant dense<0.000000e+00> : vector<8x384xf32>
    %143 = tpu.matmul %140, %142, %cst_73 {dimension_numbers = #tpu.dot_dimension_numbers<[1], [0], [0], [1], [0, 0, 1, 1], [], []>} : vector<8x32xf32>, vector<32x384xf32>, vector<8x384xf32> -> vector<8x384xf32>
    %144 = vector.extract_strided_slice %139 {offsets = [0, 0], sizes = [8, 128], strides = [1, 1]} : vector<8x384xf32> to vector<8x128xf32>
    %145 = vector.extract_strided_slice %143 {offsets = [0, 0], sizes = [8, 128], strides = [1, 1]} : vector<8x384xf32> to vector<8x128xf32>
    %146 = arith.addf %144, %145 : vector<8x128xf32>
    %cst_74 = arith.constant 5.000000e-01 : f32
    %147 = vector.broadcast %cst_74 : f32 to vector<8x128xf32>
    %148 = arith.mulf %147, %146 : vector<8x128xf32>
    %149 = math.tanh %148 : vector<8x128xf32>
    %cst_75 = arith.constant 1.000000e+00 : f32
    %150 = vector.broadcast %cst_75 : f32 to vector<8x128xf32>
    %151 = arith.addf %149, %150 : vector<8x128xf32>
    %cst_76 = arith.constant 5.000000e-01 : f32
    %152 = vector.broadcast %cst_76 : f32 to vector<8x128xf32>
    %153 = arith.mulf %152, %151 : vector<8x128xf32>
    %154 = vector.extract_strided_slice %139 {offsets = [0, 128], sizes = [8, 128], strides = [1, 1]} : vector<8x384xf32> to vector<8x128xf32>
    %155 = vector.extract_strided_slice %143 {offsets = [0, 128], sizes = [8, 128], strides = [1, 1]} : vector<8x384xf32> to vector<8x128xf32>
    %156 = arith.addf %154, %155 : vector<8x128xf32>
    %cst_77 = arith.constant 5.000000e-01 : f32
    %157 = vector.broadcast %cst_77 : f32 to vector<8x128xf32>
    %158 = arith.mulf %157, %156 : vector<8x128xf32>
    %159 = math.tanh %158 : vector<8x128xf32>
    %cst_78 = arith.constant 1.000000e+00 : f32
    %160 = vector.broadcast %cst_78 : f32 to vector<8x128xf32>
    %161 = arith.addf %159, %160 : vector<8x128xf32>
    %cst_79 = arith.constant 5.000000e-01 : f32
    %162 = vector.broadcast %cst_79 : f32 to vector<8x128xf32>
    %163 = arith.mulf %162, %161 : vector<8x128xf32>
    %164 = vector.extract_strided_slice %139 {offsets = [0, 256], sizes = [8, 128], strides = [1, 1]} : vector<8x384xf32> to vector<8x128xf32>
    %165 = vector.extract_strided_slice %143 {offsets = [0, 256], sizes = [8, 128], strides = [1, 1]} : vector<8x384xf32> to vector<8x128xf32>
    %166 = arith.addf %165, %20 : vector<8x128xf32>
    %167 = arith.mulf %153, %166 : vector<8x128xf32>
    %168 = arith.addf %164, %167 : vector<8x128xf32>
    %169 = math.tanh %168 : vector<8x128xf32>
    %cst_80 = arith.constant 1.000000e+00 : f32
    %170 = vector.broadcast %cst_80 : f32 to vector<8x128xf32>
    %171 = arith.subf %170, %163 : vector<8x128xf32>
    %172 = arith.mulf %171, %169 : vector<8x128xf32>
    %173 = arith.mulf %163, %98 : vector<8x128xf32>
    %174 = arith.addf %172, %173 : vector<8x128xf32>
    %175 = vector.extract_strided_slice %8 {offsets = [16, 0], sizes = [8, 384], strides = [1, 1]} : vector<64x384xf32> to vector<8x384xf32>
    %176 = vector.extract_strided_slice %134 {offsets = [0, 0], sizes = [8, 32], strides = [1, 1]} : vector<8x128xf32> to vector<8x32xf32>
    %c0_81 = arith.constant 0 : index
    %c0_82 = arith.constant 0 : index
    %c0_83 = arith.constant 0 : index
    %c0_84 = arith.constant 0 : index
    %177 = vector.load %arg3[%c0_81, %c0_82, %c0_83, %c0_84] : memref<2x2x32x384xf32, #tpu.memory_space<vmem>>, vector<1x1x32x384xf32>
    %178 = vector.shape_cast %177 : vector<1x1x32x384xf32> to vector<32x384xf32>
    %cst_85 = arith.constant dense<0.000000e+00> : vector<8x384xf32>
    %179 = tpu.matmul %176, %178, %cst_85 {dimension_numbers = #tpu.dot_dimension_numbers<[1], [0], [0], [1], [0, 0, 1, 1], [], []>} : vector<8x32xf32>, vector<32x384xf32>, vector<8x384xf32> -> vector<8x384xf32>
    %180 = vector.extract_strided_slice %175 {offsets = [0, 0], sizes = [8, 128], strides = [1, 1]} : vector<8x384xf32> to vector<8x128xf32>
    %181 = vector.extract_strided_slice %179 {offsets = [0, 0], sizes = [8, 128], strides = [1, 1]} : vector<8x384xf32> to vector<8x128xf32>
    %182 = arith.addf %180, %181 : vector<8x128xf32>
    %cst_86 = arith.constant 5.000000e-01 : f32
    %183 = vector.broadcast %cst_86 : f32 to vector<8x128xf32>
    %184 = arith.mulf %183, %182 : vector<8x128xf32>
    %185 = math.tanh %184 : vector<8x128xf32>
    %cst_87 = arith.constant 1.000000e+00 : f32
    %186 = vector.broadcast %cst_87 : f32 to vector<8x128xf32>
    %187 = arith.addf %185, %186 : vector<8x128xf32>
    %cst_88 = arith.constant 5.000000e-01 : f32
    %188 = vector.broadcast %cst_88 : f32 to vector<8x128xf32>
    %189 = arith.mulf %188, %187 : vector<8x128xf32>
    %190 = vector.extract_strided_slice %175 {offsets = [0, 128], sizes = [8, 128], strides = [1, 1]} : vector<8x384xf32> to vector<8x128xf32>
    %191 = vector.extract_strided_slice %179 {offsets = [0, 128], sizes = [8, 128], strides = [1, 1]} : vector<8x384xf32> to vector<8x128xf32>
    %192 = arith.addf %190, %191 : vector<8x128xf32>
    %cst_89 = arith.constant 5.000000e-01 : f32
    %193 = vector.broadcast %cst_89 : f32 to vector<8x128xf32>
    %194 = arith.mulf %193, %192 : vector<8x128xf32>
    %195 = math.tanh %194 : vector<8x128xf32>
    %cst_90 = arith.constant 1.000000e+00 : f32
    %196 = vector.broadcast %cst_90 : f32 to vector<8x128xf32>
    %197 = arith.addf %195, %196 : vector<8x128xf32>
    %cst_91 = arith.constant 5.000000e-01 : f32
    %198 = vector.broadcast %cst_91 : f32 to vector<8x128xf32>
    %199 = arith.mulf %198, %197 : vector<8x128xf32>
    %200 = vector.extract_strided_slice %175 {offsets = [0, 256], sizes = [8, 128], strides = [1, 1]} : vector<8x384xf32> to vector<8x128xf32>
    %201 = vector.extract_strided_slice %179 {offsets = [0, 256], sizes = [8, 128], strides = [1, 1]} : vector<8x384xf32> to vector<8x128xf32>
    %202 = arith.addf %201, %16 : vector<8x128xf32>
    %203 = arith.mulf %189, %202 : vector<8x128xf32>
    %204 = arith.addf %200, %203 : vector<8x128xf32>
    %205 = math.tanh %204 : vector<8x128xf32>
    %cst_92 = arith.constant 1.000000e+00 : f32
    %206 = vector.broadcast %cst_92 : f32 to vector<8x128xf32>
    %207 = arith.subf %206, %199 : vector<8x128xf32>
    %208 = arith.mulf %207, %205 : vector<8x128xf32>
    %209 = arith.mulf %199, %134 : vector<8x128xf32>
    %210 = arith.addf %208, %209 : vector<8x128xf32>
    %211 = vector.extract_strided_slice %210 {offsets = [0, 0], sizes = [8, 32], strides = [1, 1]} : vector<8x128xf32> to vector<8x32xf32>
    %c0_93 = arith.constant 0 : index
    %c1_94 = arith.constant 1 : index
    %c0_95 = arith.constant 0 : index
    %c0_96 = arith.constant 0 : index
    %212 = vector.load %arg2[%c0_93, %c1_94, %c0_95, %c0_96] : memref<2x2x32x384xf32, #tpu.memory_space<vmem>>, vector<1x1x32x384xf32>
    %213 = vector.shape_cast %212 : vector<1x1x32x384xf32> to vector<32x384xf32>
    %cst_97 = arith.constant dense<0.000000e+00> : vector<8x384xf32>
    %214 = tpu.matmul %211, %213, %cst_97 {dimension_numbers = #tpu.dot_dimension_numbers<[1], [0], [0], [1], [0, 0, 1, 1], [], []>} : vector<8x32xf32>, vector<32x384xf32>, vector<8x384xf32> -> vector<8x384xf32>
    %215 = arith.addf %214, %12 : vector<8x384xf32>
    %216 = vector.extract_strided_slice %174 {offsets = [0, 0], sizes = [8, 32], strides = [1, 1]} : vector<8x128xf32> to vector<8x32xf32>
    %c0_98 = arith.constant 0 : index
    %c1_99 = arith.constant 1 : index
    %c0_100 = arith.constant 0 : index
    %c0_101 = arith.constant 0 : index
    %217 = vector.load %arg3[%c0_98, %c1_99, %c0_100, %c0_101] : memref<2x2x32x384xf32, #tpu.memory_space<vmem>>, vector<1x1x32x384xf32>
    %218 = vector.shape_cast %217 : vector<1x1x32x384xf32> to vector<32x384xf32>
    %cst_102 = arith.constant dense<0.000000e+00> : vector<8x384xf32>
    %219 = tpu.matmul %216, %218, %cst_102 {dimension_numbers = #tpu.dot_dimension_numbers<[1], [0], [0], [1], [0, 0, 1, 1], [], []>} : vector<8x32xf32>, vector<32x384xf32>, vector<8x384xf32> -> vector<8x384xf32>
    %220 = vector.extract_strided_slice %215 {offsets = [0, 0], sizes = [8, 128], strides = [1, 1]} : vector<8x384xf32> to vector<8x128xf32>
    %221 = vector.extract_strided_slice %219 {offsets = [0, 0], sizes = [8, 128], strides = [1, 1]} : vector<8x384xf32> to vector<8x128xf32>
    %222 = arith.addf %220, %221 : vector<8x128xf32>
    %cst_103 = arith.constant 5.000000e-01 : f32
    %223 = vector.broadcast %cst_103 : f32 to vector<8x128xf32>
    %224 = arith.mulf %223, %222 : vector<8x128xf32>
    %225 = math.tanh %224 : vector<8x128xf32>
    %cst_104 = arith.constant 1.000000e+00 : f32
    %226 = vector.broadcast %cst_104 : f32 to vector<8x128xf32>
    %227 = arith.addf %225, %226 : vector<8x128xf32>
    %cst_105 = arith.constant 5.000000e-01 : f32
    %228 = vector.broadcast %cst_105 : f32 to vector<8x128xf32>
    %229 = arith.mulf %228, %227 : vector<8x128xf32>
    %230 = vector.extract_strided_slice %215 {offsets = [0, 128], sizes = [8, 128], strides = [1, 1]} : vector<8x384xf32> to vector<8x128xf32>
    %231 = vector.extract_strided_slice %219 {offsets = [0, 128], sizes = [8, 128], strides = [1, 1]} : vector<8x384xf32> to vector<8x128xf32>
    %232 = arith.addf %230, %231 : vector<8x128xf32>
    %cst_106 = arith.constant 5.000000e-01 : f32
    %233 = vector.broadcast %cst_106 : f32 to vector<8x128xf32>
    %234 = arith.mulf %233, %232 : vector<8x128xf32>
    %235 = math.tanh %234 : vector<8x128xf32>
    %cst_107 = arith.constant 1.000000e+00 : f32
    %236 = vector.broadcast %cst_107 : f32 to vector<8x128xf32>
    %237 = arith.addf %235, %236 : vector<8x128xf32>
    %cst_108 = arith.constant 5.000000e-01 : f32
    %238 = vector.broadcast %cst_108 : f32 to vector<8x128xf32>
    %239 = arith.mulf %238, %237 : vector<8x128xf32>
    %240 = vector.extract_strided_slice %215 {offsets = [0, 256], sizes = [8, 128], strides = [1, 1]} : vector<8x384xf32> to vector<8x128xf32>
    %241 = vector.extract_strided_slice %219 {offsets = [0, 256], sizes = [8, 128], strides = [1, 1]} : vector<8x384xf32> to vector<8x128xf32>
    %242 = arith.addf %241, %20 : vector<8x128xf32>
    %243 = arith.mulf %229, %242 : vector<8x128xf32>
    %244 = arith.addf %240, %243 : vector<8x128xf32>
    %245 = math.tanh %244 : vector<8x128xf32>
    %cst_109 = arith.constant 1.000000e+00 : f32
    %246 = vector.broadcast %cst_109 : f32 to vector<8x128xf32>
    %247 = arith.subf %246, %239 : vector<8x128xf32>
    %248 = arith.mulf %247, %245 : vector<8x128xf32>
    %249 = arith.mulf %239, %174 : vector<8x128xf32>
    %250 = arith.addf %248, %249 : vector<8x128xf32>
    %251 = vector.extract_strided_slice %8 {offsets = [24, 0], sizes = [8, 384], strides = [1, 1]} : vector<64x384xf32> to vector<8x384xf32>
    %252 = vector.extract_strided_slice %210 {offsets = [0, 0], sizes = [8, 32], strides = [1, 1]} : vector<8x128xf32> to vector<8x32xf32>
    %c0_110 = arith.constant 0 : index
    %c0_111 = arith.constant 0 : index
    %c0_112 = arith.constant 0 : index
    %c0_113 = arith.constant 0 : index
    %253 = vector.load %arg3[%c0_110, %c0_111, %c0_112, %c0_113] : memref<2x2x32x384xf32, #tpu.memory_space<vmem>>, vector<1x1x32x384xf32>
    %254 = vector.shape_cast %253 : vector<1x1x32x384xf32> to vector<32x384xf32>
    %cst_114 = arith.constant dense<0.000000e+00> : vector<8x384xf32>
    %255 = tpu.matmul %252, %254, %cst_114 {dimension_numbers = #tpu.dot_dimension_numbers<[1], [0], [0], [1], [0, 0, 1, 1], [], []>} : vector<8x32xf32>, vector<32x384xf32>, vector<8x384xf32> -> vector<8x384xf32>
    %256 = vector.extract_strided_slice %251 {offsets = [0, 0], sizes = [8, 128], strides = [1, 1]} : vector<8x384xf32> to vector<8x128xf32>
    %257 = vector.extract_strided_slice %255 {offsets = [0, 0], sizes = [8, 128], strides = [1, 1]} : vector<8x384xf32> to vector<8x128xf32>
    %258 = arith.addf %256, %257 : vector<8x128xf32>
    %cst_115 = arith.constant 5.000000e-01 : f32
    %259 = vector.broadcast %cst_115 : f32 to vector<8x128xf32>
    %260 = arith.mulf %259, %258 : vector<8x128xf32>
    %261 = math.tanh %260 : vector<8x128xf32>
    %cst_116 = arith.constant 1.000000e+00 : f32
    %262 = vector.broadcast %cst_116 : f32 to vector<8x128xf32>
    %263 = arith.addf %261, %262 : vector<8x128xf32>
    %cst_117 = arith.constant 5.000000e-01 : f32
    %264 = vector.broadcast %cst_117 : f32 to vector<8x128xf32>
    %265 = arith.mulf %264, %263 : vector<8x128xf32>
    %266 = vector.extract_strided_slice %251 {offsets = [0, 128], sizes = [8, 128], strides = [1, 1]} : vector<8x384xf32> to vector<8x128xf32>
    %267 = vector.extract_strided_slice %255 {offsets = [0, 128], sizes = [8, 128], strides = [1, 1]} : vector<8x384xf32> to vector<8x128xf32>
    %268 = arith.addf %266, %267 : vector<8x128xf32>
    %cst_118 = arith.constant 5.000000e-01 : f32
    %269 = vector.broadcast %cst_118 : f32 to vector<8x128xf32>
    %270 = arith.mulf %269, %268 : vector<8x128xf32>
    %271 = math.tanh %270 : vector<8x128xf32>
    %cst_119 = arith.constant 1.000000e+00 : f32
    %272 = vector.broadcast %cst_119 : f32 to vector<8x128xf32>
    %273 = arith.addf %271, %272 : vector<8x128xf32>
    %cst_120 = arith.constant 5.000000e-01 : f32
    %274 = vector.broadcast %cst_120 : f32 to vector<8x128xf32>
    %275 = arith.mulf %274, %273 : vector<8x128xf32>
    %276 = vector.extract_strided_slice %251 {offsets = [0, 256], sizes = [8, 128], strides = [1, 1]} : vector<8x384xf32> to vector<8x128xf32>
    %277 = vector.extract_strided_slice %255 {offsets = [0, 256], sizes = [8, 128], strides = [1, 1]} : vector<8x384xf32> to vector<8x128xf32>
    %278 = arith.addf %277, %16 : vector<8x128xf32>
    %279 = arith.mulf %265, %278 : vector<8x128xf32>
    %280 = arith.addf %276, %279 : vector<8x128xf32>
    %281 = math.tanh %280 : vector<8x128xf32>
    %cst_121 = arith.constant 1.000000e+00 : f32
    %282 = vector.broadcast %cst_121 : f32 to vector<8x128xf32>
    %283 = arith.subf %282, %275 : vector<8x128xf32>
    %284 = arith.mulf %283, %281 : vector<8x128xf32>
    %285 = arith.mulf %275, %210 : vector<8x128xf32>
    %286 = arith.addf %284, %285 : vector<8x128xf32>
    %287 = vector.extract_strided_slice %286 {offsets = [0, 0], sizes = [8, 32], strides = [1, 1]} : vector<8x128xf32> to vector<8x32xf32>
    %c0_122 = arith.constant 0 : index
    %c1_123 = arith.constant 1 : index
    %c0_124 = arith.constant 0 : index
    %c0_125 = arith.constant 0 : index
    %288 = vector.load %arg2[%c0_122, %c1_123, %c0_124, %c0_125] : memref<2x2x32x384xf32, #tpu.memory_space<vmem>>, vector<1x1x32x384xf32>
    %289 = vector.shape_cast %288 : vector<1x1x32x384xf32> to vector<32x384xf32>
    %cst_126 = arith.constant dense<0.000000e+00> : vector<8x384xf32>
    %290 = tpu.matmul %287, %289, %cst_126 {dimension_numbers = #tpu.dot_dimension_numbers<[1], [0], [0], [1], [0, 0, 1, 1], [], []>} : vector<8x32xf32>, vector<32x384xf32>, vector<8x384xf32> -> vector<8x384xf32>
    %291 = arith.addf %290, %12 : vector<8x384xf32>
    %292 = vector.extract_strided_slice %250 {offsets = [0, 0], sizes = [8, 32], strides = [1, 1]} : vector<8x128xf32> to vector<8x32xf32>
    %c0_127 = arith.constant 0 : index
    %c1_128 = arith.constant 1 : index
    %c0_129 = arith.constant 0 : index
    %c0_130 = arith.constant 0 : index
    %293 = vector.load %arg3[%c0_127, %c1_128, %c0_129, %c0_130] : memref<2x2x32x384xf32, #tpu.memory_space<vmem>>, vector<1x1x32x384xf32>
    %294 = vector.shape_cast %293 : vector<1x1x32x384xf32> to vector<32x384xf32>
    %cst_131 = arith.constant dense<0.000000e+00> : vector<8x384xf32>
    %295 = tpu.matmul %292, %294, %cst_131 {dimension_numbers = #tpu.dot_dimension_numbers<[1], [0], [0], [1], [0, 0, 1, 1], [], []>} : vector<8x32xf32>, vector<32x384xf32>, vector<8x384xf32> -> vector<8x384xf32>
    %296 = vector.extract_strided_slice %291 {offsets = [0, 0], sizes = [8, 128], strides = [1, 1]} : vector<8x384xf32> to vector<8x128xf32>
    %297 = vector.extract_strided_slice %295 {offsets = [0, 0], sizes = [8, 128], strides = [1, 1]} : vector<8x384xf32> to vector<8x128xf32>
    %298 = arith.addf %296, %297 : vector<8x128xf32>
    %cst_132 = arith.constant 5.000000e-01 : f32
    %299 = vector.broadcast %cst_132 : f32 to vector<8x128xf32>
    %300 = arith.mulf %299, %298 : vector<8x128xf32>
    %301 = math.tanh %300 : vector<8x128xf32>
    %cst_133 = arith.constant 1.000000e+00 : f32
    %302 = vector.broadcast %cst_133 : f32 to vector<8x128xf32>
    %303 = arith.addf %301, %302 : vector<8x128xf32>
    %cst_134 = arith.constant 5.000000e-01 : f32
    %304 = vector.broadcast %cst_134 : f32 to vector<8x128xf32>
    %305 = arith.mulf %304, %303 : vector<8x128xf32>
    %306 = vector.extract_strided_slice %291 {offsets = [0, 128], sizes = [8, 128], strides = [1, 1]} : vector<8x384xf32> to vector<8x128xf32>
    %307 = vector.extract_strided_slice %295 {offsets = [0, 128], sizes = [8, 128], strides = [1, 1]} : vector<8x384xf32> to vector<8x128xf32>
    %308 = arith.addf %306, %307 : vector<8x128xf32>
    %cst_135 = arith.constant 5.000000e-01 : f32
    %309 = vector.broadcast %cst_135 : f32 to vector<8x128xf32>
    %310 = arith.mulf %309, %308 : vector<8x128xf32>
    %311 = math.tanh %310 : vector<8x128xf32>
    %cst_136 = arith.constant 1.000000e+00 : f32
    %312 = vector.broadcast %cst_136 : f32 to vector<8x128xf32>
    %313 = arith.addf %311, %312 : vector<8x128xf32>
    %cst_137 = arith.constant 5.000000e-01 : f32
    %314 = vector.broadcast %cst_137 : f32 to vector<8x128xf32>
    %315 = arith.mulf %314, %313 : vector<8x128xf32>
    %316 = vector.extract_strided_slice %291 {offsets = [0, 256], sizes = [8, 128], strides = [1, 1]} : vector<8x384xf32> to vector<8x128xf32>
    %317 = vector.extract_strided_slice %295 {offsets = [0, 256], sizes = [8, 128], strides = [1, 1]} : vector<8x384xf32> to vector<8x128xf32>
    %318 = arith.addf %317, %20 : vector<8x128xf32>
    %319 = arith.mulf %305, %318 : vector<8x128xf32>
    %320 = arith.addf %316, %319 : vector<8x128xf32>
    %321 = math.tanh %320 : vector<8x128xf32>
    %cst_138 = arith.constant 1.000000e+00 : f32
    %322 = vector.broadcast %cst_138 : f32 to vector<8x128xf32>
    %323 = arith.subf %322, %315 : vector<8x128xf32>
    %324 = arith.mulf %323, %321 : vector<8x128xf32>
    %325 = arith.mulf %315, %250 : vector<8x128xf32>
    %326 = arith.addf %324, %325 : vector<8x128xf32>
    %327 = vector.extract_strided_slice %8 {offsets = [32, 0], sizes = [8, 384], strides = [1, 1]} : vector<64x384xf32> to vector<8x384xf32>
    %328 = vector.extract_strided_slice %286 {offsets = [0, 0], sizes = [8, 32], strides = [1, 1]} : vector<8x128xf32> to vector<8x32xf32>
    %c0_139 = arith.constant 0 : index
    %c0_140 = arith.constant 0 : index
    %c0_141 = arith.constant 0 : index
    %c0_142 = arith.constant 0 : index
    %329 = vector.load %arg3[%c0_139, %c0_140, %c0_141, %c0_142] : memref<2x2x32x384xf32, #tpu.memory_space<vmem>>, vector<1x1x32x384xf32>
    %330 = vector.shape_cast %329 : vector<1x1x32x384xf32> to vector<32x384xf32>
    %cst_143 = arith.constant dense<0.000000e+00> : vector<8x384xf32>
    %331 = tpu.matmul %328, %330, %cst_143 {dimension_numbers = #tpu.dot_dimension_numbers<[1], [0], [0], [1], [0, 0, 1, 1], [], []>} : vector<8x32xf32>, vector<32x384xf32>, vector<8x384xf32> -> vector<8x384xf32>
    %332 = vector.extract_strided_slice %327 {offsets = [0, 0], sizes = [8, 128], strides = [1, 1]} : vector<8x384xf32> to vector<8x128xf32>
    %333 = vector.extract_strided_slice %331 {offsets = [0, 0], sizes = [8, 128], strides = [1, 1]} : vector<8x384xf32> to vector<8x128xf32>
    %334 = arith.addf %332, %333 : vector<8x128xf32>
    %cst_144 = arith.constant 5.000000e-01 : f32
    %335 = vector.broadcast %cst_144 : f32 to vector<8x128xf32>
    %336 = arith.mulf %335, %334 : vector<8x128xf32>
    %337 = math.tanh %336 : vector<8x128xf32>
    %cst_145 = arith.constant 1.000000e+00 : f32
    %338 = vector.broadcast %cst_145 : f32 to vector<8x128xf32>
    %339 = arith.addf %337, %338 : vector<8x128xf32>
    %cst_146 = arith.constant 5.000000e-01 : f32
    %340 = vector.broadcast %cst_146 : f32 to vector<8x128xf32>
    %341 = arith.mulf %340, %339 : vector<8x128xf32>
    %342 = vector.extract_strided_slice %327 {offsets = [0, 128], sizes = [8, 128], strides = [1, 1]} : vector<8x384xf32> to vector<8x128xf32>
    %343 = vector.extract_strided_slice %331 {offsets = [0, 128], sizes = [8, 128], strides = [1, 1]} : vector<8x384xf32> to vector<8x128xf32>
    %344 = arith.addf %342, %343 : vector<8x128xf32>
    %cst_147 = arith.constant 5.000000e-01 : f32
    %345 = vector.broadcast %cst_147 : f32 to vector<8x128xf32>
    %346 = arith.mulf %345, %344 : vector<8x128xf32>
    %347 = math.tanh %346 : vector<8x128xf32>
    %cst_148 = arith.constant 1.000000e+00 : f32
    %348 = vector.broadcast %cst_148 : f32 to vector<8x128xf32>
    %349 = arith.addf %347, %348 : vector<8x128xf32>
    %cst_149 = arith.constant 5.000000e-01 : f32
    %350 = vector.broadcast %cst_149 : f32 to vector<8x128xf32>
    %351 = arith.mulf %350, %349 : vector<8x128xf32>
    %352 = vector.extract_strided_slice %327 {offsets = [0, 256], sizes = [8, 128], strides = [1, 1]} : vector<8x384xf32> to vector<8x128xf32>
    %353 = vector.extract_strided_slice %331 {offsets = [0, 256], sizes = [8, 128], strides = [1, 1]} : vector<8x384xf32> to vector<8x128xf32>
    %354 = arith.addf %353, %16 : vector<8x128xf32>
    %355 = arith.mulf %341, %354 : vector<8x128xf32>
    %356 = arith.addf %352, %355 : vector<8x128xf32>
    %357 = math.tanh %356 : vector<8x128xf32>
    %cst_150 = arith.constant 1.000000e+00 : f32
    %358 = vector.broadcast %cst_150 : f32 to vector<8x128xf32>
    %359 = arith.subf %358, %351 : vector<8x128xf32>
    %360 = arith.mulf %359, %357 : vector<8x128xf32>
    %361 = arith.mulf %351, %286 : vector<8x128xf32>
    %362 = arith.addf %360, %361 : vector<8x128xf32>
    %363 = vector.extract_strided_slice %362 {offsets = [0, 0], sizes = [8, 32], strides = [1, 1]} : vector<8x128xf32> to vector<8x32xf32>
    %c0_151 = arith.constant 0 : index
    %c1_152 = arith.constant 1 : index
    %c0_153 = arith.constant 0 : index
    %c0_154 = arith.constant 0 : index
    %364 = vector.load %arg2[%c0_151, %c1_152, %c0_153, %c0_154] : memref<2x2x32x384xf32, #tpu.memory_space<vmem>>, vector<1x1x32x384xf32>
    %365 = vector.shape_cast %364 : vector<1x1x32x384xf32> to vector<32x384xf32>
    %cst_155 = arith.constant dense<0.000000e+00> : vector<8x384xf32>
    %366 = tpu.matmul %363, %365, %cst_155 {dimension_numbers = #tpu.dot_dimension_numbers<[1], [0], [0], [1], [0, 0, 1, 1], [], []>} : vector<8x32xf32>, vector<32x384xf32>, vector<8x384xf32> -> vector<8x384xf32>
    %367 = arith.addf %366, %12 : vector<8x384xf32>
    %368 = vector.extract_strided_slice %326 {offsets = [0, 0], sizes = [8, 32], strides = [1, 1]} : vector<8x128xf32> to vector<8x32xf32>
    %c0_156 = arith.constant 0 : index
    %c1_157 = arith.constant 1 : index
    %c0_158 = arith.constant 0 : index
    %c0_159 = arith.constant 0 : index
    %369 = vector.load %arg3[%c0_156, %c1_157, %c0_158, %c0_159] : memref<2x2x32x384xf32, #tpu.memory_space<vmem>>, vector<1x1x32x384xf32>
    %370 = vector.shape_cast %369 : vector<1x1x32x384xf32> to vector<32x384xf32>
    %cst_160 = arith.constant dense<0.000000e+00> : vector<8x384xf32>
    %371 = tpu.matmul %368, %370, %cst_160 {dimension_numbers = #tpu.dot_dimension_numbers<[1], [0], [0], [1], [0, 0, 1, 1], [], []>} : vector<8x32xf32>, vector<32x384xf32>, vector<8x384xf32> -> vector<8x384xf32>
    %372 = vector.extract_strided_slice %367 {offsets = [0, 0], sizes = [8, 128], strides = [1, 1]} : vector<8x384xf32> to vector<8x128xf32>
    %373 = vector.extract_strided_slice %371 {offsets = [0, 0], sizes = [8, 128], strides = [1, 1]} : vector<8x384xf32> to vector<8x128xf32>
    %374 = arith.addf %372, %373 : vector<8x128xf32>
    %cst_161 = arith.constant 5.000000e-01 : f32
    %375 = vector.broadcast %cst_161 : f32 to vector<8x128xf32>
    %376 = arith.mulf %375, %374 : vector<8x128xf32>
    %377 = math.tanh %376 : vector<8x128xf32>
    %cst_162 = arith.constant 1.000000e+00 : f32
    %378 = vector.broadcast %cst_162 : f32 to vector<8x128xf32>
    %379 = arith.addf %377, %378 : vector<8x128xf32>
    %cst_163 = arith.constant 5.000000e-01 : f32
    %380 = vector.broadcast %cst_163 : f32 to vector<8x128xf32>
    %381 = arith.mulf %380, %379 : vector<8x128xf32>
    %382 = vector.extract_strided_slice %367 {offsets = [0, 128], sizes = [8, 128], strides = [1, 1]} : vector<8x384xf32> to vector<8x128xf32>
    %383 = vector.extract_strided_slice %371 {offsets = [0, 128], sizes = [8, 128], strides = [1, 1]} : vector<8x384xf32> to vector<8x128xf32>
    %384 = arith.addf %382, %383 : vector<8x128xf32>
    %cst_164 = arith.constant 5.000000e-01 : f32
    %385 = vector.broadcast %cst_164 : f32 to vector<8x128xf32>
    %386 = arith.mulf %385, %384 : vector<8x128xf32>
    %387 = math.tanh %386 : vector<8x128xf32>
    %cst_165 = arith.constant 1.000000e+00 : f32
    %388 = vector.broadcast %cst_165 : f32 to vector<8x128xf32>
    %389 = arith.addf %387, %388 : vector<8x128xf32>
    %cst_166 = arith.constant 5.000000e-01 : f32
    %390 = vector.broadcast %cst_166 : f32 to vector<8x128xf32>
    %391 = arith.mulf %390, %389 : vector<8x128xf32>
    %392 = vector.extract_strided_slice %367 {offsets = [0, 256], sizes = [8, 128], strides = [1, 1]} : vector<8x384xf32> to vector<8x128xf32>
    %393 = vector.extract_strided_slice %371 {offsets = [0, 256], sizes = [8, 128], strides = [1, 1]} : vector<8x384xf32> to vector<8x128xf32>
    %394 = arith.addf %393, %20 : vector<8x128xf32>
    %395 = arith.mulf %381, %394 : vector<8x128xf32>
    %396 = arith.addf %392, %395 : vector<8x128xf32>
    %397 = math.tanh %396 : vector<8x128xf32>
    %cst_167 = arith.constant 1.000000e+00 : f32
    %398 = vector.broadcast %cst_167 : f32 to vector<8x128xf32>
    %399 = arith.subf %398, %391 : vector<8x128xf32>
    %400 = arith.mulf %399, %397 : vector<8x128xf32>
    %401 = arith.mulf %391, %326 : vector<8x128xf32>
    %402 = arith.addf %400, %401 : vector<8x128xf32>
    %403 = vector.extract_strided_slice %8 {offsets = [40, 0], sizes = [8, 384], strides = [1, 1]} : vector<64x384xf32> to vector<8x384xf32>
    %404 = vector.extract_strided_slice %362 {offsets = [0, 0], sizes = [8, 32], strides = [1, 1]} : vector<8x128xf32> to vector<8x32xf32>
    %c0_168 = arith.constant 0 : index
    %c0_169 = arith.constant 0 : index
    %c0_170 = arith.constant 0 : index
    %c0_171 = arith.constant 0 : index
    %405 = vector.load %arg3[%c0_168, %c0_169, %c0_170, %c0_171] : memref<2x2x32x384xf32, #tpu.memory_space<vmem>>, vector<1x1x32x384xf32>
    %406 = vector.shape_cast %405 : vector<1x1x32x384xf32> to vector<32x384xf32>
    %cst_172 = arith.constant dense<0.000000e+00> : vector<8x384xf32>
    %407 = tpu.matmul %404, %406, %cst_172 {dimension_numbers = #tpu.dot_dimension_numbers<[1], [0], [0], [1], [0, 0, 1, 1], [], []>} : vector<8x32xf32>, vector<32x384xf32>, vector<8x384xf32> -> vector<8x384xf32>
    %408 = vector.extract_strided_slice %403 {offsets = [0, 0], sizes = [8, 128], strides = [1, 1]} : vector<8x384xf32> to vector<8x128xf32>
    %409 = vector.extract_strided_slice %407 {offsets = [0, 0], sizes = [8, 128], strides = [1, 1]} : vector<8x384xf32> to vector<8x128xf32>
    %410 = arith.addf %408, %409 : vector<8x128xf32>
    %cst_173 = arith.constant 5.000000e-01 : f32
    %411 = vector.broadcast %cst_173 : f32 to vector<8x128xf32>
    %412 = arith.mulf %411, %410 : vector<8x128xf32>
    %413 = math.tanh %412 : vector<8x128xf32>
    %cst_174 = arith.constant 1.000000e+00 : f32
    %414 = vector.broadcast %cst_174 : f32 to vector<8x128xf32>
    %415 = arith.addf %413, %414 : vector<8x128xf32>
    %cst_175 = arith.constant 5.000000e-01 : f32
    %416 = vector.broadcast %cst_175 : f32 to vector<8x128xf32>
    %417 = arith.mulf %416, %415 : vector<8x128xf32>
    %418 = vector.extract_strided_slice %403 {offsets = [0, 128], sizes = [8, 128], strides = [1, 1]} : vector<8x384xf32> to vector<8x128xf32>
    %419 = vector.extract_strided_slice %407 {offsets = [0, 128], sizes = [8, 128], strides = [1, 1]} : vector<8x384xf32> to vector<8x128xf32>
    %420 = arith.addf %418, %419 : vector<8x128xf32>
    %cst_176 = arith.constant 5.000000e-01 : f32
    %421 = vector.broadcast %cst_176 : f32 to vector<8x128xf32>
    %422 = arith.mulf %421, %420 : vector<8x128xf32>
    %423 = math.tanh %422 : vector<8x128xf32>
    %cst_177 = arith.constant 1.000000e+00 : f32
    %424 = vector.broadcast %cst_177 : f32 to vector<8x128xf32>
    %425 = arith.addf %423, %424 : vector<8x128xf32>
    %cst_178 = arith.constant 5.000000e-01 : f32
    %426 = vector.broadcast %cst_178 : f32 to vector<8x128xf32>
    %427 = arith.mulf %426, %425 : vector<8x128xf32>
    %428 = vector.extract_strided_slice %403 {offsets = [0, 256], sizes = [8, 128], strides = [1, 1]} : vector<8x384xf32> to vector<8x128xf32>
    %429 = vector.extract_strided_slice %407 {offsets = [0, 256], sizes = [8, 128], strides = [1, 1]} : vector<8x384xf32> to vector<8x128xf32>
    %430 = arith.addf %429, %16 : vector<8x128xf32>
    %431 = arith.mulf %417, %430 : vector<8x128xf32>
    %432 = arith.addf %428, %431 : vector<8x128xf32>
    %433 = math.tanh %432 : vector<8x128xf32>
    %cst_179 = arith.constant 1.000000e+00 : f32
    %434 = vector.broadcast %cst_179 : f32 to vector<8x128xf32>
    %435 = arith.subf %434, %427 : vector<8x128xf32>
    %436 = arith.mulf %435, %433 : vector<8x128xf32>
    %437 = arith.mulf %427, %362 : vector<8x128xf32>
    %438 = arith.addf %436, %437 : vector<8x128xf32>
    %439 = vector.extract_strided_slice %438 {offsets = [0, 0], sizes = [8, 32], strides = [1, 1]} : vector<8x128xf32> to vector<8x32xf32>
    %c0_180 = arith.constant 0 : index
    %c1_181 = arith.constant 1 : index
    %c0_182 = arith.constant 0 : index
    %c0_183 = arith.constant 0 : index
    %440 = vector.load %arg2[%c0_180, %c1_181, %c0_182, %c0_183] : memref<2x2x32x384xf32, #tpu.memory_space<vmem>>, vector<1x1x32x384xf32>
    %441 = vector.shape_cast %440 : vector<1x1x32x384xf32> to vector<32x384xf32>
    %cst_184 = arith.constant dense<0.000000e+00> : vector<8x384xf32>
    %442 = tpu.matmul %439, %441, %cst_184 {dimension_numbers = #tpu.dot_dimension_numbers<[1], [0], [0], [1], [0, 0, 1, 1], [], []>} : vector<8x32xf32>, vector<32x384xf32>, vector<8x384xf32> -> vector<8x384xf32>
    %443 = arith.addf %442, %12 : vector<8x384xf32>
    %444 = vector.extract_strided_slice %402 {offsets = [0, 0], sizes = [8, 32], strides = [1, 1]} : vector<8x128xf32> to vector<8x32xf32>
    %c0_185 = arith.constant 0 : index
    %c1_186 = arith.constant 1 : index
    %c0_187 = arith.constant 0 : index
    %c0_188 = arith.constant 0 : index
    %445 = vector.load %arg3[%c0_185, %c1_186, %c0_187, %c0_188] : memref<2x2x32x384xf32, #tpu.memory_space<vmem>>, vector<1x1x32x384xf32>
    %446 = vector.shape_cast %445 : vector<1x1x32x384xf32> to vector<32x384xf32>
    %cst_189 = arith.constant dense<0.000000e+00> : vector<8x384xf32>
    %447 = tpu.matmul %444, %446, %cst_189 {dimension_numbers = #tpu.dot_dimension_numbers<[1], [0], [0], [1], [0, 0, 1, 1], [], []>} : vector<8x32xf32>, vector<32x384xf32>, vector<8x384xf32> -> vector<8x384xf32>
    %448 = vector.extract_strided_slice %443 {offsets = [0, 0], sizes = [8, 128], strides = [1, 1]} : vector<8x384xf32> to vector<8x128xf32>
    %449 = vector.extract_strided_slice %447 {offsets = [0, 0], sizes = [8, 128], strides = [1, 1]} : vector<8x384xf32> to vector<8x128xf32>
    %450 = arith.addf %448, %449 : vector<8x128xf32>
    %cst_190 = arith.constant 5.000000e-01 : f32
    %451 = vector.broadcast %cst_190 : f32 to vector<8x128xf32>
    %452 = arith.mulf %451, %450 : vector<8x128xf32>
    %453 = math.tanh %452 : vector<8x128xf32>
    %cst_191 = arith.constant 1.000000e+00 : f32
    %454 = vector.broadcast %cst_191 : f32 to vector<8x128xf32>
    %455 = arith.addf %453, %454 : vector<8x128xf32>
    %cst_192 = arith.constant 5.000000e-01 : f32
    %456 = vector.broadcast %cst_192 : f32 to vector<8x128xf32>
    %457 = arith.mulf %456, %455 : vector<8x128xf32>
    %458 = vector.extract_strided_slice %443 {offsets = [0, 128], sizes = [8, 128], strides = [1, 1]} : vector<8x384xf32> to vector<8x128xf32>
    %459 = vector.extract_strided_slice %447 {offsets = [0, 128], sizes = [8, 128], strides = [1, 1]} : vector<8x384xf32> to vector<8x128xf32>
    %460 = arith.addf %458, %459 : vector<8x128xf32>
    %cst_193 = arith.constant 5.000000e-01 : f32
    %461 = vector.broadcast %cst_193 : f32 to vector<8x128xf32>
    %462 = arith.mulf %461, %460 : vector<8x128xf32>
    %463 = math.tanh %462 : vector<8x128xf32>
    %cst_194 = arith.constant 1.000000e+00 : f32
    %464 = vector.broadcast %cst_194 : f32 to vector<8x128xf32>
    %465 = arith.addf %463, %464 : vector<8x128xf32>
    %cst_195 = arith.constant 5.000000e-01 : f32
    %466 = vector.broadcast %cst_195 : f32 to vector<8x128xf32>
    %467 = arith.mulf %466, %465 : vector<8x128xf32>
    %468 = vector.extract_strided_slice %443 {offsets = [0, 256], sizes = [8, 128], strides = [1, 1]} : vector<8x384xf32> to vector<8x128xf32>
    %469 = vector.extract_strided_slice %447 {offsets = [0, 256], sizes = [8, 128], strides = [1, 1]} : vector<8x384xf32> to vector<8x128xf32>
    %470 = arith.addf %469, %20 : vector<8x128xf32>
    %471 = arith.mulf %457, %470 : vector<8x128xf32>
    %472 = arith.addf %468, %471 : vector<8x128xf32>
    %473 = math.tanh %472 : vector<8x128xf32>
    %cst_196 = arith.constant 1.000000e+00 : f32
    %474 = vector.broadcast %cst_196 : f32 to vector<8x128xf32>
    %475 = arith.subf %474, %467 : vector<8x128xf32>
    %476 = arith.mulf %475, %473 : vector<8x128xf32>
    %477 = arith.mulf %467, %402 : vector<8x128xf32>
    %478 = arith.addf %476, %477 : vector<8x128xf32>
    %479 = vector.extract_strided_slice %8 {offsets = [48, 0], sizes = [8, 384], strides = [1, 1]} : vector<64x384xf32> to vector<8x384xf32>
    %480 = vector.extract_strided_slice %438 {offsets = [0, 0], sizes = [8, 32], strides = [1, 1]} : vector<8x128xf32> to vector<8x32xf32>
    %c0_197 = arith.constant 0 : index
    %c0_198 = arith.constant 0 : index
    %c0_199 = arith.constant 0 : index
    %c0_200 = arith.constant 0 : index
    %481 = vector.load %arg3[%c0_197, %c0_198, %c0_199, %c0_200] : memref<2x2x32x384xf32, #tpu.memory_space<vmem>>, vector<1x1x32x384xf32>
    %482 = vector.shape_cast %481 : vector<1x1x32x384xf32> to vector<32x384xf32>
    %cst_201 = arith.constant dense<0.000000e+00> : vector<8x384xf32>
    %483 = tpu.matmul %480, %482, %cst_201 {dimension_numbers = #tpu.dot_dimension_numbers<[1], [0], [0], [1], [0, 0, 1, 1], [], []>} : vector<8x32xf32>, vector<32x384xf32>, vector<8x384xf32> -> vector<8x384xf32>
    %484 = vector.extract_strided_slice %479 {offsets = [0, 0], sizes = [8, 128], strides = [1, 1]} : vector<8x384xf32> to vector<8x128xf32>
    %485 = vector.extract_strided_slice %483 {offsets = [0, 0], sizes = [8, 128], strides = [1, 1]} : vector<8x384xf32> to vector<8x128xf32>
    %486 = arith.addf %484, %485 : vector<8x128xf32>
    %cst_202 = arith.constant 5.000000e-01 : f32
    %487 = vector.broadcast %cst_202 : f32 to vector<8x128xf32>
    %488 = arith.mulf %487, %486 : vector<8x128xf32>
    %489 = math.tanh %488 : vector<8x128xf32>
    %cst_203 = arith.constant 1.000000e+00 : f32
    %490 = vector.broadcast %cst_203 : f32 to vector<8x128xf32>
    %491 = arith.addf %489, %490 : vector<8x128xf32>
    %cst_204 = arith.constant 5.000000e-01 : f32
    %492 = vector.broadcast %cst_204 : f32 to vector<8x128xf32>
    %493 = arith.mulf %492, %491 : vector<8x128xf32>
    %494 = vector.extract_strided_slice %479 {offsets = [0, 128], sizes = [8, 128], strides = [1, 1]} : vector<8x384xf32> to vector<8x128xf32>
    %495 = vector.extract_strided_slice %483 {offsets = [0, 128], sizes = [8, 128], strides = [1, 1]} : vector<8x384xf32> to vector<8x128xf32>
    %496 = arith.addf %494, %495 : vector<8x128xf32>
    %cst_205 = arith.constant 5.000000e-01 : f32
    %497 = vector.broadcast %cst_205 : f32 to vector<8x128xf32>
    %498 = arith.mulf %497, %496 : vector<8x128xf32>
    %499 = math.tanh %498 : vector<8x128xf32>
    %cst_206 = arith.constant 1.000000e+00 : f32
    %500 = vector.broadcast %cst_206 : f32 to vector<8x128xf32>
    %501 = arith.addf %499, %500 : vector<8x128xf32>
    %cst_207 = arith.constant 5.000000e-01 : f32
    %502 = vector.broadcast %cst_207 : f32 to vector<8x128xf32>
    %503 = arith.mulf %502, %501 : vector<8x128xf32>
    %504 = vector.extract_strided_slice %479 {offsets = [0, 256], sizes = [8, 128], strides = [1, 1]} : vector<8x384xf32> to vector<8x128xf32>
    %505 = vector.extract_strided_slice %483 {offsets = [0, 256], sizes = [8, 128], strides = [1, 1]} : vector<8x384xf32> to vector<8x128xf32>
    %506 = arith.addf %505, %16 : vector<8x128xf32>
    %507 = arith.mulf %493, %506 : vector<8x128xf32>
    %508 = arith.addf %504, %507 : vector<8x128xf32>
    %509 = math.tanh %508 : vector<8x128xf32>
    %cst_208 = arith.constant 1.000000e+00 : f32
    %510 = vector.broadcast %cst_208 : f32 to vector<8x128xf32>
    %511 = arith.subf %510, %503 : vector<8x128xf32>
    %512 = arith.mulf %511, %509 : vector<8x128xf32>
    %513 = arith.mulf %503, %438 : vector<8x128xf32>
    %514 = arith.addf %512, %513 : vector<8x128xf32>
    %515 = vector.extract_strided_slice %514 {offsets = [0, 0], sizes = [8, 32], strides = [1, 1]} : vector<8x128xf32> to vector<8x32xf32>
    %c0_209 = arith.constant 0 : index
    %c1_210 = arith.constant 1 : index
    %c0_211 = arith.constant 0 : index
    %c0_212 = arith.constant 0 : index
    %516 = vector.load %arg2[%c0_209, %c1_210, %c0_211, %c0_212] : memref<2x2x32x384xf32, #tpu.memory_space<vmem>>, vector<1x1x32x384xf32>
    %517 = vector.shape_cast %516 : vector<1x1x32x384xf32> to vector<32x384xf32>
    %cst_213 = arith.constant dense<0.000000e+00> : vector<8x384xf32>
    %518 = tpu.matmul %515, %517, %cst_213 {dimension_numbers = #tpu.dot_dimension_numbers<[1], [0], [0], [1], [0, 0, 1, 1], [], []>} : vector<8x32xf32>, vector<32x384xf32>, vector<8x384xf32> -> vector<8x384xf32>
    %519 = arith.addf %518, %12 : vector<8x384xf32>
    %520 = vector.extract_strided_slice %478 {offsets = [0, 0], sizes = [8, 32], strides = [1, 1]} : vector<8x128xf32> to vector<8x32xf32>
    %c0_214 = arith.constant 0 : index
    %c1_215 = arith.constant 1 : index
    %c0_216 = arith.constant 0 : index
    %c0_217 = arith.constant 0 : index
    %521 = vector.load %arg3[%c0_214, %c1_215, %c0_216, %c0_217] : memref<2x2x32x384xf32, #tpu.memory_space<vmem>>, vector<1x1x32x384xf32>
    %522 = vector.shape_cast %521 : vector<1x1x32x384xf32> to vector<32x384xf32>
    %cst_218 = arith.constant dense<0.000000e+00> : vector<8x384xf32>
    %523 = tpu.matmul %520, %522, %cst_218 {dimension_numbers = #tpu.dot_dimension_numbers<[1], [0], [0], [1], [0, 0, 1, 1], [], []>} : vector<8x32xf32>, vector<32x384xf32>, vector<8x384xf32> -> vector<8x384xf32>
    %524 = vector.extract_strided_slice %519 {offsets = [0, 0], sizes = [8, 128], strides = [1, 1]} : vector<8x384xf32> to vector<8x128xf32>
    %525 = vector.extract_strided_slice %523 {offsets = [0, 0], sizes = [8, 128], strides = [1, 1]} : vector<8x384xf32> to vector<8x128xf32>
    %526 = arith.addf %524, %525 : vector<8x128xf32>
    %cst_219 = arith.constant 5.000000e-01 : f32
    %527 = vector.broadcast %cst_219 : f32 to vector<8x128xf32>
    %528 = arith.mulf %527, %526 : vector<8x128xf32>
    %529 = math.tanh %528 : vector<8x128xf32>
    %cst_220 = arith.constant 1.000000e+00 : f32
    %530 = vector.broadcast %cst_220 : f32 to vector<8x128xf32>
    %531 = arith.addf %529, %530 : vector<8x128xf32>
    %cst_221 = arith.constant 5.000000e-01 : f32
    %532 = vector.broadcast %cst_221 : f32 to vector<8x128xf32>
    %533 = arith.mulf %532, %531 : vector<8x128xf32>
    %534 = vector.extract_strided_slice %519 {offsets = [0, 128], sizes = [8, 128], strides = [1, 1]} : vector<8x384xf32> to vector<8x128xf32>
    %535 = vector.extract_strided_slice %523 {offsets = [0, 128], sizes = [8, 128], strides = [1, 1]} : vector<8x384xf32> to vector<8x128xf32>
    %536 = arith.addf %534, %535 : vector<8x128xf32>
    %cst_222 = arith.constant 5.000000e-01 : f32
    %537 = vector.broadcast %cst_222 : f32 to vector<8x128xf32>
    %538 = arith.mulf %537, %536 : vector<8x128xf32>
    %539 = math.tanh %538 : vector<8x128xf32>
    %cst_223 = arith.constant 1.000000e+00 : f32
    %540 = vector.broadcast %cst_223 : f32 to vector<8x128xf32>
    %541 = arith.addf %539, %540 : vector<8x128xf32>
    %cst_224 = arith.constant 5.000000e-01 : f32
    %542 = vector.broadcast %cst_224 : f32 to vector<8x128xf32>
    %543 = arith.mulf %542, %541 : vector<8x128xf32>
    %544 = vector.extract_strided_slice %519 {offsets = [0, 256], sizes = [8, 128], strides = [1, 1]} : vector<8x384xf32> to vector<8x128xf32>
    %545 = vector.extract_strided_slice %523 {offsets = [0, 256], sizes = [8, 128], strides = [1, 1]} : vector<8x384xf32> to vector<8x128xf32>
    %546 = arith.addf %545, %20 : vector<8x128xf32>
    %547 = arith.mulf %533, %546 : vector<8x128xf32>
    %548 = arith.addf %544, %547 : vector<8x128xf32>
    %549 = math.tanh %548 : vector<8x128xf32>
    %cst_225 = arith.constant 1.000000e+00 : f32
    %550 = vector.broadcast %cst_225 : f32 to vector<8x128xf32>
    %551 = arith.subf %550, %543 : vector<8x128xf32>
    %552 = arith.mulf %551, %549 : vector<8x128xf32>
    %553 = arith.mulf %543, %478 : vector<8x128xf32>
    %554 = arith.addf %552, %553 : vector<8x128xf32>
    %555 = vector.extract_strided_slice %8 {offsets = [56, 0], sizes = [8, 384], strides = [1, 1]} : vector<64x384xf32> to vector<8x384xf32>
    %556 = vector.extract_strided_slice %514 {offsets = [0, 0], sizes = [8, 32], strides = [1, 1]} : vector<8x128xf32> to vector<8x32xf32>
    %c0_226 = arith.constant 0 : index
    %c0_227 = arith.constant 0 : index
    %c0_228 = arith.constant 0 : index
    %c0_229 = arith.constant 0 : index
    %557 = vector.load %arg3[%c0_226, %c0_227, %c0_228, %c0_229] : memref<2x2x32x384xf32, #tpu.memory_space<vmem>>, vector<1x1x32x384xf32>
    %558 = vector.shape_cast %557 : vector<1x1x32x384xf32> to vector<32x384xf32>
    %cst_230 = arith.constant dense<0.000000e+00> : vector<8x384xf32>
    %559 = tpu.matmul %556, %558, %cst_230 {dimension_numbers = #tpu.dot_dimension_numbers<[1], [0], [0], [1], [0, 0, 1, 1], [], []>} : vector<8x32xf32>, vector<32x384xf32>, vector<8x384xf32> -> vector<8x384xf32>
    %560 = vector.extract_strided_slice %555 {offsets = [0, 0], sizes = [8, 128], strides = [1, 1]} : vector<8x384xf32> to vector<8x128xf32>
    %561 = vector.extract_strided_slice %559 {offsets = [0, 0], sizes = [8, 128], strides = [1, 1]} : vector<8x384xf32> to vector<8x128xf32>
    %562 = arith.addf %560, %561 : vector<8x128xf32>
    %cst_231 = arith.constant 5.000000e-01 : f32
    %563 = vector.broadcast %cst_231 : f32 to vector<8x128xf32>
    %564 = arith.mulf %563, %562 : vector<8x128xf32>
    %565 = math.tanh %564 : vector<8x128xf32>
    %cst_232 = arith.constant 1.000000e+00 : f32
    %566 = vector.broadcast %cst_232 : f32 to vector<8x128xf32>
    %567 = arith.addf %565, %566 : vector<8x128xf32>
    %cst_233 = arith.constant 5.000000e-01 : f32
    %568 = vector.broadcast %cst_233 : f32 to vector<8x128xf32>
    %569 = arith.mulf %568, %567 : vector<8x128xf32>
    %570 = vector.extract_strided_slice %555 {offsets = [0, 128], sizes = [8, 128], strides = [1, 1]} : vector<8x384xf32> to vector<8x128xf32>
    %571 = vector.extract_strided_slice %559 {offsets = [0, 128], sizes = [8, 128], strides = [1, 1]} : vector<8x384xf32> to vector<8x128xf32>
    %572 = arith.addf %570, %571 : vector<8x128xf32>
    %cst_234 = arith.constant 5.000000e-01 : f32
    %573 = vector.broadcast %cst_234 : f32 to vector<8x128xf32>
    %574 = arith.mulf %573, %572 : vector<8x128xf32>
    %575 = math.tanh %574 : vector<8x128xf32>
    %cst_235 = arith.constant 1.000000e+00 : f32
    %576 = vector.broadcast %cst_235 : f32 to vector<8x128xf32>
    %577 = arith.addf %575, %576 : vector<8x128xf32>
    %cst_236 = arith.constant 5.000000e-01 : f32
    %578 = vector.broadcast %cst_236 : f32 to vector<8x128xf32>
    %579 = arith.mulf %578, %577 : vector<8x128xf32>
    %580 = vector.extract_strided_slice %555 {offsets = [0, 256], sizes = [8, 128], strides = [1, 1]} : vector<8x384xf32> to vector<8x128xf32>
    %581 = vector.extract_strided_slice %559 {offsets = [0, 256], sizes = [8, 128], strides = [1, 1]} : vector<8x384xf32> to vector<8x128xf32>
    %582 = arith.addf %581, %16 : vector<8x128xf32>
    %583 = arith.mulf %569, %582 : vector<8x128xf32>
    %584 = arith.addf %580, %583 : vector<8x128xf32>
    %585 = math.tanh %584 : vector<8x128xf32>
    %cst_237 = arith.constant 1.000000e+00 : f32
    %586 = vector.broadcast %cst_237 : f32 to vector<8x128xf32>
    %587 = arith.subf %586, %579 : vector<8x128xf32>
    %588 = arith.mulf %587, %585 : vector<8x128xf32>
    %589 = arith.mulf %579, %514 : vector<8x128xf32>
    %590 = arith.addf %588, %589 : vector<8x128xf32>
    %591 = vector.extract_strided_slice %590 {offsets = [0, 0], sizes = [8, 32], strides = [1, 1]} : vector<8x128xf32> to vector<8x32xf32>
    %c0_238 = arith.constant 0 : index
    %c1_239 = arith.constant 1 : index
    %c0_240 = arith.constant 0 : index
    %c0_241 = arith.constant 0 : index
    %592 = vector.load %arg2[%c0_238, %c1_239, %c0_240, %c0_241] : memref<2x2x32x384xf32, #tpu.memory_space<vmem>>, vector<1x1x32x384xf32>
    %593 = vector.shape_cast %592 : vector<1x1x32x384xf32> to vector<32x384xf32>
    %cst_242 = arith.constant dense<0.000000e+00> : vector<8x384xf32>
    %594 = tpu.matmul %591, %593, %cst_242 {dimension_numbers = #tpu.dot_dimension_numbers<[1], [0], [0], [1], [0, 0, 1, 1], [], []>} : vector<8x32xf32>, vector<32x384xf32>, vector<8x384xf32> -> vector<8x384xf32>
    %595 = arith.addf %594, %12 : vector<8x384xf32>
    %596 = vector.extract_strided_slice %554 {offsets = [0, 0], sizes = [8, 32], strides = [1, 1]} : vector<8x128xf32> to vector<8x32xf32>
    %c0_243 = arith.constant 0 : index
    %c1_244 = arith.constant 1 : index
    %c0_245 = arith.constant 0 : index
    %c0_246 = arith.constant 0 : index
    %597 = vector.load %arg3[%c0_243, %c1_244, %c0_245, %c0_246] : memref<2x2x32x384xf32, #tpu.memory_space<vmem>>, vector<1x1x32x384xf32>
    %598 = vector.shape_cast %597 : vector<1x1x32x384xf32> to vector<32x384xf32>
    %cst_247 = arith.constant dense<0.000000e+00> : vector<8x384xf32>
    %599 = tpu.matmul %596, %598, %cst_247 {dimension_numbers = #tpu.dot_dimension_numbers<[1], [0], [0], [1], [0, 0, 1, 1], [], []>} : vector<8x32xf32>, vector<32x384xf32>, vector<8x384xf32> -> vector<8x384xf32>
    %600 = vector.extract_strided_slice %595 {offsets = [0, 0], sizes = [8, 128], strides = [1, 1]} : vector<8x384xf32> to vector<8x128xf32>
    %601 = vector.extract_strided_slice %599 {offsets = [0, 0], sizes = [8, 128], strides = [1, 1]} : vector<8x384xf32> to vector<8x128xf32>
    %602 = arith.addf %600, %601 : vector<8x128xf32>
    %cst_248 = arith.constant 5.000000e-01 : f32
    %603 = vector.broadcast %cst_248 : f32 to vector<8x128xf32>
    %604 = arith.mulf %603, %602 : vector<8x128xf32>
    %605 = math.tanh %604 : vector<8x128xf32>
    %cst_249 = arith.constant 1.000000e+00 : f32
    %606 = vector.broadcast %cst_249 : f32 to vector<8x128xf32>
    %607 = arith.addf %605, %606 : vector<8x128xf32>
    %cst_250 = arith.constant 5.000000e-01 : f32
    %608 = vector.broadcast %cst_250 : f32 to vector<8x128xf32>
    %609 = arith.mulf %608, %607 : vector<8x128xf32>
    %610 = vector.extract_strided_slice %595 {offsets = [0, 128], sizes = [8, 128], strides = [1, 1]} : vector<8x384xf32> to vector<8x128xf32>
    %611 = vector.extract_strided_slice %599 {offsets = [0, 128], sizes = [8, 128], strides = [1, 1]} : vector<8x384xf32> to vector<8x128xf32>
    %612 = arith.addf %610, %611 : vector<8x128xf32>
    %cst_251 = arith.constant 5.000000e-01 : f32
    %613 = vector.broadcast %cst_251 : f32 to vector<8x128xf32>
    %614 = arith.mulf %613, %612 : vector<8x128xf32>
    %615 = math.tanh %614 : vector<8x128xf32>
    %cst_252 = arith.constant 1.000000e+00 : f32
    %616 = vector.broadcast %cst_252 : f32 to vector<8x128xf32>
    %617 = arith.addf %615, %616 : vector<8x128xf32>
    %cst_253 = arith.constant 5.000000e-01 : f32
    %618 = vector.broadcast %cst_253 : f32 to vector<8x128xf32>
    %619 = arith.mulf %618, %617 : vector<8x128xf32>
    %620 = vector.extract_strided_slice %595 {offsets = [0, 256], sizes = [8, 128], strides = [1, 1]} : vector<8x384xf32> to vector<8x128xf32>
    %621 = vector.extract_strided_slice %599 {offsets = [0, 256], sizes = [8, 128], strides = [1, 1]} : vector<8x384xf32> to vector<8x128xf32>
    %622 = arith.addf %621, %20 : vector<8x128xf32>
    %623 = arith.mulf %609, %622 : vector<8x128xf32>
    %624 = arith.addf %620, %623 : vector<8x128xf32>
    %625 = math.tanh %624 : vector<8x128xf32>
    %cst_254 = arith.constant 1.000000e+00 : f32
    %626 = vector.broadcast %cst_254 : f32 to vector<8x128xf32>
    %627 = arith.subf %626, %619 : vector<8x128xf32>
    %628 = arith.mulf %627, %625 : vector<8x128xf32>
    %629 = arith.mulf %619, %554 : vector<8x128xf32>
    %630 = arith.addf %628, %629 : vector<8x128xf32>
    %c0_255 = arith.constant 0 : index
    %c0_256 = arith.constant 0 : index
    %c0_257 = arith.constant 0 : index
    %631 = vector.load %arg6[%c0_255, %c0_256, %c0_257] : memref<2x8x128xf32, #tpu.memory_space<vmem>>, vector<1x8x128xf32>
    %632 = vector.shape_cast %631 : vector<1x8x128xf32> to vector<8x128xf32>
    %633 = vector.shape_cast %630 : vector<8x128xf32> to vector<1x8x128xf32>
    tpu.vector_store %arg6[%c0_255, %c0_256, %c0_257], %633 {strides = array<i32>} : memref<2x8x128xf32, #tpu.memory_space<vmem>>, vector<1x8x128xf32>,
    %c1_258 = arith.constant 1 : index
    %c0_259 = arith.constant 0 : index
    %c0_260 = arith.constant 0 : index
    %634 = vector.load %arg1[%c1_258, %c0_259, %c0_260] : memref<2x64x32xf32, #tpu.memory_space<vmem>>, vector<1x64x32xf32>
    %635 = vector.shape_cast %634 : vector<1x64x32xf32> to vector<64x32xf32>
    %c1_261 = arith.constant 1 : index
    %c0_262 = arith.constant 0 : index
    %c0_263 = arith.constant 0 : index
    %c0_264 = arith.constant 0 : index
    %636 = vector.load %arg2[%c1_261, %c0_262, %c0_263, %c0_264] : memref<2x2x32x384xf32, #tpu.memory_space<vmem>>, vector<1x1x32x384xf32>
    %637 = vector.shape_cast %636 : vector<1x1x32x384xf32> to vector<32x384xf32>
    %cst_265 = arith.constant dense<0.000000e+00> : vector<64x384xf32>
    %638 = tpu.matmul %635, %637, %cst_265 {dimension_numbers = #tpu.dot_dimension_numbers<[1], [0], [0], [1], [0, 0, 1, 1], [], []>} : vector<64x32xf32>, vector<32x384xf32>, vector<64x384xf32> -> vector<64x384xf32>
    %c1_266 = arith.constant 1 : index
    %c0_267 = arith.constant 0 : index
    %c0_268 = arith.constant 0 : index
    %c0_269 = arith.constant 0 : index
    %639 = vector.load %arg4[%c1_266, %c0_267, %c0_268, %c0_269] : memref<2x2x1x384xf32, #tpu.memory_space<vmem>>, vector<1x1x1x384xf32>
    %640 = vector.shape_cast %639 : vector<1x1x1x384xf32> to vector<1x384xf32>
    %641 = vector.broadcast %640 : vector<1x384xf32> to vector<64x384xf32>
    %642 = arith.addf %638, %641 : vector<64x384xf32>
    %c1_270 = arith.constant 1 : index
    %c1_271 = arith.constant 1 : index
    %c0_272 = arith.constant 0 : index
    %c0_273 = arith.constant 0 : index
    %643 = vector.load %arg4[%c1_270, %c1_271, %c0_272, %c0_273] : memref<2x2x1x384xf32, #tpu.memory_space<vmem>>, vector<1x1x1x384xf32>
    %644 = vector.shape_cast %643 : vector<1x1x1x384xf32> to vector<1x384xf32>
    %645 = vector.shape_cast %644 : vector<1x384xf32> to vector<1x384xf32>
    %646 = vector.broadcast %645 : vector<1x384xf32> to vector<8x384xf32>
    %c1_274 = arith.constant 1 : index
    %c0_275 = arith.constant 0 : index
    %c0_276 = arith.constant 0 : index
    %c0_277 = arith.constant 0 : index
    %647 = vector.load %arg5[%c1_274, %c0_275, %c0_276, %c0_277] : memref<2x2x1x128xf32, #tpu.memory_space<vmem>>, vector<1x1x1x128xf32>
    %648 = vector.shape_cast %647 : vector<1x1x1x128xf32> to vector<1x128xf32>
    %649 = vector.shape_cast %648 : vector<1x128xf32> to vector<1x128xf32>
    %650 = vector.broadcast %649 : vector<1x128xf32> to vector<8x128xf32>
    %c1_278 = arith.constant 1 : index
    %c1_279 = arith.constant 1 : index
    %c0_280 = arith.constant 0 : index
    %c0_281 = arith.constant 0 : index
    %651 = vector.load %arg5[%c1_278, %c1_279, %c0_280, %c0_281] : memref<2x2x1x128xf32, #tpu.memory_space<vmem>>, vector<1x1x1x128xf32>
    %652 = vector.shape_cast %651 : vector<1x1x1x128xf32> to vector<1x128xf32>
    %653 = vector.shape_cast %652 : vector<1x128xf32> to vector<1x128xf32>
    %654 = vector.broadcast %653 : vector<1x128xf32> to vector<8x128xf32>
    %cst_282 = arith.constant 0.000000e+00 : f32
    %655 = vector.broadcast %cst_282 : f32 to vector<8x128xf32>
    %cst_283 = arith.constant 0.000000e+00 : f32
    %656 = vector.broadcast %cst_283 : f32 to vector<8x128xf32>
    %657 = vector.extract_strided_slice %642 {offsets = [0, 0], sizes = [8, 384], strides = [1, 1]} : vector<64x384xf32> to vector<8x384xf32>
    %658 = vector.extract_strided_slice %655 {offsets = [0, 0], sizes = [8, 32], strides = [1, 1]} : vector<8x128xf32> to vector<8x32xf32>
    %c1_284 = arith.constant 1 : index
    %c0_285 = arith.constant 0 : index
    %c0_286 = arith.constant 0 : index
    %c0_287 = arith.constant 0 : index
    %659 = vector.load %arg3[%c1_284, %c0_285, %c0_286, %c0_287] : memref<2x2x32x384xf32, #tpu.memory_space<vmem>>, vector<1x1x32x384xf32>
    %660 = vector.shape_cast %659 : vector<1x1x32x384xf32> to vector<32x384xf32>
    %cst_288 = arith.constant dense<0.000000e+00> : vector<8x384xf32>
    %661 = tpu.matmul %658, %660, %cst_288 {dimension_numbers = #tpu.dot_dimension_numbers<[1], [0], [0], [1], [0, 0, 1, 1], [], []>} : vector<8x32xf32>, vector<32x384xf32>, vector<8x384xf32> -> vector<8x384xf32>
    %662 = vector.extract_strided_slice %657 {offsets = [0, 0], sizes = [8, 128], strides = [1, 1]} : vector<8x384xf32> to vector<8x128xf32>
    %663 = vector.extract_strided_slice %661 {offsets = [0, 0], sizes = [8, 128], strides = [1, 1]} : vector<8x384xf32> to vector<8x128xf32>
    %664 = arith.addf %662, %663 : vector<8x128xf32>
    %cst_289 = arith.constant 5.000000e-01 : f32
    %665 = vector.broadcast %cst_289 : f32 to vector<8x128xf32>
    %666 = arith.mulf %665, %664 : vector<8x128xf32>
    %667 = math.tanh %666 : vector<8x128xf32>
    %cst_290 = arith.constant 1.000000e+00 : f32
    %668 = vector.broadcast %cst_290 : f32 to vector<8x128xf32>
    %669 = arith.addf %667, %668 : vector<8x128xf32>
    %cst_291 = arith.constant 5.000000e-01 : f32
    %670 = vector.broadcast %cst_291 : f32 to vector<8x128xf32>
    %671 = arith.mulf %670, %669 : vector<8x128xf32>
    %672 = vector.extract_strided_slice %657 {offsets = [0, 128], sizes = [8, 128], strides = [1, 1]} : vector<8x384xf32> to vector<8x128xf32>
    %673 = vector.extract_strided_slice %661 {offsets = [0, 128], sizes = [8, 128], strides = [1, 1]} : vector<8x384xf32> to vector<8x128xf32>
    %674 = arith.addf %672, %673 : vector<8x128xf32>
    %cst_292 = arith.constant 5.000000e-01 : f32
    %675 = vector.broadcast %cst_292 : f32 to vector<8x128xf32>
    %676 = arith.mulf %675, %674 : vector<8x128xf32>
    %677 = math.tanh %676 : vector<8x128xf32>
    %cst_293 = arith.constant 1.000000e+00 : f32
    %678 = vector.broadcast %cst_293 : f32 to vector<8x128xf32>
    %679 = arith.addf %677, %678 : vector<8x128xf32>
    %cst_294 = arith.constant 5.000000e-01 : f32
    %680 = vector.broadcast %cst_294 : f32 to vector<8x128xf32>
    %681 = arith.mulf %680, %679 : vector<8x128xf32>
    %682 = vector.extract_strided_slice %657 {offsets = [0, 256], sizes = [8, 128], strides = [1, 1]} : vector<8x384xf32> to vector<8x128xf32>
    %683 = vector.extract_strided_slice %661 {offsets = [0, 256], sizes = [8, 128], strides = [1, 1]} : vector<8x384xf32> to vector<8x128xf32>
    %684 = arith.addf %683, %650 : vector<8x128xf32>
    %685 = arith.mulf %671, %684 : vector<8x128xf32>
    %686 = arith.addf %682, %685 : vector<8x128xf32>
    %687 = math.tanh %686 : vector<8x128xf32>
    %cst_295 = arith.constant 1.000000e+00 : f32
    %688 = vector.broadcast %cst_295 : f32 to vector<8x128xf32>
    %689 = arith.subf %688, %681 : vector<8x128xf32>
    %690 = arith.mulf %689, %687 : vector<8x128xf32>
    %691 = arith.mulf %681, %655 : vector<8x128xf32>
    %692 = arith.addf %690, %691 : vector<8x128xf32>
    %693 = vector.extract_strided_slice %692 {offsets = [0, 0], sizes = [8, 32], strides = [1, 1]} : vector<8x128xf32> to vector<8x32xf32>
    %c1_296 = arith.constant 1 : index
    %c1_297 = arith.constant 1 : index
    %c0_298 = arith.constant 0 : index
    %c0_299 = arith.constant 0 : index
    %694 = vector.load %arg2[%c1_296, %c1_297, %c0_298, %c0_299] : memref<2x2x32x384xf32, #tpu.memory_space<vmem>>, vector<1x1x32x384xf32>
    %695 = vector.shape_cast %694 : vector<1x1x32x384xf32> to vector<32x384xf32>
    %cst_300 = arith.constant dense<0.000000e+00> : vector<8x384xf32>
    %696 = tpu.matmul %693, %695, %cst_300 {dimension_numbers = #tpu.dot_dimension_numbers<[1], [0], [0], [1], [0, 0, 1, 1], [], []>} : vector<8x32xf32>, vector<32x384xf32>, vector<8x384xf32> -> vector<8x384xf32>
    %697 = arith.addf %696, %646 : vector<8x384xf32>
    %698 = vector.extract_strided_slice %656 {offsets = [0, 0], sizes = [8, 32], strides = [1, 1]} : vector<8x128xf32> to vector<8x32xf32>
    %c1_301 = arith.constant 1 : index
    %c1_302 = arith.constant 1 : index
    %c0_303 = arith.constant 0 : index
    %c0_304 = arith.constant 0 : index
    %699 = vector.load %arg3[%c1_301, %c1_302, %c0_303, %c0_304] : memref<2x2x32x384xf32, #tpu.memory_space<vmem>>, vector<1x1x32x384xf32>
    %700 = vector.shape_cast %699 : vector<1x1x32x384xf32> to vector<32x384xf32>
    %cst_305 = arith.constant dense<0.000000e+00> : vector<8x384xf32>
    %701 = tpu.matmul %698, %700, %cst_305 {dimension_numbers = #tpu.dot_dimension_numbers<[1], [0], [0], [1], [0, 0, 1, 1], [], []>} : vector<8x32xf32>, vector<32x384xf32>, vector<8x384xf32> -> vector<8x384xf32>
    %702 = vector.extract_strided_slice %697 {offsets = [0, 0], sizes = [8, 128], strides = [1, 1]} : vector<8x384xf32> to vector<8x128xf32>
    %703 = vector.extract_strided_slice %701 {offsets = [0, 0], sizes = [8, 128], strides = [1, 1]} : vector<8x384xf32> to vector<8x128xf32>
    %704 = arith.addf %702, %703 : vector<8x128xf32>
    %cst_306 = arith.constant 5.000000e-01 : f32
    %705 = vector.broadcast %cst_306 : f32 to vector<8x128xf32>
    %706 = arith.mulf %705, %704 : vector<8x128xf32>
    %707 = math.tanh %706 : vector<8x128xf32>
    %cst_307 = arith.constant 1.000000e+00 : f32
    %708 = vector.broadcast %cst_307 : f32 to vector<8x128xf32>
    %709 = arith.addf %707, %708 : vector<8x128xf32>
    %cst_308 = arith.constant 5.000000e-01 : f32
    %710 = vector.broadcast %cst_308 : f32 to vector<8x128xf32>
    %711 = arith.mulf %710, %709 : vector<8x128xf32>
    %712 = vector.extract_strided_slice %697 {offsets = [0, 128], sizes = [8, 128], strides = [1, 1]} : vector<8x384xf32> to vector<8x128xf32>
    %713 = vector.extract_strided_slice %701 {offsets = [0, 128], sizes = [8, 128], strides = [1, 1]} : vector<8x384xf32> to vector<8x128xf32>
    %714 = arith.addf %712, %713 : vector<8x128xf32>
    %cst_309 = arith.constant 5.000000e-01 : f32
    %715 = vector.broadcast %cst_309 : f32 to vector<8x128xf32>
    %716 = arith.mulf %715, %714 : vector<8x128xf32>
    %717 = math.tanh %716 : vector<8x128xf32>
    %cst_310 = arith.constant 1.000000e+00 : f32
    %718 = vector.broadcast %cst_310 : f32 to vector<8x128xf32>
    %719 = arith.addf %717, %718 : vector<8x128xf32>
    %cst_311 = arith.constant 5.000000e-01 : f32
    %720 = vector.broadcast %cst_311 : f32 to vector<8x128xf32>
    %721 = arith.mulf %720, %719 : vector<8x128xf32>
    %722 = vector.extract_strided_slice %697 {offsets = [0, 256], sizes = [8, 128], strides = [1, 1]} : vector<8x384xf32> to vector<8x128xf32>
    %723 = vector.extract_strided_slice %701 {offsets = [0, 256], sizes = [8, 128], strides = [1, 1]} : vector<8x384xf32> to vector<8x128xf32>
    %724 = arith.addf %723, %654 : vector<8x128xf32>
    %725 = arith.mulf %711, %724 : vector<8x128xf32>
    %726 = arith.addf %722, %725 : vector<8x128xf32>
    %727 = math.tanh %726 : vector<8x128xf32>
    %cst_312 = arith.constant 1.000000e+00 : f32
    %728 = vector.broadcast %cst_312 : f32 to vector<8x128xf32>
    %729 = arith.subf %728, %721 : vector<8x128xf32>
    %730 = arith.mulf %729, %727 : vector<8x128xf32>
    %731 = arith.mulf %721, %656 : vector<8x128xf32>
    %732 = arith.addf %730, %731 : vector<8x128xf32>
    %733 = vector.extract_strided_slice %642 {offsets = [8, 0], sizes = [8, 384], strides = [1, 1]} : vector<64x384xf32> to vector<8x384xf32>
    %734 = vector.extract_strided_slice %692 {offsets = [0, 0], sizes = [8, 32], strides = [1, 1]} : vector<8x128xf32> to vector<8x32xf32>
    %c1_313 = arith.constant 1 : index
    %c0_314 = arith.constant 0 : index
    %c0_315 = arith.constant 0 : index
    %c0_316 = arith.constant 0 : index
    %735 = vector.load %arg3[%c1_313, %c0_314, %c0_315, %c0_316] : memref<2x2x32x384xf32, #tpu.memory_space<vmem>>, vector<1x1x32x384xf32>
    %736 = vector.shape_cast %735 : vector<1x1x32x384xf32> to vector<32x384xf32>
    %cst_317 = arith.constant dense<0.000000e+00> : vector<8x384xf32>
    %737 = tpu.matmul %734, %736, %cst_317 {dimension_numbers = #tpu.dot_dimension_numbers<[1], [0], [0], [1], [0, 0, 1, 1], [], []>} : vector<8x32xf32>, vector<32x384xf32>, vector<8x384xf32> -> vector<8x384xf32>
    %738 = vector.extract_strided_slice %733 {offsets = [0, 0], sizes = [8, 128], strides = [1, 1]} : vector<8x384xf32> to vector<8x128xf32>
    %739 = vector.extract_strided_slice %737 {offsets = [0, 0], sizes = [8, 128], strides = [1, 1]} : vector<8x384xf32> to vector<8x128xf32>
    %740 = arith.addf %738, %739 : vector<8x128xf32>
    %cst_318 = arith.constant 5.000000e-01 : f32
    %741 = vector.broadcast %cst_318 : f32 to vector<8x128xf32>
    %742 = arith.mulf %741, %740 : vector<8x128xf32>
    %743 = math.tanh %742 : vector<8x128xf32>
    %cst_319 = arith.constant 1.000000e+00 : f32
    %744 = vector.broadcast %cst_319 : f32 to vector<8x128xf32>
    %745 = arith.addf %743, %744 : vector<8x128xf32>
    %cst_320 = arith.constant 5.000000e-01 : f32
    %746 = vector.broadcast %cst_320 : f32 to vector<8x128xf32>
    %747 = arith.mulf %746, %745 : vector<8x128xf32>
    %748 = vector.extract_strided_slice %733 {offsets = [0, 128], sizes = [8, 128], strides = [1, 1]} : vector<8x384xf32> to vector<8x128xf32>
    %749 = vector.extract_strided_slice %737 {offsets = [0, 128], sizes = [8, 128], strides = [1, 1]} : vector<8x384xf32> to vector<8x128xf32>
    %750 = arith.addf %748, %749 : vector<8x128xf32>
    %cst_321 = arith.constant 5.000000e-01 : f32
    %751 = vector.broadcast %cst_321 : f32 to vector<8x128xf32>
    %752 = arith.mulf %751, %750 : vector<8x128xf32>
    %753 = math.tanh %752 : vector<8x128xf32>
    %cst_322 = arith.constant 1.000000e+00 : f32
    %754 = vector.broadcast %cst_322 : f32 to vector<8x128xf32>
    %755 = arith.addf %753, %754 : vector<8x128xf32>
    %cst_323 = arith.constant 5.000000e-01 : f32
    %756 = vector.broadcast %cst_323 : f32 to vector<8x128xf32>
    %757 = arith.mulf %756, %755 : vector<8x128xf32>
    %758 = vector.extract_strided_slice %733 {offsets = [0, 256], sizes = [8, 128], strides = [1, 1]} : vector<8x384xf32> to vector<8x128xf32>
    %759 = vector.extract_strided_slice %737 {offsets = [0, 256], sizes = [8, 128], strides = [1, 1]} : vector<8x384xf32> to vector<8x128xf32>
    %760 = arith.addf %759, %650 : vector<8x128xf32>
    %761 = arith.mulf %747, %760 : vector<8x128xf32>
    %762 = arith.addf %758, %761 : vector<8x128xf32>
    %763 = math.tanh %762 : vector<8x128xf32>
    %cst_324 = arith.constant 1.000000e+00 : f32
    %764 = vector.broadcast %cst_324 : f32 to vector<8x128xf32>
    %765 = arith.subf %764, %757 : vector<8x128xf32>
    %766 = arith.mulf %765, %763 : vector<8x128xf32>
    %767 = arith.mulf %757, %692 : vector<8x128xf32>
    %768 = arith.addf %766, %767 : vector<8x128xf32>
    %769 = vector.extract_strided_slice %768 {offsets = [0, 0], sizes = [8, 32], strides = [1, 1]} : vector<8x128xf32> to vector<8x32xf32>
    %c1_325 = arith.constant 1 : index
    %c1_326 = arith.constant 1 : index
    %c0_327 = arith.constant 0 : index
    %c0_328 = arith.constant 0 : index
    %770 = vector.load %arg2[%c1_325, %c1_326, %c0_327, %c0_328] : memref<2x2x32x384xf32, #tpu.memory_space<vmem>>, vector<1x1x32x384xf32>
    %771 = vector.shape_cast %770 : vector<1x1x32x384xf32> to vector<32x384xf32>
    %cst_329 = arith.constant dense<0.000000e+00> : vector<8x384xf32>
    %772 = tpu.matmul %769, %771, %cst_329 {dimension_numbers = #tpu.dot_dimension_numbers<[1], [0], [0], [1], [0, 0, 1, 1], [], []>} : vector<8x32xf32>, vector<32x384xf32>, vector<8x384xf32> -> vector<8x384xf32>
    %773 = arith.addf %772, %646 : vector<8x384xf32>
    %774 = vector.extract_strided_slice %732 {offsets = [0, 0], sizes = [8, 32], strides = [1, 1]} : vector<8x128xf32> to vector<8x32xf32>
    %c1_330 = arith.constant 1 : index
    %c1_331 = arith.constant 1 : index
    %c0_332 = arith.constant 0 : index
    %c0_333 = arith.constant 0 : index
    %775 = vector.load %arg3[%c1_330, %c1_331, %c0_332, %c0_333] : memref<2x2x32x384xf32, #tpu.memory_space<vmem>>, vector<1x1x32x384xf32>
    %776 = vector.shape_cast %775 : vector<1x1x32x384xf32> to vector<32x384xf32>
    %cst_334 = arith.constant dense<0.000000e+00> : vector<8x384xf32>
    %777 = tpu.matmul %774, %776, %cst_334 {dimension_numbers = #tpu.dot_dimension_numbers<[1], [0], [0], [1], [0, 0, 1, 1], [], []>} : vector<8x32xf32>, vector<32x384xf32>, vector<8x384xf32> -> vector<8x384xf32>
    %778 = vector.extract_strided_slice %773 {offsets = [0, 0], sizes = [8, 128], strides = [1, 1]} : vector<8x384xf32> to vector<8x128xf32>
    %779 = vector.extract_strided_slice %777 {offsets = [0, 0], sizes = [8, 128], strides = [1, 1]} : vector<8x384xf32> to vector<8x128xf32>
    %780 = arith.addf %778, %779 : vector<8x128xf32>
    %cst_335 = arith.constant 5.000000e-01 : f32
    %781 = vector.broadcast %cst_335 : f32 to vector<8x128xf32>
    %782 = arith.mulf %781, %780 : vector<8x128xf32>
    %783 = math.tanh %782 : vector<8x128xf32>
    %cst_336 = arith.constant 1.000000e+00 : f32
    %784 = vector.broadcast %cst_336 : f32 to vector<8x128xf32>
    %785 = arith.addf %783, %784 : vector<8x128xf32>
    %cst_337 = arith.constant 5.000000e-01 : f32
    %786 = vector.broadcast %cst_337 : f32 to vector<8x128xf32>
    %787 = arith.mulf %786, %785 : vector<8x128xf32>
    %788 = vector.extract_strided_slice %773 {offsets = [0, 128], sizes = [8, 128], strides = [1, 1]} : vector<8x384xf32> to vector<8x128xf32>
    %789 = vector.extract_strided_slice %777 {offsets = [0, 128], sizes = [8, 128], strides = [1, 1]} : vector<8x384xf32> to vector<8x128xf32>
    %790 = arith.addf %788, %789 : vector<8x128xf32>
    %cst_338 = arith.constant 5.000000e-01 : f32
    %791 = vector.broadcast %cst_338 : f32 to vector<8x128xf32>
    %792 = arith.mulf %791, %790 : vector<8x128xf32>
    %793 = math.tanh %792 : vector<8x128xf32>
    %cst_339 = arith.constant 1.000000e+00 : f32
    %794 = vector.broadcast %cst_339 : f32 to vector<8x128xf32>
    %795 = arith.addf %793, %794 : vector<8x128xf32>
    %cst_340 = arith.constant 5.000000e-01 : f32
    %796 = vector.broadcast %cst_340 : f32 to vector<8x128xf32>
    %797 = arith.mulf %796, %795 : vector<8x128xf32>
    %798 = vector.extract_strided_slice %773 {offsets = [0, 256], sizes = [8, 128], strides = [1, 1]} : vector<8x384xf32> to vector<8x128xf32>
    %799 = vector.extract_strided_slice %777 {offsets = [0, 256], sizes = [8, 128], strides = [1, 1]} : vector<8x384xf32> to vector<8x128xf32>
    %800 = arith.addf %799, %654 : vector<8x128xf32>
    %801 = arith.mulf %787, %800 : vector<8x128xf32>
    %802 = arith.addf %798, %801 : vector<8x128xf32>
    %803 = math.tanh %802 : vector<8x128xf32>
    %cst_341 = arith.constant 1.000000e+00 : f32
    %804 = vector.broadcast %cst_341 : f32 to vector<8x128xf32>
    %805 = arith.subf %804, %797 : vector<8x128xf32>
    %806 = arith.mulf %805, %803 : vector<8x128xf32>
    %807 = arith.mulf %797, %732 : vector<8x128xf32>
    %808 = arith.addf %806, %807 : vector<8x128xf32>
    %809 = vector.extract_strided_slice %642 {offsets = [16, 0], sizes = [8, 384], strides = [1, 1]} : vector<64x384xf32> to vector<8x384xf32>
    %810 = vector.extract_strided_slice %768 {offsets = [0, 0], sizes = [8, 32], strides = [1, 1]} : vector<8x128xf32> to vector<8x32xf32>
    %c1_342 = arith.constant 1 : index
    %c0_343 = arith.constant 0 : index
    %c0_344 = arith.constant 0 : index
    %c0_345 = arith.constant 0 : index
    %811 = vector.load %arg3[%c1_342, %c0_343, %c0_344, %c0_345] : memref<2x2x32x384xf32, #tpu.memory_space<vmem>>, vector<1x1x32x384xf32>
    %812 = vector.shape_cast %811 : vector<1x1x32x384xf32> to vector<32x384xf32>
    %cst_346 = arith.constant dense<0.000000e+00> : vector<8x384xf32>
    %813 = tpu.matmul %810, %812, %cst_346 {dimension_numbers = #tpu.dot_dimension_numbers<[1], [0], [0], [1], [0, 0, 1, 1], [], []>} : vector<8x32xf32>, vector<32x384xf32>, vector<8x384xf32> -> vector<8x384xf32>
    %814 = vector.extract_strided_slice %809 {offsets = [0, 0], sizes = [8, 128], strides = [1, 1]} : vector<8x384xf32> to vector<8x128xf32>
    %815 = vector.extract_strided_slice %813 {offsets = [0, 0], sizes = [8, 128], strides = [1, 1]} : vector<8x384xf32> to vector<8x128xf32>
    %816 = arith.addf %814, %815 : vector<8x128xf32>
    %cst_347 = arith.constant 5.000000e-01 : f32
    %817 = vector.broadcast %cst_347 : f32 to vector<8x128xf32>
    %818 = arith.mulf %817, %816 : vector<8x128xf32>
    %819 = math.tanh %818 : vector<8x128xf32>
    %cst_348 = arith.constant 1.000000e+00 : f32
    %820 = vector.broadcast %cst_348 : f32 to vector<8x128xf32>
    %821 = arith.addf %819, %820 : vector<8x128xf32>
    %cst_349 = arith.constant 5.000000e-01 : f32
    %822 = vector.broadcast %cst_349 : f32 to vector<8x128xf32>
    %823 = arith.mulf %822, %821 : vector<8x128xf32>
    %824 = vector.extract_strided_slice %809 {offsets = [0, 128], sizes = [8, 128], strides = [1, 1]} : vector<8x384xf32> to vector<8x128xf32>
    %825 = vector.extract_strided_slice %813 {offsets = [0, 128], sizes = [8, 128], strides = [1, 1]} : vector<8x384xf32> to vector<8x128xf32>
    %826 = arith.addf %824, %825 : vector<8x128xf32>
    %cst_350 = arith.constant 5.000000e-01 : f32
    %827 = vector.broadcast %cst_350 : f32 to vector<8x128xf32>
    %828 = arith.mulf %827, %826 : vector<8x128xf32>
    %829 = math.tanh %828 : vector<8x128xf32>
    %cst_351 = arith.constant 1.000000e+00 : f32
    %830 = vector.broadcast %cst_351 : f32 to vector<8x128xf32>
    %831 = arith.addf %829, %830 : vector<8x128xf32>
    %cst_352 = arith.constant 5.000000e-01 : f32
    %832 = vector.broadcast %cst_352 : f32 to vector<8x128xf32>
    %833 = arith.mulf %832, %831 : vector<8x128xf32>
    %834 = vector.extract_strided_slice %809 {offsets = [0, 256], sizes = [8, 128], strides = [1, 1]} : vector<8x384xf32> to vector<8x128xf32>
    %835 = vector.extract_strided_slice %813 {offsets = [0, 256], sizes = [8, 128], strides = [1, 1]} : vector<8x384xf32> to vector<8x128xf32>
    %836 = arith.addf %835, %650 : vector<8x128xf32>
    %837 = arith.mulf %823, %836 : vector<8x128xf32>
    %838 = arith.addf %834, %837 : vector<8x128xf32>
    %839 = math.tanh %838 : vector<8x128xf32>
    %cst_353 = arith.constant 1.000000e+00 : f32
    %840 = vector.broadcast %cst_353 : f32 to vector<8x128xf32>
    %841 = arith.subf %840, %833 : vector<8x128xf32>
    %842 = arith.mulf %841, %839 : vector<8x128xf32>
    %843 = arith.mulf %833, %768 : vector<8x128xf32>
    %844 = arith.addf %842, %843 : vector<8x128xf32>
    %845 = vector.extract_strided_slice %844 {offsets = [0, 0], sizes = [8, 32], strides = [1, 1]} : vector<8x128xf32> to vector<8x32xf32>
    %c1_354 = arith.constant 1 : index
    %c1_355 = arith.constant 1 : index
    %c0_356 = arith.constant 0 : index
    %c0_357 = arith.constant 0 : index
    %846 = vector.load %arg2[%c1_354, %c1_355, %c0_356, %c0_357] : memref<2x2x32x384xf32, #tpu.memory_space<vmem>>, vector<1x1x32x384xf32>
    %847 = vector.shape_cast %846 : vector<1x1x32x384xf32> to vector<32x384xf32>
    %cst_358 = arith.constant dense<0.000000e+00> : vector<8x384xf32>
    %848 = tpu.matmul %845, %847, %cst_358 {dimension_numbers = #tpu.dot_dimension_numbers<[1], [0], [0], [1], [0, 0, 1, 1], [], []>} : vector<8x32xf32>, vector<32x384xf32>, vector<8x384xf32> -> vector<8x384xf32>
    %849 = arith.addf %848, %646 : vector<8x384xf32>
    %850 = vector.extract_strided_slice %808 {offsets = [0, 0], sizes = [8, 32], strides = [1, 1]} : vector<8x128xf32> to vector<8x32xf32>
    %c1_359 = arith.constant 1 : index
    %c1_360 = arith.constant 1 : index
    %c0_361 = arith.constant 0 : index
    %c0_362 = arith.constant 0 : index
    %851 = vector.load %arg3[%c1_359, %c1_360, %c0_361, %c0_362] : memref<2x2x32x384xf32, #tpu.memory_space<vmem>>, vector<1x1x32x384xf32>
    %852 = vector.shape_cast %851 : vector<1x1x32x384xf32> to vector<32x384xf32>
    %cst_363 = arith.constant dense<0.000000e+00> : vector<8x384xf32>
    %853 = tpu.matmul %850, %852, %cst_363 {dimension_numbers = #tpu.dot_dimension_numbers<[1], [0], [0], [1], [0, 0, 1, 1], [], []>} : vector<8x32xf32>, vector<32x384xf32>, vector<8x384xf32> -> vector<8x384xf32>
    %854 = vector.extract_strided_slice %849 {offsets = [0, 0], sizes = [8, 128], strides = [1, 1]} : vector<8x384xf32> to vector<8x128xf32>
    %855 = vector.extract_strided_slice %853 {offsets = [0, 0], sizes = [8, 128], strides = [1, 1]} : vector<8x384xf32> to vector<8x128xf32>
    %856 = arith.addf %854, %855 : vector<8x128xf32>
    %cst_364 = arith.constant 5.000000e-01 : f32
    %857 = vector.broadcast %cst_364 : f32 to vector<8x128xf32>
    %858 = arith.mulf %857, %856 : vector<8x128xf32>
    %859 = math.tanh %858 : vector<8x128xf32>
    %cst_365 = arith.constant 1.000000e+00 : f32
    %860 = vector.broadcast %cst_365 : f32 to vector<8x128xf32>
    %861 = arith.addf %859, %860 : vector<8x128xf32>
    %cst_366 = arith.constant 5.000000e-01 : f32
    %862 = vector.broadcast %cst_366 : f32 to vector<8x128xf32>
    %863 = arith.mulf %862, %861 : vector<8x128xf32>
    %864 = vector.extract_strided_slice %849 {offsets = [0, 128], sizes = [8, 128], strides = [1, 1]} : vector<8x384xf32> to vector<8x128xf32>
    %865 = vector.extract_strided_slice %853 {offsets = [0, 128], sizes = [8, 128], strides = [1, 1]} : vector<8x384xf32> to vector<8x128xf32>
    %866 = arith.addf %864, %865 : vector<8x128xf32>
    %cst_367 = arith.constant 5.000000e-01 : f32
    %867 = vector.broadcast %cst_367 : f32 to vector<8x128xf32>
    %868 = arith.mulf %867, %866 : vector<8x128xf32>
    %869 = math.tanh %868 : vector<8x128xf32>
    %cst_368 = arith.constant 1.000000e+00 : f32
    %870 = vector.broadcast %cst_368 : f32 to vector<8x128xf32>
    %871 = arith.addf %869, %870 : vector<8x128xf32>
    %cst_369 = arith.constant 5.000000e-01 : f32
    %872 = vector.broadcast %cst_369 : f32 to vector<8x128xf32>
    %873 = arith.mulf %872, %871 : vector<8x128xf32>
    %874 = vector.extract_strided_slice %849 {offsets = [0, 256], sizes = [8, 128], strides = [1, 1]} : vector<8x384xf32> to vector<8x128xf32>
    %875 = vector.extract_strided_slice %853 {offsets = [0, 256], sizes = [8, 128], strides = [1, 1]} : vector<8x384xf32> to vector<8x128xf32>
    %876 = arith.addf %875, %654 : vector<8x128xf32>
    %877 = arith.mulf %863, %876 : vector<8x128xf32>
    %878 = arith.addf %874, %877 : vector<8x128xf32>
    %879 = math.tanh %878 : vector<8x128xf32>
    %cst_370 = arith.constant 1.000000e+00 : f32
    %880 = vector.broadcast %cst_370 : f32 to vector<8x128xf32>
    %881 = arith.subf %880, %873 : vector<8x128xf32>
    %882 = arith.mulf %881, %879 : vector<8x128xf32>
    %883 = arith.mulf %873, %808 : vector<8x128xf32>
    %884 = arith.addf %882, %883 : vector<8x128xf32>
    %885 = vector.extract_strided_slice %642 {offsets = [24, 0], sizes = [8, 384], strides = [1, 1]} : vector<64x384xf32> to vector<8x384xf32>
    %886 = vector.extract_strided_slice %844 {offsets = [0, 0], sizes = [8, 32], strides = [1, 1]} : vector<8x128xf32> to vector<8x32xf32>
    %c1_371 = arith.constant 1 : index
    %c0_372 = arith.constant 0 : index
    %c0_373 = arith.constant 0 : index
    %c0_374 = arith.constant 0 : index
    %887 = vector.load %arg3[%c1_371, %c0_372, %c0_373, %c0_374] : memref<2x2x32x384xf32, #tpu.memory_space<vmem>>, vector<1x1x32x384xf32>
    %888 = vector.shape_cast %887 : vector<1x1x32x384xf32> to vector<32x384xf32>
    %cst_375 = arith.constant dense<0.000000e+00> : vector<8x384xf32>
    %889 = tpu.matmul %886, %888, %cst_375 {dimension_numbers = #tpu.dot_dimension_numbers<[1], [0], [0], [1], [0, 0, 1, 1], [], []>} : vector<8x32xf32>, vector<32x384xf32>, vector<8x384xf32> -> vector<8x384xf32>
    %890 = vector.extract_strided_slice %885 {offsets = [0, 0], sizes = [8, 128], strides = [1, 1]} : vector<8x384xf32> to vector<8x128xf32>
    %891 = vector.extract_strided_slice %889 {offsets = [0, 0], sizes = [8, 128], strides = [1, 1]} : vector<8x384xf32> to vector<8x128xf32>
    %892 = arith.addf %890, %891 : vector<8x128xf32>
    %cst_376 = arith.constant 5.000000e-01 : f32
    %893 = vector.broadcast %cst_376 : f32 to vector<8x128xf32>
    %894 = arith.mulf %893, %892 : vector<8x128xf32>
    %895 = math.tanh %894 : vector<8x128xf32>
    %cst_377 = arith.constant 1.000000e+00 : f32
    %896 = vector.broadcast %cst_377 : f32 to vector<8x128xf32>
    %897 = arith.addf %895, %896 : vector<8x128xf32>
    %cst_378 = arith.constant 5.000000e-01 : f32
    %898 = vector.broadcast %cst_378 : f32 to vector<8x128xf32>
    %899 = arith.mulf %898, %897 : vector<8x128xf32>
    %900 = vector.extract_strided_slice %885 {offsets = [0, 128], sizes = [8, 128], strides = [1, 1]} : vector<8x384xf32> to vector<8x128xf32>
    %901 = vector.extract_strided_slice %889 {offsets = [0, 128], sizes = [8, 128], strides = [1, 1]} : vector<8x384xf32> to vector<8x128xf32>
    %902 = arith.addf %900, %901 : vector<8x128xf32>
    %cst_379 = arith.constant 5.000000e-01 : f32
    %903 = vector.broadcast %cst_379 : f32 to vector<8x128xf32>
    %904 = arith.mulf %903, %902 : vector<8x128xf32>
    %905 = math.tanh %904 : vector<8x128xf32>
    %cst_380 = arith.constant 1.000000e+00 : f32
    %906 = vector.broadcast %cst_380 : f32 to vector<8x128xf32>
    %907 = arith.addf %905, %906 : vector<8x128xf32>
    %cst_381 = arith.constant 5.000000e-01 : f32
    %908 = vector.broadcast %cst_381 : f32 to vector<8x128xf32>
    %909 = arith.mulf %908, %907 : vector<8x128xf32>
    %910 = vector.extract_strided_slice %885 {offsets = [0, 256], sizes = [8, 128], strides = [1, 1]} : vector<8x384xf32> to vector<8x128xf32>
    %911 = vector.extract_strided_slice %889 {offsets = [0, 256], sizes = [8, 128], strides = [1, 1]} : vector<8x384xf32> to vector<8x128xf32>
    %912 = arith.addf %911, %650 : vector<8x128xf32>
    %913 = arith.mulf %899, %912 : vector<8x128xf32>
    %914 = arith.addf %910, %913 : vector<8x128xf32>
    %915 = math.tanh %914 : vector<8x128xf32>
    %cst_382 = arith.constant 1.000000e+00 : f32
    %916 = vector.broadcast %cst_382 : f32 to vector<8x128xf32>
    %917 = arith.subf %916, %909 : vector<8x128xf32>
    %918 = arith.mulf %917, %915 : vector<8x128xf32>
    %919 = arith.mulf %909, %844 : vector<8x128xf32>
    %920 = arith.addf %918, %919 : vector<8x128xf32>
    %921 = vector.extract_strided_slice %920 {offsets = [0, 0], sizes = [8, 32], strides = [1, 1]} : vector<8x128xf32> to vector<8x32xf32>
    %c1_383 = arith.constant 1 : index
    %c1_384 = arith.constant 1 : index
    %c0_385 = arith.constant 0 : index
    %c0_386 = arith.constant 0 : index
    %922 = vector.load %arg2[%c1_383, %c1_384, %c0_385, %c0_386] : memref<2x2x32x384xf32, #tpu.memory_space<vmem>>, vector<1x1x32x384xf32>
    %923 = vector.shape_cast %922 : vector<1x1x32x384xf32> to vector<32x384xf32>
    %cst_387 = arith.constant dense<0.000000e+00> : vector<8x384xf32>
    %924 = tpu.matmul %921, %923, %cst_387 {dimension_numbers = #tpu.dot_dimension_numbers<[1], [0], [0], [1], [0, 0, 1, 1], [], []>} : vector<8x32xf32>, vector<32x384xf32>, vector<8x384xf32> -> vector<8x384xf32>
    %925 = arith.addf %924, %646 : vector<8x384xf32>
    %926 = vector.extract_strided_slice %884 {offsets = [0, 0], sizes = [8, 32], strides = [1, 1]} : vector<8x128xf32> to vector<8x32xf32>
    %c1_388 = arith.constant 1 : index
    %c1_389 = arith.constant 1 : index
    %c0_390 = arith.constant 0 : index
    %c0_391 = arith.constant 0 : index
    %927 = vector.load %arg3[%c1_388, %c1_389, %c0_390, %c0_391] : memref<2x2x32x384xf32, #tpu.memory_space<vmem>>, vector<1x1x32x384xf32>
    %928 = vector.shape_cast %927 : vector<1x1x32x384xf32> to vector<32x384xf32>
    %cst_392 = arith.constant dense<0.000000e+00> : vector<8x384xf32>
    %929 = tpu.matmul %926, %928, %cst_392 {dimension_numbers = #tpu.dot_dimension_numbers<[1], [0], [0], [1], [0, 0, 1, 1], [], []>} : vector<8x32xf32>, vector<32x384xf32>, vector<8x384xf32> -> vector<8x384xf32>
    %930 = vector.extract_strided_slice %925 {offsets = [0, 0], sizes = [8, 128], strides = [1, 1]} : vector<8x384xf32> to vector<8x128xf32>
    %931 = vector.extract_strided_slice %929 {offsets = [0, 0], sizes = [8, 128], strides = [1, 1]} : vector<8x384xf32> to vector<8x128xf32>
    %932 = arith.addf %930, %931 : vector<8x128xf32>
    %cst_393 = arith.constant 5.000000e-01 : f32
    %933 = vector.broadcast %cst_393 : f32 to vector<8x128xf32>
    %934 = arith.mulf %933, %932 : vector<8x128xf32>
    %935 = math.tanh %934 : vector<8x128xf32>
    %cst_394 = arith.constant 1.000000e+00 : f32
    %936 = vector.broadcast %cst_394 : f32 to vector<8x128xf32>
    %937 = arith.addf %935, %936 : vector<8x128xf32>
    %cst_395 = arith.constant 5.000000e-01 : f32
    %938 = vector.broadcast %cst_395 : f32 to vector<8x128xf32>
    %939 = arith.mulf %938, %937 : vector<8x128xf32>
    %940 = vector.extract_strided_slice %925 {offsets = [0, 128], sizes = [8, 128], strides = [1, 1]} : vector<8x384xf32> to vector<8x128xf32>
    %941 = vector.extract_strided_slice %929 {offsets = [0, 128], sizes = [8, 128], strides = [1, 1]} : vector<8x384xf32> to vector<8x128xf32>
    %942 = arith.addf %940, %941 : vector<8x128xf32>
    %cst_396 = arith.constant 5.000000e-01 : f32
    %943 = vector.broadcast %cst_396 : f32 to vector<8x128xf32>
    %944 = arith.mulf %943, %942 : vector<8x128xf32>
    %945 = math.tanh %944 : vector<8x128xf32>
    %cst_397 = arith.constant 1.000000e+00 : f32
    %946 = vector.broadcast %cst_397 : f32 to vector<8x128xf32>
    %947 = arith.addf %945, %946 : vector<8x128xf32>
    %cst_398 = arith.constant 5.000000e-01 : f32
    %948 = vector.broadcast %cst_398 : f32 to vector<8x128xf32>
    %949 = arith.mulf %948, %947 : vector<8x128xf32>
    %950 = vector.extract_strided_slice %925 {offsets = [0, 256], sizes = [8, 128], strides = [1, 1]} : vector<8x384xf32> to vector<8x128xf32>
    %951 = vector.extract_strided_slice %929 {offsets = [0, 256], sizes = [8, 128], strides = [1, 1]} : vector<8x384xf32> to vector<8x128xf32>
    %952 = arith.addf %951, %654 : vector<8x128xf32>
    %953 = arith.mulf %939, %952 : vector<8x128xf32>
    %954 = arith.addf %950, %953 : vector<8x128xf32>
    %955 = math.tanh %954 : vector<8x128xf32>
    %cst_399 = arith.constant 1.000000e+00 : f32
    %956 = vector.broadcast %cst_399 : f32 to vector<8x128xf32>
    %957 = arith.subf %956, %949 : vector<8x128xf32>
    %958 = arith.mulf %957, %955 : vector<8x128xf32>
    %959 = arith.mulf %949, %884 : vector<8x128xf32>
    %960 = arith.addf %958, %959 : vector<8x128xf32>
    %961 = vector.extract_strided_slice %642 {offsets = [32, 0], sizes = [8, 384], strides = [1, 1]} : vector<64x384xf32> to vector<8x384xf32>
    %962 = vector.extract_strided_slice %920 {offsets = [0, 0], sizes = [8, 32], strides = [1, 1]} : vector<8x128xf32> to vector<8x32xf32>
    %c1_400 = arith.constant 1 : index
    %c0_401 = arith.constant 0 : index
    %c0_402 = arith.constant 0 : index
    %c0_403 = arith.constant 0 : index
    %963 = vector.load %arg3[%c1_400, %c0_401, %c0_402, %c0_403] : memref<2x2x32x384xf32, #tpu.memory_space<vmem>>, vector<1x1x32x384xf32>
    %964 = vector.shape_cast %963 : vector<1x1x32x384xf32> to vector<32x384xf32>
    %cst_404 = arith.constant dense<0.000000e+00> : vector<8x384xf32>
    %965 = tpu.matmul %962, %964, %cst_404 {dimension_numbers = #tpu.dot_dimension_numbers<[1], [0], [0], [1], [0, 0, 1, 1], [], []>} : vector<8x32xf32>, vector<32x384xf32>, vector<8x384xf32> -> vector<8x384xf32>
    %966 = vector.extract_strided_slice %961 {offsets = [0, 0], sizes = [8, 128], strides = [1, 1]} : vector<8x384xf32> to vector<8x128xf32>
    %967 = vector.extract_strided_slice %965 {offsets = [0, 0], sizes = [8, 128], strides = [1, 1]} : vector<8x384xf32> to vector<8x128xf32>
    %968 = arith.addf %966, %967 : vector<8x128xf32>
    %cst_405 = arith.constant 5.000000e-01 : f32
    %969 = vector.broadcast %cst_405 : f32 to vector<8x128xf32>
    %970 = arith.mulf %969, %968 : vector<8x128xf32>
    %971 = math.tanh %970 : vector<8x128xf32>
    %cst_406 = arith.constant 1.000000e+00 : f32
    %972 = vector.broadcast %cst_406 : f32 to vector<8x128xf32>
    %973 = arith.addf %971, %972 : vector<8x128xf32>
    %cst_407 = arith.constant 5.000000e-01 : f32
    %974 = vector.broadcast %cst_407 : f32 to vector<8x128xf32>
    %975 = arith.mulf %974, %973 : vector<8x128xf32>
    %976 = vector.extract_strided_slice %961 {offsets = [0, 128], sizes = [8, 128], strides = [1, 1]} : vector<8x384xf32> to vector<8x128xf32>
    %977 = vector.extract_strided_slice %965 {offsets = [0, 128], sizes = [8, 128], strides = [1, 1]} : vector<8x384xf32> to vector<8x128xf32>
    %978 = arith.addf %976, %977 : vector<8x128xf32>
    %cst_408 = arith.constant 5.000000e-01 : f32
    %979 = vector.broadcast %cst_408 : f32 to vector<8x128xf32>
    %980 = arith.mulf %979, %978 : vector<8x128xf32>
    %981 = math.tanh %980 : vector<8x128xf32>
    %cst_409 = arith.constant 1.000000e+00 : f32
    %982 = vector.broadcast %cst_409 : f32 to vector<8x128xf32>
    %983 = arith.addf %981, %982 : vector<8x128xf32>
    %cst_410 = arith.constant 5.000000e-01 : f32
    %984 = vector.broadcast %cst_410 : f32 to vector<8x128xf32>
    %985 = arith.mulf %984, %983 : vector<8x128xf32>
    %986 = vector.extract_strided_slice %961 {offsets = [0, 256], sizes = [8, 128], strides = [1, 1]} : vector<8x384xf32> to vector<8x128xf32>
    %987 = vector.extract_strided_slice %965 {offsets = [0, 256], sizes = [8, 128], strides = [1, 1]} : vector<8x384xf32> to vector<8x128xf32>
    %988 = arith.addf %987, %650 : vector<8x128xf32>
    %989 = arith.mulf %975, %988 : vector<8x128xf32>
    %990 = arith.addf %986, %989 : vector<8x128xf32>
    %991 = math.tanh %990 : vector<8x128xf32>
    %cst_411 = arith.constant 1.000000e+00 : f32
    %992 = vector.broadcast %cst_411 : f32 to vector<8x128xf32>
    %993 = arith.subf %992, %985 : vector<8x128xf32>
    %994 = arith.mulf %993, %991 : vector<8x128xf32>
    %995 = arith.mulf %985, %920 : vector<8x128xf32>
    %996 = arith.addf %994, %995 : vector<8x128xf32>
    %997 = vector.extract_strided_slice %996 {offsets = [0, 0], sizes = [8, 32], strides = [1, 1]} : vector<8x128xf32> to vector<8x32xf32>
    %c1_412 = arith.constant 1 : index
    %c1_413 = arith.constant 1 : index
    %c0_414 = arith.constant 0 : index
    %c0_415 = arith.constant 0 : index
    %998 = vector.load %arg2[%c1_412, %c1_413, %c0_414, %c0_415] : memref<2x2x32x384xf32, #tpu.memory_space<vmem>>, vector<1x1x32x384xf32>
    %999 = vector.shape_cast %998 : vector<1x1x32x384xf32> to vector<32x384xf32>
    %cst_416 = arith.constant dense<0.000000e+00> : vector<8x384xf32>
    %1000 = tpu.matmul %997, %999, %cst_416 {dimension_numbers = #tpu.dot_dimension_numbers<[1], [0], [0], [1], [0, 0, 1, 1], [], []>} : vector<8x32xf32>, vector<32x384xf32>, vector<8x384xf32> -> vector<8x384xf32>
    %1001 = arith.addf %1000, %646 : vector<8x384xf32>
    %1002 = vector.extract_strided_slice %960 {offsets = [0, 0], sizes = [8, 32], strides = [1, 1]} : vector<8x128xf32> to vector<8x32xf32>
    %c1_417 = arith.constant 1 : index
    %c1_418 = arith.constant 1 : index
    %c0_419 = arith.constant 0 : index
    %c0_420 = arith.constant 0 : index
    %1003 = vector.load %arg3[%c1_417, %c1_418, %c0_419, %c0_420] : memref<2x2x32x384xf32, #tpu.memory_space<vmem>>, vector<1x1x32x384xf32>
    %1004 = vector.shape_cast %1003 : vector<1x1x32x384xf32> to vector<32x384xf32>
    %cst_421 = arith.constant dense<0.000000e+00> : vector<8x384xf32>
    %1005 = tpu.matmul %1002, %1004, %cst_421 {dimension_numbers = #tpu.dot_dimension_numbers<[1], [0], [0], [1], [0, 0, 1, 1], [], []>} : vector<8x32xf32>, vector<32x384xf32>, vector<8x384xf32> -> vector<8x384xf32>
    %1006 = vector.extract_strided_slice %1001 {offsets = [0, 0], sizes = [8, 128], strides = [1, 1]} : vector<8x384xf32> to vector<8x128xf32>
    %1007 = vector.extract_strided_slice %1005 {offsets = [0, 0], sizes = [8, 128], strides = [1, 1]} : vector<8x384xf32> to vector<8x128xf32>
    %1008 = arith.addf %1006, %1007 : vector<8x128xf32>
    %cst_422 = arith.constant 5.000000e-01 : f32
    %1009 = vector.broadcast %cst_422 : f32 to vector<8x128xf32>
    %1010 = arith.mulf %1009, %1008 : vector<8x128xf32>
    %1011 = math.tanh %1010 : vector<8x128xf32>
    %cst_423 = arith.constant 1.000000e+00 : f32
    %1012 = vector.broadcast %cst_423 : f32 to vector<8x128xf32>
    %1013 = arith.addf %1011, %1012 : vector<8x128xf32>
    %cst_424 = arith.constant 5.000000e-01 : f32
    %1014 = vector.broadcast %cst_424 : f32 to vector<8x128xf32>
    %1015 = arith.mulf %1014, %1013 : vector<8x128xf32>
    %1016 = vector.extract_strided_slice %1001 {offsets = [0, 128], sizes = [8, 128], strides = [1, 1]} : vector<8x384xf32> to vector<8x128xf32>
    %1017 = vector.extract_strided_slice %1005 {offsets = [0, 128], sizes = [8, 128], strides = [1, 1]} : vector<8x384xf32> to vector<8x128xf32>
    %1018 = arith.addf %1016, %1017 : vector<8x128xf32>
    %cst_425 = arith.constant 5.000000e-01 : f32
    %1019 = vector.broadcast %cst_425 : f32 to vector<8x128xf32>
    %1020 = arith.mulf %1019, %1018 : vector<8x128xf32>
    %1021 = math.tanh %1020 : vector<8x128xf32>
    %cst_426 = arith.constant 1.000000e+00 : f32
    %1022 = vector.broadcast %cst_426 : f32 to vector<8x128xf32>
    %1023 = arith.addf %1021, %1022 : vector<8x128xf32>
    %cst_427 = arith.constant 5.000000e-01 : f32
    %1024 = vector.broadcast %cst_427 : f32 to vector<8x128xf32>
    %1025 = arith.mulf %1024, %1023 : vector<8x128xf32>
    %1026 = vector.extract_strided_slice %1001 {offsets = [0, 256], sizes = [8, 128], strides = [1, 1]} : vector<8x384xf32> to vector<8x128xf32>
    %1027 = vector.extract_strided_slice %1005 {offsets = [0, 256], sizes = [8, 128], strides = [1, 1]} : vector<8x384xf32> to vector<8x128xf32>
    %1028 = arith.addf %1027, %654 : vector<8x128xf32>
    %1029 = arith.mulf %1015, %1028 : vector<8x128xf32>
    %1030 = arith.addf %1026, %1029 : vector<8x128xf32>
    %1031 = math.tanh %1030 : vector<8x128xf32>
    %cst_428 = arith.constant 1.000000e+00 : f32
    %1032 = vector.broadcast %cst_428 : f32 to vector<8x128xf32>
    %1033 = arith.subf %1032, %1025 : vector<8x128xf32>
    %1034 = arith.mulf %1033, %1031 : vector<8x128xf32>
    %1035 = arith.mulf %1025, %960 : vector<8x128xf32>
    %1036 = arith.addf %1034, %1035 : vector<8x128xf32>
    %1037 = vector.extract_strided_slice %642 {offsets = [40, 0], sizes = [8, 384], strides = [1, 1]} : vector<64x384xf32> to vector<8x384xf32>
    %1038 = vector.extract_strided_slice %996 {offsets = [0, 0], sizes = [8, 32], strides = [1, 1]} : vector<8x128xf32> to vector<8x32xf32>
    %c1_429 = arith.constant 1 : index
    %c0_430 = arith.constant 0 : index
    %c0_431 = arith.constant 0 : index
    %c0_432 = arith.constant 0 : index
    %1039 = vector.load %arg3[%c1_429, %c0_430, %c0_431, %c0_432] : memref<2x2x32x384xf32, #tpu.memory_space<vmem>>, vector<1x1x32x384xf32>
    %1040 = vector.shape_cast %1039 : vector<1x1x32x384xf32> to vector<32x384xf32>
    %cst_433 = arith.constant dense<0.000000e+00> : vector<8x384xf32>
    %1041 = tpu.matmul %1038, %1040, %cst_433 {dimension_numbers = #tpu.dot_dimension_numbers<[1], [0], [0], [1], [0, 0, 1, 1], [], []>} : vector<8x32xf32>, vector<32x384xf32>, vector<8x384xf32> -> vector<8x384xf32>
    %1042 = vector.extract_strided_slice %1037 {offsets = [0, 0], sizes = [8, 128], strides = [1, 1]} : vector<8x384xf32> to vector<8x128xf32>
    %1043 = vector.extract_strided_slice %1041 {offsets = [0, 0], sizes = [8, 128], strides = [1, 1]} : vector<8x384xf32> to vector<8x128xf32>
    %1044 = arith.addf %1042, %1043 : vector<8x128xf32>
    %cst_434 = arith.constant 5.000000e-01 : f32
    %1045 = vector.broadcast %cst_434 : f32 to vector<8x128xf32>
    %1046 = arith.mulf %1045, %1044 : vector<8x128xf32>
    %1047 = math.tanh %1046 : vector<8x128xf32>
    %cst_435 = arith.constant 1.000000e+00 : f32
    %1048 = vector.broadcast %cst_435 : f32 to vector<8x128xf32>
    %1049 = arith.addf %1047, %1048 : vector<8x128xf32>
    %cst_436 = arith.constant 5.000000e-01 : f32
    %1050 = vector.broadcast %cst_436 : f32 to vector<8x128xf32>
    %1051 = arith.mulf %1050, %1049 : vector<8x128xf32>
    %1052 = vector.extract_strided_slice %1037 {offsets = [0, 128], sizes = [8, 128], strides = [1, 1]} : vector<8x384xf32> to vector<8x128xf32>
    %1053 = vector.extract_strided_slice %1041 {offsets = [0, 128], sizes = [8, 128], strides = [1, 1]} : vector<8x384xf32> to vector<8x128xf32>
    %1054 = arith.addf %1052, %1053 : vector<8x128xf32>
    %cst_437 = arith.constant 5.000000e-01 : f32
    %1055 = vector.broadcast %cst_437 : f32 to vector<8x128xf32>
    %1056 = arith.mulf %1055, %1054 : vector<8x128xf32>
    %1057 = math.tanh %1056 : vector<8x128xf32>
    %cst_438 = arith.constant 1.000000e+00 : f32
    %1058 = vector.broadcast %cst_438 : f32 to vector<8x128xf32>
    %1059 = arith.addf %1057, %1058 : vector<8x128xf32>
    %cst_439 = arith.constant 5.000000e-01 : f32
    %1060 = vector.broadcast %cst_439 : f32 to vector<8x128xf32>
    %1061 = arith.mulf %1060, %1059 : vector<8x128xf32>
    %1062 = vector.extract_strided_slice %1037 {offsets = [0, 256], sizes = [8, 128], strides = [1, 1]} : vector<8x384xf32> to vector<8x128xf32>
    %1063 = vector.extract_strided_slice %1041 {offsets = [0, 256], sizes = [8, 128], strides = [1, 1]} : vector<8x384xf32> to vector<8x128xf32>
    %1064 = arith.addf %1063, %650 : vector<8x128xf32>
    %1065 = arith.mulf %1051, %1064 : vector<8x128xf32>
    %1066 = arith.addf %1062, %1065 : vector<8x128xf32>
    %1067 = math.tanh %1066 : vector<8x128xf32>
    %cst_440 = arith.constant 1.000000e+00 : f32
    %1068 = vector.broadcast %cst_440 : f32 to vector<8x128xf32>
    %1069 = arith.subf %1068, %1061 : vector<8x128xf32>
    %1070 = arith.mulf %1069, %1067 : vector<8x128xf32>
    %1071 = arith.mulf %1061, %996 : vector<8x128xf32>
    %1072 = arith.addf %1070, %1071 : vector<8x128xf32>
    %1073 = vector.extract_strided_slice %1072 {offsets = [0, 0], sizes = [8, 32], strides = [1, 1]} : vector<8x128xf32> to vector<8x32xf32>
    %c1_441 = arith.constant 1 : index
    %c1_442 = arith.constant 1 : index
    %c0_443 = arith.constant 0 : index
    %c0_444 = arith.constant 0 : index
    %1074 = vector.load %arg2[%c1_441, %c1_442, %c0_443, %c0_444] : memref<2x2x32x384xf32, #tpu.memory_space<vmem>>, vector<1x1x32x384xf32>
    %1075 = vector.shape_cast %1074 : vector<1x1x32x384xf32> to vector<32x384xf32>
    %cst_445 = arith.constant dense<0.000000e+00> : vector<8x384xf32>
    %1076 = tpu.matmul %1073, %1075, %cst_445 {dimension_numbers = #tpu.dot_dimension_numbers<[1], [0], [0], [1], [0, 0, 1, 1], [], []>} : vector<8x32xf32>, vector<32x384xf32>, vector<8x384xf32> -> vector<8x384xf32>
    %1077 = arith.addf %1076, %646 : vector<8x384xf32>
    %1078 = vector.extract_strided_slice %1036 {offsets = [0, 0], sizes = [8, 32], strides = [1, 1]} : vector<8x128xf32> to vector<8x32xf32>
    %c1_446 = arith.constant 1 : index
    %c1_447 = arith.constant 1 : index
    %c0_448 = arith.constant 0 : index
    %c0_449 = arith.constant 0 : index
    %1079 = vector.load %arg3[%c1_446, %c1_447, %c0_448, %c0_449] : memref<2x2x32x384xf32, #tpu.memory_space<vmem>>, vector<1x1x32x384xf32>
    %1080 = vector.shape_cast %1079 : vector<1x1x32x384xf32> to vector<32x384xf32>
    %cst_450 = arith.constant dense<0.000000e+00> : vector<8x384xf32>
    %1081 = tpu.matmul %1078, %1080, %cst_450 {dimension_numbers = #tpu.dot_dimension_numbers<[1], [0], [0], [1], [0, 0, 1, 1], [], []>} : vector<8x32xf32>, vector<32x384xf32>, vector<8x384xf32> -> vector<8x384xf32>
    %1082 = vector.extract_strided_slice %1077 {offsets = [0, 0], sizes = [8, 128], strides = [1, 1]} : vector<8x384xf32> to vector<8x128xf32>
    %1083 = vector.extract_strided_slice %1081 {offsets = [0, 0], sizes = [8, 128], strides = [1, 1]} : vector<8x384xf32> to vector<8x128xf32>
    %1084 = arith.addf %1082, %1083 : vector<8x128xf32>
    %cst_451 = arith.constant 5.000000e-01 : f32
    %1085 = vector.broadcast %cst_451 : f32 to vector<8x128xf32>
    %1086 = arith.mulf %1085, %1084 : vector<8x128xf32>
    %1087 = math.tanh %1086 : vector<8x128xf32>
    %cst_452 = arith.constant 1.000000e+00 : f32
    %1088 = vector.broadcast %cst_452 : f32 to vector<8x128xf32>
    %1089 = arith.addf %1087, %1088 : vector<8x128xf32>
    %cst_453 = arith.constant 5.000000e-01 : f32
    %1090 = vector.broadcast %cst_453 : f32 to vector<8x128xf32>
    %1091 = arith.mulf %1090, %1089 : vector<8x128xf32>
    %1092 = vector.extract_strided_slice %1077 {offsets = [0, 128], sizes = [8, 128], strides = [1, 1]} : vector<8x384xf32> to vector<8x128xf32>
    %1093 = vector.extract_strided_slice %1081 {offsets = [0, 128], sizes = [8, 128], strides = [1, 1]} : vector<8x384xf32> to vector<8x128xf32>
    %1094 = arith.addf %1092, %1093 : vector<8x128xf32>
    %cst_454 = arith.constant 5.000000e-01 : f32
    %1095 = vector.broadcast %cst_454 : f32 to vector<8x128xf32>
    %1096 = arith.mulf %1095, %1094 : vector<8x128xf32>
    %1097 = math.tanh %1096 : vector<8x128xf32>
    %cst_455 = arith.constant 1.000000e+00 : f32
    %1098 = vector.broadcast %cst_455 : f32 to vector<8x128xf32>
    %1099 = arith.addf %1097, %1098 : vector<8x128xf32>
    %cst_456 = arith.constant 5.000000e-01 : f32
    %1100 = vector.broadcast %cst_456 : f32 to vector<8x128xf32>
    %1101 = arith.mulf %1100, %1099 : vector<8x128xf32>
    %1102 = vector.extract_strided_slice %1077 {offsets = [0, 256], sizes = [8, 128], strides = [1, 1]} : vector<8x384xf32> to vector<8x128xf32>
    %1103 = vector.extract_strided_slice %1081 {offsets = [0, 256], sizes = [8, 128], strides = [1, 1]} : vector<8x384xf32> to vector<8x128xf32>
    %1104 = arith.addf %1103, %654 : vector<8x128xf32>
    %1105 = arith.mulf %1091, %1104 : vector<8x128xf32>
    %1106 = arith.addf %1102, %1105 : vector<8x128xf32>
    %1107 = math.tanh %1106 : vector<8x128xf32>
    %cst_457 = arith.constant 1.000000e+00 : f32
    %1108 = vector.broadcast %cst_457 : f32 to vector<8x128xf32>
    %1109 = arith.subf %1108, %1101 : vector<8x128xf32>
    %1110 = arith.mulf %1109, %1107 : vector<8x128xf32>
    %1111 = arith.mulf %1101, %1036 : vector<8x128xf32>
    %1112 = arith.addf %1110, %1111 : vector<8x128xf32>
    %1113 = vector.extract_strided_slice %642 {offsets = [48, 0], sizes = [8, 384], strides = [1, 1]} : vector<64x384xf32> to vector<8x384xf32>
    %1114 = vector.extract_strided_slice %1072 {offsets = [0, 0], sizes = [8, 32], strides = [1, 1]} : vector<8x128xf32> to vector<8x32xf32>
    %c1_458 = arith.constant 1 : index
    %c0_459 = arith.constant 0 : index
    %c0_460 = arith.constant 0 : index
    %c0_461 = arith.constant 0 : index
    %1115 = vector.load %arg3[%c1_458, %c0_459, %c0_460, %c0_461] : memref<2x2x32x384xf32, #tpu.memory_space<vmem>>, vector<1x1x32x384xf32>
    %1116 = vector.shape_cast %1115 : vector<1x1x32x384xf32> to vector<32x384xf32>
    %cst_462 = arith.constant dense<0.000000e+00> : vector<8x384xf32>
    %1117 = tpu.matmul %1114, %1116, %cst_462 {dimension_numbers = #tpu.dot_dimension_numbers<[1], [0], [0], [1], [0, 0, 1, 1], [], []>} : vector<8x32xf32>, vector<32x384xf32>, vector<8x384xf32> -> vector<8x384xf32>
    %1118 = vector.extract_strided_slice %1113 {offsets = [0, 0], sizes = [8, 128], strides = [1, 1]} : vector<8x384xf32> to vector<8x128xf32>
    %1119 = vector.extract_strided_slice %1117 {offsets = [0, 0], sizes = [8, 128], strides = [1, 1]} : vector<8x384xf32> to vector<8x128xf32>
    %1120 = arith.addf %1118, %1119 : vector<8x128xf32>
    %cst_463 = arith.constant 5.000000e-01 : f32
    %1121 = vector.broadcast %cst_463 : f32 to vector<8x128xf32>
    %1122 = arith.mulf %1121, %1120 : vector<8x128xf32>
    %1123 = math.tanh %1122 : vector<8x128xf32>
    %cst_464 = arith.constant 1.000000e+00 : f32
    %1124 = vector.broadcast %cst_464 : f32 to vector<8x128xf32>
    %1125 = arith.addf %1123, %1124 : vector<8x128xf32>
    %cst_465 = arith.constant 5.000000e-01 : f32
    %1126 = vector.broadcast %cst_465 : f32 to vector<8x128xf32>
    %1127 = arith.mulf %1126, %1125 : vector<8x128xf32>
    %1128 = vector.extract_strided_slice %1113 {offsets = [0, 128], sizes = [8, 128], strides = [1, 1]} : vector<8x384xf32> to vector<8x128xf32>
    %1129 = vector.extract_strided_slice %1117 {offsets = [0, 128], sizes = [8, 128], strides = [1, 1]} : vector<8x384xf32> to vector<8x128xf32>
    %1130 = arith.addf %1128, %1129 : vector<8x128xf32>
    %cst_466 = arith.constant 5.000000e-01 : f32
    %1131 = vector.broadcast %cst_466 : f32 to vector<8x128xf32>
    %1132 = arith.mulf %1131, %1130 : vector<8x128xf32>
    %1133 = math.tanh %1132 : vector<8x128xf32>
    %cst_467 = arith.constant 1.000000e+00 : f32
    %1134 = vector.broadcast %cst_467 : f32 to vector<8x128xf32>
    %1135 = arith.addf %1133, %1134 : vector<8x128xf32>
    %cst_468 = arith.constant 5.000000e-01 : f32
    %1136 = vector.broadcast %cst_468 : f32 to vector<8x128xf32>
    %1137 = arith.mulf %1136, %1135 : vector<8x128xf32>
    %1138 = vector.extract_strided_slice %1113 {offsets = [0, 256], sizes = [8, 128], strides = [1, 1]} : vector<8x384xf32> to vector<8x128xf32>
    %1139 = vector.extract_strided_slice %1117 {offsets = [0, 256], sizes = [8, 128], strides = [1, 1]} : vector<8x384xf32> to vector<8x128xf32>
    %1140 = arith.addf %1139, %650 : vector<8x128xf32>
    %1141 = arith.mulf %1127, %1140 : vector<8x128xf32>
    %1142 = arith.addf %1138, %1141 : vector<8x128xf32>
    %1143 = math.tanh %1142 : vector<8x128xf32>
    %cst_469 = arith.constant 1.000000e+00 : f32
    %1144 = vector.broadcast %cst_469 : f32 to vector<8x128xf32>
    %1145 = arith.subf %1144, %1137 : vector<8x128xf32>
    %1146 = arith.mulf %1145, %1143 : vector<8x128xf32>
    %1147 = arith.mulf %1137, %1072 : vector<8x128xf32>
    %1148 = arith.addf %1146, %1147 : vector<8x128xf32>
    %1149 = vector.extract_strided_slice %1148 {offsets = [0, 0], sizes = [8, 32], strides = [1, 1]} : vector<8x128xf32> to vector<8x32xf32>
    %c1_470 = arith.constant 1 : index
    %c1_471 = arith.constant 1 : index
    %c0_472 = arith.constant 0 : index
    %c0_473 = arith.constant 0 : index
    %1150 = vector.load %arg2[%c1_470, %c1_471, %c0_472, %c0_473] : memref<2x2x32x384xf32, #tpu.memory_space<vmem>>, vector<1x1x32x384xf32>
    %1151 = vector.shape_cast %1150 : vector<1x1x32x384xf32> to vector<32x384xf32>
    %cst_474 = arith.constant dense<0.000000e+00> : vector<8x384xf32>
    %1152 = tpu.matmul %1149, %1151, %cst_474 {dimension_numbers = #tpu.dot_dimension_numbers<[1], [0], [0], [1], [0, 0, 1, 1], [], []>} : vector<8x32xf32>, vector<32x384xf32>, vector<8x384xf32> -> vector<8x384xf32>
    %1153 = arith.addf %1152, %646 : vector<8x384xf32>
    %1154 = vector.extract_strided_slice %1112 {offsets = [0, 0], sizes = [8, 32], strides = [1, 1]} : vector<8x128xf32> to vector<8x32xf32>
    %c1_475 = arith.constant 1 : index
    %c1_476 = arith.constant 1 : index
    %c0_477 = arith.constant 0 : index
    %c0_478 = arith.constant 0 : index
    %1155 = vector.load %arg3[%c1_475, %c1_476, %c0_477, %c0_478] : memref<2x2x32x384xf32, #tpu.memory_space<vmem>>, vector<1x1x32x384xf32>
    %1156 = vector.shape_cast %1155 : vector<1x1x32x384xf32> to vector<32x384xf32>
    %cst_479 = arith.constant dense<0.000000e+00> : vector<8x384xf32>
    %1157 = tpu.matmul %1154, %1156, %cst_479 {dimension_numbers = #tpu.dot_dimension_numbers<[1], [0], [0], [1], [0, 0, 1, 1], [], []>} : vector<8x32xf32>, vector<32x384xf32>, vector<8x384xf32> -> vector<8x384xf32>
    %1158 = vector.extract_strided_slice %1153 {offsets = [0, 0], sizes = [8, 128], strides = [1, 1]} : vector<8x384xf32> to vector<8x128xf32>
    %1159 = vector.extract_strided_slice %1157 {offsets = [0, 0], sizes = [8, 128], strides = [1, 1]} : vector<8x384xf32> to vector<8x128xf32>
    %1160 = arith.addf %1158, %1159 : vector<8x128xf32>
    %cst_480 = arith.constant 5.000000e-01 : f32
    %1161 = vector.broadcast %cst_480 : f32 to vector<8x128xf32>
    %1162 = arith.mulf %1161, %1160 : vector<8x128xf32>
    %1163 = math.tanh %1162 : vector<8x128xf32>
    %cst_481 = arith.constant 1.000000e+00 : f32
    %1164 = vector.broadcast %cst_481 : f32 to vector<8x128xf32>
    %1165 = arith.addf %1163, %1164 : vector<8x128xf32>
    %cst_482 = arith.constant 5.000000e-01 : f32
    %1166 = vector.broadcast %cst_482 : f32 to vector<8x128xf32>
    %1167 = arith.mulf %1166, %1165 : vector<8x128xf32>
    %1168 = vector.extract_strided_slice %1153 {offsets = [0, 128], sizes = [8, 128], strides = [1, 1]} : vector<8x384xf32> to vector<8x128xf32>
    %1169 = vector.extract_strided_slice %1157 {offsets = [0, 128], sizes = [8, 128], strides = [1, 1]} : vector<8x384xf32> to vector<8x128xf32>
    %1170 = arith.addf %1168, %1169 : vector<8x128xf32>
    %cst_483 = arith.constant 5.000000e-01 : f32
    %1171 = vector.broadcast %cst_483 : f32 to vector<8x128xf32>
    %1172 = arith.mulf %1171, %1170 : vector<8x128xf32>
    %1173 = math.tanh %1172 : vector<8x128xf32>
    %cst_484 = arith.constant 1.000000e+00 : f32
    %1174 = vector.broadcast %cst_484 : f32 to vector<8x128xf32>
    %1175 = arith.addf %1173, %1174 : vector<8x128xf32>
    %cst_485 = arith.constant 5.000000e-01 : f32
    %1176 = vector.broadcast %cst_485 : f32 to vector<8x128xf32>
    %1177 = arith.mulf %1176, %1175 : vector<8x128xf32>
    %1178 = vector.extract_strided_slice %1153 {offsets = [0, 256], sizes = [8, 128], strides = [1, 1]} : vector<8x384xf32> to vector<8x128xf32>
    %1179 = vector.extract_strided_slice %1157 {offsets = [0, 256], sizes = [8, 128], strides = [1, 1]} : vector<8x384xf32> to vector<8x128xf32>
    %1180 = arith.addf %1179, %654 : vector<8x128xf32>
    %1181 = arith.mulf %1167, %1180 : vector<8x128xf32>
    %1182 = arith.addf %1178, %1181 : vector<8x128xf32>
    %1183 = math.tanh %1182 : vector<8x128xf32>
    %cst_486 = arith.constant 1.000000e+00 : f32
    %1184 = vector.broadcast %cst_486 : f32 to vector<8x128xf32>
    %1185 = arith.subf %1184, %1177 : vector<8x128xf32>
    %1186 = arith.mulf %1185, %1183 : vector<8x128xf32>
    %1187 = arith.mulf %1177, %1112 : vector<8x128xf32>
    %1188 = arith.addf %1186, %1187 : vector<8x128xf32>
    %1189 = vector.extract_strided_slice %642 {offsets = [56, 0], sizes = [8, 384], strides = [1, 1]} : vector<64x384xf32> to vector<8x384xf32>
    %1190 = vector.extract_strided_slice %1148 {offsets = [0, 0], sizes = [8, 32], strides = [1, 1]} : vector<8x128xf32> to vector<8x32xf32>
    %c1_487 = arith.constant 1 : index
    %c0_488 = arith.constant 0 : index
    %c0_489 = arith.constant 0 : index
    %c0_490 = arith.constant 0 : index
    %1191 = vector.load %arg3[%c1_487, %c0_488, %c0_489, %c0_490] : memref<2x2x32x384xf32, #tpu.memory_space<vmem>>, vector<1x1x32x384xf32>
    %1192 = vector.shape_cast %1191 : vector<1x1x32x384xf32> to vector<32x384xf32>
    %cst_491 = arith.constant dense<0.000000e+00> : vector<8x384xf32>
    %1193 = tpu.matmul %1190, %1192, %cst_491 {dimension_numbers = #tpu.dot_dimension_numbers<[1], [0], [0], [1], [0, 0, 1, 1], [], []>} : vector<8x32xf32>, vector<32x384xf32>, vector<8x384xf32> -> vector<8x384xf32>
    %1194 = vector.extract_strided_slice %1189 {offsets = [0, 0], sizes = [8, 128], strides = [1, 1]} : vector<8x384xf32> to vector<8x128xf32>
    %1195 = vector.extract_strided_slice %1193 {offsets = [0, 0], sizes = [8, 128], strides = [1, 1]} : vector<8x384xf32> to vector<8x128xf32>
    %1196 = arith.addf %1194, %1195 : vector<8x128xf32>
    %cst_492 = arith.constant 5.000000e-01 : f32
    %1197 = vector.broadcast %cst_492 : f32 to vector<8x128xf32>
    %1198 = arith.mulf %1197, %1196 : vector<8x128xf32>
    %1199 = math.tanh %1198 : vector<8x128xf32>
    %cst_493 = arith.constant 1.000000e+00 : f32
    %1200 = vector.broadcast %cst_493 : f32 to vector<8x128xf32>
    %1201 = arith.addf %1199, %1200 : vector<8x128xf32>
    %cst_494 = arith.constant 5.000000e-01 : f32
    %1202 = vector.broadcast %cst_494 : f32 to vector<8x128xf32>
    %1203 = arith.mulf %1202, %1201 : vector<8x128xf32>
    %1204 = vector.extract_strided_slice %1189 {offsets = [0, 128], sizes = [8, 128], strides = [1, 1]} : vector<8x384xf32> to vector<8x128xf32>
    %1205 = vector.extract_strided_slice %1193 {offsets = [0, 128], sizes = [8, 128], strides = [1, 1]} : vector<8x384xf32> to vector<8x128xf32>
    %1206 = arith.addf %1204, %1205 : vector<8x128xf32>
    %cst_495 = arith.constant 5.000000e-01 : f32
    %1207 = vector.broadcast %cst_495 : f32 to vector<8x128xf32>
    %1208 = arith.mulf %1207, %1206 : vector<8x128xf32>
    %1209 = math.tanh %1208 : vector<8x128xf32>
    %cst_496 = arith.constant 1.000000e+00 : f32
    %1210 = vector.broadcast %cst_496 : f32 to vector<8x128xf32>
    %1211 = arith.addf %1209, %1210 : vector<8x128xf32>
    %cst_497 = arith.constant 5.000000e-01 : f32
    %1212 = vector.broadcast %cst_497 : f32 to vector<8x128xf32>
    %1213 = arith.mulf %1212, %1211 : vector<8x128xf32>
    %1214 = vector.extract_strided_slice %1189 {offsets = [0, 256], sizes = [8, 128], strides = [1, 1]} : vector<8x384xf32> to vector<8x128xf32>
    %1215 = vector.extract_strided_slice %1193 {offsets = [0, 256], sizes = [8, 128], strides = [1, 1]} : vector<8x384xf32> to vector<8x128xf32>
    %1216 = arith.addf %1215, %650 : vector<8x128xf32>
    %1217 = arith.mulf %1203, %1216 : vector<8x128xf32>
    %1218 = arith.addf %1214, %1217 : vector<8x128xf32>
    %1219 = math.tanh %1218 : vector<8x128xf32>
    %cst_498 = arith.constant 1.000000e+00 : f32
    %1220 = vector.broadcast %cst_498 : f32 to vector<8x128xf32>
    %1221 = arith.subf %1220, %1213 : vector<8x128xf32>
    %1222 = arith.mulf %1221, %1219 : vector<8x128xf32>
    %1223 = arith.mulf %1213, %1148 : vector<8x128xf32>
    %1224 = arith.addf %1222, %1223 : vector<8x128xf32>
    %1225 = vector.extract_strided_slice %1224 {offsets = [0, 0], sizes = [8, 32], strides = [1, 1]} : vector<8x128xf32> to vector<8x32xf32>
    %c1_499 = arith.constant 1 : index
    %c1_500 = arith.constant 1 : index
    %c0_501 = arith.constant 0 : index
    %c0_502 = arith.constant 0 : index
    %1226 = vector.load %arg2[%c1_499, %c1_500, %c0_501, %c0_502] : memref<2x2x32x384xf32, #tpu.memory_space<vmem>>, vector<1x1x32x384xf32>
    %1227 = vector.shape_cast %1226 : vector<1x1x32x384xf32> to vector<32x384xf32>
    %cst_503 = arith.constant dense<0.000000e+00> : vector<8x384xf32>
    %1228 = tpu.matmul %1225, %1227, %cst_503 {dimension_numbers = #tpu.dot_dimension_numbers<[1], [0], [0], [1], [0, 0, 1, 1], [], []>} : vector<8x32xf32>, vector<32x384xf32>, vector<8x384xf32> -> vector<8x384xf32>
    %1229 = arith.addf %1228, %646 : vector<8x384xf32>
    %1230 = vector.extract_strided_slice %1188 {offsets = [0, 0], sizes = [8, 32], strides = [1, 1]} : vector<8x128xf32> to vector<8x32xf32>
    %c1_504 = arith.constant 1 : index
    %c1_505 = arith.constant 1 : index
    %c0_506 = arith.constant 0 : index
    %c0_507 = arith.constant 0 : index
    %1231 = vector.load %arg3[%c1_504, %c1_505, %c0_506, %c0_507] : memref<2x2x32x384xf32, #tpu.memory_space<vmem>>, vector<1x1x32x384xf32>
    %1232 = vector.shape_cast %1231 : vector<1x1x32x384xf32> to vector<32x384xf32>
    %cst_508 = arith.constant dense<0.000000e+00> : vector<8x384xf32>
    %1233 = tpu.matmul %1230, %1232, %cst_508 {dimension_numbers = #tpu.dot_dimension_numbers<[1], [0], [0], [1], [0, 0, 1, 1], [], []>} : vector<8x32xf32>, vector<32x384xf32>, vector<8x384xf32> -> vector<8x384xf32>
    %1234 = vector.extract_strided_slice %1229 {offsets = [0, 0], sizes = [8, 128], strides = [1, 1]} : vector<8x384xf32> to vector<8x128xf32>
    %1235 = vector.extract_strided_slice %1233 {offsets = [0, 0], sizes = [8, 128], strides = [1, 1]} : vector<8x384xf32> to vector<8x128xf32>
    %1236 = arith.addf %1234, %1235 : vector<8x128xf32>
    %cst_509 = arith.constant 5.000000e-01 : f32
    %1237 = vector.broadcast %cst_509 : f32 to vector<8x128xf32>
    %1238 = arith.mulf %1237, %1236 : vector<8x128xf32>
    %1239 = math.tanh %1238 : vector<8x128xf32>
    %cst_510 = arith.constant 1.000000e+00 : f32
    %1240 = vector.broadcast %cst_510 : f32 to vector<8x128xf32>
    %1241 = arith.addf %1239, %1240 : vector<8x128xf32>
    %cst_511 = arith.constant 5.000000e-01 : f32
    %1242 = vector.broadcast %cst_511 : f32 to vector<8x128xf32>
    %1243 = arith.mulf %1242, %1241 : vector<8x128xf32>
    %1244 = vector.extract_strided_slice %1229 {offsets = [0, 128], sizes = [8, 128], strides = [1, 1]} : vector<8x384xf32> to vector<8x128xf32>
    %1245 = vector.extract_strided_slice %1233 {offsets = [0, 128], sizes = [8, 128], strides = [1, 1]} : vector<8x384xf32> to vector<8x128xf32>
    %1246 = arith.addf %1244, %1245 : vector<8x128xf32>
    %cst_512 = arith.constant 5.000000e-01 : f32
    %1247 = vector.broadcast %cst_512 : f32 to vector<8x128xf32>
    %1248 = arith.mulf %1247, %1246 : vector<8x128xf32>
    %1249 = math.tanh %1248 : vector<8x128xf32>
    %cst_513 = arith.constant 1.000000e+00 : f32
    %1250 = vector.broadcast %cst_513 : f32 to vector<8x128xf32>
    %1251 = arith.addf %1249, %1250 : vector<8x128xf32>
    %cst_514 = arith.constant 5.000000e-01 : f32
    %1252 = vector.broadcast %cst_514 : f32 to vector<8x128xf32>
    %1253 = arith.mulf %1252, %1251 : vector<8x128xf32>
    %1254 = vector.extract_strided_slice %1229 {offsets = [0, 256], sizes = [8, 128], strides = [1, 1]} : vector<8x384xf32> to vector<8x128xf32>
    %1255 = vector.extract_strided_slice %1233 {offsets = [0, 256], sizes = [8, 128], strides = [1, 1]} : vector<8x384xf32> to vector<8x128xf32>
    %1256 = arith.addf %1255, %654 : vector<8x128xf32>
    %1257 = arith.mulf %1243, %1256 : vector<8x128xf32>
    %1258 = arith.addf %1254, %1257 : vector<8x128xf32>
    %1259 = math.tanh %1258 : vector<8x128xf32>
    %cst_515 = arith.constant 1.000000e+00 : f32
    %1260 = vector.broadcast %cst_515 : f32 to vector<8x128xf32>
    %1261 = arith.subf %1260, %1253 : vector<8x128xf32>
    %1262 = arith.mulf %1261, %1259 : vector<8x128xf32>
    %1263 = arith.mulf %1253, %1188 : vector<8x128xf32>
    %1264 = arith.addf %1262, %1263 : vector<8x128xf32>
    %c1_516 = arith.constant 1 : index
    %c0_517 = arith.constant 0 : index
    %c0_518 = arith.constant 0 : index
    %1265 = vector.load %arg6[%c1_516, %c0_517, %c0_518] : memref<2x8x128xf32, #tpu.memory_space<vmem>>, vector<1x8x128xf32>
    %1266 = vector.shape_cast %1265 : vector<1x8x128xf32> to vector<8x128xf32>
    %1267 = vector.shape_cast %1264 : vector<8x128xf32> to vector<1x8x128xf32>
    tpu.vector_store %arg6[%c1_516, %c0_517, %c0_518], %1267 {strides = array<i32>} : memref<2x8x128xf32, #tpu.memory_space<vmem>>, vector<1x8x128xf32>,
    return
  }
  func.func @transform_0(%arg0: i32) -> (i32, i32, i32) {
    %c0_i32 = arith.constant 0 : i32
    %c0_i32_0 = arith.constant 0 : i32
    %c0_i32_1 = arith.constant 0 : i32
    return %arg0, %c0_i32, %c0_i32_0 : i32, i32, i32
  }
  func.func @transform_1(%arg0: i32) -> (i32, i32, i32, i32) {
    %c0_i32 = arith.constant 0 : i32
    %c0_i32_0 = arith.constant 0 : i32
    %c0_i32_1 = arith.constant 0 : i32
    %c0_i32_2 = arith.constant 0 : i32
    return %arg0, %c0_i32, %c0_i32_0, %c0_i32_1 : i32, i32, i32, i32
  }
  func.func @transform_2(%arg0: i32) -> (i32, i32, i32, i32) {
    %c0_i32 = arith.constant 0 : i32
    %c0_i32_0 = arith.constant 0 : i32
    %c0_i32_1 = arith.constant 0 : i32
    %c0_i32_2 = arith.constant 0 : i32
    return %arg0, %c0_i32, %c0_i32_0, %c0_i32_1 : i32, i32, i32, i32
  }
  func.func @transform_3(%arg0: i32) -> (i32, i32, i32, i32) {
    %c0_i32 = arith.constant 0 : i32
    %c0_i32_0 = arith.constant 0 : i32
    %c0_i32_1 = arith.constant 0 : i32
    %c0_i32_2 = arith.constant 0 : i32
    return %arg0, %c0_i32, %c0_i32_0, %c0_i32_1 : i32, i32, i32, i32
  }
  func.func @transform_4(%arg0: i32) -> (i32, i32, i32, i32) {
    %c0_i32 = arith.constant 0 : i32
    %c0_i32_0 = arith.constant 0 : i32
    %c0_i32_1 = arith.constant 0 : i32
    %c0_i32_2 = arith.constant 0 : i32
    return %arg0, %c0_i32, %c0_i32_0, %c0_i32_1 : i32, i32, i32, i32
  }
  func.func @transform_5(%arg0: i32) -> (i32, i32, i32) {
    %c0_i32 = arith.constant 0 : i32
    %c0_i32_0 = arith.constant 0 : i32
    %c0_i32_1 = arith.constant 0 : i32
    return %arg0, %c0_i32, %c0_i32_0 : i32, i32, i32
  }
}

</mosaic_0001>

<llo_original>
// kernel: _fused_forward.1
$region0: #{_fused_forward.1}
  #allocation0 [shape = 'u32[]', space=smem, size = 0x4, offset = 0x4, fixed_abs, tag = 'smem constant byte address 0x4 - core index']
  #allocation1 [shape = 'u32[72,128]{1,0:T(1,128)}', space=vmem, size = 0x9000, scoped, tag = 'internal scratch']
  %s0 = inlined_call_operand.vmem [shape: f32[2,64,32], index: 0, kind: input, shape index: {}]
  %s1 = inlined_call_operand.hbm [shape: f32[2,2,32,384], index: 1, kind: input, shape index: {}]
  %s2 = inlined_call_operand.hbm [shape: f32[2,2,32,384], index: 2, kind: input, shape index: {}]
  %s3 = inlined_call_operand.vmem [shape: f32[2,2,1,384], index: 3, kind: input, shape index: {}]
  %s4 = inlined_call_operand.vmem [shape: f32[2,2,1,128], index: 4, kind: input, shape index: {}]
  %s5 = inlined_call_operand.hbm [shape: f32[2,8,128], index: 5, kind: output, shape index: {}]
  %s6 = sld [smem:[#allocation0]]
  $region38: #{_fused_forward.1} parent=0
    _
  %s8 = ssub.s32 1, %s6
  %s9 = scalar_select 0, %s8, %s6
  $region1: #{_fused_forward.1} parent=0
    #allocation2 [shape = 'u8[196608]{0}', space=vmem, size = 0x30000, scoped, tag = 'input window, operand 1, single buffered']
    #allocation3 [shape = 's32[1]{0}', space=sflag, size = 0x4, scoped, tag = 'scoped memory for _fused_forward.1']
    #allocation4 [shape = 's32[1]{0}', space=sflag, size = 0x4, scoped, tag = 'scoped memory for _fused_forward.1']
    #allocation5 [shape = 'u8[196608]{0}', space=vmem, size = 0x30000, scoped, tag = 'input window, operand 2, single buffered']
    #allocation6 [shape = 's32[1]{0}', space=sflag, size = 0x4, scoped, tag = 'scoped memory for _fused_forward.1']
    #allocation7 [shape = 'u8[8192]{0}', space=vmem, size = 0x2000, scoped, tag = 'output window, operand 0, single buffered']
    %10 = vsyncpa [#allocation3], 0
    %11 = vsyncpa [#allocation6], 0
    %12 = vsyncpa [#allocation4], 0
    // Predicated region
    $region2: #{_fused_forward.1} parent=1 // pred_check
      _
    $region3: #{_fused_forward.1} parent=1 // pred_check_branch
      %14 = sbr.rel (0) target = $region5
    $region4: #{_fused_forward.1} parent=1 // pred_region
      _
    $region5: #{_fused_forward.1} parent=1 // pred_fallthru
      _
    // Predicated region
    $region6: #{_fused_forward.1} parent=1 // pred_check
      _
    $region7: #{_fused_forward.1} parent=1 // pred_check_branch
      %16 = sbr.rel (0) target = $region9
    $region8: #{_fused_forward.1} parent=1 // pred_region
      %18 = vsyncadd [#allocation3], 0
      %s19 = sshll.u32 %s1, 4
      %s20 = int_to_ptr.hbm [resolvable:$true] %s19
      %s21 = sshll.u32 [#allocation2], 4
      %s22 = int_to_ptr.vmem [resolvable:$true] %s21
      %27 = dma.hbm_to_vmem [thread:$0]  %s20, 6144, %s22, [#allocation3], 384, 384, 24
    $region9: #{_fused_forward.1} parent=1 // pred_fallthru
      _
    // Predicated region
    $region10: #{_fused_forward.1} parent=1 // pred_check
      _
    $region11: #{_fused_forward.1} parent=1 // pred_check_branch
      %29 = sbr.rel (0) target = $region13
    $region12: #{_fused_forward.1} parent=1 // pred_region
      %31 = vsyncadd [#allocation6], 0
      %s32 = sshll.u32 %s2, 4
      %s33 = int_to_ptr.hbm [resolvable:$true] %s32
      %s34 = sshll.u32 [#allocation5], 4
      %s35 = int_to_ptr.vmem [resolvable:$true] %s34
      %40 = dma.hbm_to_vmem [thread:$0]  %s33, 6144, %s35, [#allocation6], 384, 384, 24
    $region13: #{_fused_forward.1} parent=1 // pred_fallthru
      _
    // Predicated region
    $region14: #{_fused_forward.1} parent=1 // pred_check
      _
    $region15: #{_fused_forward.1} parent=1 // pred_check_branch
      %42 = sbr.rel (0) target = $region17
    $region16: #{_fused_forward.1} parent=1 // pred_region
      _
    $region17: #{_fused_forward.1} parent=1 // pred_fallthru
      _
    // Predicated region
    $region18: #{_fused_forward.1} parent=1 // pred_check
      _
    $region19: #{_fused_forward.1} parent=1 // pred_check_branch
      %44 = sbr.rel (0) target = $region21
    $region20: #{_fused_forward.1} parent=1 // pred_region
      _
    $region21: #{_fused_forward.1} parent=1 // pred_fallthru
      _
    // Predicated region
    $region22: #{_fused_forward.1} parent=1 // pred_check
      _
    $region23: #{_fused_forward.1} parent=1 // pred_check_branch
      %46 = sbr.rel (0) target = $region25
    $region24: #{_fused_forward.1} parent=1 // pred_region
      %48 = dma.done [#allocation3], 6144
    $region25: #{_fused_forward.1} parent=1 // pred_fallthru
      _
    // Predicated region
    $region26: #{_fused_forward.1} parent=1 // pred_check
      _
    $region27: #{_fused_forward.1} parent=1 // pred_check_branch
      %50 = sbr.rel (0) target = $region29
    $region28: #{_fused_forward.1} parent=1 // pred_region
      %52 = dma.done [#allocation6], 6144
    $region29: #{_fused_forward.1} parent=1 // pred_fallthru
      _
    %v53 = vld [vmem:[%s0] sm:$0xff]
    %v54 = vld [vmem:[%s0 + $0x8] sm:$0xff]
    %v55 = vld [vmem:[%s0 + $0x10] sm:$0xff]
    %v56 = vld [vmem:[%s0 + $0x18] sm:$0xff]
    %v57 = vld [vmem:[%s0 + $0x20] sm:$0xff]
    %v58 = vld [vmem:[%s0 + $0x28] sm:$0xff]
    %v59 = vld [vmem:[%s0 + $0x30] sm:$0xff]
    %v60 = vld [vmem:[%s0 + $0x38] sm:$0xff]
    %v61 = vld [vmem:[#allocation2] sm:$0xff]
    %v62 = vld [vmem:[#allocation2 + $0x8] sm:$0xff]
    %v63 = vld [vmem:[#allocation2 + $0x10] sm:$0xff]
    %v64 = vld [vmem:[#allocation2 + $0x18] sm:$0xff]
    %v65 = vld [vmem:[#allocation2 + $0x20] sm:$0xff]
    %v66 = vld [vmem:[#allocation2 + $0x28] sm:$0xff]
    %v67 = vld [vmem:[#allocation2 + $0x30] sm:$0xff]
    %v68 = vld [vmem:[#allocation2 + $0x38] sm:$0xff]
    %v69 = vld [vmem:[#allocation2 + $0x40] sm:$0xff]
    %v70 = vld [vmem:[#allocation2 + $0x48] sm:$0xff]
    %v71 = vld [vmem:[#allocation2 + $0x50] sm:$0xff]
    %v72 = vld [vmem:[#allocation2 + $0x58] sm:$0xff]
    %v73 = vld [vmem:[%s3] sm:$0x7]
    %v75 = vperm.slane %v73, 0
    %v76 = vperm.slane %v73, 1
    %v77 = vperm.slane %v73, 2
    %vm81 = vcmask 261120
    %v83 = vsel %vm81, %v53, 0
    %v86 = vsel %vm81, %v54, 0
    %v89 = vsel %vm81, %v55, 0
    %v92 = vsel %vm81, %v56, 0
    %v95 = vsel %vm81, %v57, 0
    %v98 = vsel %vm81, %v58, 0
    %v101 = vsel %vm81, %v59, 0
    %v104 = vsel %vm81, %v60, 0
    %106 = vmatpush.msra.mxu0 0.0
    %107 = vmatpush.msra.mxu0 0.0
    %108 = vmatpush.msra.mxu0 0.0
    %109 = vmatpush.msra.mxu0 0.0
    %110 = vmatpush.msra.mxu0 0.0
    %111 = vmatpush.msra.mxu0 0.0
    %112 = vmatpush.msra.mxu0 0.0
    %113 = vmatpush.msra.mxu0 0.0
    %114 = vmatpush.msra.mxu0 0.0
    %115 = vmatpush.msra.mxu0 0.0
    %116 = vmatpush.msra.mxu0 0.0
    %117 = vmatpush.msra.mxu0 0.0
    %118 = vmatpush.msra.mxu0 %v70
    %119 = vmatpush.msra.mxu0 %v67
    %120 = vmatpush.msra.mxu0 %v64
    %121 = vmatpush.msra.mxu0 %v61
    %122 = vmatmul.f32.gmra.mxu0 %v83
    %v123 = vpop.f32.mrf.mxu0
    %v124 = vadd.f32 %v75, %v123
    %125 = vmatmul.f32.gmra.mxu0 %v86
    %v126 = vpop.f32.mrf.mxu0
    %v127 = vadd.f32 %v75, %v126
    %128 = vmatmul.f32.gmra.mxu0 %v89
    %v129 = vpop.f32.mrf.mxu0
    %v130 = vadd.f32 %v75, %v129
    %131 = vmatmul.f32.gmra.mxu0 %v92
    %v132 = vpop.f32.mrf.mxu0
    %v133 = vadd.f32 %v75, %v132
    %134 = vmatmul.f32.gmra.mxu0 %v95
    %v135 = vpop.f32.mrf.mxu0
    %v136 = vadd.f32 %v75, %v135
    %137 = vmatmul.f32.gmra.mxu0 %v98
    %v138 = vpop.f32.mrf.mxu0
    %v139 = vadd.f32 %v75, %v138
    %140 = vmatmul.f32.gmra.mxu0 %v101
    %v141 = vpop.f32.mrf.mxu0
    %v142 = vadd.f32 %v75, %v141
    %143 = vmatmul.f32.gmra.mxu0 %v104
    %v144 = vpop.f32.mrf.mxu0
    %v145 = vadd.f32 %v75, %v144
    %146 = vdwg.mxu0
    %147 = vmatpush.msra.mxu0 0.0
    %148 = vmatpush.msra.mxu0 0.0
    %149 = vmatpush.msra.mxu0 0.0
    %150 = vmatpush.msra.mxu0 0.0
    %151 = vmatpush.msra.mxu0 0.0
    %152 = vmatpush.msra.mxu0 0.0
    %153 = vmatpush.msra.mxu0 0.0
    %154 = vmatpush.msra.mxu0 0.0
    %155 = vmatpush.msra.mxu0 0.0
    %156 = vmatpush.msra.mxu0 0.0
    %157 = vmatpush.msra.mxu0 0.0
    %158 = vmatpush.msra.mxu0 0.0
    %159 = vmatpush.msra.mxu0 %v71
    %160 = vmatpush.msra.mxu0 %v68
    %161 = vmatpush.msra.mxu0 %v65
    %162 = vmatpush.msra.mxu0 %v62
    %163 = vmatmul.f32.gmra.mxu0 %v83
    %v164 = vpop.f32.mrf.mxu0
    %v165 = vadd.f32 %v76, %v164
    %166 = vmatmul.f32.gmra.mxu0 %v86
    %v167 = vpop.f32.mrf.mxu0
    %v168 = vadd.f32 %v76, %v167
    %169 = vmatmul.f32.gmra.mxu0 %v89
    %v170 = vpop.f32.mrf.mxu0
    %v171 = vadd.f32 %v76, %v170
    %172 = vmatmul.f32.gmra.mxu0 %v92
    %v173 = vpop.f32.mrf.mxu0
    %v174 = vadd.f32 %v76, %v173
    %175 = vmatmul.f32.gmra.mxu0 %v95
    %v176 = vpop.f32.mrf.mxu0
    %v177 = vadd.f32 %v76, %v176
    %178 = vmatmul.f32.gmra.mxu0 %v98
    %v179 = vpop.f32.mrf.mxu0
    %v180 = vadd.f32 %v76, %v179
    %181 = vmatmul.f32.gmra.mxu0 %v101
    %v182 = vpop.f32.mrf.mxu0
    %v183 = vadd.f32 %v76, %v182
    %184 = vmatmul.f32.gmra.mxu0 %v104
    %v185 = vpop.f32.mrf.mxu0
    %v186 = vadd.f32 %v76, %v185
    %187 = vdwg.mxu0
    %188 = vmatpush.msra.mxu0 0.0
    %189 = vmatpush.msra.mxu0 0.0
    %190 = vmatpush.msra.mxu0 0.0
    %191 = vmatpush.msra.mxu0 0.0
    %192 = vmatpush.msra.mxu0 0.0
    %193 = vmatpush.msra.mxu0 0.0
    %194 = vmatpush.msra.mxu0 0.0
    %195 = vmatpush.msra.mxu0 0.0
    %196 = vmatpush.msra.mxu0 0.0
    %197 = vmatpush.msra.mxu0 0.0
    %198 = vmatpush.msra.mxu0 0.0
    %199 = vmatpush.msra.mxu0 0.0
    %200 = vmatpush.msra.mxu0 %v72
    %201 = vmatpush.msra.mxu0 %v69
    %202 = vmatpush.msra.mxu0 %v66
    %203 = vmatpush.msra.mxu0 %v63
    %204 = vmatmul.f32.gmra.mxu0 %v83
    %v205 = vpop.f32.mrf.mxu0
    %v206 = vadd.f32 %v77, %v205
    %207 = vmatmul.f32.gmra.mxu0 %v86
    %v208 = vpop.f32.mrf.mxu0
    %v209 = vadd.f32 %v77, %v208
    %210 = vmatmul.f32.gmra.mxu0 %v89
    %v211 = vpop.f32.mrf.mxu0
    %v212 = vadd.f32 %v77, %v211
    %213 = vmatmul.f32.gmra.mxu0 %v92
    %v214 = vpop.f32.mrf.mxu0
    %v215 = vadd.f32 %v77, %v214
    %216 = vmatmul.f32.gmra.mxu0 %v95
    %v217 = vpop.f32.mrf.mxu0
    %v218 = vadd.f32 %v77, %v217
    %219 = vmatmul.f32.gmra.mxu0 %v98
    %v220 = vpop.f32.mrf.mxu0
    %v221 = vadd.f32 %v77, %v220
    %222 = vmatmul.f32.gmra.mxu0 %v101
    %v223 = vpop.f32.mrf.mxu0
    %v224 = vadd.f32 %v77, %v223
    %225 = vmatmul.f32.gmra.mxu0 %v104
    %v226 = vpop.f32.mrf.mxu0
    %v227 = vadd.f32 %v77, %v226
    %228 = vdwg.mxu0
    %s229 = scalar_lea.vmem %s3, 3
    %v230 = vld [vmem:[%s229] sm:$0x7]
    %v232 = vperm.slane %v230, 0
    %v233 = vperm.slane %v230, 1
    %v234 = vperm.slane %v230, 2
    %v238 = vld [vmem:[%s4] sm:$0x1]
    %v240 = vperm.slane %v238, 0
    %s242 = scalar_lea.vmem %s4, 1
    %v243 = vld [vmem:[%s242] sm:$0x1]
    %v245 = vperm.slane %v243, 0
    %v247 = vld [vmem:[#allocation5] sm:$0xff]
    %v248 = vld [vmem:[#allocation5 + $0x8] sm:$0xff]
    %v249 = vld [vmem:[#allocation5 + $0x10] sm:$0xff]
    %v250 = vld [vmem:[#allocation5 + $0x18] sm:$0xff]
    %v251 = vld [vmem:[#allocation5 + $0x20] sm:$0xff]
    %v252 = vld [vmem:[#allocation5 + $0x28] sm:$0xff]
    %v253 = vld [vmem:[#allocation5 + $0x30] sm:$0xff]
    %v254 = vld [vmem:[#allocation5 + $0x38] sm:$0xff]
    %v255 = vld [vmem:[#allocation5 + $0x40] sm:$0xff]
    %v256 = vld [vmem:[#allocation5 + $0x48] sm:$0xff]
    %v257 = vld [vmem:[#allocation5 + $0x50] sm:$0xff]
    %v258 = vld [vmem:[#allocation5 + $0x58] sm:$0xff]
    %v260 = vsel %vm81, 0.0, 0
    %262 = vmatpush.msra.mxu0 0.0
    %263 = vmatpush.msra.mxu0 0.0
    %264 = vmatpush.msra.mxu0 0.0
    %265 = vmatpush.msra.mxu0 0.0
    %266 = vmatpush.msra.mxu0 0.0
    %267 = vmatpush.msra.mxu0 0.0
    %268 = vmatpush.msra.mxu0 0.0
    %269 = vmatpush.msra.mxu0 0.0
    %270 = vmatpush.msra.mxu0 0.0
    %271 = vmatpush.msra.mxu0 0.0
    %272 = vmatpush.msra.mxu0 0.0
    %273 = vmatpush.msra.mxu0 0.0
    %274 = vmatpush.msra.mxu0 %v256
    %275 = vmatpush.msra.mxu0 %v253
    %276 = vmatpush.msra.mxu0 %v250
    %277 = vmatpush.msra.mxu0 %v247
    %278 = vmatmul.f32.gmra.mxu0 %v260
    %v279 = vpop.f32.mrf.mxu0
    %v280 = vadd.f32 0.0, %v279
    %281 = vdwg.mxu0
    %282 = vmatpush.msra.mxu0 0.0
    %283 = vmatpush.msra.mxu0 0.0
    %284 = vmatpush.msra.mxu0 0.0
    %285 = vmatpush.msra.mxu0 0.0
    %286 = vmatpush.msra.mxu0 0.0
    %287 = vmatpush.msra.mxu0 0.0
    %288 = vmatpush.msra.mxu0 0.0
    %289 = vmatpush.msra.mxu0 0.0
    %290 = vmatpush.msra.mxu0 0.0
    %291 = vmatpush.msra.mxu0 0.0
    %292 = vmatpush.msra.mxu0 0.0
    %293 = vmatpush.msra.mxu0 0.0
    %294 = vmatpush.msra.mxu0 %v257
    %295 = vmatpush.msra.mxu0 %v254
    %296 = vmatpush.msra.mxu0 %v251
    %297 = vmatpush.msra.mxu0 %v248
    %298 = vmatmul.f32.gmra.mxu0 %v260
    %v299 = vpop.f32.mrf.mxu0
    %v300 = vadd.f32 0.0, %v299
    %301 = vdwg.mxu0
    %302 = vmatpush.msra.mxu0 0.0
    %303 = vmatpush.msra.mxu0 0.0
    %304 = vmatpush.msra.mxu0 0.0
    %305 = vmatpush.msra.mxu0 0.0
    %306 = vmatpush.msra.mxu0 0.0
    %307 = vmatpush.msra.mxu0 0.0
    %308 = vmatpush.msra.mxu0 0.0
    %309 = vmatpush.msra.mxu0 0.0
    %310 = vmatpush.msra.mxu0 0.0
    %311 = vmatpush.msra.mxu0 0.0
    %312 = vmatpush.msra.mxu0 0.0
    %313 = vmatpush.msra.mxu0 0.0
    %314 = vmatpush.msra.mxu0 %v258
    %315 = vmatpush.msra.mxu0 %v255
    %316 = vmatpush.msra.mxu0 %v252
    %317 = vmatpush.msra.mxu0 %v249
    %318 = vmatmul.f32.gmra.mxu0 %v260
    %v319 = vpop.f32.mrf.mxu0
    %v320 = vadd.f32 0.0, %v319
    %321 = vdwg.mxu0
    %v322 = vadd.f32 %v124, %v280
    %v323 = vmul.f32 %v322, 0.5
    %v324 = vtanh.pop %v323
    %v325 = vadd.f32 %v324, 1.0
    %v326 = vmul.f32 %v325, 0.5
    %v327 = vadd.f32 %v165, %v300
    %v328 = vmul.f32 %v327, 0.5
    %v329 = vtanh.pop %v328
    %v330 = vadd.f32 %v329, 1.0
    %v331 = vmul.f32 %v330, 0.5
    %v332 = vadd.f32 %v320, %v240
    %v333 = vmul.f32 %v326, %v332
    %v334 = vadd.f32 %v206, %v333
    %v335 = vtanh.pop %v334
    %v336 = vsub.f32 1.0, %v331
    %v337 = vmul.f32 %v336, %v335
    %v338 = vmul.f32 %v331, 0.0
    %v339 = vadd.f32 %v337, %v338
    %s340 = scalar_lea.vmem [#allocation2], 96
    %v341 = vld [vmem:[%s340] sm:$0xff]
    %v342 = vld [vmem:[%s340 + $0x8] sm:$0xff]
    %v343 = vld [vmem:[%s340 + $0x10] sm:$0xff]
    %v344 = vld [vmem:[%s340 + $0x18] sm:$0xff]
    %v345 = vld [vmem:[%s340 + $0x20] sm:$0xff]
    %v346 = vld [vmem:[%s340 + $0x28] sm:$0xff]
    %v347 = vld [vmem:[%s340 + $0x30] sm:$0xff]
    %v348 = vld [vmem:[%s340 + $0x38] sm:$0xff]
    %v349 = vld [vmem:[%s340 + $0x40] sm:$0xff]
    %v350 = vld [vmem:[%s340 + $0x48] sm:$0xff]
    %v351 = vld [vmem:[%s340 + $0x50] sm:$0xff]
    %v352 = vld [vmem:[%s340 + $0x58] sm:$0xff]
    %v354 = vsel %vm81, %v339, 0
    %356 = vmatpush.msra.mxu0 0.0
    %357 = vmatpush.msra.mxu0 0.0
    %358 = vmatpush.msra.mxu0 0.0
    %359 = vmatpush.msra.mxu0 0.0
    %360 = vmatpush.msra.mxu0 0.0
    %361 = vmatpush.msra.mxu0 0.0
    %362 = vmatpush.msra.mxu0 0.0
    %363 = vmatpush.msra.mxu0 0.0
    %364 = vmatpush.msra.mxu0 0.0
    %365 = vmatpush.msra.mxu0 0.0
    %366 = vmatpush.msra.mxu0 0.0
    %367 = vmatpush.msra.mxu0 0.0
    %368 = vmatpush.msra.mxu0 %v350
    %369 = vmatpush.msra.mxu0 %v347
    %370 = vmatpush.msra.mxu0 %v344
    %371 = vmatpush.msra.mxu0 %v341
    %372 = vmatmul.f32.gmra.mxu0 %v354
    %v373 = vpop.f32.mrf.mxu0
    %v374 = vadd.f32 %v232, %v373
    %375 = vdwg.mxu0
    %376 = vmatpush.msra.mxu0 0.0
    %377 = vmatpush.msra.mxu0 0.0
    %378 = vmatpush.msra.mxu0 0.0
    %379 = vmatpush.msra.mxu0 0.0
    %380 = vmatpush.msra.mxu0 0.0
    %381 = vmatpush.msra.mxu0 0.0
    %382 = vmatpush.msra.mxu0 0.0
    %383 = vmatpush.msra.mxu0 0.0
    %384 = vmatpush.msra.mxu0 0.0
    %385 = vmatpush.msra.mxu0 0.0
    %386 = vmatpush.msra.mxu0 0.0
    %387 = vmatpush.msra.mxu0 0.0
    %388 = vmatpush.msra.mxu0 %v351
    %389 = vmatpush.msra.mxu0 %v348
    %390 = vmatpush.msra.mxu0 %v345
    %391 = vmatpush.msra.mxu0 %v342
    %392 = vmatmul.f32.gmra.mxu0 %v354
    %v393 = vpop.f32.mrf.mxu0
    %v394 = vadd.f32 %v233, %v393
    %395 = vdwg.mxu0
    %396 = vmatpush.msra.mxu0 0.0
    %397 = vmatpush.msra.mxu0 0.0
    %398 = vmatpush.msra.mxu0 0.0
    %399 = vmatpush.msra.mxu0 0.0
    %400 = vmatpush.msra.mxu0 0.0
    %401 = vmatpush.msra.mxu0 0.0
    %402 = vmatpush.msra.mxu0 0.0
    %403 = vmatpush.msra.mxu0 0.0
    %404 = vmatpush.msra.mxu0 0.0
    %405 = vmatpush.msra.mxu0 0.0
    %406 = vmatpush.msra.mxu0 0.0
    %407 = vmatpush.msra.mxu0 0.0
    %408 = vmatpush.msra.mxu0 %v352
    %409 = vmatpush.msra.mxu0 %v349
    %410 = vmatpush.msra.mxu0 %v346
    %411 = vmatpush.msra.mxu0 %v343
    %412 = vmatmul.f32.gmra.mxu0 %v354
    %v413 = vpop.f32.mrf.mxu0
    %v414 = vadd.f32 %v234, %v413
    %415 = vdwg.mxu0
    %s416 = scalar_lea.vmem [#allocation5], 96
    %v417 = vld [vmem:[%s416] sm:$0xff]
    %v418 = vld [vmem:[%s416 + $0x8] sm:$0xff]
    %v419 = vld [vmem:[%s416 + $0x10] sm:$0xff]
    %v420 = vld [vmem:[%s416 + $0x18] sm:$0xff]
    %v421 = vld [vmem:[%s416 + $0x20] sm:$0xff]
    %v422 = vld [vmem:[%s416 + $0x28] sm:$0xff]
    %v423 = vld [vmem:[%s416 + $0x30] sm:$0xff]
    %v424 = vld [vmem:[%s416 + $0x38] sm:$0xff]
    %v425 = vld [vmem:[%s416 + $0x40] sm:$0xff]
    %v426 = vld [vmem:[%s416 + $0x48] sm:$0xff]
    %v427 = vld [vmem:[%s416 + $0x50] sm:$0xff]
    %v428 = vld [vmem:[%s416 + $0x58] sm:$0xff]
    %429 = vmatpush.msra.mxu0 0.0
    %430 = vmatpush.msra.mxu0 0.0
    %431 = vmatpush.msra.mxu0 0.0
    %432 = vmatpush.msra.mxu0 0.0
    %433 = vmatpush.msra.mxu0 0.0
    %434 = vmatpush.msra.mxu0 0.0
    %435 = vmatpush.msra.mxu0 0.0
    %436 = vmatpush.msra.mxu0 0.0
    %437 = vmatpush.msra.mxu0 0.0
    %438 = vmatpush.msra.mxu0 0.0
    %439 = vmatpush.msra.mxu0 0.0
    %440 = vmatpush.msra.mxu0 0.0
    %441 = vmatpush.msra.mxu0 %v426
    %442 = vmatpush.msra.mxu0 %v423
    %443 = vmatpush.msra.mxu0 %v420
    %444 = vmatpush.msra.mxu0 %v417
    %445 = vmatmul.f32.gmra.mxu0 %v260
    %v446 = vpop.f32.mrf.mxu0
    %v447 = vadd.f32 0.0, %v446
    %448 = vdwg.mxu0
    %449 = vmatpush.msra.mxu0 0.0
    %450 = vmatpush.msra.mxu0 0.0
    %451 = vmatpush.msra.mxu0 0.0
    %452 = vmatpush.msra.mxu0 0.0
    %453 = vmatpush.msra.mxu0 0.0
    %454 = vmatpush.msra.mxu0 0.0
    %455 = vmatpush.msra.mxu0 0.0
    %456 = vmatpush.msra.mxu0 0.0
    %457 = vmatpush.msra.mxu0 0.0
    %458 = vmatpush.msra.mxu0 0.0
    %459 = vmatpush.msra.mxu0 0.0
    %460 = vmatpush.msra.mxu0 0.0
    %461 = vmatpush.msra.mxu0 %v427
    %462 = vmatpush.msra.mxu0 %v424
    %463 = vmatpush.msra.mxu0 %v421
    %464 = vmatpush.msra.mxu0 %v418
    %465 = vmatmul.f32.gmra.mxu0 %v260
    %v466 = vpop.f32.mrf.mxu0
    %v467 = vadd.f32 0.0, %v466
    %468 = vdwg.mxu0
    %469 = vmatpush.msra.mxu0 0.0
    %470 = vmatpush.msra.mxu0 0.0
    %471 = vmatpush.msra.mxu0 0.0
    %472 = vmatpush.msra.mxu0 0.0
    %473 = vmatpush.msra.mxu0 0.0
    %474 = vmatpush.msra.mxu0 0.0
    %475 = vmatpush.msra.mxu0 0.0
    %476 = vmatpush.msra.mxu0 0.0
    %477 = vmatpush.msra.mxu0 0.0
    %478 = vmatpush.msra.mxu0 0.0
    %479 = vmatpush.msra.mxu0 0.0
    %480 = vmatpush.msra.mxu0 0.0
    %481 = vmatpush.msra.mxu0 %v428
    %482 = vmatpush.msra.mxu0 %v425
    %483 = vmatpush.msra.mxu0 %v422
    %484 = vmatpush.msra.mxu0 %v419
    %485 = vmatmul.f32.gmra.mxu0 %v260
    %v486 = vpop.f32.mrf.mxu0
    %v487 = vadd.f32 0.0, %v486
    %488 = vdwg.mxu0
    %v489 = vadd.f32 %v374, %v447
    %v490 = vmul.f32 %v489, 0.5
    %v491 = vtanh.pop %v490
    %v492 = vadd.f32 %v491, 1.0
    %v493 = vmul.f32 %v492, 0.5
    %v494 = vadd.f32 %v394, %v467
    %v495 = vmul.f32 %v494, 0.5
    %v496 = vtanh.pop %v495
    %v497 = vadd.f32 %v496, 1.0
    %v498 = vmul.f32 %v497, 0.5
    %v499 = vadd.f32 %v487, %v245
    %v500 = vmul.f32 %v493, %v499
    %v501 = vadd.f32 %v414, %v500
    %v502 = vtanh.pop %v501
    %v503 = vsub.f32 1.0, %v498
    %v504 = vmul.f32 %v503, %v502
    %v505 = vmul.f32 %v498, 0.0
    %v506 = vadd.f32 %v504, %v505
    %507 = vmatpush.msra.mxu0 0.0
    %508 = vmatpush.msra.mxu0 0.0
    %509 = vmatpush.msra.mxu0 0.0
    %510 = vmatpush.msra.mxu0 0.0
    %511 = vmatpush.msra.mxu0 0.0
    %512 = vmatpush.msra.mxu0 0.0
    %513 = vmatpush.msra.mxu0 0.0
    %514 = vmatpush.msra.mxu0 0.0
    %515 = vmatpush.msra.mxu0 0.0
    %516 = vmatpush.msra.mxu0 0.0
    %517 = vmatpush.msra.mxu0 0.0
    %518 = vmatpush.msra.mxu0 0.0
    %519 = vmatpush.msra.mxu0 %v256
    %520 = vmatpush.msra.mxu0 %v253
    %521 = vmatpush.msra.mxu0 %v250
    %522 = vmatpush.msra.mxu0 %v247
    %523 = vmatmul.f32.gmra.mxu0 %v354
    %v524 = vpop.f32.mrf.mxu0
    %v525 = vadd.f32 0.0, %v524
    %526 = vdwg.mxu0
    %527 = vmatpush.msra.mxu0 0.0
    %528 = vmatpush.msra.mxu0 0.0
    %529 = vmatpush.msra.mxu0 0.0
    %530 = vmatpush.msra.mxu0 0.0
    %531 = vmatpush.msra.mxu0 0.0
    %532 = vmatpush.msra.mxu0 0.0
    %533 = vmatpush.msra.mxu0 0.0
    %534 = vmatpush.msra.mxu0 0.0
    %535 = vmatpush.msra.mxu0 0.0
    %536 = vmatpush.msra.mxu0 0.0
    %537 = vmatpush.msra.mxu0 0.0
    %538 = vmatpush.msra.mxu0 0.0
    %539 = vmatpush.msra.mxu0 %v257
    %540 = vmatpush.msra.mxu0 %v254
    %541 = vmatpush.msra.mxu0 %v251
    %542 = vmatpush.msra.mxu0 %v248
    %543 = vmatmul.f32.gmra.mxu0 %v354
    %v544 = vpop.f32.mrf.mxu0
    %v545 = vadd.f32 0.0, %v544
    %546 = vdwg.mxu0
    %547 = vmatpush.msra.mxu0 0.0
    %548 = vmatpush.msra.mxu0 0.0
    %549 = vmatpush.msra.mxu0 0.0
    %550 = vmatpush.msra.mxu0 0.0
    %551 = vmatpush.msra.mxu0 0.0
    %552 = vmatpush.msra.mxu0 0.0
    %553 = vmatpush.msra.mxu0 0.0
    %554 = vmatpush.msra.mxu0 0.0
    %555 = vmatpush.msra.mxu0 0.0
    %556 = vmatpush.msra.mxu0 0.0
    %557 = vmatpush.msra.mxu0 0.0
    %558 = vmatpush.msra.mxu0 0.0
    %559 = vmatpush.msra.mxu0 %v258
    %560 = vmatpush.msra.mxu0 %v255
    %561 = vmatpush.msra.mxu0 %v252
    %562 = vmatpush.msra.mxu0 %v249
    %563 = vmatmul.f32.gmra.mxu0 %v354
    %v564 = vpop.f32.mrf.mxu0
    %v565 = vadd.f32 0.0, %v564
    %566 = vdwg.mxu0
    %v567 = vadd.f32 %v127, %v525
    %v568 = vmul.f32 %v567, 0.5
    %v569 = vtanh.pop %v568
    %v570 = vadd.f32 %v569, 1.0
    %v571 = vmul.f32 %v570, 0.5
    %v572 = vadd.f32 %v168, %v545
    %v573 = vmul.f32 %v572, 0.5
    %v574 = vtanh.pop %v573
    %v575 = vadd.f32 %v574, 1.0
    %v576 = vmul.f32 %v575, 0.5
    %v577 = vadd.f32 %v565, %v240
    %v578 = vmul.f32 %v571, %v577
    %v579 = vadd.f32 %v209, %v578
    %v580 = vtanh.pop %v579
    %v581 = vsub.f32 1.0, %v576
    %v582 = vmul.f32 %v581, %v580
    %v583 = vmul.f32 %v576, %v339
    %v584 = vadd.f32 %v582, %v583
    %v586 = vsel %vm81, %v584, 0
    %588 = vmatpush.msra.mxu0 0.0
    %589 = vmatpush.msra.mxu0 0.0
    %590 = vmatpush.msra.mxu0 0.0
    %591 = vmatpush.msra.mxu0 0.0
    %592 = vmatpush.msra.mxu0 0.0
    %593 = vmatpush.msra.mxu0 0.0
    %594 = vmatpush.msra.mxu0 0.0
    %595 = vmatpush.msra.mxu0 0.0
    %596 = vmatpush.msra.mxu0 0.0
    %597 = vmatpush.msra.mxu0 0.0
    %598 = vmatpush.msra.mxu0 0.0
    %599 = vmatpush.msra.mxu0 0.0
    %600 = vmatpush.msra.mxu0 %v350
    %601 = vmatpush.msra.mxu0 %v347
    %602 = vmatpush.msra.mxu0 %v344
    %603 = vmatpush.msra.mxu0 %v341
    %604 = vmatmul.f32.gmra.mxu0 %v586
    %v605 = vpop.f32.mrf.mxu0
    %v606 = vadd.f32 %v232, %v605
    %607 = vdwg.mxu0
    %608 = vmatpush.msra.mxu0 0.0
    %609 = vmatpush.msra.mxu0 0.0
    %610 = vmatpush.msra.mxu0 0.0
    %611 = vmatpush.msra.mxu0 0.0
    %612 = vmatpush.msra.mxu0 0.0
    %613 = vmatpush.msra.mxu0 0.0
    %614 = vmatpush.msra.mxu0 0.0
    %615 = vmatpush.msra.mxu0 0.0
    %616 = vmatpush.msra.mxu0 0.0
    %617 = vmatpush.msra.mxu0 0.0
    %618 = vmatpush.msra.mxu0 0.0
    %619 = vmatpush.msra.mxu0 0.0
    %620 = vmatpush.msra.mxu0 %v351
    %621 = vmatpush.msra.mxu0 %v348
    %622 = vmatpush.msra.mxu0 %v345
    %623 = vmatpush.msra.mxu0 %v342
    %624 = vmatmul.f32.gmra.mxu0 %v586
    %v625 = vpop.f32.mrf.mxu0
    %v626 = vadd.f32 %v233, %v625
    %627 = vdwg.mxu0
    %628 = vmatpush.msra.mxu0 0.0
    %629 = vmatpush.msra.mxu0 0.0
    %630 = vmatpush.msra.mxu0 0.0
    %631 = vmatpush.msra.mxu0 0.0
    %632 = vmatpush.msra.mxu0 0.0
    %633 = vmatpush.msra.mxu0 0.0
    %634 = vmatpush.msra.mxu0 0.0
    %635 = vmatpush.msra.mxu0 0.0
    %636 = vmatpush.msra.mxu0 0.0
    %637 = vmatpush.msra.mxu0 0.0
    %638 = vmatpush.msra.mxu0 0.0
    %639 = vmatpush.msra.mxu0 0.0
    %640 = vmatpush.msra.mxu0 %v352
    %641 = vmatpush.msra.mxu0 %v349
    %642 = vmatpush.msra.mxu0 %v346
    %643 = vmatpush.msra.mxu0 %v343
    %644 = vmatmul.f32.gmra.mxu0 %v586
    %v645 = vpop.f32.mrf.mxu0
    %v646 = vadd.f32 %v234, %v645
    %647 = vdwg.mxu0
    %v649 = vsel %vm81, %v506, 0
    %651 = vmatpush.msra.mxu0 0.0
    %652 = vmatpush.msra.mxu0 0.0
    %653 = vmatpush.msra.mxu0 0.0
    %654 = vmatpush.msra.mxu0 0.0
    %655 = vmatpush.msra.mxu0 0.0
    %656 = vmatpush.msra.mxu0 0.0
    %657 = vmatpush.msra.mxu0 0.0
    %658 = vmatpush.msra.mxu0 0.0
    %659 = vmatpush.msra.mxu0 0.0
    %660 = vmatpush.msra.mxu0 0.0
    %661 = vmatpush.msra.mxu0 0.0
    %662 = vmatpush.msra.mxu0 0.0
    %663 = vmatpush.msra.mxu0 %v426
    %664 = vmatpush.msra.mxu0 %v423
    %665 = vmatpush.msra.mxu0 %v420
    %666 = vmatpush.msra.mxu0 %v417
    %667 = vmatmul.f32.gmra.mxu0 %v649
    %v668 = vpop.f32.mrf.mxu0
    %v669 = vadd.f32 0.0, %v668
    %670 = vdwg.mxu0
    %671 = vmatpush.msra.mxu0 0.0
    %672 = vmatpush.msra.mxu0 0.0
    %673 = vmatpush.msra.mxu0 0.0
    %674 = vmatpush.msra.mxu0 0.0
    %675 = vmatpush.msra.mxu0 0.0
    %676 = vmatpush.msra.mxu0 0.0
    %677 = vmatpush.msra.mxu0 0.0
    %678 = vmatpush.msra.mxu0 0.0
    %679 = vmatpush.msra.mxu0 0.0
    %680 = vmatpush.msra.mxu0 0.0
    %681 = vmatpush.msra.mxu0 0.0
    %682 = vmatpush.msra.mxu0 0.0
    %683 = vmatpush.msra.mxu0 %v427
    %684 = vmatpush.msra.mxu0 %v424
    %685 = vmatpush.msra.mxu0 %v421
    %686 = vmatpush.msra.mxu0 %v418
    %687 = vmatmul.f32.gmra.mxu0 %v649
    %v688 = vpop.f32.mrf.mxu0
    %v689 = vadd.f32 0.0, %v688
    %690 = vdwg.mxu0
    %691 = vmatpush.msra.mxu0 0.0
    %692 = vmatpush.msra.mxu0 0.0
    %693 = vmatpush.msra.mxu0 0.0
    %694 = vmatpush.msra.mxu0 0.0
    %695 = vmatpush.msra.mxu0 0.0
    %696 = vmatpush.msra.mxu0 0.0
    %697 = vmatpush.msra.mxu0 0.0
    %698 = vmatpush.msra.mxu0 0.0
    %699 = vmatpush.msra.mxu0 0.0
    %700 = vmatpush.msra.mxu0 0.0
    %701 = vmatpush.msra.mxu0 0.0
    %702 = vmatpush.msra.mxu0 0.0
    %703 = vmatpush.msra.mxu0 %v428
    %704 = vmatpush.msra.mxu0 %v425
    %705 = vmatpush.msra.mxu0 %v422
    %706 = vmatpush.msra.mxu0 %v419
    %707 = vmatmul.f32.gmra.mxu0 %v649
    %v708 = vpop.f32.mrf.mxu0
    %v709 = vadd.f32 0.0, %v708
    %710 = vdwg.mxu0
    %v711 = vadd.f32 %v606, %v669
    %v712 = vmul.f32 %v711, 0.5
    %v713 = vtanh.pop %v712
    %v714 = vadd.f32 %v713, 1.0
    %v715 = vmul.f32 %v714, 0.5
    %v716 = vadd.f32 %v626, %v689
    %v717 = vmul.f32 %v716, 0.5
    %v718 = vtanh.pop %v717
    %v719 = vadd.f32 %v718, 1.0
    %v720 = vmul.f32 %v719, 0.5
    %v721 = vadd.f32 %v709, %v245
    %v722 = vmul.f32 %v715, %v721
    %v723 = vadd.f32 %v646, %v722
    %v724 = vtanh.pop %v723
    %v725 = vsub.f32 1.0, %v720
    %v726 = vmul.f32 %v725, %v724
    %v727 = vmul.f32 %v720, %v506
    %v728 = vadd.f32 %v726, %v727
    %729 = vmatpush.msra.mxu0 0.0
    %730 = vmatpush.msra.mxu0 0.0
    %731 = vmatpush.msra.mxu0 0.0
    %732 = vmatpush.msra.mxu0 0.0
    %733 = vmatpush.msra.mxu0 0.0
    %734 = vmatpush.msra.mxu0 0.0
    %735 = vmatpush.msra.mxu0 0.0
    %736 = vmatpush.msra.mxu0 0.0
    %737 = vmatpush.msra.mxu0 0.0
    %738 = vmatpush.msra.mxu0 0.0
    %739 = vmatpush.msra.mxu0 0.0
    %740 = vmatpush.msra.mxu0 0.0
    %741 = vmatpush.msra.mxu0 %v256
    %742 = vmatpush.msra.mxu0 %v253
    %743 = vmatpush.msra.mxu0 %v250
    %744 = vmatpush.msra.mxu0 %v247
    %745 = vmatmul.f32.gmra.mxu0 %v586
    %v746 = vpop.f32.mrf.mxu0
    %v747 = vadd.f32 0.0, %v746
    %748 = vdwg.mxu0
    %749 = vmatpush.msra.mxu0 0.0
    %750 = vmatpush.msra.mxu0 0.0
    %751 = vmatpush.msra.mxu0 0.0
    %752 = vmatpush.msra.mxu0 0.0
    %753 = vmatpush.msra.mxu0 0.0
    %754 = vmatpush.msra.mxu0 0.0
    %755 = vmatpush.msra.mxu0 0.0
    %756 = vmatpush.msra.mxu0 0.0
    %757 = vmatpush.msra.mxu0 0.0
    %758 = vmatpush.msra.mxu0 0.0
    %759 = vmatpush.msra.mxu0 0.0
    %760 = vmatpush.msra.mxu0 0.0
    %761 = vmatpush.msra.mxu0 %v257
    %762 = vmatpush.msra.mxu0 %v254
    %763 = vmatpush.msra.mxu0 %v251
    %764 = vmatpush.msra.mxu0 %v248
    %765 = vmatmul.f32.gmra.mxu0 %v586
    %v766 = vpop.f32.mrf.mxu0
    %v767 = vadd.f32 0.0, %v766
    %768 = vdwg.mxu0
    %769 = vmatpush.msra.mxu0 0.0
    %770 = vmatpush.msra.mxu0 0.0
    %771 = vmatpush.msra.mxu0 0.0
    %772 = vmatpush.msra.mxu0 0.0
    %773 = vmatpush.msra.mxu0 0.0
    %774 = vmatpush.msra.mxu0 0.0
    %775 = vmatpush.msra.mxu0 0.0
    %776 = vmatpush.msra.mxu0 0.0
    %777 = vmatpush.msra.mxu0 0.0
    %778 = vmatpush.msra.mxu0 0.0
    %779 = vmatpush.msra.mxu0 0.0
    %780 = vmatpush.msra.mxu0 0.0
    %781 = vmatpush.msra.mxu0 %v258
    %782 = vmatpush.msra.mxu0 %v255
    %783 = vmatpush.msra.mxu0 %v252
    %784 = vmatpush.msra.mxu0 %v249
    %785 = vmatmul.f32.gmra.mxu0 %v586
    %v786 = vpop.f32.mrf.mxu0
    %v787 = vadd.f32 0.0, %v786
    %788 = vdwg.mxu0
    %v789 = vadd.f32 %v130, %v747
    %v790 = vmul.f32 %v789, 0.5
    %v791 = vtanh.pop %v790
    %v792 = vadd.f32 %v791, 1.0
    %v793 = vmul.f32 %v792, 0.5
    %v794 = vadd.f32 %v171, %v767
    %v795 = vmul.f32 %v794, 0.5
    %v796 = vtanh.pop %v795
    %v797 = vadd.f32 %v796, 1.0
    %v798 = vmul.f32 %v797, 0.5
    %v799 = vadd.f32 %v787, %v240
    %v800 = vmul.f32 %v793, %v799
    %v801 = vadd.f32 %v212, %v800
    %v802 = vtanh.pop %v801
    %v803 = vsub.f32 1.0, %v798
    %v804 = vmul.f32 %v803, %v802
    %v805 = vmul.f32 %v798, %v584
    %v806 = vadd.f32 %v804, %v805
    %v808 = vsel %vm81, %v806, 0
    %810 = vmatpush.msra.mxu0 0.0
    %811 = vmatpush.msra.mxu0 0.0
    %812 = vmatpush.msra.mxu0 0.0
    %813 = vmatpush.msra.mxu0 0.0
    %814 = vmatpush.msra.mxu0 0.0
    %815 = vmatpush.msra.mxu0 0.0
    %816 = vmatpush.msra.mxu0 0.0
    %817 = vmatpush.msra.mxu0 0.0
    %818 = vmatpush.msra.mxu0 0.0
    %819 = vmatpush.msra.mxu0 0.0
    %820 = vmatpush.msra.mxu0 0.0
    %821 = vmatpush.msra.mxu0 0.0
    %822 = vmatpush.msra.mxu0 %v350
    %823 = vmatpush.msra.mxu0 %v347
    %824 = vmatpush.msra.mxu0 %v344
    %825 = vmatpush.msra.mxu0 %v341
    %826 = vmatmul.f32.gmra.mxu0 %v808
    %v827 = vpop.f32.mrf.mxu0
    %v828 = vadd.f32 %v232, %v827
    %829 = vdwg.mxu0
    %830 = vmatpush.msra.mxu0 0.0
    %831 = vmatpush.msra.mxu0 0.0
    %832 = vmatpush.msra.mxu0 0.0
    %833 = vmatpush.msra.mxu0 0.0
    %834 = vmatpush.msra.mxu0 0.0
    %835 = vmatpush.msra.mxu0 0.0
    %836 = vmatpush.msra.mxu0 0.0
    %837 = vmatpush.msra.mxu0 0.0
    %838 = vmatpush.msra.mxu0 0.0
    %839 = vmatpush.msra.mxu0 0.0
    %840 = vmatpush.msra.mxu0 0.0
    %841 = vmatpush.msra.mxu0 0.0
    %842 = vmatpush.msra.mxu0 %v351
    %843 = vmatpush.msra.mxu0 %v348
    %844 = vmatpush.msra.mxu0 %v345
    %845 = vmatpush.msra.mxu0 %v342
    %846 = vmatmul.f32.gmra.mxu0 %v808
    %v847 = vpop.f32.mrf.mxu0
    %v848 = vadd.f32 %v233, %v847
    %849 = vdwg.mxu0
    %850 = vmatpush.msra.mxu0 0.0
    %851 = vmatpush.msra.mxu0 0.0
    %852 = vmatpush.msra.mxu0 0.0
    %853 = vmatpush.msra.mxu0 0.0
    %854 = vmatpush.msra.mxu0 0.0
    %855 = vmatpush.msra.mxu0 0.0
    %856 = vmatpush.msra.mxu0 0.0
    %857 = vmatpush.msra.mxu0 0.0
    %858 = vmatpush.msra.mxu0 0.0
    %859 = vmatpush.msra.mxu0 0.0
    %860 = vmatpush.msra.mxu0 0.0
    %861 = vmatpush.msra.mxu0 0.0
    %862 = vmatpush.msra.mxu0 %v352
    %863 = vmatpush.msra.mxu0 %v349
    %864 = vmatpush.msra.mxu0 %v346
    %865 = vmatpush.msra.mxu0 %v343
    %866 = vmatmul.f32.gmra.mxu0 %v808
    %v867 = vpop.f32.mrf.mxu0
    %v868 = vadd.f32 %v234, %v867
    %869 = vdwg.mxu0
    %v871 = vsel %vm81, %v728, 0
    %873 = vmatpush.msra.mxu0 0.0
    %874 = vmatpush.msra.mxu0 0.0
    %875 = vmatpush.msra.mxu0 0.0
    %876 = vmatpush.msra.mxu0 0.0
    %877 = vmatpush.msra.mxu0 0.0
    %878 = vmatpush.msra.mxu0 0.0
    %879 = vmatpush.msra.mxu0 0.0
    %880 = vmatpush.msra.mxu0 0.0
    %881 = vmatpush.msra.mxu0 0.0
    %882 = vmatpush.msra.mxu0 0.0
    %883 = vmatpush.msra.mxu0 0.0
    %884 = vmatpush.msra.mxu0 0.0
    %885 = vmatpush.msra.mxu0 %v426
    %886 = vmatpush.msra.mxu0 %v423
    %887 = vmatpush.msra.mxu0 %v420
    %888 = vmatpush.msra.mxu0 %v417
    %889 = vmatmul.f32.gmra.mxu0 %v871
    %v890 = vpop.f32.mrf.mxu0
    %v891 = vadd.f32 0.0, %v890
    %892 = vdwg.mxu0
    %893 = vmatpush.msra.mxu0 0.0
    %894 = vmatpush.msra.mxu0 0.0
    %895 = vmatpush.msra.mxu0 0.0
    %896 = vmatpush.msra.mxu0 0.0
    %897 = vmatpush.msra.mxu0 0.0
    %898 = vmatpush.msra.mxu0 0.0
    %899 = vmatpush.msra.mxu0 0.0
    %900 = vmatpush.msra.mxu0 0.0
    %901 = vmatpush.msra.mxu0 0.0
    %902 = vmatpush.msra.mxu0 0.0
    %903 = vmatpush.msra.mxu0 0.0
    %904 = vmatpush.msra.mxu0 0.0
    %905 = vmatpush.msra.mxu0 %v427
    %906 = vmatpush.msra.mxu0 %v424
    %907 = vmatpush.msra.mxu0 %v421
    %908 = vmatpush.msra.mxu0 %v418
    %909 = vmatmul.f32.gmra.mxu0 %v871
    %v910 = vpop.f32.mrf.mxu0
    %v911 = vadd.f32 0.0, %v910
    %912 = vdwg.mxu0
    %913 = vmatpush.msra.mxu0 0.0
    %914 = vmatpush.msra.mxu0 0.0
    %915 = vmatpush.msra.mxu0 0.0
    %916 = vmatpush.msra.mxu0 0.0
    %917 = vmatpush.msra.mxu0 0.0
    %918 = vmatpush.msra.mxu0 0.0
    %919 = vmatpush.msra.mxu0 0.0
    %920 = vmatpush.msra.mxu0 0.0
    %921 = vmatpush.msra.mxu0 0.0
    %922 = vmatpush.msra.mxu0 0.0
    %923 = vmatpush.msra.mxu0 0.0
    %924 = vmatpush.msra.mxu0 0.0
    %925 = vmatpush.msra.mxu0 %v428
    %926 = vmatpush.msra.mxu0 %v425
    %927 = vmatpush.msra.mxu0 %v422
    %928 = vmatpush.msra.mxu0 %v419
    %929 = vmatmul.f32.gmra.mxu0 %v871
    %v930 = vpop.f32.mrf.mxu0
    %v931 = vadd.f32 0.0, %v930
    %932 = vdwg.mxu0
    %v933 = vadd.f32 %v828, %v891
    %v934 = vmul.f32 %v933, 0.5
    %v935 = vtanh.pop %v934
    %v936 = vadd.f32 %v935, 1.0
    %v937 = vmul.f32 %v936, 0.5
    %v938 = vadd.f32 %v848, %v911
    %v939 = vmul.f32 %v938, 0.5
    %v940 = vtanh.pop %v939
    %v941 = vadd.f32 %v940, 1.0
    %v942 = vmul.f32 %v941, 0.5
    %v943 = vadd.f32 %v931, %v245
    %v944 = vmul.f32 %v937, %v943
    %v945 = vadd.f32 %v868, %v944
    %v946 = vtanh.pop %v945
    %v947 = vsub.f32 1.0, %v942
    %v948 = vmul.f32 %v947, %v946
    %v949 = vmul.f32 %v942, %v728
    %v950 = vadd.f32 %v948, %v949
    %951 = vmatpush.msra.mxu0 0.0
    %952 = vmatpush.msra.mxu0 0.0
    %953 = vmatpush.msra.mxu0 0.0
    %954 = vmatpush.msra.mxu0 0.0
    %955 = vmatpush.msra.mxu0 0.0
    %956 = vmatpush.msra.mxu0 0.0
    %957 = vmatpush.msra.mxu0 0.0
    %958 = vmatpush.msra.mxu0 0.0
    %959 = vmatpush.msra.mxu0 0.0
    %960 = vmatpush.msra.mxu0 0.0
    %961 = vmatpush.msra.mxu0 0.0
    %962 = vmatpush.msra.mxu0 0.0
    %963 = vmatpush.msra.mxu0 %v256
    %964 = vmatpush.msra.mxu0 %v253
    %965 = vmatpush.msra.mxu0 %v250
    %966 = vmatpush.msra.mxu0 %v247
    %967 = vmatmul.f32.gmra.mxu0 %v808
    %v968 = vpop.f32.mrf.mxu0
    %v969 = vadd.f32 0.0, %v968
    %970 = vdwg.mxu0
    %971 = vmatpush.msra.mxu0 0.0
    %972 = vmatpush.msra.mxu0 0.0
    %973 = vmatpush.msra.mxu0 0.0
    %974 = vmatpush.msra.mxu0 0.0
    %975 = vmatpush.msra.mxu0 0.0
    %976 = vmatpush.msra.mxu0 0.0
    %977 = vmatpush.msra.mxu0 0.0
    %978 = vmatpush.msra.mxu0 0.0
    %979 = vmatpush.msra.mxu0 0.0
    %980 = vmatpush.msra.mxu0 0.0
    %981 = vmatpush.msra.mxu0 0.0
    %982 = vmatpush.msra.mxu0 0.0
    %983 = vmatpush.msra.mxu0 %v257
    %984 = vmatpush.msra.mxu0 %v254
    %985 = vmatpush.msra.mxu0 %v251
    %986 = vmatpush.msra.mxu0 %v248
    %987 = vmatmul.f32.gmra.mxu0 %v808
    %v988 = vpop.f32.mrf.mxu0
    %v989 = vadd.f32 0.0, %v988
    %990 = vdwg.mxu0
    %991 = vmatpush.msra.mxu0 0.0
    %992 = vmatpush.msra.mxu0 0.0
    %993 = vmatpush.msra.mxu0 0.0
    %994 = vmatpush.msra.mxu0 0.0
    %995 = vmatpush.msra.mxu0 0.0
    %996 = vmatpush.msra.mxu0 0.0
    %997 = vmatpush.msra.mxu0 0.0
    %998 = vmatpush.msra.mxu0 0.0
    %999 = vmatpush.msra.mxu0 0.0
    %1000 = vmatpush.msra.mxu0 0.0
    %1001 = vmatpush.msra.mxu0 0.0
    %1002 = vmatpush.msra.mxu0 0.0
    %1003 = vmatpush.msra.mxu0 %v258
    %1004 = vmatpush.msra.mxu0 %v255
    %1005 = vmatpush.msra.mxu0 %v252
    %1006 = vmatpush.msra.mxu0 %v249
    %1007 = vmatmul.f32.gmra.mxu0 %v808
    %v1008 = vpop.f32.mrf.mxu0
    %v1009 = vadd.f32 0.0, %v1008
    %1010 = vdwg.mxu0
    %v1011 = vadd.f32 %v133, %v969
    %v1012 = vmul.f32 %v1011, 0.5
    %v1013 = vtanh.pop %v1012
    %v1014 = vadd.f32 %v1013, 1.0
    %v1015 = vmul.f32 %v1014, 0.5
    %v1016 = vadd.f32 %v174, %v989
    %v1017 = vmul.f32 %v1016, 0.5
    %v1018 = vtanh.pop %v1017
    %v1019 = vadd.f32 %v1018, 1.0
    %v1020 = vmul.f32 %v1019, 0.5
    %v1021 = vadd.f32 %v1009, %v240
    %v1022 = vmul.f32 %v1015, %v1021
    %v1023 = vadd.f32 %v215, %v1022
    %v1024 = vtanh.pop %v1023
    %v1025 = vsub.f32 1.0, %v1020
    %v1026 = vmul.f32 %v1025, %v1024
    %v1027 = vmul.f32 %v1020, %v806
    %v1028 = vadd.f32 %v1026, %v1027
    %v1030 = vsel %vm81, %v1028, 0
    %1032 = vmatpush.msra.mxu0 0.0
    %1033 = vmatpush.msra.mxu0 0.0
    %1034 = vmatpush.msra.mxu0 0.0
    %1035 = vmatpush.msra.mxu0 0.0
    %1036 = vmatpush.msra.mxu0 0.0
    %1037 = vmatpush.msra.mxu0 0.0
    %1038 = vmatpush.msra.mxu0 0.0
    %1039 = vmatpush.msra.mxu0 0.0
    %1040 = vmatpush.msra.mxu0 0.0
    %1041 = vmatpush.msra.mxu0 0.0
    %1042 = vmatpush.msra.mxu0 0.0
    %1043 = vmatpush.msra.mxu0 0.0
    %1044 = vmatpush.msra.mxu0 %v350
    %1045 = vmatpush.msra.mxu0 %v347
    %1046 = vmatpush.msra.mxu0 %v344
    %1047 = vmatpush.msra.mxu0 %v341
    %1048 = vmatmul.f32.gmra.mxu0 %v1030
    %v1049 = vpop.f32.mrf.mxu0
    %v1050 = vadd.f32 %v232, %v1049
    %1051 = vdwg.mxu0
    %1052 = vmatpush.msra.mxu0 0.0
    %1053 = vmatpush.msra.mxu0 0.0
    %1054 = vmatpush.msra.mxu0 0.0
    %1055 = vmatpush.msra.mxu0 0.0
    %1056 = vmatpush.msra.mxu0 0.0
    %1057 = vmatpush.msra.mxu0 0.0
    %1058 = vmatpush.msra.mxu0 0.0
    %1059 = vmatpush.msra.mxu0 0.0
    %1060 = vmatpush.msra.mxu0 0.0
    %1061 = vmatpush.msra.mxu0 0.0
    %1062 = vmatpush.msra.mxu0 0.0
    %1063 = vmatpush.msra.mxu0 0.0
    %1064 = vmatpush.msra.mxu0 %v351
    %1065 = vmatpush.msra.mxu0 %v348
    %1066 = vmatpush.msra.mxu0 %v345
    %1067 = vmatpush.msra.mxu0 %v342
    %1068 = vmatmul.f32.gmra.mxu0 %v1030
    %v1069 = vpop.f32.mrf.mxu0
    %v1070 = vadd.f32 %v233, %v1069
    %1071 = vdwg.mxu0
    %1072 = vmatpush.msra.mxu0 0.0
    %1073 = vmatpush.msra.mxu0 0.0
    %1074 = vmatpush.msra.mxu0 0.0
    %1075 = vmatpush.msra.mxu0 0.0
    %1076 = vmatpush.msra.mxu0 0.0
    %1077 = vmatpush.msra.mxu0 0.0
    %1078 = vmatpush.msra.mxu0 0.0
    %1079 = vmatpush.msra.mxu0 0.0
    %1080 = vmatpush.msra.mxu0 0.0
    %1081 = vmatpush.msra.mxu0 0.0
    %1082 = vmatpush.msra.mxu0 0.0
    %1083 = vmatpush.msra.mxu0 0.0
    %1084 = vmatpush.msra.mxu0 %v352
    %1085 = vmatpush.msra.mxu0 %v349
    %1086 = vmatpush.msra.mxu0 %v346
    %1087 = vmatpush.msra.mxu0 %v343
    %1088 = vmatmul.f32.gmra.mxu0 %v1030
    %v1089 = vpop.f32.mrf.mxu0
    %v1090 = vadd.f32 %v234, %v1089
    %1091 = vdwg.mxu0
    %v1093 = vsel %vm81, %v950, 0
    %1095 = vmatpush.msra.mxu0 0.0
    %1096 = vmatpush.msra.mxu0 0.0
    %1097 = vmatpush.msra.mxu0 0.0
    %1098 = vmatpush.msra.mxu0 0.0
    %1099 = vmatpush.msra.mxu0 0.0
    %1100 = vmatpush.msra.mxu0 0.0
    %1101 = vmatpush.msra.mxu0 0.0
    %1102 = vmatpush.msra.mxu0 0.0
    %1103 = vmatpush.msra.mxu0 0.0
    %1104 = vmatpush.msra.mxu0 0.0
    %1105 = vmatpush.msra.mxu0 0.0
    %1106 = vmatpush.msra.mxu0 0.0
    %1107 = vmatpush.msra.mxu0 %v426
    %1108 = vmatpush.msra.mxu0 %v423
    %1109 = vmatpush.msra.mxu0 %v420
    %1110 = vmatpush.msra.mxu0 %v417
    %1111 = vmatmul.f32.gmra.mxu0 %v1093
    %v1112 = vpop.f32.mrf.mxu0
    %v1113 = vadd.f32 0.0, %v1112
    %1114 = vdwg.mxu0
    %1115 = vmatpush.msra.mxu0 0.0
    %1116 = vmatpush.msra.mxu0 0.0
    %1117 = vmatpush.msra.mxu0 0.0
    %1118 = vmatpush.msra.mxu0 0.0
    %1119 = vmatpush.msra.mxu0 0.0
    %1120 = vmatpush.msra.mxu0 0.0
    %1121 = vmatpush.msra.mxu0 0.0
    %1122 = vmatpush.msra.mxu0 0.0
    %1123 = vmatpush.msra.mxu0 0.0
    %1124 = vmatpush.msra.mxu0 0.0
    %1125 = vmatpush.msra.mxu0 0.0
    %1126 = vmatpush.msra.mxu0 0.0
    %1127 = vmatpush.msra.mxu0 %v427
    %1128 = vmatpush.msra.mxu0 %v424
    %1129 = vmatpush.msra.mxu0 %v421
    %1130 = vmatpush.msra.mxu0 %v418
    %1131 = vmatmul.f32.gmra.mxu0 %v1093
    %v1132 = vpop.f32.mrf.mxu0
    %v1133 = vadd.f32 0.0, %v1132
    %1134 = vdwg.mxu0
    %1135 = vmatpush.msra.mxu0 0.0
    %1136 = vmatpush.msra.mxu0 0.0
    %1137 = vmatpush.msra.mxu0 0.0
    %1138 = vmatpush.msra.mxu0 0.0
    %1139 = vmatpush.msra.mxu0 0.0
    %1140 = vmatpush.msra.mxu0 0.0
    %1141 = vmatpush.msra.mxu0 0.0
    %1142 = vmatpush.msra.mxu0 0.0
    %1143 = vmatpush.msra.mxu0 0.0
    %1144 = vmatpush.msra.mxu0 0.0
    %1145 = vmatpush.msra.mxu0 0.0
    %1146 = vmatpush.msra.mxu0 0.0
    %1147 = vmatpush.msra.mxu0 %v428
    %1148 = vmatpush.msra.mxu0 %v425
    %1149 = vmatpush.msra.mxu0 %v422
    %1150 = vmatpush.msra.mxu0 %v419
    %1151 = vmatmul.f32.gmra.mxu0 %v1093
    %v1152 = vpop.f32.mrf.mxu0
    %v1153 = vadd.f32 0.0, %v1152
    %1154 = vdwg.mxu0
    %v1155 = vadd.f32 %v1050, %v1113
    %v1156 = vmul.f32 %v1155, 0.5
    %v1157 = vtanh.pop %v1156
    %v1158 = vadd.f32 %v1157, 1.0
    %v1159 = vmul.f32 %v1158, 0.5
    %v1160 = vadd.f32 %v1070, %v1133
    %v1161 = vmul.f32 %v1160, 0.5
    %v1162 = vtanh.pop %v1161
    %v1163 = vadd.f32 %v1162, 1.0
    %v1164 = vmul.f32 %v1163, 0.5
    %v1165 = vadd.f32 %v1153, %v245
    %v1166 = vmul.f32 %v1159, %v1165
    %v1167 = vadd.f32 %v1090, %v1166
    %v1168 = vtanh.pop %v1167
    %v1169 = vsub.f32 1.0, %v1164
    %v1170 = vmul.f32 %v1169, %v1168
    %v1171 = vmul.f32 %v1164, %v950
    %v1172 = vadd.f32 %v1170, %v1171
    %1173 = vmatpush.msra.mxu0 0.0
    %1174 = vmatpush.msra.mxu0 0.0
    %1175 = vmatpush.msra.mxu0 0.0
    %1176 = vmatpush.msra.mxu0 0.0
    %1177 = vmatpush.msra.mxu0 0.0
    %1178 = vmatpush.msra.mxu0 0.0
    %1179 = vmatpush.msra.mxu0 0.0
    %1180 = vmatpush.msra.mxu0 0.0
    %1181 = vmatpush.msra.mxu0 0.0
    %1182 = vmatpush.msra.mxu0 0.0
    %1183 = vmatpush.msra.mxu0 0.0
    %1184 = vmatpush.msra.mxu0 0.0
    %1185 = vmatpush.msra.mxu0 %v256
    %1186 = vmatpush.msra.mxu0 %v253
    %1187 = vmatpush.msra.mxu0 %v250
    %1188 = vmatpush.msra.mxu0 %v247
    %1189 = vmatmul.f32.gmra.mxu0 %v1030
    %v1190 = vpop.f32.mrf.mxu0
    %v1191 = vadd.f32 0.0, %v1190
    %1192 = vdwg.mxu0
    %1193 = vmatpush.msra.mxu0 0.0
    %1194 = vmatpush.msra.mxu0 0.0
    %1195 = vmatpush.msra.mxu0 0.0
    %1196 = vmatpush.msra.mxu0 0.0
    %1197 = vmatpush.msra.mxu0 0.0
    %1198 = vmatpush.msra.mxu0 0.0
    %1199 = vmatpush.msra.mxu0 0.0
    %1200 = vmatpush.msra.mxu0 0.0
    %1201 = vmatpush.msra.mxu0 0.0
    %1202 = vmatpush.msra.mxu0 0.0
    %1203 = vmatpush.msra.mxu0 0.0
    %1204 = vmatpush.msra.mxu0 0.0
    %1205 = vmatpush.msra.mxu0 %v257
    %1206 = vmatpush.msra.mxu0 %v254
    %1207 = vmatpush.msra.mxu0 %v251
    %1208 = vmatpush.msra.mxu0 %v248
    %1209 = vmatmul.f32.gmra.mxu0 %v1030
    %v1210 = vpop.f32.mrf.mxu0
    %v1211 = vadd.f32 0.0, %v1210
    %1212 = vdwg.mxu0
    %1213 = vmatpush.msra.mxu0 0.0
    %1214 = vmatpush.msra.mxu0 0.0
    %1215 = vmatpush.msra.mxu0 0.0
    %1216 = vmatpush.msra.mxu0 0.0
    %1217 = vmatpush.msra.mxu0 0.0
    %1218 = vmatpush.msra.mxu0 0.0
    %1219 = vmatpush.msra.mxu0 0.0
    %1220 = vmatpush.msra.mxu0 0.0
    %1221 = vmatpush.msra.mxu0 0.0
    %1222 = vmatpush.msra.mxu0 0.0
    %1223 = vmatpush.msra.mxu0 0.0
    %1224 = vmatpush.msra.mxu0 0.0
    %1225 = vmatpush.msra.mxu0 %v258
    %1226 = vmatpush.msra.mxu0 %v255
    %1227 = vmatpush.msra.mxu0 %v252
    %1228 = vmatpush.msra.mxu0 %v249
    %1229 = vmatmul.f32.gmra.mxu0 %v1030
    %v1230 = vpop.f32.mrf.mxu0
    %v1231 = vadd.f32 0.0, %v1230
    %1232 = vdwg.mxu0
    %v1233 = vadd.f32 %v136, %v1191
    %v1234 = vmul.f32 %v1233, 0.5
    %v1235 = vtanh.pop %v1234
    %v1236 = vadd.f32 %v1235, 1.0
    %v1237 = vmul.f32 %v1236, 0.5
    %v1238 = vadd.f32 %v177, %v1211
    %v1239 = vmul.f32 %v1238, 0.5
    %v1240 = vtanh.pop %v1239
    %v1241 = vadd.f32 %v1240, 1.0
    %v1242 = vmul.f32 %v1241, 0.5
    %v1243 = vadd.f32 %v1231, %v240
    %v1244 = vmul.f32 %v1237, %v1243
    %v1245 = vadd.f32 %v218, %v1244
    %v1246 = vtanh.pop %v1245
    %v1247 = vsub.f32 1.0, %v1242
    %v1248 = vmul.f32 %v1247, %v1246
    %v1249 = vmul.f32 %v1242, %v1028
    %v1250 = vadd.f32 %v1248, %v1249
    %v1252 = vsel %vm81, %v1250, 0
    %1254 = vmatpush.msra.mxu0 0.0
    %1255 = vmatpush.msra.mxu0 0.0
    %1256 = vmatpush.msra.mxu0 0.0
    %1257 = vmatpush.msra.mxu0 0.0
    %1258 = vmatpush.msra.mxu0 0.0
    %1259 = vmatpush.msra.mxu0 0.0
    %1260 = vmatpush.msra.mxu0 0.0
    %1261 = vmatpush.msra.mxu0 0.0
    %1262 = vmatpush.msra.mxu0 0.0
    %1263 = vmatpush.msra.mxu0 0.0
    %1264 = vmatpush.msra.mxu0 0.0
    %1265 = vmatpush.msra.mxu0 0.0
    %1266 = vmatpush.msra.mxu0 %v350
    %1267 = vmatpush.msra.mxu0 %v347
    %1268 = vmatpush.msra.mxu0 %v344
    %1269 = vmatpush.msra.mxu0 %v341
    %1270 = vmatmul.f32.gmra.mxu0 %v1252
    %v1271 = vpop.f32.mrf.mxu0
    %v1272 = vadd.f32 %v232, %v1271
    %1273 = vdwg.mxu0
    %1274 = vmatpush.msra.mxu0 0.0
    %1275 = vmatpush.msra.mxu0 0.0
    %1276 = vmatpush.msra.mxu0 0.0
    %1277 = vmatpush.msra.mxu0 0.0
    %1278 = vmatpush.msra.mxu0 0.0
    %1279 = vmatpush.msra.mxu0 0.0
    %1280 = vmatpush.msra.mxu0 0.0
    %1281 = vmatpush.msra.mxu0 0.0
    %1282 = vmatpush.msra.mxu0 0.0
    %1283 = vmatpush.msra.mxu0 0.0
    %1284 = vmatpush.msra.mxu0 0.0
    %1285 = vmatpush.msra.mxu0 0.0
    %1286 = vmatpush.msra.mxu0 %v351
    %1287 = vmatpush.msra.mxu0 %v348
    %1288 = vmatpush.msra.mxu0 %v345
    %1289 = vmatpush.msra.mxu0 %v342
    %1290 = vmatmul.f32.gmra.mxu0 %v1252
    %v1291 = vpop.f32.mrf.mxu0
    %v1292 = vadd.f32 %v233, %v1291
    %1293 = vdwg.mxu0
    %1294 = vmatpush.msra.mxu0 0.0
    %1295 = vmatpush.msra.mxu0 0.0
    %1296 = vmatpush.msra.mxu0 0.0
    %1297 = vmatpush.msra.mxu0 0.0
    %1298 = vmatpush.msra.mxu0 0.0
    %1299 = vmatpush.msra.mxu0 0.0
    %1300 = vmatpush.msra.mxu0 0.0
    %1301 = vmatpush.msra.mxu0 0.0
    %1302 = vmatpush.msra.mxu0 0.0
    %1303 = vmatpush.msra.mxu0 0.0
    %1304 = vmatpush.msra.mxu0 0.0
    %1305 = vmatpush.msra.mxu0 0.0
    %1306 = vmatpush.msra.mxu0 %v352
    %1307 = vmatpush.msra.mxu0 %v349
    %1308 = vmatpush.msra.mxu0 %v346
    %1309 = vmatpush.msra.mxu0 %v343
    %1310 = vmatmul.f32.gmra.mxu0 %v1252
    %v1311 = vpop.f32.mrf.mxu0
    %v1312 = vadd.f32 %v234, %v1311
    %1313 = vdwg.mxu0
    %v1315 = vsel %vm81, %v1172, 0
    %1317 = vmatpush.msra.mxu0 0.0
    %1318 = vmatpush.msra.mxu0 0.0
    %1319 = vmatpush.msra.mxu0 0.0
    %1320 = vmatpush.msra.mxu0 0.0
    %1321 = vmatpush.msra.mxu0 0.0
    %1322 = vmatpush.msra.mxu0 0.0
    %1323 = vmatpush.msra.mxu0 0.0
    %1324 = vmatpush.msra.mxu0 0.0
    %1325 = vmatpush.msra.mxu0 0.0
    %1326 = vmatpush.msra.mxu0 0.0
    %1327 = vmatpush.msra.mxu0 0.0
    %1328 = vmatpush.msra.mxu0 0.0
    %1329 = vmatpush.msra.mxu0 %v426
    %1330 = vmatpush.msra.mxu0 %v423
    %1331 = vmatpush.msra.mxu0 %v420
    %1332 = vmatpush.msra.mxu0 %v417
    %1333 = vmatmul.f32.gmra.mxu0 %v1315
    %v1334 = vpop.f32.mrf.mxu0
    %v1335 = vadd.f32 0.0, %v1334
    %1336 = vdwg.mxu0
    %1337 = vmatpush.msra.mxu0 0.0
    %1338 = vmatpush.msra.mxu0 0.0
    %1339 = vmatpush.msra.mxu0 0.0
    %1340 = vmatpush.msra.mxu0 0.0
    %1341 = vmatpush.msra.mxu0 0.0
    %1342 = vmatpush.msra.mxu0 0.0
    %1343 = vmatpush.msra.mxu0 0.0
    %1344 = vmatpush.msra.mxu0 0.0
    %1345 = vmatpush.msra.mxu0 0.0
    %1346 = vmatpush.msra.mxu0 0.0
    %1347 = vmatpush.msra.mxu0 0.0
    %1348 = vmatpush.msra.mxu0 0.0
    %1349 = vmatpush.msra.mxu0 %v427
    %1350 = vmatpush.msra.mxu0 %v424
    %1351 = vmatpush.msra.mxu0 %v421
    %1352 = vmatpush.msra.mxu0 %v418
    %1353 = vmatmul.f32.gmra.mxu0 %v1315
    %v1354 = vpop.f32.mrf.mxu0
    %v1355 = vadd.f32 0.0, %v1354
    %1356 = vdwg.mxu0
    %1357 = vmatpush.msra.mxu0 0.0
    %1358 = vmatpush.msra.mxu0 0.0
    %1359 = vmatpush.msra.mxu0 0.0
    %1360 = vmatpush.msra.mxu0 0.0
    %1361 = vmatpush.msra.mxu0 0.0
    %1362 = vmatpush.msra.mxu0 0.0
    %1363 = vmatpush.msra.mxu0 0.0
    %1364 = vmatpush.msra.mxu0 0.0
    %1365 = vmatpush.msra.mxu0 0.0
    %1366 = vmatpush.msra.mxu0 0.0
    %1367 = vmatpush.msra.mxu0 0.0
    %1368 = vmatpush.msra.mxu0 0.0
    %1369 = vmatpush.msra.mxu0 %v428
    %1370 = vmatpush.msra.mxu0 %v425
    %1371 = vmatpush.msra.mxu0 %v422
    %1372 = vmatpush.msra.mxu0 %v419
    %1373 = vmatmul.f32.gmra.mxu0 %v1315
    %v1374 = vpop.f32.mrf.mxu0
    %v1375 = vadd.f32 0.0, %v1374
    %1376 = vdwg.mxu0
    %v1377 = vadd.f32 %v1272, %v1335
    %v1378 = vmul.f32 %v1377, 0.5
    %v1379 = vtanh.pop %v1378
    %v1380 = vadd.f32 %v1379, 1.0
    %v1381 = vmul.f32 %v1380, 0.5
    %v1382 = vadd.f32 %v1292, %v1355
    %v1383 = vmul.f32 %v1382, 0.5
    %v1384 = vtanh.pop %v1383
    %v1385 = vadd.f32 %v1384, 1.0
    %v1386 = vmul.f32 %v1385, 0.5
    %v1387 = vadd.f32 %v1375, %v245
    %v1388 = vmul.f32 %v1381, %v1387
    %v1389 = vadd.f32 %v1312, %v1388
    %v1390 = vtanh.pop %v1389
    %v1391 = vsub.f32 1.0, %v1386
    %v1392 = vmul.f32 %v1391, %v1390
    %v1393 = vmul.f32 %v1386, %v1172
    %v1394 = vadd.f32 %v1392, %v1393
    %1395 = vmatpush.msra.mxu0 0.0
    %1396 = vmatpush.msra.mxu0 0.0
    %1397 = vmatpush.msra.mxu0 0.0
    %1398 = vmatpush.msra.mxu0 0.0
    %1399 = vmatpush.msra.mxu0 0.0
    %1400 = vmatpush.msra.mxu0 0.0
    %1401 = vmatpush.msra.mxu0 0.0
    %1402 = vmatpush.msra.mxu0 0.0
    %1403 = vmatpush.msra.mxu0 0.0
    %1404 = vmatpush.msra.mxu0 0.0
    %1405 = vmatpush.msra.mxu0 0.0
    %1406 = vmatpush.msra.mxu0 0.0
    %1407 = vmatpush.msra.mxu0 %v256
    %1408 = vmatpush.msra.mxu0 %v253
    %1409 = vmatpush.msra.mxu0 %v250
    %1410 = vmatpush.msra.mxu0 %v247
    %1411 = vmatmul.f32.gmra.mxu0 %v1252
    %v1412 = vpop.f32.mrf.mxu0
    %v1413 = vadd.f32 0.0, %v1412
    %1414 = vdwg.mxu0
    %1415 = vmatpush.msra.mxu0 0.0
    %1416 = vmatpush.msra.mxu0 0.0
    %1417 = vmatpush.msra.mxu0 0.0
    %1418 = vmatpush.msra.mxu0 0.0
    %1419 = vmatpush.msra.mxu0 0.0
    %1420 = vmatpush.msra.mxu0 0.0
    %1421 = vmatpush.msra.mxu0 0.0
    %1422 = vmatpush.msra.mxu0 0.0
    %1423 = vmatpush.msra.mxu0 0.0
    %1424 = vmatpush.msra.mxu0 0.0
    %1425 = vmatpush.msra.mxu0 0.0
    %1426 = vmatpush.msra.mxu0 0.0
    %1427 = vmatpush.msra.mxu0 %v257
    %1428 = vmatpush.msra.mxu0 %v254
    %1429 = vmatpush.msra.mxu0 %v251
    %1430 = vmatpush.msra.mxu0 %v248
    %1431 = vmatmul.f32.gmra.mxu0 %v1252
    %v1432 = vpop.f32.mrf.mxu0
    %v1433 = vadd.f32 0.0, %v1432
    %1434 = vdwg.mxu0
    %1435 = vmatpush.msra.mxu0 0.0
    %1436 = vmatpush.msra.mxu0 0.0
    %1437 = vmatpush.msra.mxu0 0.0
    %1438 = vmatpush.msra.mxu0 0.0
    %1439 = vmatpush.msra.mxu0 0.0
    %1440 = vmatpush.msra.mxu0 0.0
    %1441 = vmatpush.msra.mxu0 0.0
    %1442 = vmatpush.msra.mxu0 0.0
    %1443 = vmatpush.msra.mxu0 0.0
    %1444 = vmatpush.msra.mxu0 0.0
    %1445 = vmatpush.msra.mxu0 0.0
    %1446 = vmatpush.msra.mxu0 0.0
    %1447 = vmatpush.msra.mxu0 %v258
    %1448 = vmatpush.msra.mxu0 %v255
    %1449 = vmatpush.msra.mxu0 %v252
    %1450 = vmatpush.msra.mxu0 %v249
    %1451 = vmatmul.f32.gmra.mxu0 %v1252
    %v1452 = vpop.f32.mrf.mxu0
    %v1453 = vadd.f32 0.0, %v1452
    %1454 = vdwg.mxu0
    %v1455 = vadd.f32 %v139, %v1413
    %v1456 = vmul.f32 %v1455, 0.5
    %v1457 = vtanh.pop %v1456
    %v1458 = vadd.f32 %v1457, 1.0
    %v1459 = vmul.f32 %v1458, 0.5
    %v1460 = vadd.f32 %v180, %v1433
    %v1461 = vmul.f32 %v1460, 0.5
    %v1462 = vtanh.pop %v1461
    %v1463 = vadd.f32 %v1462, 1.0
    %v1464 = vmul.f32 %v1463, 0.5
    %v1465 = vadd.f32 %v1453, %v240
    %v1466 = vmul.f32 %v1459, %v1465
    %v1467 = vadd.f32 %v221, %v1466
    %v1468 = vtanh.pop %v1467
    %v1469 = vsub.f32 1.0, %v1464
    %v1470 = vmul.f32 %v1469, %v1468
    %v1471 = vmul.f32 %v1464, %v1250
    %v1472 = vadd.f32 %v1470, %v1471
    %v1474 = vsel %vm81, %v1472, 0
    %1476 = vmatpush.msra.mxu0 0.0
    %1477 = vmatpush.msra.mxu0 0.0
    %1478 = vmatpush.msra.mxu0 0.0
    %1479 = vmatpush.msra.mxu0 0.0
    %1480 = vmatpush.msra.mxu0 0.0
    %1481 = vmatpush.msra.mxu0 0.0
    %1482 = vmatpush.msra.mxu0 0.0
    %1483 = vmatpush.msra.mxu0 0.0
    %1484 = vmatpush.msra.mxu0 0.0
    %1485 = vmatpush.msra.mxu0 0.0
    %1486 = vmatpush.msra.mxu0 0.0
    %1487 = vmatpush.msra.mxu0 0.0
    %1488 = vmatpush.msra.mxu0 %v350
    %1489 = vmatpush.msra.mxu0 %v347
    %1490 = vmatpush.msra.mxu0 %v344
    %1491 = vmatpush.msra.mxu0 %v341
    %1492 = vmatmul.f32.gmra.mxu0 %v1474
    %v1493 = vpop.f32.mrf.mxu0
    %v1494 = vadd.f32 %v232, %v1493
    %1495 = vdwg.mxu0
    %1496 = vmatpush.msra.mxu0 0.0
    %1497 = vmatpush.msra.mxu0 0.0
    %1498 = vmatpush.msra.mxu0 0.0
    %1499 = vmatpush.msra.mxu0 0.0
    %1500 = vmatpush.msra.mxu0 0.0
    %1501 = vmatpush.msra.mxu0 0.0
    %1502 = vmatpush.msra.mxu0 0.0
    %1503 = vmatpush.msra.mxu0 0.0
    %1504 = vmatpush.msra.mxu0 0.0
    %1505 = vmatpush.msra.mxu0 0.0
    %1506 = vmatpush.msra.mxu0 0.0
    %1507 = vmatpush.msra.mxu0 0.0
    %1508 = vmatpush.msra.mxu0 %v351
    %1509 = vmatpush.msra.mxu0 %v348
    %1510 = vmatpush.msra.mxu0 %v345
    %1511 = vmatpush.msra.mxu0 %v342
    %1512 = vmatmul.f32.gmra.mxu0 %v1474
    %v1513 = vpop.f32.mrf.mxu0
    %v1514 = vadd.f32 %v233, %v1513
    %1515 = vdwg.mxu0
    %1516 = vmatpush.msra.mxu0 0.0
    %1517 = vmatpush.msra.mxu0 0.0
    %1518 = vmatpush.msra.mxu0 0.0
    %1519 = vmatpush.msra.mxu0 0.0
    %1520 = vmatpush.msra.mxu0 0.0
    %1521 = vmatpush.msra.mxu0 0.0
    %1522 = vmatpush.msra.mxu0 0.0
    %1523 = vmatpush.msra.mxu0 0.0
    %1524 = vmatpush.msra.mxu0 0.0
    %1525 = vmatpush.msra.mxu0 0.0
    %1526 = vmatpush.msra.mxu0 0.0
    %1527 = vmatpush.msra.mxu0 0.0
    %1528 = vmatpush.msra.mxu0 %v352
    %1529 = vmatpush.msra.mxu0 %v349
    %1530 = vmatpush.msra.mxu0 %v346
    %1531 = vmatpush.msra.mxu0 %v343
    %1532 = vmatmul.f32.gmra.mxu0 %v1474
    %v1533 = vpop.f32.mrf.mxu0
    %v1534 = vadd.f32 %v234, %v1533
    %1535 = vdwg.mxu0
    %v1537 = vsel %vm81, %v1394, 0
    %1539 = vmatpush.msra.mxu0 0.0
    %1540 = vmatpush.msra.mxu0 0.0
    %1541 = vmatpush.msra.mxu0 0.0
    %1542 = vmatpush.msra.mxu0 0.0
    %1543 = vmatpush.msra.mxu0 0.0
    %1544 = vmatpush.msra.mxu0 0.0
    %1545 = vmatpush.msra.mxu0 0.0
    %1546 = vmatpush.msra.mxu0 0.0
    %1547 = vmatpush.msra.mxu0 0.0
    %1548 = vmatpush.msra.mxu0 0.0
    %1549 = vmatpush.msra.mxu0 0.0
    %1550 = vmatpush.msra.mxu0 0.0
    %1551 = vmatpush.msra.mxu0 %v426
    %1552 = vmatpush.msra.mxu0 %v423
    %1553 = vmatpush.msra.mxu0 %v420
    %1554 = vmatpush.msra.mxu0 %v417
    %1555 = vmatmul.f32.gmra.mxu0 %v1537
    %v1556 = vpop.f32.mrf.mxu0
    %v1557 = vadd.f32 0.0, %v1556
    %1558 = vdwg.mxu0
    %1559 = vmatpush.msra.mxu0 0.0
    %1560 = vmatpush.msra.mxu0 0.0
    %1561 = vmatpush.msra.mxu0 0.0
    %1562 = vmatpush.msra.mxu0 0.0
    %1563 = vmatpush.msra.mxu0 0.0
    %1564 = vmatpush.msra.mxu0 0.0
    %1565 = vmatpush.msra.mxu0 0.0
    %1566 = vmatpush.msra.mxu0 0.0
    %1567 = vmatpush.msra.mxu0 0.0
    %1568 = vmatpush.msra.mxu0 0.0
    %1569 = vmatpush.msra.mxu0 0.0
    %1570 = vmatpush.msra.mxu0 0.0
    %1571 = vmatpush.msra.mxu0 %v427
    %1572 = vmatpush.msra.mxu0 %v424
    %1573 = vmatpush.msra.mxu0 %v421
    %1574 = vmatpush.msra.mxu0 %v418
    %1575 = vmatmul.f32.gmra.mxu0 %v1537
    %v1576 = vpop.f32.mrf.mxu0
    %v1577 = vadd.f32 0.0, %v1576
    %1578 = vdwg.mxu0
    %1579 = vmatpush.msra.mxu0 0.0
    %1580 = vmatpush.msra.mxu0 0.0
    %1581 = vmatpush.msra.mxu0 0.0
    %1582 = vmatpush.msra.mxu0 0.0
    %1583 = vmatpush.msra.mxu0 0.0
    %1584 = vmatpush.msra.mxu0 0.0
    %1585 = vmatpush.msra.mxu0 0.0
    %1586 = vmatpush.msra.mxu0 0.0
    %1587 = vmatpush.msra.mxu0 0.0
    %1588 = vmatpush.msra.mxu0 0.0
    %1589 = vmatpush.msra.mxu0 0.0
    %1590 = vmatpush.msra.mxu0 0.0
    %1591 = vmatpush.msra.mxu0 %v428
    %1592 = vmatpush.msra.mxu0 %v425
    %1593 = vmatpush.msra.mxu0 %v422
    %1594 = vmatpush.msra.mxu0 %v419
    %1595 = vmatmul.f32.gmra.mxu0 %v1537
    %v1596 = vpop.f32.mrf.mxu0
    %v1597 = vadd.f32 0.0, %v1596
    %1598 = vdwg.mxu0
    %v1599 = vadd.f32 %v1494, %v1557
    %v1600 = vmul.f32 %v1599, 0.5
    %v1601 = vtanh.pop %v1600
    %v1602 = vadd.f32 %v1601, 1.0
    %v1603 = vmul.f32 %v1602, 0.5
    %v1604 = vadd.f32 %v1514, %v1577
    %v1605 = vmul.f32 %v1604, 0.5
    %v1606 = vtanh.pop %v1605
    %v1607 = vadd.f32 %v1606, 1.0
    %v1608 = vmul.f32 %v1607, 0.5
    %v1609 = vadd.f32 %v1597, %v245
    %v1610 = vmul.f32 %v1603, %v1609
    %v1611 = vadd.f32 %v1534, %v1610
    %v1612 = vtanh.pop %v1611
    %v1613 = vsub.f32 1.0, %v1608
    %v1614 = vmul.f32 %v1613, %v1612
    %v1615 = vmul.f32 %v1608, %v1394
    %v1616 = vadd.f32 %v1614, %v1615
    %1617 = vmatpush.msra.mxu0 0.0
    %1618 = vmatpush.msra.mxu0 0.0
    %1619 = vmatpush.msra.mxu0 0.0
    %1620 = vmatpush.msra.mxu0 0.0
    %1621 = vmatpush.msra.mxu0 0.0
    %1622 = vmatpush.msra.mxu0 0.0
    %1623 = vmatpush.msra.mxu0 0.0
    %1624 = vmatpush.msra.mxu0 0.0
    %1625 = vmatpush.msra.mxu0 0.0
    %1626 = vmatpush.msra.mxu0 0.0
    %1627 = vmatpush.msra.mxu0 0.0
    %1628 = vmatpush.msra.mxu0 0.0
    %1629 = vmatpush.msra.mxu0 %v256
    %1630 = vmatpush.msra.mxu0 %v253
    %1631 = vmatpush.msra.mxu0 %v250
    %1632 = vmatpush.msra.mxu0 %v247
    %1633 = vmatmul.f32.gmra.mxu0 %v1474
    %v1634 = vpop.f32.mrf.mxu0
    %v1635 = vadd.f32 0.0, %v1634
    %1636 = vdwg.mxu0
    %1637 = vmatpush.msra.mxu0 0.0
    %1638 = vmatpush.msra.mxu0 0.0
    %1639 = vmatpush.msra.mxu0 0.0
    %1640 = vmatpush.msra.mxu0 0.0
    %1641 = vmatpush.msra.mxu0 0.0
    %1642 = vmatpush.msra.mxu0 0.0
    %1643 = vmatpush.msra.mxu0 0.0
    %1644 = vmatpush.msra.mxu0 0.0
    %1645 = vmatpush.msra.mxu0 0.0
    %1646 = vmatpush.msra.mxu0 0.0
    %1647 = vmatpush.msra.mxu0 0.0
    %1648 = vmatpush.msra.mxu0 0.0
    %1649 = vmatpush.msra.mxu0 %v257
    %1650 = vmatpush.msra.mxu0 %v254
    %1651 = vmatpush.msra.mxu0 %v251
    %1652 = vmatpush.msra.mxu0 %v248
    %1653 = vmatmul.f32.gmra.mxu0 %v1474
    %v1654 = vpop.f32.mrf.mxu0
    %v1655 = vadd.f32 0.0, %v1654
    %1656 = vdwg.mxu0
    %1657 = vmatpush.msra.mxu0 0.0
    %1658 = vmatpush.msra.mxu0 0.0
    %1659 = vmatpush.msra.mxu0 0.0
    %1660 = vmatpush.msra.mxu0 0.0
    %1661 = vmatpush.msra.mxu0 0.0
    %1662 = vmatpush.msra.mxu0 0.0
    %1663 = vmatpush.msra.mxu0 0.0
    %1664 = vmatpush.msra.mxu0 0.0
    %1665 = vmatpush.msra.mxu0 0.0
    %1666 = vmatpush.msra.mxu0 0.0
    %1667 = vmatpush.msra.mxu0 0.0
    %1668 = vmatpush.msra.mxu0 0.0
    %1669 = vmatpush.msra.mxu0 %v258
    %1670 = vmatpush.msra.mxu0 %v255
    %1671 = vmatpush.msra.mxu0 %v252
    %1672 = vmatpush.msra.mxu0 %v249
    %1673 = vmatmul.f32.gmra.mxu0 %v1474
    %v1674 = vpop.f32.mrf.mxu0
    %v1675 = vadd.f32 0.0, %v1674
    %1676 = vdwg.mxu0
    %v1677 = vadd.f32 %v142, %v1635
    %v1678 = vmul.f32 %v1677, 0.5
    %v1679 = vtanh.pop %v1678
    %v1680 = vadd.f32 %v1679, 1.0
    %v1681 = vmul.f32 %v1680, 0.5
    %v1682 = vadd.f32 %v183, %v1655
    %v1683 = vmul.f32 %v1682, 0.5
    %v1684 = vtanh.pop %v1683
    %v1685 = vadd.f32 %v1684, 1.0
    %v1686 = vmul.f32 %v1685, 0.5
    %v1687 = vadd.f32 %v1675, %v240
    %v1688 = vmul.f32 %v1681, %v1687
    %v1689 = vadd.f32 %v224, %v1688
    %v1690 = vtanh.pop %v1689
    %v1691 = vsub.f32 1.0, %v1686
    %v1692 = vmul.f32 %v1691, %v1690
    %v1693 = vmul.f32 %v1686, %v1472
    %v1694 = vadd.f32 %v1692, %v1693
    %v1696 = vsel %vm81, %v1694, 0
    %1698 = vmatpush.msra.mxu0 0.0
    %1699 = vmatpush.msra.mxu0 0.0
    %1700 = vmatpush.msra.mxu0 0.0
    %1701 = vmatpush.msra.mxu0 0.0
    %1702 = vmatpush.msra.mxu0 0.0
    %1703 = vmatpush.msra.mxu0 0.0
    %1704 = vmatpush.msra.mxu0 0.0
    %1705 = vmatpush.msra.mxu0 0.0
    %1706 = vmatpush.msra.mxu0 0.0
    %1707 = vmatpush.msra.mxu0 0.0
    %1708 = vmatpush.msra.mxu0 0.0
    %1709 = vmatpush.msra.mxu0 0.0
    %1710 = vmatpush.msra.mxu0 %v350
    %1711 = vmatpush.msra.mxu0 %v347
    %1712 = vmatpush.msra.mxu0 %v344
    %1713 = vmatpush.msra.mxu0 %v341
    %1714 = vmatmul.f32.gmra.mxu0 %v1696
    %v1715 = vpop.f32.mrf.mxu0
    %v1716 = vadd.f32 %v232, %v1715
    %1717 = vdwg.mxu0
    %1718 = vmatpush.msra.mxu0 0.0
    %1719 = vmatpush.msra.mxu0 0.0
    %1720 = vmatpush.msra.mxu0 0.0
    %1721 = vmatpush.msra.mxu0 0.0
    %1722 = vmatpush.msra.mxu0 0.0
    %1723 = vmatpush.msra.mxu0 0.0
    %1724 = vmatpush.msra.mxu0 0.0
    %1725 = vmatpush.msra.mxu0 0.0
    %1726 = vmatpush.msra.mxu0 0.0
    %1727 = vmatpush.msra.mxu0 0.0
    %1728 = vmatpush.msra.mxu0 0.0
    %1729 = vmatpush.msra.mxu0 0.0
    %1730 = vmatpush.msra.mxu0 %v351
    %1731 = vmatpush.msra.mxu0 %v348
    %1732 = vmatpush.msra.mxu0 %v345
    %1733 = vmatpush.msra.mxu0 %v342
    %1734 = vmatmul.f32.gmra.mxu0 %v1696
    %v1735 = vpop.f32.mrf.mxu0
    %v1736 = vadd.f32 %v233, %v1735
    %1737 = vdwg.mxu0
    %1738 = vmatpush.msra.mxu0 0.0
    %1739 = vmatpush.msra.mxu0 0.0
    %1740 = vmatpush.msra.mxu0 0.0
    %1741 = vmatpush.msra.mxu0 0.0
    %1742 = vmatpush.msra.mxu0 0.0
    %1743 = vmatpush.msra.mxu0 0.0
    %1744 = vmatpush.msra.mxu0 0.0
    %1745 = vmatpush.msra.mxu0 0.0
    %1746 = vmatpush.msra.mxu0 0.0
    %1747 = vmatpush.msra.mxu0 0.0
    %1748 = vmatpush.msra.mxu0 0.0
    %1749 = vmatpush.msra.mxu0 0.0
    %1750 = vmatpush.msra.mxu0 %v352
    %1751 = vmatpush.msra.mxu0 %v349
    %1752 = vmatpush.msra.mxu0 %v346
    %1753 = vmatpush.msra.mxu0 %v343
    %1754 = vmatmul.f32.gmra.mxu0 %v1696
    %v1755 = vpop.f32.mrf.mxu0
    %v1756 = vadd.f32 %v234, %v1755
    %1757 = vdwg.mxu0
    %v1759 = vsel %vm81, %v1616, 0
    %1761 = vmatpush.msra.mxu0 0.0
    %1762 = vmatpush.msra.mxu0 0.0
    %1763 = vmatpush.msra.mxu0 0.0
    %1764 = vmatpush.msra.mxu0 0.0
    %1765 = vmatpush.msra.mxu0 0.0
    %1766 = vmatpush.msra.mxu0 0.0
    %1767 = vmatpush.msra.mxu0 0.0
    %1768 = vmatpush.msra.mxu0 0.0
    %1769 = vmatpush.msra.mxu0 0.0
    %1770 = vmatpush.msra.mxu0 0.0
    %1771 = vmatpush.msra.mxu0 0.0
    %1772 = vmatpush.msra.mxu0 0.0
    %1773 = vmatpush.msra.mxu0 %v426
    %1774 = vmatpush.msra.mxu0 %v423
    %1775 = vmatpush.msra.mxu0 %v420
    %1776 = vmatpush.msra.mxu0 %v417
    %1777 = vmatmul.f32.gmra.mxu0 %v1759
    %v1778 = vpop.f32.mrf.mxu0
    %v1779 = vadd.f32 0.0, %v1778
    %1780 = vdwg.mxu0
    %1781 = vmatpush.msra.mxu0 0.0
    %1782 = vmatpush.msra.mxu0 0.0
    %1783 = vmatpush.msra.mxu0 0.0
    %1784 = vmatpush.msra.mxu0 0.0
    %1785 = vmatpush.msra.mxu0 0.0
    %1786 = vmatpush.msra.mxu0 0.0
    %1787 = vmatpush.msra.mxu0 0.0
    %1788 = vmatpush.msra.mxu0 0.0
    %1789 = vmatpush.msra.mxu0 0.0
    %1790 = vmatpush.msra.mxu0 0.0
    %1791 = vmatpush.msra.mxu0 0.0
    %1792 = vmatpush.msra.mxu0 0.0
    %1793 = vmatpush.msra.mxu0 %v427
    %1794 = vmatpush.msra.mxu0 %v424
    %1795 = vmatpush.msra.mxu0 %v421
    %1796 = vmatpush.msra.mxu0 %v418
    %1797 = vmatmul.f32.gmra.mxu0 %v1759
    %v1798 = vpop.f32.mrf.mxu0
    %v1799 = vadd.f32 0.0, %v1798
    %1800 = vdwg.mxu0
    %1801 = vmatpush.msra.mxu0 0.0
    %1802 = vmatpush.msra.mxu0 0.0
    %1803 = vmatpush.msra.mxu0 0.0
    %1804 = vmatpush.msra.mxu0 0.0
    %1805 = vmatpush.msra.mxu0 0.0
    %1806 = vmatpush.msra.mxu0 0.0
    %1807 = vmatpush.msra.mxu0 0.0
    %1808 = vmatpush.msra.mxu0 0.0
    %1809 = vmatpush.msra.mxu0 0.0
    %1810 = vmatpush.msra.mxu0 0.0
    %1811 = vmatpush.msra.mxu0 0.0
    %1812 = vmatpush.msra.mxu0 0.0
    %1813 = vmatpush.msra.mxu0 %v428
    %1814 = vmatpush.msra.mxu0 %v425
    %1815 = vmatpush.msra.mxu0 %v422
    %1816 = vmatpush.msra.mxu0 %v419
    %1817 = vmatmul.f32.gmra.mxu0 %v1759
    %v1818 = vpop.f32.mrf.mxu0
    %v1819 = vadd.f32 0.0, %v1818
    %1820 = vdwg.mxu0
    %v1821 = vadd.f32 %v1716, %v1779
    %v1822 = vmul.f32 %v1821, 0.5
    %v1823 = vtanh.pop %v1822
    %v1824 = vadd.f32 %v1823, 1.0
    %v1825 = vmul.f32 %v1824, 0.5
    %v1826 = vadd.f32 %v1736, %v1799
    %v1827 = vmul.f32 %v1826, 0.5
    %v1828 = vtanh.pop %v1827
    %v1829 = vadd.f32 %v1828, 1.0
    %v1830 = vmul.f32 %v1829, 0.5
    %v1831 = vadd.f32 %v1819, %v245
    %v1832 = vmul.f32 %v1825, %v1831
    %v1833 = vadd.f32 %v1756, %v1832
    %v1834 = vtanh.pop %v1833
    %v1835 = vsub.f32 1.0, %v1830
    %v1836 = vmul.f32 %v1835, %v1834
    %v1837 = vmul.f32 %v1830, %v1616
    %v1838 = vadd.f32 %v1836, %v1837
    %1839 = vmatpush.msra.mxu0 0.0
    %1840 = vmatpush.msra.mxu0 0.0
    %1841 = vmatpush.msra.mxu0 0.0
    %1842 = vmatpush.msra.mxu0 0.0
    %1843 = vmatpush.msra.mxu0 0.0
    %1844 = vmatpush.msra.mxu0 0.0
    %1845 = vmatpush.msra.mxu0 0.0
    %1846 = vmatpush.msra.mxu0 0.0
    %1847 = vmatpush.msra.mxu0 0.0
    %1848 = vmatpush.msra.mxu0 0.0
    %1849 = vmatpush.msra.mxu0 0.0
    %1850 = vmatpush.msra.mxu0 0.0
    %1851 = vmatpush.msra.mxu0 %v256
    %1852 = vmatpush.msra.mxu0 %v253
    %1853 = vmatpush.msra.mxu0 %v250
    %1854 = vmatpush.msra.mxu0 %v247
    %1855 = vmatmul.f32.gmra.mxu0 %v1696
    %v1856 = vpop.f32.mrf.mxu0
    %v1857 = vadd.f32 0.0, %v1856
    %1858 = vdwg.mxu0
    %1859 = vmatpush.msra.mxu0 0.0
    %1860 = vmatpush.msra.mxu0 0.0
    %1861 = vmatpush.msra.mxu0 0.0
    %1862 = vmatpush.msra.mxu0 0.0
    %1863 = vmatpush.msra.mxu0 0.0
    %1864 = vmatpush.msra.mxu0 0.0
    %1865 = vmatpush.msra.mxu0 0.0
    %1866 = vmatpush.msra.mxu0 0.0
    %1867 = vmatpush.msra.mxu0 0.0
    %1868 = vmatpush.msra.mxu0 0.0
    %1869 = vmatpush.msra.mxu0 0.0
    %1870 = vmatpush.msra.mxu0 0.0
    %1871 = vmatpush.msra.mxu0 %v257
    %1872 = vmatpush.msra.mxu0 %v254
    %1873 = vmatpush.msra.mxu0 %v251
    %1874 = vmatpush.msra.mxu0 %v248
    %1875 = vmatmul.f32.gmra.mxu0 %v1696
    %v1876 = vpop.f32.mrf.mxu0
    %v1877 = vadd.f32 0.0, %v1876
    %1878 = vdwg.mxu0
    %1879 = vmatpush.msra.mxu0 0.0
    %1880 = vmatpush.msra.mxu0 0.0
    %1881 = vmatpush.msra.mxu0 0.0
    %1882 = vmatpush.msra.mxu0 0.0
    %1883 = vmatpush.msra.mxu0 0.0
    %1884 = vmatpush.msra.mxu0 0.0
    %1885 = vmatpush.msra.mxu0 0.0
    %1886 = vmatpush.msra.mxu0 0.0
    %1887 = vmatpush.msra.mxu0 0.0
    %1888 = vmatpush.msra.mxu0 0.0
    %1889 = vmatpush.msra.mxu0 0.0
    %1890 = vmatpush.msra.mxu0 0.0
    %1891 = vmatpush.msra.mxu0 %v258
    %1892 = vmatpush.msra.mxu0 %v255
    %1893 = vmatpush.msra.mxu0 %v252
    %1894 = vmatpush.msra.mxu0 %v249
    %1895 = vmatmul.f32.gmra.mxu0 %v1696
    %v1896 = vpop.f32.mrf.mxu0
    %v1897 = vadd.f32 0.0, %v1896
    %1898 = vdwg.mxu0
    %v1899 = vadd.f32 %v145, %v1857
    %v1900 = vmul.f32 %v1899, 0.5
    %v1901 = vtanh.pop %v1900
    %v1902 = vadd.f32 %v1901, 1.0
    %v1903 = vmul.f32 %v1902, 0.5
    %v1904 = vadd.f32 %v186, %v1877
    %v1905 = vmul.f32 %v1904, 0.5
    %v1906 = vtanh.pop %v1905
    %v1907 = vadd.f32 %v1906, 1.0
    %v1908 = vmul.f32 %v1907, 0.5
    %v1909 = vadd.f32 %v1897, %v240
    %v1910 = vmul.f32 %v1903, %v1909
    %v1911 = vadd.f32 %v227, %v1910
    %v1912 = vtanh.pop %v1911
    %v1913 = vsub.f32 1.0, %v1908
    %v1914 = vmul.f32 %v1913, %v1912
    %v1915 = vmul.f32 %v1908, %v1694
    %v1916 = vadd.f32 %v1914, %v1915
    %v1918 = vsel %vm81, %v1916, 0
    %1920 = vmatpush.msra.mxu0 0.0
    %1921 = vmatpush.msra.mxu0 0.0
    %1922 = vmatpush.msra.mxu0 0.0
    %1923 = vmatpush.msra.mxu0 0.0
    %1924 = vmatpush.msra.mxu0 0.0
    %1925 = vmatpush.msra.mxu0 0.0
    %1926 = vmatpush.msra.mxu0 0.0
    %1927 = vmatpush.msra.mxu0 0.0
    %1928 = vmatpush.msra.mxu0 0.0
    %1929 = vmatpush.msra.mxu0 0.0
    %1930 = vmatpush.msra.mxu0 0.0
    %1931 = vmatpush.msra.mxu0 0.0
    %1932 = vmatpush.msra.mxu0 %v350
    %1933 = vmatpush.msra.mxu0 %v347
    %1934 = vmatpush.msra.mxu0 %v344
    %1935 = vmatpush.msra.mxu0 %v341
    %1936 = vmatmul.f32.gmra.mxu0 %v1918
    %v1937 = vpop.f32.mrf.mxu0
    %v1938 = vadd.f32 %v232, %v1937
    %1939 = vdwg.mxu0
    %1940 = vmatpush.msra.mxu0 0.0
    %1941 = vmatpush.msra.mxu0 0.0
    %1942 = vmatpush.msra.mxu0 0.0
    %1943 = vmatpush.msra.mxu0 0.0
    %1944 = vmatpush.msra.mxu0 0.0
    %1945 = vmatpush.msra.mxu0 0.0
    %1946 = vmatpush.msra.mxu0 0.0
    %1947 = vmatpush.msra.mxu0 0.0
    %1948 = vmatpush.msra.mxu0 0.0
    %1949 = vmatpush.msra.mxu0 0.0
    %1950 = vmatpush.msra.mxu0 0.0
    %1951 = vmatpush.msra.mxu0 0.0
    %1952 = vmatpush.msra.mxu0 %v351
    %1953 = vmatpush.msra.mxu0 %v348
    %1954 = vmatpush.msra.mxu0 %v345
    %1955 = vmatpush.msra.mxu0 %v342
    %1956 = vmatmul.f32.gmra.mxu0 %v1918
    %v1957 = vpop.f32.mrf.mxu0
    %v1958 = vadd.f32 %v233, %v1957
    %1959 = vdwg.mxu0
    %1960 = vmatpush.msra.mxu0 0.0
    %1961 = vmatpush.msra.mxu0 0.0
    %1962 = vmatpush.msra.mxu0 0.0
    %1963 = vmatpush.msra.mxu0 0.0
    %1964 = vmatpush.msra.mxu0 0.0
    %1965 = vmatpush.msra.mxu0 0.0
    %1966 = vmatpush.msra.mxu0 0.0
    %1967 = vmatpush.msra.mxu0 0.0
    %1968 = vmatpush.msra.mxu0 0.0
    %1969 = vmatpush.msra.mxu0 0.0
    %1970 = vmatpush.msra.mxu0 0.0
    %1971 = vmatpush.msra.mxu0 0.0
    %1972 = vmatpush.msra.mxu0 %v352
    %1973 = vmatpush.msra.mxu0 %v349
    %1974 = vmatpush.msra.mxu0 %v346
    %1975 = vmatpush.msra.mxu0 %v343
    %1976 = vmatmul.f32.gmra.mxu0 %v1918
    %v1977 = vpop.f32.mrf.mxu0
    %v1978 = vadd.f32 %v234, %v1977
    %1979 = vdwg.mxu0
    %v1981 = vsel %vm81, %v1838, 0
    %1983 = vmatpush.msra.mxu0 0.0
    %1984 = vmatpush.msra.mxu0 0.0
    %1985 = vmatpush.msra.mxu0 0.0
    %1986 = vmatpush.msra.mxu0 0.0
    %1987 = vmatpush.msra.mxu0 0.0
    %1988 = vmatpush.msra.mxu0 0.0
    %1989 = vmatpush.msra.mxu0 0.0
    %1990 = vmatpush.msra.mxu0 0.0
    %1991 = vmatpush.msra.mxu0 0.0
    %1992 = vmatpush.msra.mxu0 0.0
    %1993 = vmatpush.msra.mxu0 0.0
    %1994 = vmatpush.msra.mxu0 0.0
    %1995 = vmatpush.msra.mxu0 %v426
    %1996 = vmatpush.msra.mxu0 %v423
    %1997 = vmatpush.msra.mxu0 %v420
    %1998 = vmatpush.msra.mxu0 %v417
    %1999 = vmatmul.f32.gmra.mxu0 %v1981
    %v2000 = vpop.f32.mrf.mxu0
    %v2001 = vadd.f32 0.0, %v2000
    %2002 = vdwg.mxu0
    %2003 = vmatpush.msra.mxu0 0.0
    %2004 = vmatpush.msra.mxu0 0.0
    %2005 = vmatpush.msra.mxu0 0.0
    %2006 = vmatpush.msra.mxu0 0.0
    %2007 = vmatpush.msra.mxu0 0.0
    %2008 = vmatpush.msra.mxu0 0.0
    %2009 = vmatpush.msra.mxu0 0.0
    %2010 = vmatpush.msra.mxu0 0.0
    %2011 = vmatpush.msra.mxu0 0.0
    %2012 = vmatpush.msra.mxu0 0.0
    %2013 = vmatpush.msra.mxu0 0.0
    %2014 = vmatpush.msra.mxu0 0.0
    %2015 = vmatpush.msra.mxu0 %v427
    %2016 = vmatpush.msra.mxu0 %v424
    %2017 = vmatpush.msra.mxu0 %v421
    %2018 = vmatpush.msra.mxu0 %v418
    %2019 = vmatmul.f32.gmra.mxu0 %v1981
    %v2020 = vpop.f32.mrf.mxu0
    %v2021 = vadd.f32 0.0, %v2020
    %2022 = vdwg.mxu0
    %2023 = vmatpush.msra.mxu0 0.0
    %2024 = vmatpush.msra.mxu0 0.0
    %2025 = vmatpush.msra.mxu0 0.0
    %2026 = vmatpush.msra.mxu0 0.0
    %2027 = vmatpush.msra.mxu0 0.0
    %2028 = vmatpush.msra.mxu0 0.0
    %2029 = vmatpush.msra.mxu0 0.0
    %2030 = vmatpush.msra.mxu0 0.0
    %2031 = vmatpush.msra.mxu0 0.0
    %2032 = vmatpush.msra.mxu0 0.0
    %2033 = vmatpush.msra.mxu0 0.0
    %2034 = vmatpush.msra.mxu0 0.0
    %2035 = vmatpush.msra.mxu0 %v428
    %2036 = vmatpush.msra.mxu0 %v425
    %2037 = vmatpush.msra.mxu0 %v422
    %2038 = vmatpush.msra.mxu0 %v419
    %2039 = vmatmul.f32.gmra.mxu0 %v1981
    %v2040 = vpop.f32.mrf.mxu0
    %v2041 = vadd.f32 0.0, %v2040
    %2042 = vdwg.mxu0
    %v2043 = vadd.f32 %v1938, %v2001
    %v2044 = vmul.f32 %v2043, 0.5
    %v2045 = vtanh.pop %v2044
    %v2046 = vadd.f32 %v2045, 1.0
    %v2047 = vmul.f32 %v2046, 0.5
    %v2048 = vadd.f32 %v1958, %v2021
    %v2049 = vmul.f32 %v2048, 0.5
    %v2050 = vtanh.pop %v2049
    %v2051 = vadd.f32 %v2050, 1.0
    %v2052 = vmul.f32 %v2051, 0.5
    %v2053 = vadd.f32 %v2041, %v245
    %v2054 = vmul.f32 %v2047, %v2053
    %v2055 = vadd.f32 %v1978, %v2054
    %v2056 = vtanh.pop %v2055
    %v2057 = vsub.f32 1.0, %v2052
    %v2058 = vmul.f32 %v2057, %v2056
    %v2059 = vmul.f32 %v2052, %v1838
    %v2060 = vadd.f32 %v2058, %v2059
    %2061 = vst [vmem:[#allocation7] sm:$0xff] %v2060
    %s2062 = scalar_lea.vmem %s0, 64
    %v2063 = vld [vmem:[%s2062] sm:$0xff]
    %v2064 = vld [vmem:[%s2062 + $0x8] sm:$0xff]
    %v2065 = vld [vmem:[%s2062 + $0x10] sm:$0xff]
    %v2066 = vld [vmem:[%s2062 + $0x18] sm:$0xff]
    %v2067 = vld [vmem:[%s2062 + $0x20] sm:$0xff]
    %v2068 = vld [vmem:[%s2062 + $0x28] sm:$0xff]
    %v2069 = vld [vmem:[%s2062 + $0x30] sm:$0xff]
    %v2070 = vld [vmem:[%s2062 + $0x38] sm:$0xff]
    %s2071 = scalar_lea.vmem [#allocation2], 192
    %v2072 = vld [vmem:[%s2071] sm:$0xff]
    %v2073 = vld [vmem:[%s2071 + $0x8] sm:$0xff]
    %v2074 = vld [vmem:[%s2071 + $0x10] sm:$0xff]
    %v2075 = vld [vmem:[%s2071 + $0x18] sm:$0xff]
    %v2076 = vld [vmem:[%s2071 + $0x20] sm:$0xff]
    %v2077 = vld [vmem:[%s2071 + $0x28] sm:$0xff]
    %v2078 = vld [vmem:[%s2071 + $0x30] sm:$0xff]
    %v2079 = vld [vmem:[%s2071 + $0x38] sm:$0xff]
    %v2080 = vld [vmem:[%s2071 + $0x40] sm:$0xff]
    %v2081 = vld [vmem:[%s2071 + $0x48] sm:$0xff]
    %v2082 = vld [vmem:[%s2071 + $0x50] sm:$0xff]
    %v2083 = vld [vmem:[%s2071 + $0x58] sm:$0xff]
    %s2084 = scalar_lea.vmem %s3, 6
    %v2085 = vld [vmem:[%s2084] sm:$0x7]
    %v2087 = vperm.slane %v2085, 0
    %v2088 = vperm.slane %v2085, 1
    %v2089 = vperm.slane %v2085, 2
    %v2094 = vsel %vm81, %v2063, 0
    %v2097 = vsel %vm81, %v2064, 0
    %v2100 = vsel %vm81, %v2065, 0
    %v2103 = vsel %vm81, %v2066, 0
    %v2106 = vsel %vm81, %v2067, 0
    %v2109 = vsel %vm81, %v2068, 0
    %v2112 = vsel %vm81, %v2069, 0
    %v2115 = vsel %vm81, %v2070, 0
    %2117 = vmatpush.msra.mxu0 0.0
    %2118 = vmatpush.msra.mxu0 0.0
    %2119 = vmatpush.msra.mxu0 0.0
    %2120 = vmatpush.msra.mxu0 0.0
    %2121 = vmatpush.msra.mxu0 0.0
    %2122 = vmatpush.msra.mxu0 0.0
    %2123 = vmatpush.msra.mxu0 0.0
    %2124 = vmatpush.msra.mxu0 0.0
    %2125 = vmatpush.msra.mxu0 0.0
    %2126 = vmatpush.msra.mxu0 0.0
    %2127 = vmatpush.msra.mxu0 0.0
    %2128 = vmatpush.msra.mxu0 0.0
    %2129 = vmatpush.msra.mxu0 %v2081
    %2130 = vmatpush.msra.mxu0 %v2078
    %2131 = vmatpush.msra.mxu0 %v2075
    %2132 = vmatpush.msra.mxu0 %v2072
    %2133 = vmatmul.f32.gmra.mxu0 %v2094
    %v2134 = vpop.f32.mrf.mxu0
    %v2135 = vadd.f32 %v2087, %v2134
    %2136 = vmatmul.f32.gmra.mxu0 %v2097
    %v2137 = vpop.f32.mrf.mxu0
    %v2138 = vadd.f32 %v2087, %v2137
    %2139 = vmatmul.f32.gmra.mxu0 %v2100
    %v2140 = vpop.f32.mrf.mxu0
    %v2141 = vadd.f32 %v2087, %v2140
    %2142 = vmatmul.f32.gmra.mxu0 %v2103
    %v2143 = vpop.f32.mrf.mxu0
    %v2144 = vadd.f32 %v2087, %v2143
    %2145 = vmatmul.f32.gmra.mxu0 %v2106
    %v2146 = vpop.f32.mrf.mxu0
    %v2147 = vadd.f32 %v2087, %v2146
    %2148 = vmatmul.f32.gmra.mxu0 %v2109
    %v2149 = vpop.f32.mrf.mxu0
    %v2150 = vadd.f32 %v2087, %v2149
    %2151 = vmatmul.f32.gmra.mxu0 %v2112
    %v2152 = vpop.f32.mrf.mxu0
    %v2153 = vadd.f32 %v2087, %v2152
    %2154 = vmatmul.f32.gmra.mxu0 %v2115
    %v2155 = vpop.f32.mrf.mxu0
    %v2156 = vadd.f32 %v2087, %v2155
    %2157 = vdwg.mxu0
    %2158 = vmatpush.msra.mxu0 0.0
    %2159 = vmatpush.msra.mxu0 0.0
    %2160 = vmatpush.msra.mxu0 0.0
    %2161 = vmatpush.msra.mxu0 0.0
    %2162 = vmatpush.msra.mxu0 0.0
    %2163 = vmatpush.msra.mxu0 0.0
    %2164 = vmatpush.msra.mxu0 0.0
    %2165 = vmatpush.msra.mxu0 0.0
    %2166 = vmatpush.msra.mxu0 0.0
    %2167 = vmatpush.msra.mxu0 0.0
    %2168 = vmatpush.msra.mxu0 0.0
    %2169 = vmatpush.msra.mxu0 0.0
    %2170 = vmatpush.msra.mxu0 %v2082
    %2171 = vmatpush.msra.mxu0 %v2079
    %2172 = vmatpush.msra.mxu0 %v2076
    %2173 = vmatpush.msra.mxu0 %v2073
    %2174 = vmatmul.f32.gmra.mxu0 %v2094
    %v2175 = vpop.f32.mrf.mxu0
    %v2176 = vadd.f32 %v2088, %v2175
    %2177 = vmatmul.f32.gmra.mxu0 %v2097
    %v2178 = vpop.f32.mrf.mxu0
    %v2179 = vadd.f32 %v2088, %v2178
    %2180 = vmatmul.f32.gmra.mxu0 %v2100
    %v2181 = vpop.f32.mrf.mxu0
    %v2182 = vadd.f32 %v2088, %v2181
    %2183 = vmatmul.f32.gmra.mxu0 %v2103
    %v2184 = vpop.f32.mrf.mxu0
    %v2185 = vadd.f32 %v2088, %v2184
    %2186 = vmatmul.f32.gmra.mxu0 %v2106
    %v2187 = vpop.f32.mrf.mxu0
    %v2188 = vadd.f32 %v2088, %v2187
    %2189 = vmatmul.f32.gmra.mxu0 %v2109
    %v2190 = vpop.f32.mrf.mxu0
    %v2191 = vadd.f32 %v2088, %v2190
    %2192 = vmatmul.f32.gmra.mxu0 %v2112
    %v2193 = vpop.f32.mrf.mxu0
    %v2194 = vadd.f32 %v2088, %v2193
    %2195 = vmatmul.f32.gmra.mxu0 %v2115
    %v2196 = vpop.f32.mrf.mxu0
    %v2197 = vadd.f32 %v2088, %v2196
    %2198 = vdwg.mxu0
    %2199 = vmatpush.msra.mxu0 0.0
    %2200 = vmatpush.msra.mxu0 0.0
    %2201 = vmatpush.msra.mxu0 0.0
    %2202 = vmatpush.msra.mxu0 0.0
    %2203 = vmatpush.msra.mxu0 0.0
    %2204 = vmatpush.msra.mxu0 0.0
    %2205 = vmatpush.msra.mxu0 0.0
    %2206 = vmatpush.msra.mxu0 0.0
    %2207 = vmatpush.msra.mxu0 0.0
    %2208 = vmatpush.msra.mxu0 0.0
    %2209 = vmatpush.msra.mxu0 0.0
    %2210 = vmatpush.msra.mxu0 0.0
    %2211 = vmatpush.msra.mxu0 %v2083
    %2212 = vmatpush.msra.mxu0 %v2080
    %2213 = vmatpush.msra.mxu0 %v2077
    %2214 = vmatpush.msra.mxu0 %v2074
    %2215 = vmatmul.f32.gmra.mxu0 %v2094
    %v2216 = vpop.f32.mrf.mxu0
    %v2217 = vadd.f32 %v2089, %v2216
    %2218 = vmatmul.f32.gmra.mxu0 %v2097
    %v2219 = vpop.f32.mrf.mxu0
    %v2220 = vadd.f32 %v2089, %v2219
    %2221 = vmatmul.f32.gmra.mxu0 %v2100
    %v2222 = vpop.f32.mrf.mxu0
    %v2223 = vadd.f32 %v2089, %v2222
    %2224 = vmatmul.f32.gmra.mxu0 %v2103
    %v2225 = vpop.f32.mrf.mxu0
    %v2226 = vadd.f32 %v2089, %v2225
    %2227 = vmatmul.f32.gmra.mxu0 %v2106
    %v2228 = vpop.f32.mrf.mxu0
    %v2229 = vadd.f32 %v2089, %v2228
    %2230 = vmatmul.f32.gmra.mxu0 %v2109
    %v2231 = vpop.f32.mrf.mxu0
    %v2232 = vadd.f32 %v2089, %v2231
    %2233 = vmatmul.f32.gmra.mxu0 %v2112
    %v2234 = vpop.f32.mrf.mxu0
    %v2235 = vadd.f32 %v2089, %v2234
    %2236 = vmatmul.f32.gmra.mxu0 %v2115
    %v2237 = vpop.f32.mrf.mxu0
    %v2238 = vadd.f32 %v2089, %v2237
    %2239 = vdwg.mxu0
    %s2240 = scalar_lea.vmem %s3, 9
    %v2241 = vld [vmem:[%s2240] sm:$0x7]
    %v2243 = vperm.slane %v2241, 0
    %v2244 = vperm.slane %v2241, 1
    %v2245 = vperm.slane %v2241, 2
    %s2249 = scalar_lea.vmem %s4, 2
    %v2250 = vld [vmem:[%s2249] sm:$0x1]
    %v2252 = vperm.slane %v2250, 0
    %s2254 = scalar_lea.vmem %s4, 3
    %v2255 = vld [vmem:[%s2254] sm:$0x1]
    %v2257 = vperm.slane %v2255, 0
    %s2259 = scalar_lea.vmem [#allocation5], 192
    %v2260 = vld [vmem:[%s2259] sm:$0xff]
    %v2261 = vld [vmem:[%s2259 + $0x8] sm:$0xff]
    %v2262 = vld [vmem:[%s2259 + $0x10] sm:$0xff]
    %v2263 = vld [vmem:[%s2259 + $0x18] sm:$0xff]
    %v2264 = vld [vmem:[%s2259 + $0x20] sm:$0xff]
    %v2265 = vld [vmem:[%s2259 + $0x28] sm:$0xff]
    %v2266 = vld [vmem:[%s2259 + $0x30] sm:$0xff]
    %v2267 = vld [vmem:[%s2259 + $0x38] sm:$0xff]
    %v2268 = vld [vmem:[%s2259 + $0x40] sm:$0xff]
    %v2269 = vld [vmem:[%s2259 + $0x48] sm:$0xff]
    %v2270 = vld [vmem:[%s2259 + $0x50] sm:$0xff]
    %v2271 = vld [vmem:[%s2259 + $0x58] sm:$0xff]
    %2272 = vmatpush.msra.mxu0 0.0
    %2273 = vmatpush.msra.mxu0 0.0
    %2274 = vmatpush.msra.mxu0 0.0
    %2275 = vmatpush.msra.mxu0 0.0
    %2276 = vmatpush.msra.mxu0 0.0
    %2277 = vmatpush.msra.mxu0 0.0
    %2278 = vmatpush.msra.mxu0 0.0
    %2279 = vmatpush.msra.mxu0 0.0
    %2280 = vmatpush.msra.mxu0 0.0
    %2281 = vmatpush.msra.mxu0 0.0
    %2282 = vmatpush.msra.mxu0 0.0
    %2283 = vmatpush.msra.mxu0 0.0
    %2284 = vmatpush.msra.mxu0 %v2269
    %2285 = vmatpush.msra.mxu0 %v2266
    %2286 = vmatpush.msra.mxu0 %v2263
    %2287 = vmatpush.msra.mxu0 %v2260
    %2288 = vmatmul.f32.gmra.mxu0 %v260
    %v2289 = vpop.f32.mrf.mxu0
    %v2290 = vadd.f32 0.0, %v2289
    %2291 = vdwg.mxu0
    %2292 = vmatpush.msra.mxu0 0.0
    %2293 = vmatpush.msra.mxu0 0.0
    %2294 = vmatpush.msra.mxu0 0.0
    %2295 = vmatpush.msra.mxu0 0.0
    %2296 = vmatpush.msra.mxu0 0.0
    %2297 = vmatpush.msra.mxu0 0.0
    %2298 = vmatpush.msra.mxu0 0.0
    %2299 = vmatpush.msra.mxu0 0.0
    %2300 = vmatpush.msra.mxu0 0.0
    %2301 = vmatpush.msra.mxu0 0.0
    %2302 = vmatpush.msra.mxu0 0.0
    %2303 = vmatpush.msra.mxu0 0.0
    %2304 = vmatpush.msra.mxu0 %v2270
    %2305 = vmatpush.msra.mxu0 %v2267
    %2306 = vmatpush.msra.mxu0 %v2264
    %2307 = vmatpush.msra.mxu0 %v2261
    %2308 = vmatmul.f32.gmra.mxu0 %v260
    %v2309 = vpop.f32.mrf.mxu0
    %v2310 = vadd.f32 0.0, %v2309
    %2311 = vdwg.mxu0
    %2312 = vmatpush.msra.mxu0 0.0
    %2313 = vmatpush.msra.mxu0 0.0
    %2314 = vmatpush.msra.mxu0 0.0
    %2315 = vmatpush.msra.mxu0 0.0
    %2316 = vmatpush.msra.mxu0 0.0
    %2317 = vmatpush.msra.mxu0 0.0
    %2318 = vmatpush.msra.mxu0 0.0
    %2319 = vmatpush.msra.mxu0 0.0
    %2320 = vmatpush.msra.mxu0 0.0
    %2321 = vmatpush.msra.mxu0 0.0
    %2322 = vmatpush.msra.mxu0 0.0
    %2323 = vmatpush.msra.mxu0 0.0
    %2324 = vmatpush.msra.mxu0 %v2271
    %2325 = vmatpush.msra.mxu0 %v2268
    %2326 = vmatpush.msra.mxu0 %v2265
    %2327 = vmatpush.msra.mxu0 %v2262
    %2328 = vmatmul.f32.gmra.mxu0 %v260
    %v2329 = vpop.f32.mrf.mxu0
    %v2330 = vadd.f32 0.0, %v2329
    %2331 = vdwg.mxu0
    %v2332 = vadd.f32 %v2135, %v2290
    %v2333 = vmul.f32 %v2332, 0.5
    %v2334 = vtanh.pop %v2333
    %v2335 = vadd.f32 %v2334, 1.0
    %v2336 = vmul.f32 %v2335, 0.5
    %v2337 = vadd.f32 %v2176, %v2310
    %v2338 = vmul.f32 %v2337, 0.5
    %v2339 = vtanh.pop %v2338
    %v2340 = vadd.f32 %v2339, 1.0
    %v2341 = vmul.f32 %v2340, 0.5
    %v2342 = vadd.f32 %v2330, %v2252
    %v2343 = vmul.f32 %v2336, %v2342
    %v2344 = vadd.f32 %v2217, %v2343
    %v2345 = vtanh.pop %v2344
    %v2346 = vsub.f32 1.0, %v2341
    %v2347 = vmul.f32 %v2346, %v2345
    %v2348 = vmul.f32 %v2341, 0.0
    %v2349 = vadd.f32 %v2347, %v2348
    %s2350 = scalar_lea.vmem [#allocation2], 288
    %v2351 = vld [vmem:[%s2350] sm:$0xff]
    %v2352 = vld [vmem:[%s2350 + $0x8] sm:$0xff]
    %v2353 = vld [vmem:[%s2350 + $0x10] sm:$0xff]
    %v2354 = vld [vmem:[%s2350 + $0x18] sm:$0xff]
    %v2355 = vld [vmem:[%s2350 + $0x20] sm:$0xff]
    %v2356 = vld [vmem:[%s2350 + $0x28] sm:$0xff]
    %v2357 = vld [vmem:[%s2350 + $0x30] sm:$0xff]
    %v2358 = vld [vmem:[%s2350 + $0x38] sm:$0xff]
    %v2359 = vld [vmem:[%s2350 + $0x40] sm:$0xff]
    %v2360 = vld [vmem:[%s2350 + $0x48] sm:$0xff]
    %v2361 = vld [vmem:[%s2350 + $0x50] sm:$0xff]
    %v2362 = vld [vmem:[%s2350 + $0x58] sm:$0xff]
    %v2364 = vsel %vm81, %v2349, 0
    %2366 = vmatpush.msra.mxu0 0.0
    %2367 = vmatpush.msra.mxu0 0.0
    %2368 = vmatpush.msra.mxu0 0.0
    %2369 = vmatpush.msra.mxu0 0.0
    %2370 = vmatpush.msra.mxu0 0.0
    %2371 = vmatpush.msra.mxu0 0.0
    %2372 = vmatpush.msra.mxu0 0.0
    %2373 = vmatpush.msra.mxu0 0.0
    %2374 = vmatpush.msra.mxu0 0.0
    %2375 = vmatpush.msra.mxu0 0.0
    %2376 = vmatpush.msra.mxu0 0.0
    %2377 = vmatpush.msra.mxu0 0.0
    %2378 = vmatpush.msra.mxu0 %v2360
    %2379 = vmatpush.msra.mxu0 %v2357
    %2380 = vmatpush.msra.mxu0 %v2354
    %2381 = vmatpush.msra.mxu0 %v2351
    %2382 = vmatmul.f32.gmra.mxu0 %v2364
    %v2383 = vpop.f32.mrf.mxu0
    %v2384 = vadd.f32 %v2243, %v2383
    %2385 = vdwg.mxu0
    %2386 = vmatpush.msra.mxu0 0.0
    %2387 = vmatpush.msra.mxu0 0.0
    %2388 = vmatpush.msra.mxu0 0.0
    %2389 = vmatpush.msra.mxu0 0.0
    %2390 = vmatpush.msra.mxu0 0.0
    %2391 = vmatpush.msra.mxu0 0.0
    %2392 = vmatpush.msra.mxu0 0.0
    %2393 = vmatpush.msra.mxu0 0.0
    %2394 = vmatpush.msra.mxu0 0.0
    %2395 = vmatpush.msra.mxu0 0.0
    %2396 = vmatpush.msra.mxu0 0.0
    %2397 = vmatpush.msra.mxu0 0.0
    %2398 = vmatpush.msra.mxu0 %v2361
    %2399 = vmatpush.msra.mxu0 %v2358
    %2400 = vmatpush.msra.mxu0 %v2355
    %2401 = vmatpush.msra.mxu0 %v2352
    %2402 = vmatmul.f32.gmra.mxu0 %v2364
    %v2403 = vpop.f32.mrf.mxu0
    %v2404 = vadd.f32 %v2244, %v2403
    %2405 = vdwg.mxu0
    %2406 = vmatpush.msra.mxu0 0.0
    %2407 = vmatpush.msra.mxu0 0.0
    %2408 = vmatpush.msra.mxu0 0.0
    %2409 = vmatpush.msra.mxu0 0.0
    %2410 = vmatpush.msra.mxu0 0.0
    %2411 = vmatpush.msra.mxu0 0.0
    %2412 = vmatpush.msra.mxu0 0.0
    %2413 = vmatpush.msra.mxu0 0.0
    %2414 = vmatpush.msra.mxu0 0.0
    %2415 = vmatpush.msra.mxu0 0.0
    %2416 = vmatpush.msra.mxu0 0.0
    %2417 = vmatpush.msra.mxu0 0.0
    %2418 = vmatpush.msra.mxu0 %v2362
    %2419 = vmatpush.msra.mxu0 %v2359
    %2420 = vmatpush.msra.mxu0 %v2356
    %2421 = vmatpush.msra.mxu0 %v2353
    %2422 = vmatmul.f32.gmra.mxu0 %v2364
    %v2423 = vpop.f32.mrf.mxu0
    %v2424 = vadd.f32 %v2245, %v2423
    %2425 = vdwg.mxu0
    %s2426 = scalar_lea.vmem [#allocation5], 288
    %v2427 = vld [vmem:[%s2426] sm:$0xff]
    %v2428 = vld [vmem:[%s2426 + $0x8] sm:$0xff]
    %v2429 = vld [vmem:[%s2426 + $0x10] sm:$0xff]
    %v2430 = vld [vmem:[%s2426 + $0x18] sm:$0xff]
    %v2431 = vld [vmem:[%s2426 + $0x20] sm:$0xff]
    %v2432 = vld [vmem:[%s2426 + $0x28] sm:$0xff]
    %v2433 = vld [vmem:[%s2426 + $0x30] sm:$0xff]
    %v2434 = vld [vmem:[%s2426 + $0x38] sm:$0xff]
    %v2435 = vld [vmem:[%s2426 + $0x40] sm:$0xff]
    %v2436 = vld [vmem:[%s2426 + $0x48] sm:$0xff]
    %v2437 = vld [vmem:[%s2426 + $0x50] sm:$0xff]
    %v2438 = vld [vmem:[%s2426 + $0x58] sm:$0xff]
    %2439 = vmatpush.msra.mxu0 0.0
    %2440 = vmatpush.msra.mxu0 0.0
    %2441 = vmatpush.msra.mxu0 0.0
    %2442 = vmatpush.msra.mxu0 0.0
    %2443 = vmatpush.msra.mxu0 0.0
    %2444 = vmatpush.msra.mxu0 0.0
    %2445 = vmatpush.msra.mxu0 0.0
    %2446 = vmatpush.msra.mxu0 0.0
    %2447 = vmatpush.msra.mxu0 0.0
    %2448 = vmatpush.msra.mxu0 0.0
    %2449 = vmatpush.msra.mxu0 0.0
    %2450 = vmatpush.msra.mxu0 0.0
    %2451 = vmatpush.msra.mxu0 %v2436
    %2452 = vmatpush.msra.mxu0 %v2433
    %2453 = vmatpush.msra.mxu0 %v2430
    %2454 = vmatpush.msra.mxu0 %v2427
    %2455 = vmatmul.f32.gmra.mxu0 %v260
    %v2456 = vpop.f32.mrf.mxu0
    %v2457 = vadd.f32 0.0, %v2456
    %2458 = vdwg.mxu0
    %2459 = vmatpush.msra.mxu0 0.0
    %2460 = vmatpush.msra.mxu0 0.0
    %2461 = vmatpush.msra.mxu0 0.0
    %2462 = vmatpush.msra.mxu0 0.0
    %2463 = vmatpush.msra.mxu0 0.0
    %2464 = vmatpush.msra.mxu0 0.0
    %2465 = vmatpush.msra.mxu0 0.0
    %2466 = vmatpush.msra.mxu0 0.0
    %2467 = vmatpush.msra.mxu0 0.0
    %2468 = vmatpush.msra.mxu0 0.0
    %2469 = vmatpush.msra.mxu0 0.0
    %2470 = vmatpush.msra.mxu0 0.0
    %2471 = vmatpush.msra.mxu0 %v2437
    %2472 = vmatpush.msra.mxu0 %v2434
    %2473 = vmatpush.msra.mxu0 %v2431
    %2474 = vmatpush.msra.mxu0 %v2428
    %2475 = vmatmul.f32.gmra.mxu0 %v260
    %v2476 = vpop.f32.mrf.mxu0
    %v2477 = vadd.f32 0.0, %v2476
    %2478 = vdwg.mxu0
    %2479 = vmatpush.msra.mxu0 0.0
    %2480 = vmatpush.msra.mxu0 0.0
    %2481 = vmatpush.msra.mxu0 0.0
    %2482 = vmatpush.msra.mxu0 0.0
    %2483 = vmatpush.msra.mxu0 0.0
    %2484 = vmatpush.msra.mxu0 0.0
    %2485 = vmatpush.msra.mxu0 0.0
    %2486 = vmatpush.msra.mxu0 0.0
    %2487 = vmatpush.msra.mxu0 0.0
    %2488 = vmatpush.msra.mxu0 0.0
    %2489 = vmatpush.msra.mxu0 0.0
    %2490 = vmatpush.msra.mxu0 0.0
    %2491 = vmatpush.msra.mxu0 %v2438
    %2492 = vmatpush.msra.mxu0 %v2435
    %2493 = vmatpush.msra.mxu0 %v2432
    %2494 = vmatpush.msra.mxu0 %v2429
    %2495 = vmatmul.f32.gmra.mxu0 %v260
    %v2496 = vpop.f32.mrf.mxu0
    %v2497 = vadd.f32 0.0, %v2496
    %2498 = vdwg.mxu0
    %v2499 = vadd.f32 %v2384, %v2457
    %v2500 = vmul.f32 %v2499, 0.5
    %v2501 = vtanh.pop %v2500
    %v2502 = vadd.f32 %v2501, 1.0
    %v2503 = vmul.f32 %v2502, 0.5
    %v2504 = vadd.f32 %v2404, %v2477
    %v2505 = vmul.f32 %v2504, 0.5
    %v2506 = vtanh.pop %v2505
    %v2507 = vadd.f32 %v2506, 1.0
    %v2508 = vmul.f32 %v2507, 0.5
    %v2509 = vadd.f32 %v2497, %v2257
    %v2510 = vmul.f32 %v2503, %v2509
    %v2511 = vadd.f32 %v2424, %v2510
    %v2512 = vtanh.pop %v2511
    %v2513 = vsub.f32 1.0, %v2508
    %v2514 = vmul.f32 %v2513, %v2512
    %v2515 = vmul.f32 %v2508, 0.0
    %v2516 = vadd.f32 %v2514, %v2515
    %2517 = vmatpush.msra.mxu0 0.0
    %2518 = vmatpush.msra.mxu0 0.0
    %2519 = vmatpush.msra.mxu0 0.0
    %2520 = vmatpush.msra.mxu0 0.0
    %2521 = vmatpush.msra.mxu0 0.0
    %2522 = vmatpush.msra.mxu0 0.0
    %2523 = vmatpush.msra.mxu0 0.0
    %2524 = vmatpush.msra.mxu0 0.0
    %2525 = vmatpush.msra.mxu0 0.0
    %2526 = vmatpush.msra.mxu0 0.0
    %2527 = vmatpush.msra.mxu0 0.0
    %2528 = vmatpush.msra.mxu0 0.0
    %2529 = vmatpush.msra.mxu0 %v2269
    %2530 = vmatpush.msra.mxu0 %v2266
    %2531 = vmatpush.msra.mxu0 %v2263
    %2532 = vmatpush.msra.mxu0 %v2260
    %2533 = vmatmul.f32.gmra.mxu0 %v2364
    %v2534 = vpop.f32.mrf.mxu0
    %v2535 = vadd.f32 0.0, %v2534
    %2536 = vdwg.mxu0
    %2537 = vmatpush.msra.mxu0 0.0
    %2538 = vmatpush.msra.mxu0 0.0
    %2539 = vmatpush.msra.mxu0 0.0
    %2540 = vmatpush.msra.mxu0 0.0
    %2541 = vmatpush.msra.mxu0 0.0
    %2542 = vmatpush.msra.mxu0 0.0
    %2543 = vmatpush.msra.mxu0 0.0
    %2544 = vmatpush.msra.mxu0 0.0
    %2545 = vmatpush.msra.mxu0 0.0
    %2546 = vmatpush.msra.mxu0 0.0
    %2547 = vmatpush.msra.mxu0 0.0
    %2548 = vmatpush.msra.mxu0 0.0
    %2549 = vmatpush.msra.mxu0 %v2270
    %2550 = vmatpush.msra.mxu0 %v2267
    %2551 = vmatpush.msra.mxu0 %v2264
    %2552 = vmatpush.msra.mxu0 %v2261
    %2553 = vmatmul.f32.gmra.mxu0 %v2364
    %v2554 = vpop.f32.mrf.mxu0
    %v2555 = vadd.f32 0.0, %v2554
    %2556 = vdwg.mxu0
    %2557 = vmatpush.msra.mxu0 0.0
    %2558 = vmatpush.msra.mxu0 0.0
    %2559 = vmatpush.msra.mxu0 0.0
    %2560 = vmatpush.msra.mxu0 0.0
    %2561 = vmatpush.msra.mxu0 0.0
    %2562 = vmatpush.msra.mxu0 0.0
    %2563 = vmatpush.msra.mxu0 0.0
    %2564 = vmatpush.msra.mxu0 0.0
    %2565 = vmatpush.msra.mxu0 0.0
    %2566 = vmatpush.msra.mxu0 0.0
    %2567 = vmatpush.msra.mxu0 0.0
    %2568 = vmatpush.msra.mxu0 0.0
    %2569 = vmatpush.msra.mxu0 %v2271
    %2570 = vmatpush.msra.mxu0 %v2268
    %2571 = vmatpush.msra.mxu0 %v2265
    %2572 = vmatpush.msra.mxu0 %v2262
    %2573 = vmatmul.f32.gmra.mxu0 %v2364
    %v2574 = vpop.f32.mrf.mxu0
    %v2575 = vadd.f32 0.0, %v2574
    %2576 = vdwg.mxu0
    %v2577 = vadd.f32 %v2138, %v2535
    %v2578 = vmul.f32 %v2577, 0.5
    %v2579 = vtanh.pop %v2578
    %v2580 = vadd.f32 %v2579, 1.0
    %v2581 = vmul.f32 %v2580, 0.5
    %v2582 = vadd.f32 %v2179, %v2555
    %v2583 = vmul.f32 %v2582, 0.5
    %v2584 = vtanh.pop %v2583
    %v2585 = vadd.f32 %v2584, 1.0
    %v2586 = vmul.f32 %v2585, 0.5
    %v2587 = vadd.f32 %v2575, %v2252
    %v2588 = vmul.f32 %v2581, %v2587
    %v2589 = vadd.f32 %v2220, %v2588
    %v2590 = vtanh.pop %v2589
    %v2591 = vsub.f32 1.0, %v2586
    %v2592 = vmul.f32 %v2591, %v2590
    %v2593 = vmul.f32 %v2586, %v2349
    %v2594 = vadd.f32 %v2592, %v2593
    %v2596 = vsel %vm81, %v2594, 0
    %2598 = vmatpush.msra.mxu0 0.0
    %2599 = vmatpush.msra.mxu0 0.0
    %2600 = vmatpush.msra.mxu0 0.0
    %2601 = vmatpush.msra.mxu0 0.0
    %2602 = vmatpush.msra.mxu0 0.0
    %2603 = vmatpush.msra.mxu0 0.0
    %2604 = vmatpush.msra.mxu0 0.0
    %2605 = vmatpush.msra.mxu0 0.0
    %2606 = vmatpush.msra.mxu0 0.0
    %2607 = vmatpush.msra.mxu0 0.0
    %2608 = vmatpush.msra.mxu0 0.0
    %2609 = vmatpush.msra.mxu0 0.0
    %2610 = vmatpush.msra.mxu0 %v2360
    %2611 = vmatpush.msra.mxu0 %v2357
    %2612 = vmatpush.msra.mxu0 %v2354
    %2613 = vmatpush.msra.mxu0 %v2351
    %2614 = vmatmul.f32.gmra.mxu0 %v2596
    %v2615 = vpop.f32.mrf.mxu0
    %v2616 = vadd.f32 %v2243, %v2615
    %2617 = vdwg.mxu0
    %2618 = vmatpush.msra.mxu0 0.0
    %2619 = vmatpush.msra.mxu0 0.0
    %2620 = vmatpush.msra.mxu0 0.0
    %2621 = vmatpush.msra.mxu0 0.0
    %2622 = vmatpush.msra.mxu0 0.0
    %2623 = vmatpush.msra.mxu0 0.0
    %2624 = vmatpush.msra.mxu0 0.0
    %2625 = vmatpush.msra.mxu0 0.0
    %2626 = vmatpush.msra.mxu0 0.0
    %2627 = vmatpush.msra.mxu0 0.0
    %2628 = vmatpush.msra.mxu0 0.0
    %2629 = vmatpush.msra.mxu0 0.0
    %2630 = vmatpush.msra.mxu0 %v2361
    %2631 = vmatpush.msra.mxu0 %v2358
    %2632 = vmatpush.msra.mxu0 %v2355
    %2633 = vmatpush.msra.mxu0 %v2352
    %2634 = vmatmul.f32.gmra.mxu0 %v2596
    %v2635 = vpop.f32.mrf.mxu0
    %v2636 = vadd.f32 %v2244, %v2635
    %2637 = vdwg.mxu0
    %2638 = vmatpush.msra.mxu0 0.0
    %2639 = vmatpush.msra.mxu0 0.0
    %2640 = vmatpush.msra.mxu0 0.0
    %2641 = vmatpush.msra.mxu0 0.0
    %2642 = vmatpush.msra.mxu0 0.0
    %2643 = vmatpush.msra.mxu0 0.0
    %2644 = vmatpush.msra.mxu0 0.0
    %2645 = vmatpush.msra.mxu0 0.0
    %2646 = vmatpush.msra.mxu0 0.0
    %2647 = vmatpush.msra.mxu0 0.0
    %2648 = vmatpush.msra.mxu0 0.0
    %2649 = vmatpush.msra.mxu0 0.0
    %2650 = vmatpush.msra.mxu0 %v2362
    %2651 = vmatpush.msra.mxu0 %v2359
    %2652 = vmatpush.msra.mxu0 %v2356
    %2653 = vmatpush.msra.mxu0 %v2353
    %2654 = vmatmul.f32.gmra.mxu0 %v2596
    %v2655 = vpop.f32.mrf.mxu0
    %v2656 = vadd.f32 %v2245, %v2655
    %2657 = vdwg.mxu0
    %v2659 = vsel %vm81, %v2516, 0
    %2661 = vmatpush.msra.mxu0 0.0
    %2662 = vmatpush.msra.mxu0 0.0
    %2663 = vmatpush.msra.mxu0 0.0
    %2664 = vmatpush.msra.mxu0 0.0
    %2665 = vmatpush.msra.mxu0 0.0
    %2666 = vmatpush.msra.mxu0 0.0
    %2667 = vmatpush.msra.mxu0 0.0
    %2668 = vmatpush.msra.mxu0 0.0
    %2669 = vmatpush.msra.mxu0 0.0
    %2670 = vmatpush.msra.mxu0 0.0
    %2671 = vmatpush.msra.mxu0 0.0
    %2672 = vmatpush.msra.mxu0 0.0
    %2673 = vmatpush.msra.mxu0 %v2436
    %2674 = vmatpush.msra.mxu0 %v2433
    %2675 = vmatpush.msra.mxu0 %v2430
    %2676 = vmatpush.msra.mxu0 %v2427
    %2677 = vmatmul.f32.gmra.mxu0 %v2659
    %v2678 = vpop.f32.mrf.mxu0
    %v2679 = vadd.f32 0.0, %v2678
    %2680 = vdwg.mxu0
    %2681 = vmatpush.msra.mxu0 0.0
    %2682 = vmatpush.msra.mxu0 0.0
    %2683 = vmatpush.msra.mxu0 0.0
    %2684 = vmatpush.msra.mxu0 0.0
    %2685 = vmatpush.msra.mxu0 0.0
    %2686 = vmatpush.msra.mxu0 0.0
    %2687 = vmatpush.msra.mxu0 0.0
    %2688 = vmatpush.msra.mxu0 0.0
    %2689 = vmatpush.msra.mxu0 0.0
    %2690 = vmatpush.msra.mxu0 0.0
    %2691 = vmatpush.msra.mxu0 0.0
    %2692 = vmatpush.msra.mxu0 0.0
    %2693 = vmatpush.msra.mxu0 %v2437
    %2694 = vmatpush.msra.mxu0 %v2434
    %2695 = vmatpush.msra.mxu0 %v2431
    %2696 = vmatpush.msra.mxu0 %v2428
    %2697 = vmatmul.f32.gmra.mxu0 %v2659
    %v2698 = vpop.f32.mrf.mxu0
    %v2699 = vadd.f32 0.0, %v2698
    %2700 = vdwg.mxu0
    %2701 = vmatpush.msra.mxu0 0.0
    %2702 = vmatpush.msra.mxu0 0.0
    %2703 = vmatpush.msra.mxu0 0.0
    %2704 = vmatpush.msra.mxu0 0.0
    %2705 = vmatpush.msra.mxu0 0.0
    %2706 = vmatpush.msra.mxu0 0.0
    %2707 = vmatpush.msra.mxu0 0.0
    %2708 = vmatpush.msra.mxu0 0.0
    %2709 = vmatpush.msra.mxu0 0.0
    %2710 = vmatpush.msra.mxu0 0.0
    %2711 = vmatpush.msra.mxu0 0.0
    %2712 = vmatpush.msra.mxu0 0.0
    %2713 = vmatpush.msra.mxu0 %v2438
    %2714 = vmatpush.msra.mxu0 %v2435
    %2715 = vmatpush.msra.mxu0 %v2432
    %2716 = vmatpush.msra.mxu0 %v2429
    %2717 = vmatmul.f32.gmra.mxu0 %v2659
    %v2718 = vpop.f32.mrf.mxu0
    %v2719 = vadd.f32 0.0, %v2718
    %2720 = vdwg.mxu0
    %v2721 = vadd.f32 %v2616, %v2679
    %v2722 = vmul.f32 %v2721, 0.5
    %v2723 = vtanh.pop %v2722
    %v2724 = vadd.f32 %v2723, 1.0
    %v2725 = vmul.f32 %v2724, 0.5
    %v2726 = vadd.f32 %v2636, %v2699
    %v2727 = vmul.f32 %v2726, 0.5
    %v2728 = vtanh.pop %v2727
    %v2729 = vadd.f32 %v2728, 1.0
    %v2730 = vmul.f32 %v2729, 0.5
    %v2731 = vadd.f32 %v2719, %v2257
    %v2732 = vmul.f32 %v2725, %v2731
    %v2733 = vadd.f32 %v2656, %v2732
    %v2734 = vtanh.pop %v2733
    %v2735 = vsub.f32 1.0, %v2730
    %v2736 = vmul.f32 %v2735, %v2734
    %v2737 = vmul.f32 %v2730, %v2516
    %v2738 = vadd.f32 %v2736, %v2737
    %2739 = vmatpush.msra.mxu0 0.0
    %2740 = vmatpush.msra.mxu0 0.0
    %2741 = vmatpush.msra.mxu0 0.0
    %2742 = vmatpush.msra.mxu0 0.0
    %2743 = vmatpush.msra.mxu0 0.0
    %2744 = vmatpush.msra.mxu0 0.0
    %2745 = vmatpush.msra.mxu0 0.0
    %2746 = vmatpush.msra.mxu0 0.0
    %2747 = vmatpush.msra.mxu0 0.0
    %2748 = vmatpush.msra.mxu0 0.0
    %2749 = vmatpush.msra.mxu0 0.0
    %2750 = vmatpush.msra.mxu0 0.0
    %2751 = vmatpush.msra.mxu0 %v2269
    %2752 = vmatpush.msra.mxu0 %v2266
    %2753 = vmatpush.msra.mxu0 %v2263
    %2754 = vmatpush.msra.mxu0 %v2260
    %2755 = vmatmul.f32.gmra.mxu0 %v2596
    %v2756 = vpop.f32.mrf.mxu0
    %v2757 = vadd.f32 0.0, %v2756
    %2758 = vdwg.mxu0
    %2759 = vmatpush.msra.mxu0 0.0
    %2760 = vmatpush.msra.mxu0 0.0
    %2761 = vmatpush.msra.mxu0 0.0
    %2762 = vmatpush.msra.mxu0 0.0
    %2763 = vmatpush.msra.mxu0 0.0
    %2764 = vmatpush.msra.mxu0 0.0
    %2765 = vmatpush.msra.mxu0 0.0
    %2766 = vmatpush.msra.mxu0 0.0
    %2767 = vmatpush.msra.mxu0 0.0
    %2768 = vmatpush.msra.mxu0 0.0
    %2769 = vmatpush.msra.mxu0 0.0
    %2770 = vmatpush.msra.mxu0 0.0
    %2771 = vmatpush.msra.mxu0 %v2270
    %2772 = vmatpush.msra.mxu0 %v2267
    %2773 = vmatpush.msra.mxu0 %v2264
    %2774 = vmatpush.msra.mxu0 %v2261
    %2775 = vmatmul.f32.gmra.mxu0 %v2596
    %v2776 = vpop.f32.mrf.mxu0
    %v2777 = vadd.f32 0.0, %v2776
    %2778 = vdwg.mxu0
    %2779 = vmatpush.msra.mxu0 0.0
    %2780 = vmatpush.msra.mxu0 0.0
    %2781 = vmatpush.msra.mxu0 0.0
    %2782 = vmatpush.msra.mxu0 0.0
    %2783 = vmatpush.msra.mxu0 0.0
    %2784 = vmatpush.msra.mxu0 0.0
    %2785 = vmatpush.msra.mxu0 0.0
    %2786 = vmatpush.msra.mxu0 0.0
    %2787 = vmatpush.msra.mxu0 0.0
    %2788 = vmatpush.msra.mxu0 0.0
    %2789 = vmatpush.msra.mxu0 0.0
    %2790 = vmatpush.msra.mxu0 0.0
    %2791 = vmatpush.msra.mxu0 %v2271
    %2792 = vmatpush.msra.mxu0 %v2268
    %2793 = vmatpush.msra.mxu0 %v2265
    %2794 = vmatpush.msra.mxu0 %v2262
    %2795 = vmatmul.f32.gmra.mxu0 %v2596
    %v2796 = vpop.f32.mrf.mxu0
    %v2797 = vadd.f32 0.0, %v2796
    %2798 = vdwg.mxu0
    %v2799 = vadd.f32 %v2141, %v2757
    %v2800 = vmul.f32 %v2799, 0.5
    %v2801 = vtanh.pop %v2800
    %v2802 = vadd.f32 %v2801, 1.0
    %v2803 = vmul.f32 %v2802, 0.5
    %v2804 = vadd.f32 %v2182, %v2777
    %v2805 = vmul.f32 %v2804, 0.5
    %v2806 = vtanh.pop %v2805
    %v2807 = vadd.f32 %v2806, 1.0
    %v2808 = vmul.f32 %v2807, 0.5
    %v2809 = vadd.f32 %v2797, %v2252
    %v2810 = vmul.f32 %v2803, %v2809
    %v2811 = vadd.f32 %v2223, %v2810
    %v2812 = vtanh.pop %v2811
    %v2813 = vsub.f32 1.0, %v2808
    %v2814 = vmul.f32 %v2813, %v2812
    %v2815 = vmul.f32 %v2808, %v2594
    %v2816 = vadd.f32 %v2814, %v2815
    %v2818 = vsel %vm81, %v2816, 0
    %2820 = vmatpush.msra.mxu0 0.0
    %2821 = vmatpush.msra.mxu0 0.0
    %2822 = vmatpush.msra.mxu0 0.0
    %2823 = vmatpush.msra.mxu0 0.0
    %2824 = vmatpush.msra.mxu0 0.0
    %2825 = vmatpush.msra.mxu0 0.0
    %2826 = vmatpush.msra.mxu0 0.0
    %2827 = vmatpush.msra.mxu0 0.0
    %2828 = vmatpush.msra.mxu0 0.0
    %2829 = vmatpush.msra.mxu0 0.0
    %2830 = vmatpush.msra.mxu0 0.0
    %2831 = vmatpush.msra.mxu0 0.0
    %2832 = vmatpush.msra.mxu0 %v2360
    %2833 = vmatpush.msra.mxu0 %v2357
    %2834 = vmatpush.msra.mxu0 %v2354
    %2835 = vmatpush.msra.mxu0 %v2351
    %2836 = vmatmul.f32.gmra.mxu0 %v2818
    %v2837 = vpop.f32.mrf.mxu0
    %v2838 = vadd.f32 %v2243, %v2837
    %2839 = vdwg.mxu0
    %2840 = vmatpush.msra.mxu0 0.0
    %2841 = vmatpush.msra.mxu0 0.0
    %2842 = vmatpush.msra.mxu0 0.0
    %2843 = vmatpush.msra.mxu0 0.0
    %2844 = vmatpush.msra.mxu0 0.0
    %2845 = vmatpush.msra.mxu0 0.0
    %2846 = vmatpush.msra.mxu0 0.0
    %2847 = vmatpush.msra.mxu0 0.0
    %2848 = vmatpush.msra.mxu0 0.0
    %2849 = vmatpush.msra.mxu0 0.0
    %2850 = vmatpush.msra.mxu0 0.0
    %2851 = vmatpush.msra.mxu0 0.0
    %2852 = vmatpush.msra.mxu0 %v2361
    %2853 = vmatpush.msra.mxu0 %v2358
    %2854 = vmatpush.msra.mxu0 %v2355
    %2855 = vmatpush.msra.mxu0 %v2352
    %2856 = vmatmul.f32.gmra.mxu0 %v2818
    %v2857 = vpop.f32.mrf.mxu0
    %v2858 = vadd.f32 %v2244, %v2857
    %2859 = vdwg.mxu0
    %2860 = vmatpush.msra.mxu0 0.0
    %2861 = vmatpush.msra.mxu0 0.0
    %2862 = vmatpush.msra.mxu0 0.0
    %2863 = vmatpush.msra.mxu0 0.0
    %2864 = vmatpush.msra.mxu0 0.0
    %2865 = vmatpush.msra.mxu0 0.0
    %2866 = vmatpush.msra.mxu0 0.0
    %2867 = vmatpush.msra.mxu0 0.0
    %2868 = vmatpush.msra.mxu0 0.0
    %2869 = vmatpush.msra.mxu0 0.0
    %2870 = vmatpush.msra.mxu0 0.0
    %2871 = vmatpush.msra.mxu0 0.0
    %2872 = vmatpush.msra.mxu0 %v2362
    %2873 = vmatpush.msra.mxu0 %v2359
    %2874 = vmatpush.msra.mxu0 %v2356
    %2875 = vmatpush.msra.mxu0 %v2353
    %2876 = vmatmul.f32.gmra.mxu0 %v2818
    %v2877 = vpop.f32.mrf.mxu0
    %v2878 = vadd.f32 %v2245, %v2877
    %2879 = vdwg.mxu0
    %v2881 = vsel %vm81, %v2738, 0
    %2883 = vmatpush.msra.mxu0 0.0
    %2884 = vmatpush.msra.mxu0 0.0
    %2885 = vmatpush.msra.mxu0 0.0
    %2886 = vmatpush.msra.mxu0 0.0
    %2887 = vmatpush.msra.mxu0 0.0
    %2888 = vmatpush.msra.mxu0 0.0
    %2889 = vmatpush.msra.mxu0 0.0
    %2890 = vmatpush.msra.mxu0 0.0
    %2891 = vmatpush.msra.mxu0 0.0
    %2892 = vmatpush.msra.mxu0 0.0
    %2893 = vmatpush.msra.mxu0 0.0
    %2894 = vmatpush.msra.mxu0 0.0
    %2895 = vmatpush.msra.mxu0 %v2436
    %2896 = vmatpush.msra.mxu0 %v2433
    %2897 = vmatpush.msra.mxu0 %v2430
    %2898 = vmatpush.msra.mxu0 %v2427
    %2899 = vmatmul.f32.gmra.mxu0 %v2881
    %v2900 = vpop.f32.mrf.mxu0
    %v2901 = vadd.f32 0.0, %v2900
    %2902 = vdwg.mxu0
    %2903 = vmatpush.msra.mxu0 0.0
    %2904 = vmatpush.msra.mxu0 0.0
    %2905 = vmatpush.msra.mxu0 0.0
    %2906 = vmatpush.msra.mxu0 0.0
    %2907 = vmatpush.msra.mxu0 0.0
    %2908 = vmatpush.msra.mxu0 0.0
    %2909 = vmatpush.msra.mxu0 0.0
    %2910 = vmatpush.msra.mxu0 0.0
    %2911 = vmatpush.msra.mxu0 0.0
    %2912 = vmatpush.msra.mxu0 0.0
    %2913 = vmatpush.msra.mxu0 0.0
    %2914 = vmatpush.msra.mxu0 0.0
    %2915 = vmatpush.msra.mxu0 %v2437
    %2916 = vmatpush.msra.mxu0 %v2434
    %2917 = vmatpush.msra.mxu0 %v2431
    %2918 = vmatpush.msra.mxu0 %v2428
    %2919 = vmatmul.f32.gmra.mxu0 %v2881
    %v2920 = vpop.f32.mrf.mxu0
    %v2921 = vadd.f32 0.0, %v2920
    %2922 = vdwg.mxu0
    %2923 = vmatpush.msra.mxu0 0.0
    %2924 = vmatpush.msra.mxu0 0.0
    %2925 = vmatpush.msra.mxu0 0.0
    %2926 = vmatpush.msra.mxu0 0.0
    %2927 = vmatpush.msra.mxu0 0.0
    %2928 = vmatpush.msra.mxu0 0.0
    %2929 = vmatpush.msra.mxu0 0.0
    %2930 = vmatpush.msra.mxu0 0.0
    %2931 = vmatpush.msra.mxu0 0.0
    %2932 = vmatpush.msra.mxu0 0.0
    %2933 = vmatpush.msra.mxu0 0.0
    %2934 = vmatpush.msra.mxu0 0.0
    %2935 = vmatpush.msra.mxu0 %v2438
    %2936 = vmatpush.msra.mxu0 %v2435
    %2937 = vmatpush.msra.mxu0 %v2432
    %2938 = vmatpush.msra.mxu0 %v2429
    %2939 = vmatmul.f32.gmra.mxu0 %v2881
    %v2940 = vpop.f32.mrf.mxu0
    %v2941 = vadd.f32 0.0, %v2940
    %2942 = vdwg.mxu0
    %v2943 = vadd.f32 %v2838, %v2901
    %v2944 = vmul.f32 %v2943, 0.5
    %v2945 = vtanh.pop %v2944
    %v2946 = vadd.f32 %v2945, 1.0
    %v2947 = vmul.f32 %v2946, 0.5
    %v2948 = vadd.f32 %v2858, %v2921
    %v2949 = vmul.f32 %v2948, 0.5
    %v2950 = vtanh.pop %v2949
    %v2951 = vadd.f32 %v2950, 1.0
    %v2952 = vmul.f32 %v2951, 0.5
    %v2953 = vadd.f32 %v2941, %v2257
    %v2954 = vmul.f32 %v2947, %v2953
    %v2955 = vadd.f32 %v2878, %v2954
    %v2956 = vtanh.pop %v2955
    %v2957 = vsub.f32 1.0, %v2952
    %v2958 = vmul.f32 %v2957, %v2956
    %v2959 = vmul.f32 %v2952, %v2738
    %v2960 = vadd.f32 %v2958, %v2959
    %2961 = vmatpush.msra.mxu0 0.0
    %2962 = vmatpush.msra.mxu0 0.0
    %2963 = vmatpush.msra.mxu0 0.0
    %2964 = vmatpush.msra.mxu0 0.0
    %2965 = vmatpush.msra.mxu0 0.0
    %2966 = vmatpush.msra.mxu0 0.0
    %2967 = vmatpush.msra.mxu0 0.0
    %2968 = vmatpush.msra.mxu0 0.0
    %2969 = vmatpush.msra.mxu0 0.0
    %2970 = vmatpush.msra.mxu0 0.0
    %2971 = vmatpush.msra.mxu0 0.0
    %2972 = vmatpush.msra.mxu0 0.0
    %2973 = vmatpush.msra.mxu0 %v2269
    %2974 = vmatpush.msra.mxu0 %v2266
    %2975 = vmatpush.msra.mxu0 %v2263
    %2976 = vmatpush.msra.mxu0 %v2260
    %2977 = vmatmul.f32.gmra.mxu0 %v2818
    %v2978 = vpop.f32.mrf.mxu0
    %v2979 = vadd.f32 0.0, %v2978
    %2980 = vdwg.mxu0
    %2981 = vmatpush.msra.mxu0 0.0
    %2982 = vmatpush.msra.mxu0 0.0
    %2983 = vmatpush.msra.mxu0 0.0
    %2984 = vmatpush.msra.mxu0 0.0
    %2985 = vmatpush.msra.mxu0 0.0
    %2986 = vmatpush.msra.mxu0 0.0
    %2987 = vmatpush.msra.mxu0 0.0
    %2988 = vmatpush.msra.mxu0 0.0
    %2989 = vmatpush.msra.mxu0 0.0
    %2990 = vmatpush.msra.mxu0 0.0
    %2991 = vmatpush.msra.mxu0 0.0
    %2992 = vmatpush.msra.mxu0 0.0
    %2993 = vmatpush.msra.mxu0 %v2270
    %2994 = vmatpush.msra.mxu0 %v2267
    %2995 = vmatpush.msra.mxu0 %v2264
    %2996 = vmatpush.msra.mxu0 %v2261
    %2997 = vmatmul.f32.gmra.mxu0 %v2818
    %v2998 = vpop.f32.mrf.mxu0
    %v2999 = vadd.f32 0.0, %v2998
    %3000 = vdwg.mxu0
    %3001 = vmatpush.msra.mxu0 0.0
    %3002 = vmatpush.msra.mxu0 0.0
    %3003 = vmatpush.msra.mxu0 0.0
    %3004 = vmatpush.msra.mxu0 0.0
    %3005 = vmatpush.msra.mxu0 0.0
    %3006 = vmatpush.msra.mxu0 0.0
    %3007 = vmatpush.msra.mxu0 0.0
    %3008 = vmatpush.msra.mxu0 0.0
    %3009 = vmatpush.msra.mxu0 0.0
    %3010 = vmatpush.msra.mxu0 0.0
    %3011 = vmatpush.msra.mxu0 0.0
    %3012 = vmatpush.msra.mxu0 0.0
    %3013 = vmatpush.msra.mxu0 %v2271
    %3014 = vmatpush.msra.mxu0 %v2268
    %3015 = vmatpush.msra.mxu0 %v2265
    %3016 = vmatpush.msra.mxu0 %v2262
    %3017 = vmatmul.f32.gmra.mxu0 %v2818
    %v3018 = vpop.f32.mrf.mxu0
    %v3019 = vadd.f32 0.0, %v3018
    %3020 = vdwg.mxu0
    %v3021 = vadd.f32 %v2144, %v2979
    %v3022 = vmul.f32 %v3021, 0.5
    %v3023 = vtanh.pop %v3022
    %v3024 = vadd.f32 %v3023, 1.0
    %v3025 = vmul.f32 %v3024, 0.5
    %v3026 = vadd.f32 %v2185, %v2999
    %v3027 = vmul.f32 %v3026, 0.5
    %v3028 = vtanh.pop %v3027
    %v3029 = vadd.f32 %v3028, 1.0
    %v3030 = vmul.f32 %v3029, 0.5
    %v3031 = vadd.f32 %v3019, %v2252
    %v3032 = vmul.f32 %v3025, %v3031
    %v3033 = vadd.f32 %v2226, %v3032
    %v3034 = vtanh.pop %v3033
    %v3035 = vsub.f32 1.0, %v3030
    %v3036 = vmul.f32 %v3035, %v3034
    %v3037 = vmul.f32 %v3030, %v2816
    %v3038 = vadd.f32 %v3036, %v3037
    %v3040 = vsel %vm81, %v3038, 0
    %3042 = vmatpush.msra.mxu0 0.0
    %3043 = vmatpush.msra.mxu0 0.0
    %3044 = vmatpush.msra.mxu0 0.0
    %3045 = vmatpush.msra.mxu0 0.0
    %3046 = vmatpush.msra.mxu0 0.0
    %3047 = vmatpush.msra.mxu0 0.0
    %3048 = vmatpush.msra.mxu0 0.0
    %3049 = vmatpush.msra.mxu0 0.0
    %3050 = vmatpush.msra.mxu0 0.0
    %3051 = vmatpush.msra.mxu0 0.0
    %3052 = vmatpush.msra.mxu0 0.0
    %3053 = vmatpush.msra.mxu0 0.0
    %3054 = vmatpush.msra.mxu0 %v2360
    %3055 = vmatpush.msra.mxu0 %v2357
    %3056 = vmatpush.msra.mxu0 %v2354
    %3057 = vmatpush.msra.mxu0 %v2351
    %3058 = vmatmul.f32.gmra.mxu0 %v3040
    %v3059 = vpop.f32.mrf.mxu0
    %v3060 = vadd.f32 %v2243, %v3059
    %3061 = vdwg.mxu0
    %3062 = vmatpush.msra.mxu0 0.0
    %3063 = vmatpush.msra.mxu0 0.0
    %3064 = vmatpush.msra.mxu0 0.0
    %3065 = vmatpush.msra.mxu0 0.0
    %3066 = vmatpush.msra.mxu0 0.0
    %3067 = vmatpush.msra.mxu0 0.0
    %3068 = vmatpush.msra.mxu0 0.0
    %3069 = vmatpush.msra.mxu0 0.0
    %3070 = vmatpush.msra.mxu0 0.0
    %3071 = vmatpush.msra.mxu0 0.0
    %3072 = vmatpush.msra.mxu0 0.0
    %3073 = vmatpush.msra.mxu0 0.0
    %3074 = vmatpush.msra.mxu0 %v2361
    %3075 = vmatpush.msra.mxu0 %v2358
    %3076 = vmatpush.msra.mxu0 %v2355
    %3077 = vmatpush.msra.mxu0 %v2352
    %3078 = vmatmul.f32.gmra.mxu0 %v3040
    %v3079 = vpop.f32.mrf.mxu0
    %v3080 = vadd.f32 %v2244, %v3079
    %3081 = vdwg.mxu0
    %3082 = vmatpush.msra.mxu0 0.0
    %3083 = vmatpush.msra.mxu0 0.0
    %3084 = vmatpush.msra.mxu0 0.0
    %3085 = vmatpush.msra.mxu0 0.0
    %3086 = vmatpush.msra.mxu0 0.0
    %3087 = vmatpush.msra.mxu0 0.0
    %3088 = vmatpush.msra.mxu0 0.0
    %3089 = vmatpush.msra.mxu0 0.0
    %3090 = vmatpush.msra.mxu0 0.0
    %3091 = vmatpush.msra.mxu0 0.0
    %3092 = vmatpush.msra.mxu0 0.0
    %3093 = vmatpush.msra.mxu0 0.0
    %3094 = vmatpush.msra.mxu0 %v2362
    %3095 = vmatpush.msra.mxu0 %v2359
    %3096 = vmatpush.msra.mxu0 %v2356
    %3097 = vmatpush.msra.mxu0 %v2353
    %3098 = vmatmul.f32.gmra.mxu0 %v3040
    %v3099 = vpop.f32.mrf.mxu0
    %v3100 = vadd.f32 %v2245, %v3099
    %3101 = vdwg.mxu0
    %v3103 = vsel %vm81, %v2960, 0
    %3105 = vmatpush.msra.mxu0 0.0
    %3106 = vmatpush.msra.mxu0 0.0
    %3107 = vmatpush.msra.mxu0 0.0
    %3108 = vmatpush.msra.mxu0 0.0
    %3109 = vmatpush.msra.mxu0 0.0
    %3110 = vmatpush.msra.mxu0 0.0
    %3111 = vmatpush.msra.mxu0 0.0
    %3112 = vmatpush.msra.mxu0 0.0
    %3113 = vmatpush.msra.mxu0 0.0
    %3114 = vmatpush.msra.mxu0 0.0
    %3115 = vmatpush.msra.mxu0 0.0
    %3116 = vmatpush.msra.mxu0 0.0
    %3117 = vmatpush.msra.mxu0 %v2436
    %3118 = vmatpush.msra.mxu0 %v2433
    %3119 = vmatpush.msra.mxu0 %v2430
    %3120 = vmatpush.msra.mxu0 %v2427
    %3121 = vmatmul.f32.gmra.mxu0 %v3103
    %v3122 = vpop.f32.mrf.mxu0
    %v3123 = vadd.f32 0.0, %v3122
    %3124 = vdwg.mxu0
    %3125 = vmatpush.msra.mxu0 0.0
    %3126 = vmatpush.msra.mxu0 0.0
    %3127 = vmatpush.msra.mxu0 0.0
    %3128 = vmatpush.msra.mxu0 0.0
    %3129 = vmatpush.msra.mxu0 0.0
    %3130 = vmatpush.msra.mxu0 0.0
    %3131 = vmatpush.msra.mxu0 0.0
    %3132 = vmatpush.msra.mxu0 0.0
    %3133 = vmatpush.msra.mxu0 0.0
    %3134 = vmatpush.msra.mxu0 0.0
    %3135 = vmatpush.msra.mxu0 0.0
    %3136 = vmatpush.msra.mxu0 0.0
    %3137 = vmatpush.msra.mxu0 %v2437
    %3138 = vmatpush.msra.mxu0 %v2434
    %3139 = vmatpush.msra.mxu0 %v2431
    %3140 = vmatpush.msra.mxu0 %v2428
    %3141 = vmatmul.f32.gmra.mxu0 %v3103
    %v3142 = vpop.f32.mrf.mxu0
    %v3143 = vadd.f32 0.0, %v3142
    %3144 = vdwg.mxu0
    %3145 = vmatpush.msra.mxu0 0.0
    %3146 = vmatpush.msra.mxu0 0.0
    %3147 = vmatpush.msra.mxu0 0.0
    %3148 = vmatpush.msra.mxu0 0.0
    %3149 = vmatpush.msra.mxu0 0.0
    %3150 = vmatpush.msra.mxu0 0.0
    %3151 = vmatpush.msra.mxu0 0.0
    %3152 = vmatpush.msra.mxu0 0.0
    %3153 = vmatpush.msra.mxu0 0.0
    %3154 = vmatpush.msra.mxu0 0.0
    %3155 = vmatpush.msra.mxu0 0.0
    %3156 = vmatpush.msra.mxu0 0.0
    %3157 = vmatpush.msra.mxu0 %v2438
    %3158 = vmatpush.msra.mxu0 %v2435
    %3159 = vmatpush.msra.mxu0 %v2432
    %3160 = vmatpush.msra.mxu0 %v2429
    %3161 = vmatmul.f32.gmra.mxu0 %v3103
    %v3162 = vpop.f32.mrf.mxu0
    %v3163 = vadd.f32 0.0, %v3162
    %3164 = vdwg.mxu0
    %v3165 = vadd.f32 %v3060, %v3123
    %v3166 = vmul.f32 %v3165, 0.5
    %v3167 = vtanh.pop %v3166
    %v3168 = vadd.f32 %v3167, 1.0
    %v3169 = vmul.f32 %v3168, 0.5
    %v3170 = vadd.f32 %v3080, %v3143
    %v3171 = vmul.f32 %v3170, 0.5
    %v3172 = vtanh.pop %v3171
    %v3173 = vadd.f32 %v3172, 1.0
    %v3174 = vmul.f32 %v3173, 0.5
    %v3175 = vadd.f32 %v3163, %v2257
    %v3176 = vmul.f32 %v3169, %v3175
    %v3177 = vadd.f32 %v3100, %v3176
    %v3178 = vtanh.pop %v3177
    %v3179 = vsub.f32 1.0, %v3174
    %v3180 = vmul.f32 %v3179, %v3178
    %v3181 = vmul.f32 %v3174, %v2960
    %v3182 = vadd.f32 %v3180, %v3181
    %3183 = vmatpush.msra.mxu0 0.0
    %3184 = vmatpush.msra.mxu0 0.0
    %3185 = vmatpush.msra.mxu0 0.0
    %3186 = vmatpush.msra.mxu0 0.0
    %3187 = vmatpush.msra.mxu0 0.0
    %3188 = vmatpush.msra.mxu0 0.0
    %3189 = vmatpush.msra.mxu0 0.0
    %3190 = vmatpush.msra.mxu0 0.0
    %3191 = vmatpush.msra.mxu0 0.0
    %3192 = vmatpush.msra.mxu0 0.0
    %3193 = vmatpush.msra.mxu0 0.0
    %3194 = vmatpush.msra.mxu0 0.0
    %3195 = vmatpush.msra.mxu0 %v2269
    %3196 = vmatpush.msra.mxu0 %v2266
    %3197 = vmatpush.msra.mxu0 %v2263
    %3198 = vmatpush.msra.mxu0 %v2260
    %3199 = vmatmul.f32.gmra.mxu0 %v3040
    %v3200 = vpop.f32.mrf.mxu0
    %v3201 = vadd.f32 0.0, %v3200
    %3202 = vdwg.mxu0
    %3203 = vmatpush.msra.mxu0 0.0
    %3204 = vmatpush.msra.mxu0 0.0
    %3205 = vmatpush.msra.mxu0 0.0
    %3206 = vmatpush.msra.mxu0 0.0
    %3207 = vmatpush.msra.mxu0 0.0
    %3208 = vmatpush.msra.mxu0 0.0
    %3209 = vmatpush.msra.mxu0 0.0
    %3210 = vmatpush.msra.mxu0 0.0
    %3211 = vmatpush.msra.mxu0 0.0
    %3212 = vmatpush.msra.mxu0 0.0
    %3213 = vmatpush.msra.mxu0 0.0
    %3214 = vmatpush.msra.mxu0 0.0
    %3215 = vmatpush.msra.mxu0 %v2270
    %3216 = vmatpush.msra.mxu0 %v2267
    %3217 = vmatpush.msra.mxu0 %v2264
    %3218 = vmatpush.msra.mxu0 %v2261
    %3219 = vmatmul.f32.gmra.mxu0 %v3040
    %v3220 = vpop.f32.mrf.mxu0
    %v3221 = vadd.f32 0.0, %v3220
    %3222 = vdwg.mxu0
    %3223 = vmatpush.msra.mxu0 0.0
    %3224 = vmatpush.msra.mxu0 0.0
    %3225 = vmatpush.msra.mxu0 0.0
    %3226 = vmatpush.msra.mxu0 0.0
    %3227 = vmatpush.msra.mxu0 0.0
    %3228 = vmatpush.msra.mxu0 0.0
    %3229 = vmatpush.msra.mxu0 0.0
    %3230 = vmatpush.msra.mxu0 0.0
    %3231 = vmatpush.msra.mxu0 0.0
    %3232 = vmatpush.msra.mxu0 0.0
    %3233 = vmatpush.msra.mxu0 0.0
    %3234 = vmatpush.msra.mxu0 0.0
    %3235 = vmatpush.msra.mxu0 %v2271
    %3236 = vmatpush.msra.mxu0 %v2268
    %3237 = vmatpush.msra.mxu0 %v2265
    %3238 = vmatpush.msra.mxu0 %v2262
    %3239 = vmatmul.f32.gmra.mxu0 %v3040
    %v3240 = vpop.f32.mrf.mxu0
    %v3241 = vadd.f32 0.0, %v3240
    %3242 = vdwg.mxu0
    %v3243 = vadd.f32 %v2147, %v3201
    %v3244 = vmul.f32 %v3243, 0.5
    %v3245 = vtanh.pop %v3244
    %v3246 = vadd.f32 %v3245, 1.0
    %v3247 = vmul.f32 %v3246, 0.5
    %v3248 = vadd.f32 %v2188, %v3221
    %v3249 = vmul.f32 %v3248, 0.5
    %v3250 = vtanh.pop %v3249
    %v3251 = vadd.f32 %v3250, 1.0
    %v3252 = vmul.f32 %v3251, 0.5
    %v3253 = vadd.f32 %v3241, %v2252
    %v3254 = vmul.f32 %v3247, %v3253
    %v3255 = vadd.f32 %v2229, %v3254
    %v3256 = vtanh.pop %v3255
    %v3257 = vsub.f32 1.0, %v3252
    %v3258 = vmul.f32 %v3257, %v3256
    %v3259 = vmul.f32 %v3252, %v3038
    %v3260 = vadd.f32 %v3258, %v3259
    %v3262 = vsel %vm81, %v3260, 0
    %3264 = vmatpush.msra.mxu0 0.0
    %3265 = vmatpush.msra.mxu0 0.0
    %3266 = vmatpush.msra.mxu0 0.0
    %3267 = vmatpush.msra.mxu0 0.0
    %3268 = vmatpush.msra.mxu0 0.0
    %3269 = vmatpush.msra.mxu0 0.0
    %3270 = vmatpush.msra.mxu0 0.0
    %3271 = vmatpush.msra.mxu0 0.0
    %3272 = vmatpush.msra.mxu0 0.0
    %3273 = vmatpush.msra.mxu0 0.0
    %3274 = vmatpush.msra.mxu0 0.0
    %3275 = vmatpush.msra.mxu0 0.0
    %3276 = vmatpush.msra.mxu0 %v2360
    %3277 = vmatpush.msra.mxu0 %v2357
    %3278 = vmatpush.msra.mxu0 %v2354
    %3279 = vmatpush.msra.mxu0 %v2351
    %3280 = vmatmul.f32.gmra.mxu0 %v3262
    %v3281 = vpop.f32.mrf.mxu0
    %v3282 = vadd.f32 %v2243, %v3281
    %3283 = vdwg.mxu0
    %3284 = vmatpush.msra.mxu0 0.0
    %3285 = vmatpush.msra.mxu0 0.0
    %3286 = vmatpush.msra.mxu0 0.0
    %3287 = vmatpush.msra.mxu0 0.0
    %3288 = vmatpush.msra.mxu0 0.0
    %3289 = vmatpush.msra.mxu0 0.0
    %3290 = vmatpush.msra.mxu0 0.0
    %3291 = vmatpush.msra.mxu0 0.0
    %3292 = vmatpush.msra.mxu0 0.0
    %3293 = vmatpush.msra.mxu0 0.0
    %3294 = vmatpush.msra.mxu0 0.0
    %3295 = vmatpush.msra.mxu0 0.0
    %3296 = vmatpush.msra.mxu0 %v2361
    %3297 = vmatpush.msra.mxu0 %v2358
    %3298 = vmatpush.msra.mxu0 %v2355
    %3299 = vmatpush.msra.mxu0 %v2352
    %3300 = vmatmul.f32.gmra.mxu0 %v3262
    %v3301 = vpop.f32.mrf.mxu0
    %v3302 = vadd.f32 %v2244, %v3301
    %3303 = vdwg.mxu0
    %3304 = vmatpush.msra.mxu0 0.0
    %3305 = vmatpush.msra.mxu0 0.0
    %3306 = vmatpush.msra.mxu0 0.0
    %3307 = vmatpush.msra.mxu0 0.0
    %3308 = vmatpush.msra.mxu0 0.0
    %3309 = vmatpush.msra.mxu0 0.0
    %3310 = vmatpush.msra.mxu0 0.0
    %3311 = vmatpush.msra.mxu0 0.0
    %3312 = vmatpush.msra.mxu0 0.0
    %3313 = vmatpush.msra.mxu0 0.0
    %3314 = vmatpush.msra.mxu0 0.0
    %3315 = vmatpush.msra.mxu0 0.0
    %3316 = vmatpush.msra.mxu0 %v2362
    %3317 = vmatpush.msra.mxu0 %v2359
    %3318 = vmatpush.msra.mxu0 %v2356
    %3319 = vmatpush.msra.mxu0 %v2353
    %3320 = vmatmul.f32.gmra.mxu0 %v3262
    %v3321 = vpop.f32.mrf.mxu0
    %v3322 = vadd.f32 %v2245, %v3321
    %3323 = vdwg.mxu0
    %v3325 = vsel %vm81, %v3182, 0
    %3327 = vmatpush.msra.mxu0 0.0
    %3328 = vmatpush.msra.mxu0 0.0
    %3329 = vmatpush.msra.mxu0 0.0
    %3330 = vmatpush.msra.mxu0 0.0
    %3331 = vmatpush.msra.mxu0 0.0
    %3332 = vmatpush.msra.mxu0 0.0
    %3333 = vmatpush.msra.mxu0 0.0
    %3334 = vmatpush.msra.mxu0 0.0
    %3335 = vmatpush.msra.mxu0 0.0
    %3336 = vmatpush.msra.mxu0 0.0
    %3337 = vmatpush.msra.mxu0 0.0
    %3338 = vmatpush.msra.mxu0 0.0
    %3339 = vmatpush.msra.mxu0 %v2436
    %3340 = vmatpush.msra.mxu0 %v2433
    %3341 = vmatpush.msra.mxu0 %v2430
    %3342 = vmatpush.msra.mxu0 %v2427
    %3343 = vmatmul.f32.gmra.mxu0 %v3325
    %v3344 = vpop.f32.mrf.mxu0
    %v3345 = vadd.f32 0.0, %v3344
    %3346 = vdwg.mxu0
    %3347 = vmatpush.msra.mxu0 0.0
    %3348 = vmatpush.msra.mxu0 0.0
    %3349 = vmatpush.msra.mxu0 0.0
    %3350 = vmatpush.msra.mxu0 0.0
    %3351 = vmatpush.msra.mxu0 0.0
    %3352 = vmatpush.msra.mxu0 0.0
    %3353 = vmatpush.msra.mxu0 0.0
    %3354 = vmatpush.msra.mxu0 0.0
    %3355 = vmatpush.msra.mxu0 0.0
    %3356 = vmatpush.msra.mxu0 0.0
    %3357 = vmatpush.msra.mxu0 0.0
    %3358 = vmatpush.msra.mxu0 0.0
    %3359 = vmatpush.msra.mxu0 %v2437
    %3360 = vmatpush.msra.mxu0 %v2434
    %3361 = vmatpush.msra.mxu0 %v2431
    %3362 = vmatpush.msra.mxu0 %v2428
    %3363 = vmatmul.f32.gmra.mxu0 %v3325
    %v3364 = vpop.f32.mrf.mxu0
    %v3365 = vadd.f32 0.0, %v3364
    %3366 = vdwg.mxu0
    %3367 = vmatpush.msra.mxu0 0.0
    %3368 = vmatpush.msra.mxu0 0.0
    %3369 = vmatpush.msra.mxu0 0.0
    %3370 = vmatpush.msra.mxu0 0.0
    %3371 = vmatpush.msra.mxu0 0.0
    %3372 = vmatpush.msra.mxu0 0.0
    %3373 = vmatpush.msra.mxu0 0.0
    %3374 = vmatpush.msra.mxu0 0.0
    %3375 = vmatpush.msra.mxu0 0.0
    %3376 = vmatpush.msra.mxu0 0.0
    %3377 = vmatpush.msra.mxu0 0.0
    %3378 = vmatpush.msra.mxu0 0.0
    %3379 = vmatpush.msra.mxu0 %v2438
    %3380 = vmatpush.msra.mxu0 %v2435
    %3381 = vmatpush.msra.mxu0 %v2432
    %3382 = vmatpush.msra.mxu0 %v2429
    %3383 = vmatmul.f32.gmra.mxu0 %v3325
    %v3384 = vpop.f32.mrf.mxu0
    %v3385 = vadd.f32 0.0, %v3384
    %3386 = vdwg.mxu0
    %v3387 = vadd.f32 %v3282, %v3345
    %v3388 = vmul.f32 %v3387, 0.5
    %v3389 = vtanh.pop %v3388
    %v3390 = vadd.f32 %v3389, 1.0
    %v3391 = vmul.f32 %v3390, 0.5
    %v3392 = vadd.f32 %v3302, %v3365
    %v3393 = vmul.f32 %v3392, 0.5
    %v3394 = vtanh.pop %v3393
    %v3395 = vadd.f32 %v3394, 1.0
    %v3396 = vmul.f32 %v3395, 0.5
    %v3397 = vadd.f32 %v3385, %v2257
    %v3398 = vmul.f32 %v3391, %v3397
    %v3399 = vadd.f32 %v3322, %v3398
    %v3400 = vtanh.pop %v3399
    %v3401 = vsub.f32 1.0, %v3396
    %v3402 = vmul.f32 %v3401, %v3400
    %v3403 = vmul.f32 %v3396, %v3182
    %v3404 = vadd.f32 %v3402, %v3403
    %3405 = vmatpush.msra.mxu0 0.0
    %3406 = vmatpush.msra.mxu0 0.0
    %3407 = vmatpush.msra.mxu0 0.0
    %3408 = vmatpush.msra.mxu0 0.0
    %3409 = vmatpush.msra.mxu0 0.0
    %3410 = vmatpush.msra.mxu0 0.0
    %3411 = vmatpush.msra.mxu0 0.0
    %3412 = vmatpush.msra.mxu0 0.0
    %3413 = vmatpush.msra.mxu0 0.0
    %3414 = vmatpush.msra.mxu0 0.0
    %3415 = vmatpush.msra.mxu0 0.0
    %3416 = vmatpush.msra.mxu0 0.0
    %3417 = vmatpush.msra.mxu0 %v2269
    %3418 = vmatpush.msra.mxu0 %v2266
    %3419 = vmatpush.msra.mxu0 %v2263
    %3420 = vmatpush.msra.mxu0 %v2260
    %3421 = vmatmul.f32.gmra.mxu0 %v3262
    %v3422 = vpop.f32.mrf.mxu0
    %v3423 = vadd.f32 0.0, %v3422
    %3424 = vdwg.mxu0
    %3425 = vmatpush.msra.mxu0 0.0
    %3426 = vmatpush.msra.mxu0 0.0
    %3427 = vmatpush.msra.mxu0 0.0
    %3428 = vmatpush.msra.mxu0 0.0
    %3429 = vmatpush.msra.mxu0 0.0
    %3430 = vmatpush.msra.mxu0 0.0
    %3431 = vmatpush.msra.mxu0 0.0
    %3432 = vmatpush.msra.mxu0 0.0
    %3433 = vmatpush.msra.mxu0 0.0
    %3434 = vmatpush.msra.mxu0 0.0
    %3435 = vmatpush.msra.mxu0 0.0
    %3436 = vmatpush.msra.mxu0 0.0
    %3437 = vmatpush.msra.mxu0 %v2270
    %3438 = vmatpush.msra.mxu0 %v2267
    %3439 = vmatpush.msra.mxu0 %v2264
    %3440 = vmatpush.msra.mxu0 %v2261
    %3441 = vmatmul.f32.gmra.mxu0 %v3262
    %v3442 = vpop.f32.mrf.mxu0
    %v3443 = vadd.f32 0.0, %v3442
    %3444 = vdwg.mxu0
    %3445 = vmatpush.msra.mxu0 0.0
    %3446 = vmatpush.msra.mxu0 0.0
    %3447 = vmatpush.msra.mxu0 0.0
    %3448 = vmatpush.msra.mxu0 0.0
    %3449 = vmatpush.msra.mxu0 0.0
    %3450 = vmatpush.msra.mxu0 0.0
    %3451 = vmatpush.msra.mxu0 0.0
    %3452 = vmatpush.msra.mxu0 0.0
    %3453 = vmatpush.msra.mxu0 0.0
    %3454 = vmatpush.msra.mxu0 0.0
    %3455 = vmatpush.msra.mxu0 0.0
    %3456 = vmatpush.msra.mxu0 0.0
    %3457 = vmatpush.msra.mxu0 %v2271
    %3458 = vmatpush.msra.mxu0 %v2268
    %3459 = vmatpush.msra.mxu0 %v2265
    %3460 = vmatpush.msra.mxu0 %v2262
    %3461 = vmatmul.f32.gmra.mxu0 %v3262
    %v3462 = vpop.f32.mrf.mxu0
    %v3463 = vadd.f32 0.0, %v3462
    %3464 = vdwg.mxu0
    %v3465 = vadd.f32 %v2150, %v3423
    %v3466 = vmul.f32 %v3465, 0.5
    %v3467 = vtanh.pop %v3466
    %v3468 = vadd.f32 %v3467, 1.0
    %v3469 = vmul.f32 %v3468, 0.5
    %v3470 = vadd.f32 %v2191, %v3443
    %v3471 = vmul.f32 %v3470, 0.5
    %v3472 = vtanh.pop %v3471
    %v3473 = vadd.f32 %v3472, 1.0
    %v3474 = vmul.f32 %v3473, 0.5
    %v3475 = vadd.f32 %v3463, %v2252
    %v3476 = vmul.f32 %v3469, %v3475
    %v3477 = vadd.f32 %v2232, %v3476
    %v3478 = vtanh.pop %v3477
    %v3479 = vsub.f32 1.0, %v3474
    %v3480 = vmul.f32 %v3479, %v3478
    %v3481 = vmul.f32 %v3474, %v3260
    %v3482 = vadd.f32 %v3480, %v3481
    %v3484 = vsel %vm81, %v3482, 0
    %3486 = vmatpush.msra.mxu0 0.0
    %3487 = vmatpush.msra.mxu0 0.0
    %3488 = vmatpush.msra.mxu0 0.0
    %3489 = vmatpush.msra.mxu0 0.0
    %3490 = vmatpush.msra.mxu0 0.0
    %3491 = vmatpush.msra.mxu0 0.0
    %3492 = vmatpush.msra.mxu0 0.0
    %3493 = vmatpush.msra.mxu0 0.0
    %3494 = vmatpush.msra.mxu0 0.0
    %3495 = vmatpush.msra.mxu0 0.0
    %3496 = vmatpush.msra.mxu0 0.0
    %3497 = vmatpush.msra.mxu0 0.0
    %3498 = vmatpush.msra.mxu0 %v2360
    %3499 = vmatpush.msra.mxu0 %v2357
    %3500 = vmatpush.msra.mxu0 %v2354
    %3501 = vmatpush.msra.mxu0 %v2351
    %3502 = vmatmul.f32.gmra.mxu0 %v3484
    %v3503 = vpop.f32.mrf.mxu0
    %v3504 = vadd.f32 %v2243, %v3503
    %3505 = vdwg.mxu0
    %3506 = vmatpush.msra.mxu0 0.0
    %3507 = vmatpush.msra.mxu0 0.0
    %3508 = vmatpush.msra.mxu0 0.0
    %3509 = vmatpush.msra.mxu0 0.0
    %3510 = vmatpush.msra.mxu0 0.0
    %3511 = vmatpush.msra.mxu0 0.0
    %3512 = vmatpush.msra.mxu0 0.0
    %3513 = vmatpush.msra.mxu0 0.0
    %3514 = vmatpush.msra.mxu0 0.0
    %3515 = vmatpush.msra.mxu0 0.0
    %3516 = vmatpush.msra.mxu0 0.0
    %3517 = vmatpush.msra.mxu0 0.0
    %3518 = vmatpush.msra.mxu0 %v2361
    %3519 = vmatpush.msra.mxu0 %v2358
    %3520 = vmatpush.msra.mxu0 %v2355
    %3521 = vmatpush.msra.mxu0 %v2352
    %3522 = vmatmul.f32.gmra.mxu0 %v3484
    %v3523 = vpop.f32.mrf.mxu0
    %v3524 = vadd.f32 %v2244, %v3523
    %3525 = vdwg.mxu0
    %3526 = vmatpush.msra.mxu0 0.0
    %3527 = vmatpush.msra.mxu0 0.0
    %3528 = vmatpush.msra.mxu0 0.0
    %3529 = vmatpush.msra.mxu0 0.0
    %3530 = vmatpush.msra.mxu0 0.0
    %3531 = vmatpush.msra.mxu0 0.0
    %3532 = vmatpush.msra.mxu0 0.0
    %3533 = vmatpush.msra.mxu0 0.0
    %3534 = vmatpush.msra.mxu0 0.0
    %3535 = vmatpush.msra.mxu0 0.0
    %3536 = vmatpush.msra.mxu0 0.0
    %3537 = vmatpush.msra.mxu0 0.0
    %3538 = vmatpush.msra.mxu0 %v2362
    %3539 = vmatpush.msra.mxu0 %v2359
    %3540 = vmatpush.msra.mxu0 %v2356
    %3541 = vmatpush.msra.mxu0 %v2353
    %3542 = vmatmul.f32.gmra.mxu0 %v3484
    %v3543 = vpop.f32.mrf.mxu0
    %v3544 = vadd.f32 %v2245, %v3543
    %3545 = vdwg.mxu0
    %v3547 = vsel %vm81, %v3404, 0
    %3549 = vmatpush.msra.mxu0 0.0
    %3550 = vmatpush.msra.mxu0 0.0
    %3551 = vmatpush.msra.mxu0 0.0
    %3552 = vmatpush.msra.mxu0 0.0
    %3553 = vmatpush.msra.mxu0 0.0
    %3554 = vmatpush.msra.mxu0 0.0
    %3555 = vmatpush.msra.mxu0 0.0
    %3556 = vmatpush.msra.mxu0 0.0
    %3557 = vmatpush.msra.mxu0 0.0
    %3558 = vmatpush.msra.mxu0 0.0
    %3559 = vmatpush.msra.mxu0 0.0
    %3560 = vmatpush.msra.mxu0 0.0
    %3561 = vmatpush.msra.mxu0 %v2436
    %3562 = vmatpush.msra.mxu0 %v2433
    %3563 = vmatpush.msra.mxu0 %v2430
    %3564 = vmatpush.msra.mxu0 %v2427
    %3565 = vmatmul.f32.gmra.mxu0 %v3547
    %v3566 = vpop.f32.mrf.mxu0
    %v3567 = vadd.f32 0.0, %v3566
    %3568 = vdwg.mxu0
    %3569 = vmatpush.msra.mxu0 0.0
    %3570 = vmatpush.msra.mxu0 0.0
    %3571 = vmatpush.msra.mxu0 0.0
    %3572 = vmatpush.msra.mxu0 0.0
    %3573 = vmatpush.msra.mxu0 0.0
    %3574 = vmatpush.msra.mxu0 0.0
    %3575 = vmatpush.msra.mxu0 0.0
    %3576 = vmatpush.msra.mxu0 0.0
    %3577 = vmatpush.msra.mxu0 0.0
    %3578 = vmatpush.msra.mxu0 0.0
    %3579 = vmatpush.msra.mxu0 0.0
    %3580 = vmatpush.msra.mxu0 0.0
    %3581 = vmatpush.msra.mxu0 %v2437
    %3582 = vmatpush.msra.mxu0 %v2434
    %3583 = vmatpush.msra.mxu0 %v2431
    %3584 = vmatpush.msra.mxu0 %v2428
    %3585 = vmatmul.f32.gmra.mxu0 %v3547
    %v3586 = vpop.f32.mrf.mxu0
    %v3587 = vadd.f32 0.0, %v3586
    %3588 = vdwg.mxu0
    %3589 = vmatpush.msra.mxu0 0.0
    %3590 = vmatpush.msra.mxu0 0.0
    %3591 = vmatpush.msra.mxu0 0.0
    %3592 = vmatpush.msra.mxu0 0.0
    %3593 = vmatpush.msra.mxu0 0.0
    %3594 = vmatpush.msra.mxu0 0.0
    %3595 = vmatpush.msra.mxu0 0.0
    %3596 = vmatpush.msra.mxu0 0.0
    %3597 = vmatpush.msra.mxu0 0.0
    %3598 = vmatpush.msra.mxu0 0.0
    %3599 = vmatpush.msra.mxu0 0.0
    %3600 = vmatpush.msra.mxu0 0.0
    %3601 = vmatpush.msra.mxu0 %v2438
    %3602 = vmatpush.msra.mxu0 %v2435
    %3603 = vmatpush.msra.mxu0 %v2432
    %3604 = vmatpush.msra.mxu0 %v2429
    %3605 = vmatmul.f32.gmra.mxu0 %v3547
    %v3606 = vpop.f32.mrf.mxu0
    %v3607 = vadd.f32 0.0, %v3606
    %3608 = vdwg.mxu0
    %v3609 = vadd.f32 %v3504, %v3567
    %v3610 = vmul.f32 %v3609, 0.5
    %v3611 = vtanh.pop %v3610
    %v3612 = vadd.f32 %v3611, 1.0
    %v3613 = vmul.f32 %v3612, 0.5
    %v3614 = vadd.f32 %v3524, %v3587
    %v3615 = vmul.f32 %v3614, 0.5
    %v3616 = vtanh.pop %v3615
    %v3617 = vadd.f32 %v3616, 1.0
    %v3618 = vmul.f32 %v3617, 0.5
    %v3619 = vadd.f32 %v3607, %v2257
    %v3620 = vmul.f32 %v3613, %v3619
    %v3621 = vadd.f32 %v3544, %v3620
    %v3622 = vtanh.pop %v3621
    %v3623 = vsub.f32 1.0, %v3618
    %v3624 = vmul.f32 %v3623, %v3622
    %v3625 = vmul.f32 %v3618, %v3404
    %v3626 = vadd.f32 %v3624, %v3625
    %3627 = vmatpush.msra.mxu0 0.0
    %3628 = vmatpush.msra.mxu0 0.0
    %3629 = vmatpush.msra.mxu0 0.0
    %3630 = vmatpush.msra.mxu0 0.0
    %3631 = vmatpush.msra.mxu0 0.0
    %3632 = vmatpush.msra.mxu0 0.0
    %3633 = vmatpush.msra.mxu0 0.0
    %3634 = vmatpush.msra.mxu0 0.0
    %3635 = vmatpush.msra.mxu0 0.0
    %3636 = vmatpush.msra.mxu0 0.0
    %3637 = vmatpush.msra.mxu0 0.0
    %3638 = vmatpush.msra.mxu0 0.0
    %3639 = vmatpush.msra.mxu0 %v2269
    %3640 = vmatpush.msra.mxu0 %v2266
    %3641 = vmatpush.msra.mxu0 %v2263
    %3642 = vmatpush.msra.mxu0 %v2260
    %3643 = vmatmul.f32.gmra.mxu0 %v3484
    %v3644 = vpop.f32.mrf.mxu0
    %v3645 = vadd.f32 0.0, %v3644
    %3646 = vdwg.mxu0
    %3647 = vmatpush.msra.mxu0 0.0
    %3648 = vmatpush.msra.mxu0 0.0
    %3649 = vmatpush.msra.mxu0 0.0
    %3650 = vmatpush.msra.mxu0 0.0
    %3651 = vmatpush.msra.mxu0 0.0
    %3652 = vmatpush.msra.mxu0 0.0
    %3653 = vmatpush.msra.mxu0 0.0
    %3654 = vmatpush.msra.mxu0 0.0
    %3655 = vmatpush.msra.mxu0 0.0
    %3656 = vmatpush.msra.mxu0 0.0
    %3657 = vmatpush.msra.mxu0 0.0
    %3658 = vmatpush.msra.mxu0 0.0
    %3659 = vmatpush.msra.mxu0 %v2270
    %3660 = vmatpush.msra.mxu0 %v2267
    %3661 = vmatpush.msra.mxu0 %v2264
    %3662 = vmatpush.msra.mxu0 %v2261
    %3663 = vmatmul.f32.gmra.mxu0 %v3484
    %v3664 = vpop.f32.mrf.mxu0
    %v3665 = vadd.f32 0.0, %v3664
    %3666 = vdwg.mxu0
    %3667 = vmatpush.msra.mxu0 0.0
    %3668 = vmatpush.msra.mxu0 0.0
    %3669 = vmatpush.msra.mxu0 0.0
    %3670 = vmatpush.msra.mxu0 0.0
    %3671 = vmatpush.msra.mxu0 0.0
    %3672 = vmatpush.msra.mxu0 0.0
    %3673 = vmatpush.msra.mxu0 0.0
    %3674 = vmatpush.msra.mxu0 0.0
    %3675 = vmatpush.msra.mxu0 0.0
    %3676 = vmatpush.msra.mxu0 0.0
    %3677 = vmatpush.msra.mxu0 0.0
    %3678 = vmatpush.msra.mxu0 0.0
    %3679 = vmatpush.msra.mxu0 %v2271
    %3680 = vmatpush.msra.mxu0 %v2268
    %3681 = vmatpush.msra.mxu0 %v2265
    %3682 = vmatpush.msra.mxu0 %v2262
    %3683 = vmatmul.f32.gmra.mxu0 %v3484
    %v3684 = vpop.f32.mrf.mxu0
    %v3685 = vadd.f32 0.0, %v3684
    %3686 = vdwg.mxu0
    %v3687 = vadd.f32 %v2153, %v3645
    %v3688 = vmul.f32 %v3687, 0.5
    %v3689 = vtanh.pop %v3688
    %v3690 = vadd.f32 %v3689, 1.0
    %v3691 = vmul.f32 %v3690, 0.5
    %v3692 = vadd.f32 %v2194, %v3665
    %v3693 = vmul.f32 %v3692, 0.5
    %v3694 = vtanh.pop %v3693
    %v3695 = vadd.f32 %v3694, 1.0
    %v3696 = vmul.f32 %v3695, 0.5
    %v3697 = vadd.f32 %v3685, %v2252
    %v3698 = vmul.f32 %v3691, %v3697
    %v3699 = vadd.f32 %v2235, %v3698
    %v3700 = vtanh.pop %v3699
    %v3701 = vsub.f32 1.0, %v3696
    %v3702 = vmul.f32 %v3701, %v3700
    %v3703 = vmul.f32 %v3696, %v3482
    %v3704 = vadd.f32 %v3702, %v3703
    %v3706 = vsel %vm81, %v3704, 0
    %3708 = vmatpush.msra.mxu0 0.0
    %3709 = vmatpush.msra.mxu0 0.0
    %3710 = vmatpush.msra.mxu0 0.0
    %3711 = vmatpush.msra.mxu0 0.0
    %3712 = vmatpush.msra.mxu0 0.0
    %3713 = vmatpush.msra.mxu0 0.0
    %3714 = vmatpush.msra.mxu0 0.0
    %3715 = vmatpush.msra.mxu0 0.0
    %3716 = vmatpush.msra.mxu0 0.0
    %3717 = vmatpush.msra.mxu0 0.0
    %3718 = vmatpush.msra.mxu0 0.0
    %3719 = vmatpush.msra.mxu0 0.0
    %3720 = vmatpush.msra.mxu0 %v2360
    %3721 = vmatpush.msra.mxu0 %v2357
    %3722 = vmatpush.msra.mxu0 %v2354
    %3723 = vmatpush.msra.mxu0 %v2351
    %3724 = vmatmul.f32.gmra.mxu0 %v3706
    %v3725 = vpop.f32.mrf.mxu0
    %v3726 = vadd.f32 %v2243, %v3725
    %3727 = vdwg.mxu0
    %3728 = vmatpush.msra.mxu0 0.0
    %3729 = vmatpush.msra.mxu0 0.0
    %3730 = vmatpush.msra.mxu0 0.0
    %3731 = vmatpush.msra.mxu0 0.0
    %3732 = vmatpush.msra.mxu0 0.0
    %3733 = vmatpush.msra.mxu0 0.0
    %3734 = vmatpush.msra.mxu0 0.0
    %3735 = vmatpush.msra.mxu0 0.0
    %3736 = vmatpush.msra.mxu0 0.0
    %3737 = vmatpush.msra.mxu0 0.0
    %3738 = vmatpush.msra.mxu0 0.0
    %3739 = vmatpush.msra.mxu0 0.0
    %3740 = vmatpush.msra.mxu0 %v2361
    %3741 = vmatpush.msra.mxu0 %v2358
    %3742 = vmatpush.msra.mxu0 %v2355
    %3743 = vmatpush.msra.mxu0 %v2352
    %3744 = vmatmul.f32.gmra.mxu0 %v3706
    %v3745 = vpop.f32.mrf.mxu0
    %v3746 = vadd.f32 %v2244, %v3745
    %3747 = vdwg.mxu0
    %3748 = vmatpush.msra.mxu0 0.0
    %3749 = vmatpush.msra.mxu0 0.0
    %3750 = vmatpush.msra.mxu0 0.0
    %3751 = vmatpush.msra.mxu0 0.0
    %3752 = vmatpush.msra.mxu0 0.0
    %3753 = vmatpush.msra.mxu0 0.0
    %3754 = vmatpush.msra.mxu0 0.0
    %3755 = vmatpush.msra.mxu0 0.0
    %3756 = vmatpush.msra.mxu0 0.0
    %3757 = vmatpush.msra.mxu0 0.0
    %3758 = vmatpush.msra.mxu0 0.0
    %3759 = vmatpush.msra.mxu0 0.0
    %3760 = vmatpush.msra.mxu0 %v2362
    %3761 = vmatpush.msra.mxu0 %v2359
    %3762 = vmatpush.msra.mxu0 %v2356
    %3763 = vmatpush.msra.mxu0 %v2353
    %3764 = vmatmul.f32.gmra.mxu0 %v3706
    %v3765 = vpop.f32.mrf.mxu0
    %v3766 = vadd.f32 %v2245, %v3765
    %3767 = vdwg.mxu0
    %v3769 = vsel %vm81, %v3626, 0
    %3771 = vmatpush.msra.mxu0 0.0
    %3772 = vmatpush.msra.mxu0 0.0
    %3773 = vmatpush.msra.mxu0 0.0
    %3774 = vmatpush.msra.mxu0 0.0
    %3775 = vmatpush.msra.mxu0 0.0
    %3776 = vmatpush.msra.mxu0 0.0
    %3777 = vmatpush.msra.mxu0 0.0
    %3778 = vmatpush.msra.mxu0 0.0
    %3779 = vmatpush.msra.mxu0 0.0
    %3780 = vmatpush.msra.mxu0 0.0
    %3781 = vmatpush.msra.mxu0 0.0
    %3782 = vmatpush.msra.mxu0 0.0
    %3783 = vmatpush.msra.mxu0 %v2436
    %3784 = vmatpush.msra.mxu0 %v2433
    %3785 = vmatpush.msra.mxu0 %v2430
    %3786 = vmatpush.msra.mxu0 %v2427
    %3787 = vmatmul.f32.gmra.mxu0 %v3769
    %v3788 = vpop.f32.mrf.mxu0
    %v3789 = vadd.f32 0.0, %v3788
    %3790 = vdwg.mxu0
    %3791 = vmatpush.msra.mxu0 0.0
    %3792 = vmatpush.msra.mxu0 0.0
    %3793 = vmatpush.msra.mxu0 0.0
    %3794 = vmatpush.msra.mxu0 0.0
    %3795 = vmatpush.msra.mxu0 0.0
    %3796 = vmatpush.msra.mxu0 0.0
    %3797 = vmatpush.msra.mxu0 0.0
    %3798 = vmatpush.msra.mxu0 0.0
    %3799 = vmatpush.msra.mxu0 0.0
    %3800 = vmatpush.msra.mxu0 0.0
    %3801 = vmatpush.msra.mxu0 0.0
    %3802 = vmatpush.msra.mxu0 0.0
    %3803 = vmatpush.msra.mxu0 %v2437
    %3804 = vmatpush.msra.mxu0 %v2434
    %3805 = vmatpush.msra.mxu0 %v2431
    %3806 = vmatpush.msra.mxu0 %v2428
    %3807 = vmatmul.f32.gmra.mxu0 %v3769
    %v3808 = vpop.f32.mrf.mxu0
    %v3809 = vadd.f32 0.0, %v3808
    %3810 = vdwg.mxu0
    %3811 = vmatpush.msra.mxu0 0.0
    %3812 = vmatpush.msra.mxu0 0.0
    %3813 = vmatpush.msra.mxu0 0.0
    %3814 = vmatpush.msra.mxu0 0.0
    %3815 = vmatpush.msra.mxu0 0.0
    %3816 = vmatpush.msra.mxu0 0.0
    %3817 = vmatpush.msra.mxu0 0.0
    %3818 = vmatpush.msra.mxu0 0.0
    %3819 = vmatpush.msra.mxu0 0.0
    %3820 = vmatpush.msra.mxu0 0.0
    %3821 = vmatpush.msra.mxu0 0.0
    %3822 = vmatpush.msra.mxu0 0.0
    %3823 = vmatpush.msra.mxu0 %v2438
    %3824 = vmatpush.msra.mxu0 %v2435
    %3825 = vmatpush.msra.mxu0 %v2432
    %3826 = vmatpush.msra.mxu0 %v2429
    %3827 = vmatmul.f32.gmra.mxu0 %v3769
    %v3828 = vpop.f32.mrf.mxu0
    %v3829 = vadd.f32 0.0, %v3828
    %3830 = vdwg.mxu0
    %v3831 = vadd.f32 %v3726, %v3789
    %v3832 = vmul.f32 %v3831, 0.5
    %v3833 = vtanh.pop %v3832
    %v3834 = vadd.f32 %v3833, 1.0
    %v3835 = vmul.f32 %v3834, 0.5
    %v3836 = vadd.f32 %v3746, %v3809
    %v3837 = vmul.f32 %v3836, 0.5
    %v3838 = vtanh.pop %v3837
    %v3839 = vadd.f32 %v3838, 1.0
    %v3840 = vmul.f32 %v3839, 0.5
    %v3841 = vadd.f32 %v3829, %v2257
    %v3842 = vmul.f32 %v3835, %v3841
    %v3843 = vadd.f32 %v3766, %v3842
    %v3844 = vtanh.pop %v3843
    %v3845 = vsub.f32 1.0, %v3840
    %v3846 = vmul.f32 %v3845, %v3844
    %v3847 = vmul.f32 %v3840, %v3626
    %v3848 = vadd.f32 %v3846, %v3847
    %3849 = vmatpush.msra.mxu0 0.0
    %3850 = vmatpush.msra.mxu0 0.0
    %3851 = vmatpush.msra.mxu0 0.0
    %3852 = vmatpush.msra.mxu0 0.0
    %3853 = vmatpush.msra.mxu0 0.0
    %3854 = vmatpush.msra.mxu0 0.0
    %3855 = vmatpush.msra.mxu0 0.0
    %3856 = vmatpush.msra.mxu0 0.0
    %3857 = vmatpush.msra.mxu0 0.0
    %3858 = vmatpush.msra.mxu0 0.0
    %3859 = vmatpush.msra.mxu0 0.0
    %3860 = vmatpush.msra.mxu0 0.0
    %3861 = vmatpush.msra.mxu0 %v2269
    %3862 = vmatpush.msra.mxu0 %v2266
    %3863 = vmatpush.msra.mxu0 %v2263
    %3864 = vmatpush.msra.mxu0 %v2260
    %3865 = vmatmul.f32.gmra.mxu0 %v3706
    %v3866 = vpop.f32.mrf.mxu0
    %v3867 = vadd.f32 0.0, %v3866
    %3868 = vdwg.mxu0
    %3869 = vmatpush.msra.mxu0 0.0
    %3870 = vmatpush.msra.mxu0 0.0
    %3871 = vmatpush.msra.mxu0 0.0
    %3872 = vmatpush.msra.mxu0 0.0
    %3873 = vmatpush.msra.mxu0 0.0
    %3874 = vmatpush.msra.mxu0 0.0
    %3875 = vmatpush.msra.mxu0 0.0
    %3876 = vmatpush.msra.mxu0 0.0
    %3877 = vmatpush.msra.mxu0 0.0
    %3878 = vmatpush.msra.mxu0 0.0
    %3879 = vmatpush.msra.mxu0 0.0
    %3880 = vmatpush.msra.mxu0 0.0
    %3881 = vmatpush.msra.mxu0 %v2270
    %3882 = vmatpush.msra.mxu0 %v2267
    %3883 = vmatpush.msra.mxu0 %v2264
    %3884 = vmatpush.msra.mxu0 %v2261
    %3885 = vmatmul.f32.gmra.mxu0 %v3706
    %v3886 = vpop.f32.mrf.mxu0
    %v3887 = vadd.f32 0.0, %v3886
    %3888 = vdwg.mxu0
    %3889 = vmatpush.msra.mxu0 0.0
    %3890 = vmatpush.msra.mxu0 0.0
    %3891 = vmatpush.msra.mxu0 0.0
    %3892 = vmatpush.msra.mxu0 0.0
    %3893 = vmatpush.msra.mxu0 0.0
    %3894 = vmatpush.msra.mxu0 0.0
    %3895 = vmatpush.msra.mxu0 0.0
    %3896 = vmatpush.msra.mxu0 0.0
    %3897 = vmatpush.msra.mxu0 0.0
    %3898 = vmatpush.msra.mxu0 0.0
    %3899 = vmatpush.msra.mxu0 0.0
    %3900 = vmatpush.msra.mxu0 0.0
    %3901 = vmatpush.msra.mxu0 %v2271
    %3902 = vmatpush.msra.mxu0 %v2268
    %3903 = vmatpush.msra.mxu0 %v2265
    %3904 = vmatpush.msra.mxu0 %v2262
    %3905 = vmatmul.f32.gmra.mxu0 %v3706
    %v3906 = vpop.f32.mrf.mxu0
    %v3907 = vadd.f32 0.0, %v3906
    %3908 = vdwg.mxu0
    %v3909 = vadd.f32 %v2156, %v3867
    %v3910 = vmul.f32 %v3909, 0.5
    %v3911 = vtanh.pop %v3910
    %v3912 = vadd.f32 %v3911, 1.0
    %v3913 = vmul.f32 %v3912, 0.5
    %v3914 = vadd.f32 %v2197, %v3887
    %v3915 = vmul.f32 %v3914, 0.5
    %v3916 = vtanh.pop %v3915
    %v3917 = vadd.f32 %v3916, 1.0
    %v3918 = vmul.f32 %v3917, 0.5
    %v3919 = vadd.f32 %v3907, %v2252
    %v3920 = vmul.f32 %v3913, %v3919
    %v3921 = vadd.f32 %v2238, %v3920
    %v3922 = vtanh.pop %v3921
    %v3923 = vsub.f32 1.0, %v3918
    %v3924 = vmul.f32 %v3923, %v3922
    %v3925 = vmul.f32 %v3918, %v3704
    %v3926 = vadd.f32 %v3924, %v3925
    %v3928 = vsel %vm81, %v3926, 0
    %3930 = vmatpush.msra.mxu0 0.0
    %3931 = vmatpush.msra.mxu0 0.0
    %3932 = vmatpush.msra.mxu0 0.0
    %3933 = vmatpush.msra.mxu0 0.0
    %3934 = vmatpush.msra.mxu0 0.0
    %3935 = vmatpush.msra.mxu0 0.0
    %3936 = vmatpush.msra.mxu0 0.0
    %3937 = vmatpush.msra.mxu0 0.0
    %3938 = vmatpush.msra.mxu0 0.0
    %3939 = vmatpush.msra.mxu0 0.0
    %3940 = vmatpush.msra.mxu0 0.0
    %3941 = vmatpush.msra.mxu0 0.0
    %3942 = vmatpush.msra.mxu0 %v2360
    %3943 = vmatpush.msra.mxu0 %v2357
    %3944 = vmatpush.msra.mxu0 %v2354
    %3945 = vmatpush.msra.mxu0 %v2351
    %3946 = vmatmul.f32.gmra.mxu0 %v3928
    %v3947 = vpop.f32.mrf.mxu0
    %v3948 = vadd.f32 %v2243, %v3947
    %3949 = vdwg.mxu0
    %3950 = vmatpush.msra.mxu0 0.0
    %3951 = vmatpush.msra.mxu0 0.0
    %3952 = vmatpush.msra.mxu0 0.0
    %3953 = vmatpush.msra.mxu0 0.0
    %3954 = vmatpush.msra.mxu0 0.0
    %3955 = vmatpush.msra.mxu0 0.0
    %3956 = vmatpush.msra.mxu0 0.0
    %3957 = vmatpush.msra.mxu0 0.0
    %3958 = vmatpush.msra.mxu0 0.0
    %3959 = vmatpush.msra.mxu0 0.0
    %3960 = vmatpush.msra.mxu0 0.0
    %3961 = vmatpush.msra.mxu0 0.0
    %3962 = vmatpush.msra.mxu0 %v2361
    %3963 = vmatpush.msra.mxu0 %v2358
    %3964 = vmatpush.msra.mxu0 %v2355
    %3965 = vmatpush.msra.mxu0 %v2352
    %3966 = vmatmul.f32.gmra.mxu0 %v3928
    %v3967 = vpop.f32.mrf.mxu0
    %v3968 = vadd.f32 %v2244, %v3967
    %3969 = vdwg.mxu0
    %3970 = vmatpush.msra.mxu0 0.0
    %3971 = vmatpush.msra.mxu0 0.0
    %3972 = vmatpush.msra.mxu0 0.0
    %3973 = vmatpush.msra.mxu0 0.0
    %3974 = vmatpush.msra.mxu0 0.0
    %3975 = vmatpush.msra.mxu0 0.0
    %3976 = vmatpush.msra.mxu0 0.0
    %3977 = vmatpush.msra.mxu0 0.0
    %3978 = vmatpush.msra.mxu0 0.0
    %3979 = vmatpush.msra.mxu0 0.0
    %3980 = vmatpush.msra.mxu0 0.0
    %3981 = vmatpush.msra.mxu0 0.0
    %3982 = vmatpush.msra.mxu0 %v2362
    %3983 = vmatpush.msra.mxu0 %v2359
    %3984 = vmatpush.msra.mxu0 %v2356
    %3985 = vmatpush.msra.mxu0 %v2353
    %3986 = vmatmul.f32.gmra.mxu0 %v3928
    %v3987 = vpop.f32.mrf.mxu0
    %v3988 = vadd.f32 %v2245, %v3987
    %3989 = vdwg.mxu0
    %v3991 = vsel %vm81, %v3848, 0
    %3993 = vmatpush.msra.mxu0 0.0
    %3994 = vmatpush.msra.mxu0 0.0
    %3995 = vmatpush.msra.mxu0 0.0
    %3996 = vmatpush.msra.mxu0 0.0
    %3997 = vmatpush.msra.mxu0 0.0
    %3998 = vmatpush.msra.mxu0 0.0
    %3999 = vmatpush.msra.mxu0 0.0
    %4000 = vmatpush.msra.mxu0 0.0
    %4001 = vmatpush.msra.mxu0 0.0
    %4002 = vmatpush.msra.mxu0 0.0
    %4003 = vmatpush.msra.mxu0 0.0
    %4004 = vmatpush.msra.mxu0 0.0
    %4005 = vmatpush.msra.mxu0 %v2436
    %4006 = vmatpush.msra.mxu0 %v2433
    %4007 = vmatpush.msra.mxu0 %v2430
    %4008 = vmatpush.msra.mxu0 %v2427
    %4009 = vmatmul.f32.gmra.mxu0 %v3991
    %v4010 = vpop.f32.mrf.mxu0
    %v4011 = vadd.f32 0.0, %v4010
    %4012 = vdwg.mxu0
    %4013 = vmatpush.msra.mxu0 0.0
    %4014 = vmatpush.msra.mxu0 0.0
    %4015 = vmatpush.msra.mxu0 0.0
    %4016 = vmatpush.msra.mxu0 0.0
    %4017 = vmatpush.msra.mxu0 0.0
    %4018 = vmatpush.msra.mxu0 0.0
    %4019 = vmatpush.msra.mxu0 0.0
    %4020 = vmatpush.msra.mxu0 0.0
    %4021 = vmatpush.msra.mxu0 0.0
    %4022 = vmatpush.msra.mxu0 0.0
    %4023 = vmatpush.msra.mxu0 0.0
    %4024 = vmatpush.msra.mxu0 0.0
    %4025 = vmatpush.msra.mxu0 %v2437
    %4026 = vmatpush.msra.mxu0 %v2434
    %4027 = vmatpush.msra.mxu0 %v2431
    %4028 = vmatpush.msra.mxu0 %v2428
    %4029 = vmatmul.f32.gmra.mxu0 %v3991
    %v4030 = vpop.f32.mrf.mxu0
    %v4031 = vadd.f32 0.0, %v4030
    %4032 = vdwg.mxu0
    %4033 = vmatpush.msra.mxu0 0.0
    %4034 = vmatpush.msra.mxu0 0.0
    %4035 = vmatpush.msra.mxu0 0.0
    %4036 = vmatpush.msra.mxu0 0.0
    %4037 = vmatpush.msra.mxu0 0.0
    %4038 = vmatpush.msra.mxu0 0.0
    %4039 = vmatpush.msra.mxu0 0.0
    %4040 = vmatpush.msra.mxu0 0.0
    %4041 = vmatpush.msra.mxu0 0.0
    %4042 = vmatpush.msra.mxu0 0.0
    %4043 = vmatpush.msra.mxu0 0.0
    %4044 = vmatpush.msra.mxu0 0.0
    %4045 = vmatpush.msra.mxu0 %v2438
    %4046 = vmatpush.msra.mxu0 %v2435
    %4047 = vmatpush.msra.mxu0 %v2432
    %4048 = vmatpush.msra.mxu0 %v2429
    %4049 = vmatmul.f32.gmra.mxu0 %v3991
    %v4050 = vpop.f32.mrf.mxu0
    %v4051 = vadd.f32 0.0, %v4050
    %4052 = vdwg.mxu0
    %v4053 = vadd.f32 %v3948, %v4011
    %v4054 = vmul.f32 %v4053, 0.5
    %v4055 = vtanh.pop %v4054
    %v4056 = vadd.f32 %v4055, 1.0
    %v4057 = vmul.f32 %v4056, 0.5
    %v4058 = vadd.f32 %v3968, %v4031
    %v4059 = vmul.f32 %v4058, 0.5
    %v4060 = vtanh.pop %v4059
    %v4061 = vadd.f32 %v4060, 1.0
    %v4062 = vmul.f32 %v4061, 0.5
    %v4063 = vadd.f32 %v4051, %v2257
    %v4064 = vmul.f32 %v4057, %v4063
    %v4065 = vadd.f32 %v3988, %v4064
    %v4066 = vtanh.pop %v4065
    %v4067 = vsub.f32 1.0, %v4062
    %v4068 = vmul.f32 %v4067, %v4066
    %v4069 = vmul.f32 %v4062, %v3848
    %v4070 = vadd.f32 %v4068, %v4069
    %s4071 = scalar_lea.vmem [#allocation7], 8
    %4072 = vst [vmem:[%s4071] sm:$0xff] %v4070
    // Predicated region
    $region30: #{_fused_forward.1} parent=1 // pred_check
      _
    $region31: #{_fused_forward.1} parent=1 // pred_check_branch
      %4074 = sbr.rel (0) target = $region33
    $region32: #{_fused_forward.1} parent=1 // pred_region
      %4076 = vsyncadd [#allocation4], 0
      %s4077 = sshll.u32 [#allocation7], 4
      %s4078 = int_to_ptr.vmem [resolvable:$true] %s4077
      %s4079 = sshll.u32 %s5, 4
      %s4080 = int_to_ptr.hbm [resolvable:$true] %s4079
      %4085 = dma.vmem_to_hbm [thread:$0]  %s4078, 256, %s4080, [#allocation4], 128, 128, 8
    $region33: #{_fused_forward.1} parent=1 // pred_fallthru
      _
    // Predicated region
    $region34: #{_fused_forward.1} parent=1 // pred_check
      _
    $region35: #{_fused_forward.1} parent=1 // pred_check_branch
      %4087 = sbr.rel (0) target = $region37
    $region36: #{_fused_forward.1} parent=1 // pred_region
      %4089 = dma.done [#allocation4], 256
    $region37: #{_fused_forward.1} parent=1 // pred_fallthru
      _
    %4090 = vsyncpa [#allocation3], 1
    %4091 = vsyncpa [#allocation6], 1
    %4092 = vsyncpa [#allocation4], 1

</llo_original>
